<compile_context>
chip_gen: v6e
topology: v6e:2x2x1
jax: 0.10.0
libtpu: 0.0.40
codegen_flags: <defaults>
</compile_context>

<pallas_src>
from functools import partial

import jax
import jax.numpy as jnp
from jax import lax
from jax.experimental import pallas as pl
from jax.experimental.pallas import tpu as pltpu


# ------------------------------ fused kernel -------------------------------- #

def _double_conv_kernel(x_ref, w1_ref, w2_ref, prm_ref, o_ref,
                        pad1_ref, pad2_ref, *,
                        N, H, W, Cin, Cout, k, s, p, eps):
    """conv1 + bias + BN1(train) + ReLU + conv2 + bias + BN2(train) + ReLU.

    x_ref   : (N, H, W, Cin)          NHWC input
    w1_ref  : (k*k*Cin, Cout)         packed HWIO weights, conv1
    w2_ref  : (k*k*Cout, Cout)        packed HWIO weights, conv2
    prm_ref : (6, Cout)               rows = [b1, g1, be1, b2, g2, be2]
    o_ref   : (N*H2*W2, Cout)         flattened NHWC output (wrapper reshapes)
    pad1_ref: (N, H+2p, W+2p, Cin)    VMEM scratch (zero-padded conv1 input)
    pad2_ref: (N, H1+2p, W1+2p, Cout) VMEM scratch (zero-padded conv2 input)
    """
    H1 = (H + 2 * p - k) // s + 1
    W1 = (W + 2 * p - k) // s + 1
    H2 = (H1 + 2 * p - k) // s + 1
    W2 = (W1 + 2 * p - k) // s + 1
    M1 = N * H1 * W1
    M2 = N * H2 * W2

    def im2col(xp, Ho, Wo, C):
        # k*k statically-shifted windows concatenated on the lane axis ->
        # a single (M, k*k*C) patch matrix -> ONE MXU dot per conv.
        cols = []
        for kh in range(k):
            for kw in range(k):
                cols.append(xp[:, kh:kh + (Ho - 1) * s + 1:s,
                                  kw:kw + (Wo - 1) * s + 1:s, :])
        return jnp.concatenate(cols, axis=-1).reshape(N * Ho * Wo, k * k * C)

    def bn_relu(y, gamma, beta, M, C):
        # Batch mean / biased variance via a ones-matmul on the MXU
        # (sum and sum(x^2) in one contraction; 8 identical LHS rows keep the
        # matmul on a standard sublane tile, we read row 0).
        ones = jnp.ones((8, M), jnp.float32)
        stats = jnp.dot(ones, jnp.concatenate([y, y * y], axis=1),
                        preferred_element_type=jnp.float32)[0:1, :]   # (1, 2C)
        inv_m = 1.0 / M
        mean = stats[:, :C] * inv_m
        var = jnp.maximum(stats[:, C:] * inv_m - mean * mean, 0.0)    # clamp >= 0
        scale = gamma * lax.rsqrt(var + eps)                          # EUP rsqrt
        shift = beta - mean * scale
        return jnp.maximum(y * scale + shift, 0.0)                    # one FMA + ReLU

    # Per-channel parameters (static row slices of the packed (6, Cout) operand).
    b1, g1, be1 = prm_ref[0:1, :], prm_ref[1:2, :], prm_ref[2:3, :]
    b2, g2, be2 = prm_ref[3:4, :], prm_ref[4:5, :], prm_ref[5:6, :]

    # ------------------------------- conv1 -------------------------------- #
    pad1_ref[...] = jnp.zeros(pad1_ref.shape, jnp.float32)
    pad1_ref[:, p:p + H, p:p + W, :] = x_ref[...]
    y = jnp.dot(im2col(pad1_ref[...], H1, W1, Cin), w1_ref[...],
                preferred_element_type=jnp.float32) + b1
    y = bn_relu(y, g1, be1, M1, Cout)

    # ------------------------------- conv2 -------------------------------- #
    pad2_ref[...] = jnp.zeros(pad2_ref.shape, jnp.float32)
    pad2_ref[:, p:p + H1, p:p + W1, :] = y.reshape(N, H1, W1, Cout)
    z = jnp.dot(im2col(pad2_ref[...], H2, W2, Cout), w2_ref[...],
                preferred_element_type=jnp.float32) + b2
    z = bn_relu(z, g2, be2, M2, Cout)

    o_ref[...] = z


# --------------------------------- wrapper ----------------------------------- #

@partial(jax.jit, static_argnames=("stride", "pad"))
def double_conv_block(x_nchw, w1, b1, g1, be1, w2, b2, g2, be2, *,
                      stride, pad, eps=1e-5):
    """Equivalent of DoubleConvBlock.forward. Input/output are NCHW like PyTorch."""
    N, Cin, H, W = x_nchw.shape
    Cout, _, k, _ = w1.shape
    s, p = stride, pad
    H1 = (H + 2 * p - k) // s + 1
    W1 = (W + 2 * p - k) // s + 1
    H2 = (H1 + 2 * p - k) // s + 1
    W2 = (W1 + 2 * p - k) // s + 1

    x = jnp.transpose(x_nchw, (0, 2, 3, 1))                            # NCHW -> NHWC
    w1p = jnp.transpose(w1, (2, 3, 1, 0)).reshape(k * k * Cin, Cout)   # OIHW -> (kh,kw,i,o)
    w2p = jnp.transpose(w2, (2, 3, 1, 0)).reshape(k * k * Cout, Cout)
    params = jnp.stack([b1, g1, be1, b2, g2, be2], axis=0)             # (6, Cout)

    vmem = pl.BlockSpec(memory_space=pltpu.MemorySpace.VMEM)
    kernel = partial(_double_conv_kernel, N=N, H=H, W=W, Cin=Cin, Cout=Cout,
                     k=k, s=s, p=p, eps=eps)

    out2d = pl.pallas_call(
        kernel,
        out_shape=jax.ShapeDtypeStruct((N * H2 * W2, Cout), jnp.float32),
        in_specs=[vmem] * 4,
        out_specs=vmem,
        scratch_shapes=[
            pltpu.VMEM((N, H + 2 * p, W + 2 * p, Cin), jnp.float32),
            pltpu.VMEM((N, H1 + 2 * p, W1 + 2 * p, Cout), jnp.float32),
        ],
        compiler_params=pltpu.CompilerParams(vmem_limit_bytes=32 * 1024 * 1024),
    )(x, w1p, w2p, params)

    return jnp.transpose(out2d.reshape(N, H2, W2, Cout), (0, 3, 1, 2))  # -> NCHW


# -------------------------------- reference ---------------------------------- #

def _reference(x, w1, b1, g1, be1, w2, b2, g2, be2, stride, pad, eps=1e-5):
    def conv_bn_relu(x, w, b, g, be):
        dn = lax.conv_dimension_numbers(x.shape, w.shape, ("NCHW", "OIHW", "NCHW"))
        y = lax.conv_general_dilated(x, w, (stride, stride),
                                     [(pad, pad), (pad, pad)],
                                     dimension_numbers=dn)
        y = y + b[None, :, None, None]
        mean = y.mean(axis=(0, 2, 3), keepdims=True)
        var = y.var(axis=(0, 2, 3), keepdims=True)   # biased, as BN training mode
        y = (y - mean) / jnp.sqrt(var + eps)
        y = y * g[None, :, None, None] + be[None, :, None, None]
        return jnp.maximum(y, 0.0)

    y = conv_bn_relu(x, w1, b1, g1, be1)
    return conv_bn_relu(y, w2, b2, g2, be2)


# ----------------------------------- main ------------------------------------ #

if __name__ == "__main__":
    # DoubleConvBlock(chin=4, chout=8, k=3, s=1, p=1), x: (2, 4, 16, 16) NCHW
    N, Cin, H, W = 2, 4, 16, 16
    Cout, k, s, p = 8, 3, 1, 1

    keys = jax.random.split(jax.random.PRNGKey(0), 9)
    x   = jax.random.normal(keys[0], (N, Cin, H, W), jnp.float32)
    w1  = 0.1 * jax.random.normal(keys[1], (Cout, Cin, k, k), jnp.float32)
    b1  = 0.1 * jax.random.normal(keys[2], (Cout,), jnp.float32)
    g1  = 1.0 + 0.1 * jax.random.normal(keys[3], (Cout,), jnp.float32)
    be1 = 0.1 * jax.random.normal(keys[4], (Cout,), jnp.float32)
    w2  = 0.1 * jax.random.normal(keys[5], (Cout, Cout, k, k), jnp.float32)
    b2  = 0.1 * jax.random.normal(keys[6], (Cout,), jnp.float32)
    g2  = 1.0 + 0.1 * jax.random.normal(keys[7], (Cout,), jnp.float32)
    be2 = 0.1 * jax.random.normal(keys[8], (Cout,), jnp.float32)

    out = double_conv_block(x, w1, b1, g1, be1, w2, b2, g2, be2,
                            stride=s, pad=p)
    out = jax.block_until_ready(out)
    assert out.shape == (N, Cout, H, W), out.shape

    ref = _reference(x, w1, b1, g1, be1, w2, b2, g2, be2, s, p)
    err = float(jnp.max(jnp.abs(out - ref)))
    assert jnp.allclose(out, ref, atol=2e-4, rtol=2e-4), err

    print("KERNEL_OK")
</pallas_src>

<mosaic_0001>
module attributes {stable_mosaic.version = 11 : i64} {
  func.func @_double_conv_kernel(%arg0: memref<2x16x16x4xf32, #tpu.memory_space<vmem>>, %arg1: memref<36x8xf32, #tpu.memory_space<vmem>>, %arg2: memref<72x8xf32, #tpu.memory_space<vmem>>, %arg3: memref<6x8xf32, #tpu.memory_space<vmem>>, %arg4: memref<512x8xf32, #tpu.memory_space<vmem>>, %arg5: memref<2x18x18x4xf32, #tpu.memory_space<vmem>>, %arg6: memref<2x18x18x8xf32, #tpu.memory_space<vmem>>) attributes {dimension_semantics = [], scalar_prefetch = 0 : i64, scratch_operands = 2 : i64, tpu.core_type = #tpu.core_type<tc>} {
    %c0 = arith.constant 0 : index
    %c0_0 = arith.constant 0 : index
    %0 = vector.load %arg3[%c0, %c0_0] : memref<6x8xf32, #tpu.memory_space<vmem>>, vector<1x8xf32>
    %c1 = arith.constant 1 : index
    %c0_1 = arith.constant 0 : index
    %1 = vector.load %arg3[%c1, %c0_1] : memref<6x8xf32, #tpu.memory_space<vmem>>, vector<1x8xf32>
    %c2 = arith.constant 2 : index
    %c0_2 = arith.constant 0 : index
    %2 = vector.load %arg3[%c2, %c0_2] : memref<6x8xf32, #tpu.memory_space<vmem>>, vector<1x8xf32>
    %c3 = arith.constant 3 : index
    %c0_3 = arith.constant 0 : index
    %3 = vector.load %arg3[%c3, %c0_3] : memref<6x8xf32, #tpu.memory_space<vmem>>, vector<1x8xf32>
    %c4 = arith.constant 4 : index
    %c0_4 = arith.constant 0 : index
    %4 = vector.load %arg3[%c4, %c0_4] : memref<6x8xf32, #tpu.memory_space<vmem>>, vector<1x8xf32>
    %c5 = arith.constant 5 : index
    %c0_5 = arith.constant 0 : index
    %5 = vector.load %arg3[%c5, %c0_5] : memref<6x8xf32, #tpu.memory_space<vmem>>, vector<1x8xf32>
    %cst = arith.constant 0.000000e+00 : f32
    %6 = vector.broadcast %cst : f32 to vector<2x18x18x4xf32>
    %c0_6 = arith.constant 0 : index
    %c0_7 = arith.constant 0 : index
    %c0_8 = arith.constant 0 : index
    %c0_9 = arith.constant 0 : index
    %7 = vector.load %arg5[%c0_6, %c0_7, %c0_8, %c0_9] : memref<2x18x18x4xf32, #tpu.memory_space<vmem>>, vector<2x18x18x4xf32>
    tpu.vector_store %arg5[%c0_6, %c0_7, %c0_8, %c0_9], %6 {strides = array<i32>} : memref<2x18x18x4xf32, #tpu.memory_space<vmem>>, vector<2x18x18x4xf32>,
    %c0_10 = arith.constant 0 : index
    %c0_11 = arith.constant 0 : index
    %c0_12 = arith.constant 0 : index
    %c0_13 = arith.constant 0 : index
    %8 = vector.load %arg0[%c0_10, %c0_11, %c0_12, %c0_13] : memref<2x16x16x4xf32, #tpu.memory_space<vmem>>, vector<2x16x16x4xf32>
    %c0_14 = arith.constant 0 : index
    %c1_15 = arith.constant 1 : index
    %c1_16 = arith.constant 1 : index
    %c0_17 = arith.constant 0 : index
    %9 = vector.load %arg5[%c0_14, %c1_15, %c1_16, %c0_17] : memref<2x18x18x4xf32, #tpu.memory_space<vmem>>, vector<2x16x16x4xf32>
    tpu.vector_store %arg5[%c0_14, %c1_15, %c1_16, %c0_17], %8 {strides = array<i32>} : memref<2x18x18x4xf32, #tpu.memory_space<vmem>>, vector<2x16x16x4xf32>,
    %c0_18 = arith.constant 0 : index
    %c0_19 = arith.constant 0 : index
    %c0_20 = arith.constant 0 : index
    %c0_21 = arith.constant 0 : index
    %10 = vector.load %arg5[%c0_18, %c0_19, %c0_20, %c0_21] : memref<2x18x18x4xf32, #tpu.memory_space<vmem>>, vector<2x18x18x4xf32>
    %11 = vector.extract_strided_slice %10 {offsets = [0, 0, 0, 0], sizes = [2, 16, 16, 4], strides = [1, 1, 1, 1]} : vector<2x18x18x4xf32> to vector<2x16x16x4xf32>
    %12 = vector.extract_strided_slice %10 {offsets = [0, 0, 1, 0], sizes = [2, 16, 16, 4], strides = [1, 1, 1, 1]} : vector<2x18x18x4xf32> to vector<2x16x16x4xf32>
    %13 = vector.extract_strided_slice %10 {offsets = [0, 0, 2, 0], sizes = [2, 16, 16, 4], strides = [1, 1, 1, 1]} : vector<2x18x18x4xf32> to vector<2x16x16x4xf32>
    %14 = vector.extract_strided_slice %10 {offsets = [0, 1, 0, 0], sizes = [2, 16, 16, 4], strides = [1, 1, 1, 1]} : vector<2x18x18x4xf32> to vector<2x16x16x4xf32>
    %15 = vector.extract_strided_slice %10 {offsets = [0, 1, 1, 0], sizes = [2, 16, 16, 4], strides = [1, 1, 1, 1]} : vector<2x18x18x4xf32> to vector<2x16x16x4xf32>
    %16 = vector.extract_strided_slice %10 {offsets = [0, 1, 2, 0], sizes = [2, 16, 16, 4], strides = [1, 1, 1, 1]} : vector<2x18x18x4xf32> to vector<2x16x16x4xf32>
    %17 = vector.extract_strided_slice %10 {offsets = [0, 2, 0, 0], sizes = [2, 16, 16, 4], strides = [1, 1, 1, 1]} : vector<2x18x18x4xf32> to vector<2x16x16x4xf32>
    %18 = vector.extract_strided_slice %10 {offsets = [0, 2, 1, 0], sizes = [2, 16, 16, 4], strides = [1, 1, 1, 1]} : vector<2x18x18x4xf32> to vector<2x16x16x4xf32>
    %19 = vector.extract_strided_slice %10 {offsets = [0, 2, 2, 0], sizes = [2, 16, 16, 4], strides = [1, 1, 1, 1]} : vector<2x18x18x4xf32> to vector<2x16x16x4xf32>
    %20 = tpu.concatenate %11, %12, %13, %14, %15, %16, %17, %18, %19 in 3 : vector<2x16x16x4xf32>, vector<2x16x16x4xf32>, vector<2x16x16x4xf32>, vector<2x16x16x4xf32>, vector<2x16x16x4xf32>, vector<2x16x16x4xf32>, vector<2x16x16x4xf32>, vector<2x16x16x4xf32>, vector<2x16x16x4xf32> -> vector<2x16x16x36xf32>
    %21 = vector.shape_cast %20 : vector<2x16x16x36xf32> to vector<512x36xf32>
    %c0_22 = arith.constant 0 : index
    %c0_23 = arith.constant 0 : index
    %22 = vector.load %arg1[%c0_22, %c0_23] : memref<36x8xf32, #tpu.memory_space<vmem>>, vector<36x8xf32>
    %cst_24 = arith.constant dense<0.000000e+00> : vector<512x8xf32>
    %23 = tpu.matmul %21, %22, %cst_24 {dimension_numbers = #tpu.dot_dimension_numbers<[1], [0], [0], [1], [0, 0, 1, 1], [], []>} : vector<512x36xf32>, vector<36x8xf32>, vector<512x8xf32> -> vector<512x8xf32>
    %24 = vector.broadcast %0 : vector<1x8xf32> to vector<512x8xf32>
    %25 = arith.addf %23, %24 : vector<512x8xf32>
    %cst_25 = arith.constant 1.000000e+00 : f32
    %26 = vector.broadcast %cst_25 : f32 to vector<8x512xf32>
    %27 = arith.mulf %25, %25 : vector<512x8xf32>
    %28 = tpu.concatenate %25, %27 in 1 : vector<512x8xf32>, vector<512x8xf32> -> vector<512x16xf32>
    %cst_26 = arith.constant dense<0.000000e+00> : vector<8x16xf32>
    %29 = tpu.matmul %26, %28, %cst_26 {dimension_numbers = #tpu.dot_dimension_numbers<[1], [0], [0], [1], [0, 0, 1, 1], [], []>} : vector<8x512xf32>, vector<512x16xf32>, vector<8x16xf32> -> vector<8x16xf32>
    %30 = vector.extract_strided_slice %29 {offsets = [0, 0], sizes = [1, 16], strides = [1, 1]} : vector<8x16xf32> to vector<1x16xf32>
    %31 = vector.extract_strided_slice %30 {offsets = [0, 0], sizes = [1, 8], strides = [1, 1]} : vector<1x16xf32> to vector<1x8xf32>
    %cst_27 = arith.constant 0.001953125 : f32
    %32 = vector.broadcast %cst_27 : f32 to vector<1x8xf32>
    %33 = arith.mulf %31, %32 : vector<1x8xf32>
    %34 = vector.extract_strided_slice %30 {offsets = [0, 8], sizes = [1, 8], strides = [1, 1]} : vector<1x16xf32> to vector<1x8xf32>
    %cst_28 = arith.constant 0.001953125 : f32
    %35 = vector.broadcast %cst_28 : f32 to vector<1x8xf32>
    %36 = arith.mulf %34, %35 : vector<1x8xf32>
    %37 = arith.mulf %33, %33 : vector<1x8xf32>
    %38 = arith.subf %36, %37 : vector<1x8xf32>
    %cst_29 = arith.constant 0.000000e+00 : f32
    %39 = vector.broadcast %cst_29 : f32 to vector<1x8xf32>
    %40 = arith.maximumf %38, %39 : vector<1x8xf32>
    %cst_30 = arith.constant 9.99999974E-6 : f32
    %41 = vector.broadcast %cst_30 : f32 to vector<1x8xf32>
    %42 = arith.addf %40, %41 : vector<1x8xf32>
    %43 = math.rsqrt %42 : vector<1x8xf32>
    %44 = arith.mulf %1, %43 : vector<1x8xf32>
    %45 = arith.mulf %33, %44 : vector<1x8xf32>
    %46 = arith.subf %2, %45 : vector<1x8xf32>
    %47 = vector.broadcast %44 : vector<1x8xf32> to vector<512x8xf32>
    %48 = arith.mulf %25, %47 : vector<512x8xf32>
    %49 = vector.broadcast %46 : vector<1x8xf32> to vector<512x8xf32>
    %50 = arith.addf %48, %49 : vector<512x8xf32>
    %cst_31 = arith.constant 0.000000e+00 : f32
    %51 = vector.broadcast %cst_31 : f32 to vector<512x8xf32>
    %52 = arith.maximumf %50, %51 : vector<512x8xf32>
    %cst_32 = arith.constant 0.000000e+00 : f32
    %53 = vector.broadcast %cst_32 : f32 to vector<2x18x18x8xf32>
    %c0_33 = arith.constant 0 : index
    %c0_34 = arith.constant 0 : index
    %c0_35 = arith.constant 0 : index
    %c0_36 = arith.constant 0 : index
    %54 = vector.load %arg6[%c0_33, %c0_34, %c0_35, %c0_36] : memref<2x18x18x8xf32, #tpu.memory_space<vmem>>, vector<2x18x18x8xf32>
    tpu.vector_store %arg6[%c0_33, %c0_34, %c0_35, %c0_36], %53 {strides = array<i32>} : memref<2x18x18x8xf32, #tpu.memory_space<vmem>>, vector<2x18x18x8xf32>,
    %55 = vector.shape_cast %52 : vector<512x8xf32> to vector<2x16x16x8xf32>
    %c0_37 = arith.constant 0 : index
    %c1_38 = arith.constant 1 : index
    %c1_39 = arith.constant 1 : index
    %c0_40 = arith.constant 0 : index
    %56 = vector.load %arg6[%c0_37, %c1_38, %c1_39, %c0_40] : memref<2x18x18x8xf32, #tpu.memory_space<vmem>>, vector<2x16x16x8xf32>
    tpu.vector_store %arg6[%c0_37, %c1_38, %c1_39, %c0_40], %55 {strides = array<i32>} : memref<2x18x18x8xf32, #tpu.memory_space<vmem>>, vector<2x16x16x8xf32>,
    %c0_41 = arith.constant 0 : index
    %c0_42 = arith.constant 0 : index
    %c0_43 = arith.constant 0 : index
    %c0_44 = arith.constant 0 : index
    %57 = vector.load %arg6[%c0_41, %c0_42, %c0_43, %c0_44] : memref<2x18x18x8xf32, #tpu.memory_space<vmem>>, vector<2x18x18x8xf32>
    %58 = vector.extract_strided_slice %57 {offsets = [0, 0, 0, 0], sizes = [2, 16, 16, 8], strides = [1, 1, 1, 1]} : vector<2x18x18x8xf32> to vector<2x16x16x8xf32>
    %59 = vector.extract_strided_slice %57 {offsets = [0, 0, 1, 0], sizes = [2, 16, 16, 8], strides = [1, 1, 1, 1]} : vector<2x18x18x8xf32> to vector<2x16x16x8xf32>
    %60 = vector.extract_strided_slice %57 {offsets = [0, 0, 2, 0], sizes = [2, 16, 16, 8], strides = [1, 1, 1, 1]} : vector<2x18x18x8xf32> to vector<2x16x16x8xf32>
    %61 = vector.extract_strided_slice %57 {offsets = [0, 1, 0, 0], sizes = [2, 16, 16, 8], strides = [1, 1, 1, 1]} : vector<2x18x18x8xf32> to vector<2x16x16x8xf32>
    %62 = vector.extract_strided_slice %57 {offsets = [0, 1, 1, 0], sizes = [2, 16, 16, 8], strides = [1, 1, 1, 1]} : vector<2x18x18x8xf32> to vector<2x16x16x8xf32>
    %63 = vector.extract_strided_slice %57 {offsets = [0, 1, 2, 0], sizes = [2, 16, 16, 8], strides = [1, 1, 1, 1]} : vector<2x18x18x8xf32> to vector<2x16x16x8xf32>
    %64 = vector.extract_strided_slice %57 {offsets = [0, 2, 0, 0], sizes = [2, 16, 16, 8], strides = [1, 1, 1, 1]} : vector<2x18x18x8xf32> to vector<2x16x16x8xf32>
    %65 = vector.extract_strided_slice %57 {offsets = [0, 2, 1, 0], sizes = [2, 16, 16, 8], strides = [1, 1, 1, 1]} : vector<2x18x18x8xf32> to vector<2x16x16x8xf32>
    %66 = vector.extract_strided_slice %57 {offsets = [0, 2, 2, 0], sizes = [2, 16, 16, 8], strides = [1, 1, 1, 1]} : vector<2x18x18x8xf32> to vector<2x16x16x8xf32>
    %67 = tpu.concatenate %58, %59, %60, %61, %62, %63, %64, %65, %66 in 3 : vector<2x16x16x8xf32>, vector<2x16x16x8xf32>, vector<2x16x16x8xf32>, vector<2x16x16x8xf32>, vector<2x16x16x8xf32>, vector<2x16x16x8xf32>, vector<2x16x16x8xf32>, vector<2x16x16x8xf32>, vector<2x16x16x8xf32> -> vector<2x16x16x72xf32>
    %68 = vector.shape_cast %67 : vector<2x16x16x72xf32> to vector<512x72xf32>
    %c0_45 = arith.constant 0 : index
    %c0_46 = arith.constant 0 : index
    %69 = vector.load %arg2[%c0_45, %c0_46] : memref<72x8xf32, #tpu.memory_space<vmem>>, vector<72x8xf32>
    %cst_47 = arith.constant dense<0.000000e+00> : vector<512x8xf32>
    %70 = tpu.matmul %68, %69, %cst_47 {dimension_numbers = #tpu.dot_dimension_numbers<[1], [0], [0], [1], [0, 0, 1, 1], [], []>} : vector<512x72xf32>, vector<72x8xf32>, vector<512x8xf32> -> vector<512x8xf32>
    %71 = vector.broadcast %3 : vector<1x8xf32> to vector<512x8xf32>
    %72 = arith.addf %70, %71 : vector<512x8xf32>
    %cst_48 = arith.constant 1.000000e+00 : f32
    %73 = vector.broadcast %cst_48 : f32 to vector<8x512xf32>
    %74 = arith.mulf %72, %72 : vector<512x8xf32>
    %75 = tpu.concatenate %72, %74 in 1 : vector<512x8xf32>, vector<512x8xf32> -> vector<512x16xf32>
    %cst_49 = arith.constant dense<0.000000e+00> : vector<8x16xf32>
    %76 = tpu.matmul %73, %75, %cst_49 {dimension_numbers = #tpu.dot_dimension_numbers<[1], [0], [0], [1], [0, 0, 1, 1], [], []>} : vector<8x512xf32>, vector<512x16xf32>, vector<8x16xf32> -> vector<8x16xf32>
    %77 = vector.extract_strided_slice %76 {offsets = [0, 0], sizes = [1, 16], strides = [1, 1]} : vector<8x16xf32> to vector<1x16xf32>
    %78 = vector.extract_strided_slice %77 {offsets = [0, 0], sizes = [1, 8], strides = [1, 1]} : vector<1x16xf32> to vector<1x8xf32>
    %cst_50 = arith.constant 0.001953125 : f32
    %79 = vector.broadcast %cst_50 : f32 to vector<1x8xf32>
    %80 = arith.mulf %78, %79 : vector<1x8xf32>
    %81 = vector.extract_strided_slice %77 {offsets = [0, 8], sizes = [1, 8], strides = [1, 1]} : vector<1x16xf32> to vector<1x8xf32>
    %cst_51 = arith.constant 0.001953125 : f32
    %82 = vector.broadcast %cst_51 : f32 to vector<1x8xf32>
    %83 = arith.mulf %81, %82 : vector<1x8xf32>
    %84 = arith.mulf %80, %80 : vector<1x8xf32>
    %85 = arith.subf %83, %84 : vector<1x8xf32>
    %cst_52 = arith.constant 0.000000e+00 : f32
    %86 = vector.broadcast %cst_52 : f32 to vector<1x8xf32>
    %87 = arith.maximumf %85, %86 : vector<1x8xf32>
    %cst_53 = arith.constant 9.99999974E-6 : f32
    %88 = vector.broadcast %cst_53 : f32 to vector<1x8xf32>
    %89 = arith.addf %87, %88 : vector<1x8xf32>
    %90 = math.rsqrt %89 : vector<1x8xf32>
    %91 = arith.mulf %4, %90 : vector<1x8xf32>
    %92 = arith.mulf %80, %91 : vector<1x8xf32>
    %93 = arith.subf %5, %92 : vector<1x8xf32>
    %94 = vector.broadcast %91 : vector<1x8xf32> to vector<512x8xf32>
    %95 = arith.mulf %72, %94 : vector<512x8xf32>
    %96 = vector.broadcast %93 : vector<1x8xf32> to vector<512x8xf32>
    %97 = arith.addf %95, %96 : vector<512x8xf32>
    %cst_54 = arith.constant 0.000000e+00 : f32
    %98 = vector.broadcast %cst_54 : f32 to vector<512x8xf32>
    %99 = arith.maximumf %97, %98 : vector<512x8xf32>
    %c0_55 = arith.constant 0 : index
    %c0_56 = arith.constant 0 : index
    %100 = vector.load %arg4[%c0_55, %c0_56] : memref<512x8xf32, #tpu.memory_space<vmem>>, vector<512x8xf32>
    tpu.vector_store %arg4[%c0_55, %c0_56], %99 {strides = array<i32>} : memref<512x8xf32, #tpu.memory_space<vmem>>, vector<512x8xf32>,
    return
  }
}

</mosaic_0001>

<llo_original>
// kernel: double_conv_block.1
$region0: #{double_conv_block.1}
  #allocation0 [shape = 'u32[]', space=smem, size = 0x4, offset = 0x4, fixed_abs, tag = 'smem constant byte address 0x4 - core index']
  #allocation1 [shape = 'u32[144,128]{1,0:T(1,128)}', space=vmem, size = 0x12000, scoped, tag = 'internal scratch']
  #allocation2 [shape = 'f32[2,18,18,4]{3,2,1,0:T(8,128)}', space=vmem, size = 0x6c000, scoped, tag = 'scratch operand']
  #allocation3 [shape = 'f32[2,18,18,8]{3,2,1,0:T(8,128)}', space=vmem, size = 0x6c000, scoped, tag = 'scratch operand']
  %s0 = inlined_call_operand.vmem [shape: f32[2,16,16,4], index: 0, kind: input, shape index: {}]
  %s1 = inlined_call_operand.vmem [shape: f32[36,8], index: 1, kind: input, shape index: {}]
  %s2 = inlined_call_operand.vmem [shape: f32[72,8], index: 2, kind: input, shape index: {}]
  %s3 = inlined_call_operand.vmem [shape: f32[6,8], index: 3, kind: input, shape index: {}]
  %s4 = inlined_call_operand.vmem [shape: f32[512,8], index: 4, kind: output, shape index: {}]
  %s5 = sld [smem:[#allocation0]]
  $region26: #{double_conv_block.1} parent=0
    _
  %s7 = ssub.s32 1, %s5
  %s8 = scalar_select 0, %s7, %s5
  // Predicated region
  $region2: #{double_conv_block.1} parent=0 // pred_check
    _
  $region3: #{double_conv_block.1} parent=0 // pred_check_branch
    %10 = sbr.rel (0) target = $region5
  $region4: #{double_conv_block.1} parent=0 // pred_region
    _
  $region5: #{double_conv_block.1} parent=0 // pred_fallthru
    _
  // Predicated region
  $region6: #{double_conv_block.1} parent=0 // pred_check
    _
  $region7: #{double_conv_block.1} parent=0 // pred_check_branch
    %12 = sbr.rel (0) target = $region9
  $region8: #{double_conv_block.1} parent=0 // pred_region
    _
  $region9: #{double_conv_block.1} parent=0 // pred_fallthru
    _
  // Predicated region
  $region10: #{double_conv_block.1} parent=0 // pred_check
    _
  $region11: #{double_conv_block.1} parent=0 // pred_check_branch
    %14 = sbr.rel (0) target = $region13
  $region12: #{double_conv_block.1} parent=0 // pred_region
    _
  $region13: #{double_conv_block.1} parent=0 // pred_fallthru
    _
  // Predicated region
  $region14: #{double_conv_block.1} parent=0 // pred_check
    _
  $region15: #{double_conv_block.1} parent=0 // pred_check_branch
    %16 = sbr.rel (0) target = $region17
  $region16: #{double_conv_block.1} parent=0 // pred_region
    _
  $region17: #{double_conv_block.1} parent=0 // pred_fallthru
    _
  %v17 = vld [vmem:[%s3] sm:$0x1]
  %v18 = vld [vmem:[%s3 + $0x1] sm:$0x1]
  %v19 = vld [vmem:[%s3 + $0x2] sm:$0x1]
  %v20 = vld [vmem:[%s3 + $0x3] sm:$0x1]
  %v21 = vld [vmem:[%s3 + $0x4] sm:$0x1]
  %v22 = vld [vmem:[%s3 + $0x5] sm:$0x1]
  %vm23 = vcmask 31744
  %24 = vst.msk [vmem:[#allocation2] sm:$0xff] %vm23, 0.0
  %25 = vst.msk [vmem:[#allocation2 + $0x8] sm:$0xff] %vm23, 0.0
  %vm26 = vcmask 25600
  %27 = vst.msk [vmem:[#allocation2 + $0x10] sm:$0x3] %vm26, 0.0
  %28 = vst.msk [vmem:[#allocation2 + $0x18] sm:$0xff] %vm23, 0.0
  %29 = vst.msk [vmem:[#allocation2 + $0x20] sm:$0xff] %vm23, 0.0
  %30 = vst.msk [vmem:[#allocation2 + $0x28] sm:$0x3] %vm26, 0.0
  %31 = vst.msk [vmem:[#allocation2 + $0x30] sm:$0xff] %vm23, 0.0
  %32 = vst.msk [vmem:[#allocation2 + $0x38] sm:$0xff] %vm23, 0.0
  %33 = vst.msk [vmem:[#allocation2 + $0x40] sm:$0x3] %vm26, 0.0
  %34 = vst.msk [vmem:[#allocation2 + $0x48] sm:$0xff] %vm23, 0.0
  %35 = vst.msk [vmem:[#allocation2 + $0x50] sm:$0xff] %vm23, 0.0
  %36 = vst.msk [vmem:[#allocation2 + $0x58] sm:$0x3] %vm26, 0.0
  %37 = vst.msk [vmem:[#allocation2 + $0x60] sm:$0xff] %vm23, 0.0
  %38 = vst.msk [vmem:[#allocation2 + $0x68] sm:$0xff] %vm23, 0.0
  %39 = vst.msk [vmem:[#allocation2 + $0x70] sm:$0x3] %vm26, 0.0
  %40 = vst.msk [vmem:[#allocation2 + $0x78] sm:$0xff] %vm23, 0.0
  %41 = vst.msk [vmem:[#allocation2 + $0x80] sm:$0xff] %vm23, 0.0
  %42 = vst.msk [vmem:[#allocation2 + $0x88] sm:$0x3] %vm26, 0.0
  %43 = vst.msk [vmem:[#allocation2 + $0x90] sm:$0xff] %vm23, 0.0
  %44 = vst.msk [vmem:[#allocation2 + $0x98] sm:$0xff] %vm23, 0.0
  %45 = vst.msk [vmem:[#allocation2 + $0xa0] sm:$0x3] %vm26, 0.0
  %46 = vst.msk [vmem:[#allocation2 + $0xa8] sm:$0xff] %vm23, 0.0
  %47 = vst.msk [vmem:[#allocation2 + $0xb0] sm:$0xff] %vm23, 0.0
  %48 = vst.msk [vmem:[#allocation2 + $0xb8] sm:$0x3] %vm26, 0.0
  %49 = vst.msk [vmem:[#allocation2 + $0xc0] sm:$0xff] %vm23, 0.0
  %50 = vst.msk [vmem:[#allocation2 + $0xc8] sm:$0xff] %vm23, 0.0
  %51 = vst.msk [vmem:[#allocation2 + $0xd0] sm:$0x3] %vm26, 0.0
  %52 = vst.msk [vmem:[#allocation2 + $0xd8] sm:$0xff] %vm23, 0.0
  %53 = vst.msk [vmem:[#allocation2 + $0xe0] sm:$0xff] %vm23, 0.0
  %54 = vst.msk [vmem:[#allocation2 + $0xe8] sm:$0x3] %vm26, 0.0
  %55 = vst.msk [vmem:[#allocation2 + $0xf0] sm:$0xff] %vm23, 0.0
  %56 = vst.msk [vmem:[#allocation2 + $0xf8] sm:$0xff] %vm23, 0.0
  %57 = vst.msk [vmem:[#allocation2 + $0x100] sm:$0x3] %vm26, 0.0
  %58 = vst.msk [vmem:[#allocation2 + $0x108] sm:$0xff] %vm23, 0.0
  %59 = vst.msk [vmem:[#allocation2 + $0x110] sm:$0xff] %vm23, 0.0
  %60 = vst.msk [vmem:[#allocation2 + $0x118] sm:$0x3] %vm26, 0.0
  %61 = vst.msk [vmem:[#allocation2 + $0x120] sm:$0xff] %vm23, 0.0
  %62 = vst.msk [vmem:[#allocation2 + $0x128] sm:$0xff] %vm23, 0.0
  %63 = vst.msk [vmem:[#allocation2 + $0x130] sm:$0x3] %vm26, 0.0
  %64 = vst.msk [vmem:[#allocation2 + $0x138] sm:$0xff] %vm23, 0.0
  %65 = vst.msk [vmem:[#allocation2 + $0x140] sm:$0xff] %vm23, 0.0
  %66 = vst.msk [vmem:[#allocation2 + $0x148] sm:$0x3] %vm26, 0.0
  %67 = vst.msk [vmem:[#allocation2 + $0x150] sm:$0xff] %vm23, 0.0
  %68 = vst.msk [vmem:[#allocation2 + $0x158] sm:$0xff] %vm23, 0.0
  %69 = vst.msk [vmem:[#allocation2 + $0x160] sm:$0x3] %vm26, 0.0
  %70 = vst.msk [vmem:[#allocation2 + $0x168] sm:$0xff] %vm23, 0.0
  %71 = vst.msk [vmem:[#allocation2 + $0x170] sm:$0xff] %vm23, 0.0
  %72 = vst.msk [vmem:[#allocation2 + $0x178] sm:$0x3] %vm26, 0.0
  %73 = vst.msk [vmem:[#allocation2 + $0x180] sm:$0xff] %vm23, 0.0
  %74 = vst.msk [vmem:[#allocation2 + $0x188] sm:$0xff] %vm23, 0.0
  %75 = vst.msk [vmem:[#allocation2 + $0x190] sm:$0x3] %vm26, 0.0
  %76 = vst.msk [vmem:[#allocation2 + $0x198] sm:$0xff] %vm23, 0.0
  %77 = vst.msk [vmem:[#allocation2 + $0x1a0] sm:$0xff] %vm23, 0.0
  %78 = vst.msk [vmem:[#allocation2 + $0x1a8] sm:$0x3] %vm26, 0.0
  %79 = vst.msk [vmem:[#allocation2 + $0x1b0] sm:$0xff] %vm23, 0.0
  %80 = vst.msk [vmem:[#allocation2 + $0x1b8] sm:$0xff] %vm23, 0.0
  %81 = vst.msk [vmem:[#allocation2 + $0x1c0] sm:$0x3] %vm26, 0.0
  %82 = vst.msk [vmem:[#allocation2 + $0x1c8] sm:$0xff] %vm23, 0.0
  %83 = vst.msk [vmem:[#allocation2 + $0x1d0] sm:$0xff] %vm23, 0.0
  %84 = vst.msk [vmem:[#allocation2 + $0x1d8] sm:$0x3] %vm26, 0.0
  %85 = vst.msk [vmem:[#allocation2 + $0x1e0] sm:$0xff] %vm23, 0.0
  %86 = vst.msk [vmem:[#allocation2 + $0x1e8] sm:$0xff] %vm23, 0.0
  %87 = vst.msk [vmem:[#allocation2 + $0x1f0] sm:$0x3] %vm26, 0.0
  %88 = vst.msk [vmem:[#allocation2 + $0x1f8] sm:$0xff] %vm23, 0.0
  %89 = vst.msk [vmem:[#allocation2 + $0x200] sm:$0xff] %vm23, 0.0
  %90 = vst.msk [vmem:[#allocation2 + $0x208] sm:$0x3] %vm26, 0.0
  %91 = vst.msk [vmem:[#allocation2 + $0x210] sm:$0xff] %vm23, 0.0
  %92 = vst.msk [vmem:[#allocation2 + $0x218] sm:$0xff] %vm23, 0.0
  %93 = vst.msk [vmem:[#allocation2 + $0x220] sm:$0x3] %vm26, 0.0
  %94 = vst.msk [vmem:[#allocation2 + $0x228] sm:$0xff] %vm23, 0.0
  %95 = vst.msk [vmem:[#allocation2 + $0x230] sm:$0xff] %vm23, 0.0
  %96 = vst.msk [vmem:[#allocation2 + $0x238] sm:$0x3] %vm26, 0.0
  %97 = vst.msk [vmem:[#allocation2 + $0x240] sm:$0xff] %vm23, 0.0
  %98 = vst.msk [vmem:[#allocation2 + $0x248] sm:$0xff] %vm23, 0.0
  %99 = vst.msk [vmem:[#allocation2 + $0x250] sm:$0x3] %vm26, 0.0
  %100 = vst.msk [vmem:[#allocation2 + $0x258] sm:$0xff] %vm23, 0.0
  %101 = vst.msk [vmem:[#allocation2 + $0x260] sm:$0xff] %vm23, 0.0
  %102 = vst.msk [vmem:[#allocation2 + $0x268] sm:$0x3] %vm26, 0.0
  %103 = vst.msk [vmem:[#allocation2 + $0x270] sm:$0xff] %vm23, 0.0
  %104 = vst.msk [vmem:[#allocation2 + $0x278] sm:$0xff] %vm23, 0.0
  %105 = vst.msk [vmem:[#allocation2 + $0x280] sm:$0x3] %vm26, 0.0
  %106 = vst.msk [vmem:[#allocation2 + $0x288] sm:$0xff] %vm23, 0.0
  %107 = vst.msk [vmem:[#allocation2 + $0x290] sm:$0xff] %vm23, 0.0
  %108 = vst.msk [vmem:[#allocation2 + $0x298] sm:$0x3] %vm26, 0.0
  %109 = vst.msk [vmem:[#allocation2 + $0x2a0] sm:$0xff] %vm23, 0.0
  %110 = vst.msk [vmem:[#allocation2 + $0x2a8] sm:$0xff] %vm23, 0.0
  %111 = vst.msk [vmem:[#allocation2 + $0x2b0] sm:$0x3] %vm26, 0.0
  %112 = vst.msk [vmem:[#allocation2 + $0x2b8] sm:$0xff] %vm23, 0.0
  %113 = vst.msk [vmem:[#allocation2 + $0x2c0] sm:$0xff] %vm23, 0.0
  %114 = vst.msk [vmem:[#allocation2 + $0x2c8] sm:$0x3] %vm26, 0.0
  %115 = vst.msk [vmem:[#allocation2 + $0x2d0] sm:$0xff] %vm23, 0.0
  %116 = vst.msk [vmem:[#allocation2 + $0x2d8] sm:$0xff] %vm23, 0.0
  %117 = vst.msk [vmem:[#allocation2 + $0x2e0] sm:$0x3] %vm26, 0.0
  %118 = vst.msk [vmem:[#allocation2 + $0x2e8] sm:$0xff] %vm23, 0.0
  %119 = vst.msk [vmem:[#allocation2 + $0x2f0] sm:$0xff] %vm23, 0.0
  %120 = vst.msk [vmem:[#allocation2 + $0x2f8] sm:$0x3] %vm26, 0.0
  %121 = vst.msk [vmem:[#allocation2 + $0x300] sm:$0xff] %vm23, 0.0
  %122 = vst.msk [vmem:[#allocation2 + $0x308] sm:$0xff] %vm23, 0.0
  %123 = vst.msk [vmem:[#allocation2 + $0x310] sm:$0x3] %vm26, 0.0
  %124 = vst.msk [vmem:[#allocation2 + $0x318] sm:$0xff] %vm23, 0.0
  %125 = vst.msk [vmem:[#allocation2 + $0x320] sm:$0xff] %vm23, 0.0
  %126 = vst.msk [vmem:[#allocation2 + $0x328] sm:$0x3] %vm26, 0.0
  %127 = vst.msk [vmem:[#allocation2 + $0x330] sm:$0xff] %vm23, 0.0
  %128 = vst.msk [vmem:[#allocation2 + $0x338] sm:$0xff] %vm23, 0.0
  %129 = vst.msk [vmem:[#allocation2 + $0x340] sm:$0x3] %vm26, 0.0
  %130 = vst.msk [vmem:[#allocation2 + $0x348] sm:$0xff] %vm23, 0.0
  %131 = vst.msk [vmem:[#allocation2 + $0x350] sm:$0xff] %vm23, 0.0
  %132 = vst.msk [vmem:[#allocation2 + $0x358] sm:$0x3] %vm26, 0.0
  %v133 = vld [vmem:[%s0] sm:$0xff]
  %v134 = vld [vmem:[%s0 + $0x8] sm:$0xff]
  %v135 = vld [vmem:[%s0 + $0x10] sm:$0xff]
  %v136 = vld [vmem:[%s0 + $0x18] sm:$0xff]
  %v137 = vld [vmem:[%s0 + $0x20] sm:$0xff]
  %v138 = vld [vmem:[%s0 + $0x28] sm:$0xff]
  %v139 = vld [vmem:[%s0 + $0x30] sm:$0xff]
  %v140 = vld [vmem:[%s0 + $0x38] sm:$0xff]
  %v141 = vld [vmem:[%s0 + $0x40] sm:$0xff]
  %v142 = vld [vmem:[%s0 + $0x48] sm:$0xff]
  %v143 = vld [vmem:[%s0 + $0x50] sm:$0xff]
  %v144 = vld [vmem:[%s0 + $0x58] sm:$0xff]
  %v145 = vld [vmem:[%s0 + $0x60] sm:$0xff]
  %v146 = vld [vmem:[%s0 + $0x68] sm:$0xff]
  %v147 = vld [vmem:[%s0 + $0x70] sm:$0xff]
  %v148 = vld [vmem:[%s0 + $0x78] sm:$0xff]
  %v149 = vld [vmem:[%s0 + $0x80] sm:$0xff]
  %v150 = vld [vmem:[%s0 + $0x88] sm:$0xff]
  %v151 = vld [vmem:[%s0 + $0x90] sm:$0xff]
  %v152 = vld [vmem:[%s0 + $0x98] sm:$0xff]
  %v153 = vld [vmem:[%s0 + $0xa0] sm:$0xff]
  %v154 = vld [vmem:[%s0 + $0xa8] sm:$0xff]
  %v155 = vld [vmem:[%s0 + $0xb0] sm:$0xff]
  %v156 = vld [vmem:[%s0 + $0xb8] sm:$0xff]
  %v157 = vld [vmem:[%s0 + $0xc0] sm:$0xff]
  %v158 = vld [vmem:[%s0 + $0xc8] sm:$0xff]
  %v159 = vld [vmem:[%s0 + $0xd0] sm:$0xff]
  %v160 = vld [vmem:[%s0 + $0xd8] sm:$0xff]
  %v161 = vld [vmem:[%s0 + $0xe0] sm:$0xff]
  %v162 = vld [vmem:[%s0 + $0xe8] sm:$0xff]
  %v163 = vld [vmem:[%s0 + $0xf0] sm:$0xff]
  %v164 = vld [vmem:[%s0 + $0xf8] sm:$0xff]
  %v165 = vld [vmem:[%s0 + $0x100] sm:$0xff]
  %v166 = vld [vmem:[%s0 + $0x108] sm:$0xff]
  %v167 = vld [vmem:[%s0 + $0x110] sm:$0xff]
  %v168 = vld [vmem:[%s0 + $0x118] sm:$0xff]
  %v169 = vld [vmem:[%s0 + $0x120] sm:$0xff]
  %v170 = vld [vmem:[%s0 + $0x128] sm:$0xff]
  %v171 = vld [vmem:[%s0 + $0x130] sm:$0xff]
  %v172 = vld [vmem:[%s0 + $0x138] sm:$0xff]
  %v173 = vld [vmem:[%s0 + $0x140] sm:$0xff]
  %v174 = vld [vmem:[%s0 + $0x148] sm:$0xff]
  %v175 = vld [vmem:[%s0 + $0x150] sm:$0xff]
  %v176 = vld [vmem:[%s0 + $0x158] sm:$0xff]
  %v177 = vld [vmem:[%s0 + $0x160] sm:$0xff]
  %v178 = vld [vmem:[%s0 + $0x168] sm:$0xff]
  %v179 = vld [vmem:[%s0 + $0x170] sm:$0xff]
  %v180 = vld [vmem:[%s0 + $0x178] sm:$0xff]
  %v181 = vld [vmem:[%s0 + $0x180] sm:$0xff]
  %v182 = vld [vmem:[%s0 + $0x188] sm:$0xff]
  %v183 = vld [vmem:[%s0 + $0x190] sm:$0xff]
  %v184 = vld [vmem:[%s0 + $0x198] sm:$0xff]
  %v185 = vld [vmem:[%s0 + $0x1a0] sm:$0xff]
  %v186 = vld [vmem:[%s0 + $0x1a8] sm:$0xff]
  %v187 = vld [vmem:[%s0 + $0x1b0] sm:$0xff]
  %v188 = vld [vmem:[%s0 + $0x1b8] sm:$0xff]
  %v189 = vld [vmem:[%s0 + $0x1c0] sm:$0xff]
  %v190 = vld [vmem:[%s0 + $0x1c8] sm:$0xff]
  %v191 = vld [vmem:[%s0 + $0x1d0] sm:$0xff]
  %v192 = vld [vmem:[%s0 + $0x1d8] sm:$0xff]
  %v193 = vld [vmem:[%s0 + $0x1e0] sm:$0xff]
  %v194 = vld [vmem:[%s0 + $0x1e8] sm:$0xff]
  %v195 = vld [vmem:[%s0 + $0x1f0] sm:$0xff]
  %v196 = vld [vmem:[%s0 + $0x1f8] sm:$0xff]
  %s197 = scalar_lea.vmem [#allocation2], 24
  %198 = vst.msk [vmem:[%s197 + $0x1] sm:$0xff] %vm23, %v133
  %199 = vst.msk [vmem:[%s197 + $0x9] sm:$0xff] %vm23, %v134
  %200 = vst.msk [vmem:[%s197 + $0x19] sm:$0xff] %vm23, %v135
  %201 = vst.msk [vmem:[%s197 + $0x21] sm:$0xff] %vm23, %v136
  %202 = vst.msk [vmem:[%s197 + $0x31] sm:$0xff] %vm23, %v137
  %203 = vst.msk [vmem:[%s197 + $0x39] sm:$0xff] %vm23, %v138
  %204 = vst.msk [vmem:[%s197 + $0x49] sm:$0xff] %vm23, %v139
  %205 = vst.msk [vmem:[%s197 + $0x51] sm:$0xff] %vm23, %v140
  %206 = vst.msk [vmem:[%s197 + $0x61] sm:$0xff] %vm23, %v141
  %207 = vst.msk [vmem:[%s197 + $0x69] sm:$0xff] %vm23, %v142
  %208 = vst.msk [vmem:[%s197 + $0x79] sm:$0xff] %vm23, %v143
  %209 = vst.msk [vmem:[%s197 + $0x81] sm:$0xff] %vm23, %v144
  %210 = vst.msk [vmem:[%s197 + $0x91] sm:$0xff] %vm23, %v145
  %211 = vst.msk [vmem:[%s197 + $0x99] sm:$0xff] %vm23, %v146
  %212 = vst.msk [vmem:[%s197 + $0xa9] sm:$0xff] %vm23, %v147
  %213 = vst.msk [vmem:[%s197 + $0xb1] sm:$0xff] %vm23, %v148
  %214 = vst.msk [vmem:[%s197 + $0xc1] sm:$0xff] %vm23, %v149
  %215 = vst.msk [vmem:[%s197 + $0xc9] sm:$0xff] %vm23, %v150
  %216 = vst.msk [vmem:[%s197 + $0xd9] sm:$0xff] %vm23, %v151
  %217 = vst.msk [vmem:[%s197 + $0xe1] sm:$0xff] %vm23, %v152
  %218 = vst.msk [vmem:[%s197 + $0xf1] sm:$0xff] %vm23, %v153
  %219 = vst.msk [vmem:[%s197 + $0xf9] sm:$0xff] %vm23, %v154
  %220 = vst.msk [vmem:[%s197 + $0x109] sm:$0xff] %vm23, %v155
  %221 = vst.msk [vmem:[%s197 + $0x111] sm:$0xff] %vm23, %v156
  %222 = vst.msk [vmem:[%s197 + $0x121] sm:$0xff] %vm23, %v157
  %223 = vst.msk [vmem:[%s197 + $0x129] sm:$0xff] %vm23, %v158
  %224 = vst.msk [vmem:[%s197 + $0x139] sm:$0xff] %vm23, %v159
  %225 = vst.msk [vmem:[%s197 + $0x141] sm:$0xff] %vm23, %v160
  %226 = vst.msk [vmem:[%s197 + $0x151] sm:$0xff] %vm23, %v161
  %227 = vst.msk [vmem:[%s197 + $0x159] sm:$0xff] %vm23, %v162
  %228 = vst.msk [vmem:[%s197 + $0x169] sm:$0xff] %vm23, %v163
  %229 = vst.msk [vmem:[%s197 + $0x171] sm:$0xff] %vm23, %v164
  %230 = vst.msk [vmem:[%s197 + $0x1b1] sm:$0xff] %vm23, %v165
  %231 = vst.msk [vmem:[%s197 + $0x1b9] sm:$0xff] %vm23, %v166
  %232 = vst.msk [vmem:[%s197 + $0x1c9] sm:$0xff] %vm23, %v167
  %233 = vst.msk [vmem:[%s197 + $0x1d1] sm:$0xff] %vm23, %v168
  %234 = vst.msk [vmem:[%s197 + $0x1e1] sm:$0xff] %vm23, %v169
  %235 = vst.msk [vmem:[%s197 + $0x1e9] sm:$0xff] %vm23, %v170
  %236 = vst.msk [vmem:[%s197 + $0x1f9] sm:$0xff] %vm23, %v171
  %237 = vst.msk [vmem:[%s197 + $0x201] sm:$0xff] %vm23, %v172
  %238 = vst.msk [vmem:[%s197 + $0x211] sm:$0xff] %vm23, %v173
  %239 = vst.msk [vmem:[%s197 + $0x219] sm:$0xff] %vm23, %v174
  %240 = vst.msk [vmem:[%s197 + $0x229] sm:$0xff] %vm23, %v175
  %241 = vst.msk [vmem:[%s197 + $0x231] sm:$0xff] %vm23, %v176
  %242 = vst.msk [vmem:[%s197 + $0x241] sm:$0xff] %vm23, %v177
  %243 = vst.msk [vmem:[%s197 + $0x249] sm:$0xff] %vm23, %v178
  %244 = vst.msk [vmem:[%s197 + $0x259] sm:$0xff] %vm23, %v179
  %245 = vst.msk [vmem:[%s197 + $0x261] sm:$0xff] %vm23, %v180
  %246 = vst.msk [vmem:[%s197 + $0x271] sm:$0xff] %vm23, %v181
  %247 = vst.msk [vmem:[%s197 + $0x279] sm:$0xff] %vm23, %v182
  %248 = vst.msk [vmem:[%s197 + $0x289] sm:$0xff] %vm23, %v183
  %249 = vst.msk [vmem:[%s197 + $0x291] sm:$0xff] %vm23, %v184
  %250 = vst.msk [vmem:[%s197 + $0x2a1] sm:$0xff] %vm23, %v185
  %251 = vst.msk [vmem:[%s197 + $0x2a9] sm:$0xff] %vm23, %v186
  %252 = vst.msk [vmem:[%s197 + $0x2b9] sm:$0xff] %vm23, %v187
  %253 = vst.msk [vmem:[%s197 + $0x2c1] sm:$0xff] %vm23, %v188
  %254 = vst.msk [vmem:[%s197 + $0x2d1] sm:$0xff] %vm23, %v189
  %255 = vst.msk [vmem:[%s197 + $0x2d9] sm:$0xff] %vm23, %v190
  %256 = vst.msk [vmem:[%s197 + $0x2e9] sm:$0xff] %vm23, %v191
  %257 = vst.msk [vmem:[%s197 + $0x2f1] sm:$0xff] %vm23, %v192
  %258 = vst.msk [vmem:[%s197 + $0x301] sm:$0xff] %vm23, %v193
  %259 = vst.msk [vmem:[%s197 + $0x309] sm:$0xff] %vm23, %v194
  %260 = vst.msk [vmem:[%s197 + $0x319] sm:$0xff] %vm23, %v195
  %261 = vst.msk [vmem:[%s197 + $0x321] sm:$0xff] %vm23, %v196
  %v262 = vld [vmem:[#allocation2] sm:$0xff]
  %v263 = vld [vmem:[#allocation2 + $0x8] sm:$0xff]
  %v264 = vld [vmem:[#allocation2 + $0x10] sm:$0x3]
  %v265 = vld [vmem:[#allocation2 + $0x18] sm:$0xff]
  %v266 = vld [vmem:[#allocation2 + $0x20] sm:$0xff]
  %v267 = vld [vmem:[#allocation2 + $0x28] sm:$0x3]
  %v268 = vld [vmem:[#allocation2 + $0x30] sm:$0xff]
  %v269 = vld [vmem:[#allocation2 + $0x38] sm:$0xff]
  %v270 = vld [vmem:[#allocation2 + $0x40] sm:$0x3]
  %v271 = vld [vmem:[#allocation2 + $0x48] sm:$0xff]
  %v272 = vld [vmem:[#allocation2 + $0x50] sm:$0xff]
  %v273 = vld [vmem:[#allocation2 + $0x58] sm:$0x3]
  %v274 = vld [vmem:[#allocation2 + $0x60] sm:$0xff]
  %v275 = vld [vmem:[#allocation2 + $0x68] sm:$0xff]
  %v276 = vld [vmem:[#allocation2 + $0x70] sm:$0x3]
  %v277 = vld [vmem:[#allocation2 + $0x78] sm:$0xff]
  %v278 = vld [vmem:[#allocation2 + $0x80] sm:$0xff]
  %v279 = vld [vmem:[#allocation2 + $0x88] sm:$0x3]
  %v280 = vld [vmem:[#allocation2 + $0x90] sm:$0xff]
  %v281 = vld [vmem:[#allocation2 + $0x98] sm:$0xff]
  %v282 = vld [vmem:[#allocation2 + $0xa0] sm:$0x3]
  %v283 = vld [vmem:[#allocation2 + $0xa8] sm:$0xff]
  %v284 = vld [vmem:[#allocation2 + $0xb0] sm:$0xff]
  %v285 = vld [vmem:[#allocation2 + $0xb8] sm:$0x3]
  %v286 = vld [vmem:[#allocation2 + $0xc0] sm:$0xff]
  %v287 = vld [vmem:[#allocation2 + $0xc8] sm:$0xff]
  %v288 = vld [vmem:[#allocation2 + $0xd0] sm:$0x3]
  %v289 = vld [vmem:[#allocation2 + $0xd8] sm:$0xff]
  %v290 = vld [vmem:[#allocation2 + $0xe0] sm:$0xff]
  %v291 = vld [vmem:[#allocation2 + $0xe8] sm:$0x3]
  %v292 = vld [vmem:[#allocation2 + $0xf0] sm:$0xff]
  %v293 = vld [vmem:[#allocation2 + $0xf8] sm:$0xff]
  %v294 = vld [vmem:[#allocation2 + $0x100] sm:$0x3]
  %v295 = vld [vmem:[#allocation2 + $0x108] sm:$0xff]
  %v296 = vld [vmem:[#allocation2 + $0x110] sm:$0xff]
  %v297 = vld [vmem:[#allocation2 + $0x118] sm:$0x3]
  %v298 = vld [vmem:[#allocation2 + $0x120] sm:$0xff]
  %v299 = vld [vmem:[#allocation2 + $0x128] sm:$0xff]
  %v300 = vld [vmem:[#allocation2 + $0x130] sm:$0x3]
  %v301 = vld [vmem:[#allocation2 + $0x138] sm:$0xff]
  %v302 = vld [vmem:[#allocation2 + $0x140] sm:$0xff]
  %v303 = vld [vmem:[#allocation2 + $0x148] sm:$0x3]
  %v304 = vld [vmem:[#allocation2 + $0x150] sm:$0xff]
  %v305 = vld [vmem:[#allocation2 + $0x158] sm:$0xff]
  %v306 = vld [vmem:[#allocation2 + $0x160] sm:$0x3]
  %v307 = vld [vmem:[#allocation2 + $0x168] sm:$0xff]
  %v308 = vld [vmem:[#allocation2 + $0x170] sm:$0xff]
  %v309 = vld [vmem:[#allocation2 + $0x178] sm:$0x3]
  %v310 = vld [vmem:[#allocation2 + $0x180] sm:$0xff]
  %v311 = vld [vmem:[#allocation2 + $0x188] sm:$0xff]
  %v312 = vld [vmem:[#allocation2 + $0x190] sm:$0x3]
  %v313 = vld [vmem:[#allocation2 + $0x198] sm:$0xff]
  %v314 = vld [vmem:[#allocation2 + $0x1a0] sm:$0xff]
  %v315 = vld [vmem:[#allocation2 + $0x1a8] sm:$0x3]
  %v316 = vld [vmem:[#allocation2 + $0x1b0] sm:$0xff]
  %v317 = vld [vmem:[#allocation2 + $0x1b8] sm:$0xff]
  %v318 = vld [vmem:[#allocation2 + $0x1c0] sm:$0x3]
  %v319 = vld [vmem:[#allocation2 + $0x1c8] sm:$0xff]
  %v320 = vld [vmem:[#allocation2 + $0x1d0] sm:$0xff]
  %v321 = vld [vmem:[#allocation2 + $0x1d8] sm:$0x3]
  %v322 = vld [vmem:[#allocation2 + $0x1e0] sm:$0xff]
  %v323 = vld [vmem:[#allocation2 + $0x1e8] sm:$0xff]
  %v324 = vld [vmem:[#allocation2 + $0x1f0] sm:$0x3]
  %v325 = vld [vmem:[#allocation2 + $0x1f8] sm:$0xff]
  %v326 = vld [vmem:[#allocation2 + $0x200] sm:$0xff]
  %v327 = vld [vmem:[#allocation2 + $0x208] sm:$0x3]
  %v328 = vld [vmem:[#allocation2 + $0x210] sm:$0xff]
  %v329 = vld [vmem:[#allocation2 + $0x218] sm:$0xff]
  %v330 = vld [vmem:[#allocation2 + $0x220] sm:$0x3]
  %v331 = vld [vmem:[#allocation2 + $0x228] sm:$0xff]
  %v332 = vld [vmem:[#allocation2 + $0x230] sm:$0xff]
  %v333 = vld [vmem:[#allocation2 + $0x238] sm:$0x3]
  %v334 = vld [vmem:[#allocation2 + $0x240] sm:$0xff]
  %v335 = vld [vmem:[#allocation2 + $0x248] sm:$0xff]
  %v336 = vld [vmem:[#allocation2 + $0x250] sm:$0x3]
  %v337 = vld [vmem:[#allocation2 + $0x258] sm:$0xff]
  %v338 = vld [vmem:[#allocation2 + $0x260] sm:$0xff]
  %v339 = vld [vmem:[#allocation2 + $0x268] sm:$0x3]
  %v340 = vld [vmem:[#allocation2 + $0x270] sm:$0xff]
  %v341 = vld [vmem:[#allocation2 + $0x278] sm:$0xff]
  %v342 = vld [vmem:[#allocation2 + $0x280] sm:$0x3]
  %v343 = vld [vmem:[#allocation2 + $0x288] sm:$0xff]
  %v344 = vld [vmem:[#allocation2 + $0x290] sm:$0xff]
  %v345 = vld [vmem:[#allocation2 + $0x298] sm:$0x3]
  %v346 = vld [vmem:[#allocation2 + $0x2a0] sm:$0xff]
  %v347 = vld [vmem:[#allocation2 + $0x2a8] sm:$0xff]
  %v348 = vld [vmem:[#allocation2 + $0x2b0] sm:$0x3]
  %v349 = vld [vmem:[#allocation2 + $0x2b8] sm:$0xff]
  %v350 = vld [vmem:[#allocation2 + $0x2c0] sm:$0xff]
  %v351 = vld [vmem:[#allocation2 + $0x2c8] sm:$0x3]
  %v352 = vld [vmem:[#allocation2 + $0x2d0] sm:$0xff]
  %v353 = vld [vmem:[#allocation2 + $0x2d8] sm:$0xff]
  %v354 = vld [vmem:[#allocation2 + $0x2e0] sm:$0x3]
  %v355 = vld [vmem:[#allocation2 + $0x2e8] sm:$0xff]
  %v356 = vld [vmem:[#allocation2 + $0x2f0] sm:$0xff]
  %v357 = vld [vmem:[#allocation2 + $0x2f8] sm:$0x3]
  %v358 = vld [vmem:[#allocation2 + $0x300] sm:$0xff]
  %v359 = vld [vmem:[#allocation2 + $0x308] sm:$0xff]
  %v360 = vld [vmem:[#allocation2 + $0x310] sm:$0x3]
  %v361 = vld [vmem:[#allocation2 + $0x318] sm:$0xff]
  %v362 = vld [vmem:[#allocation2 + $0x320] sm:$0xff]
  %v363 = vld [vmem:[#allocation2 + $0x328] sm:$0x3]
  %v364 = vld [vmem:[#allocation2 + $0x330] sm:$0xff]
  %v365 = vld [vmem:[#allocation2 + $0x338] sm:$0xff]
  %v366 = vld [vmem:[#allocation2 + $0x340] sm:$0x3]
  %v367 = vld [vmem:[#allocation2 + $0x348] sm:$0xff]
  %v368 = vld [vmem:[#allocation2 + $0x350] sm:$0xff]
  %v369 = vld [vmem:[#allocation2 + $0x358] sm:$0x3]
  %vm466 = vcmask 1046528
  %v467 = vrot.slane %v262, 1
  %v468 = vrot.slane %v263, 1
  %v469 = vsel %vm466, %v467, %v468
  %v470 = vrot.slane %v264, 1
  %v471 = vsel %vm466, %v468, %v470
  %v472 = vrot.slane %v265, 1
  %v473 = vrot.slane %v266, 1
  %v474 = vsel %vm466, %v472, %v473
  %v475 = vrot.slane %v267, 1
  %v476 = vsel %vm466, %v473, %v475
  %v477 = vrot.slane %v268, 1
  %v478 = vrot.slane %v269, 1
  %v479 = vsel %vm466, %v477, %v478
  %v480 = vrot.slane %v270, 1
  %v481 = vsel %vm466, %v478, %v480
  %v482 = vrot.slane %v271, 1
  %v483 = vrot.slane %v272, 1
  %v484 = vsel %vm466, %v482, %v483
  %v485 = vrot.slane %v273, 1
  %v486 = vsel %vm466, %v483, %v485
  %v487 = vrot.slane %v274, 1
  %v488 = vrot.slane %v275, 1
  %v489 = vsel %vm466, %v487, %v488
  %v490 = vrot.slane %v276, 1
  %v491 = vsel %vm466, %v488, %v490
  %v492 = vrot.slane %v277, 1
  %v493 = vrot.slane %v278, 1
  %v494 = vsel %vm466, %v492, %v493
  %v495 = vrot.slane %v279, 1
  %v496 = vsel %vm466, %v493, %v495
  %v497 = vrot.slane %v280, 1
  %v498 = vrot.slane %v281, 1
  %v499 = vsel %vm466, %v497, %v498
  %v500 = vrot.slane %v282, 1
  %v501 = vsel %vm466, %v498, %v500
  %v502 = vrot.slane %v283, 1
  %v503 = vrot.slane %v284, 1
  %v504 = vsel %vm466, %v502, %v503
  %v505 = vrot.slane %v285, 1
  %v506 = vsel %vm466, %v503, %v505
  %v507 = vrot.slane %v286, 1
  %v508 = vrot.slane %v287, 1
  %v509 = vsel %vm466, %v507, %v508
  %v510 = vrot.slane %v288, 1
  %v511 = vsel %vm466, %v508, %v510
  %v512 = vrot.slane %v289, 1
  %v513 = vrot.slane %v290, 1
  %v514 = vsel %vm466, %v512, %v513
  %v515 = vrot.slane %v291, 1
  %v516 = vsel %vm466, %v513, %v515
  %v517 = vrot.slane %v292, 1
  %v518 = vrot.slane %v293, 1
  %v519 = vsel %vm466, %v517, %v518
  %v520 = vrot.slane %v294, 1
  %v521 = vsel %vm466, %v518, %v520
  %v522 = vrot.slane %v295, 1
  %v523 = vrot.slane %v296, 1
  %v524 = vsel %vm466, %v522, %v523
  %v525 = vrot.slane %v297, 1
  %v526 = vsel %vm466, %v523, %v525
  %v527 = vrot.slane %v298, 1
  %v528 = vrot.slane %v299, 1
  %v529 = vsel %vm466, %v527, %v528
  %v530 = vrot.slane %v300, 1
  %v531 = vsel %vm466, %v528, %v530
  %v532 = vrot.slane %v301, 1
  %v533 = vrot.slane %v302, 1
  %v534 = vsel %vm466, %v532, %v533
  %v535 = vrot.slane %v303, 1
  %v536 = vsel %vm466, %v533, %v535
  %v537 = vrot.slane %v304, 1
  %v538 = vrot.slane %v305, 1
  %v539 = vsel %vm466, %v537, %v538
  %v540 = vrot.slane %v306, 1
  %v541 = vsel %vm466, %v538, %v540
  %v542 = vrot.slane %v307, 1
  %v543 = vrot.slane %v308, 1
  %v544 = vsel %vm466, %v542, %v543
  %v545 = vrot.slane %v309, 1
  %v546 = vsel %vm466, %v543, %v545
  %v547 = vrot.slane %v316, 1
  %v548 = vrot.slane %v317, 1
  %v549 = vsel %vm466, %v547, %v548
  %v550 = vrot.slane %v318, 1
  %v551 = vsel %vm466, %v548, %v550
  %v552 = vrot.slane %v319, 1
  %v553 = vrot.slane %v320, 1
  %v554 = vsel %vm466, %v552, %v553
  %v555 = vrot.slane %v321, 1
  %v556 = vsel %vm466, %v553, %v555
  %v557 = vrot.slane %v322, 1
  %v558 = vrot.slane %v323, 1
  %v559 = vsel %vm466, %v557, %v558
  %v560 = vrot.slane %v324, 1
  %v561 = vsel %vm466, %v558, %v560
  %v562 = vrot.slane %v325, 1
  %v563 = vrot.slane %v326, 1
  %v564 = vsel %vm466, %v562, %v563
  %v565 = vrot.slane %v327, 1
  %v566 = vsel %vm466, %v563, %v565
  %v567 = vrot.slane %v328, 1
  %v568 = vrot.slane %v329, 1
  %v569 = vsel %vm466, %v567, %v568
  %v570 = vrot.slane %v330, 1
  %v571 = vsel %vm466, %v568, %v570
  %v572 = vrot.slane %v331, 1
  %v573 = vrot.slane %v332, 1
  %v574 = vsel %vm466, %v572, %v573
  %v575 = vrot.slane %v333, 1
  %v576 = vsel %vm466, %v573, %v575
  %v577 = vrot.slane %v334, 1
  %v578 = vrot.slane %v335, 1
  %v579 = vsel %vm466, %v577, %v578
  %v580 = vrot.slane %v336, 1
  %v581 = vsel %vm466, %v578, %v580
  %v582 = vrot.slane %v337, 1
  %v583 = vrot.slane %v338, 1
  %v584 = vsel %vm466, %v582, %v583
  %v585 = vrot.slane %v339, 1
  %v586 = vsel %vm466, %v583, %v585
  %v587 = vrot.slane %v340, 1
  %v588 = vrot.slane %v341, 1
  %v589 = vsel %vm466, %v587, %v588
  %v590 = vrot.slane %v342, 1
  %v591 = vsel %vm466, %v588, %v590
  %v592 = vrot.slane %v343, 1
  %v593 = vrot.slane %v344, 1
  %v594 = vsel %vm466, %v592, %v593
  %v595 = vrot.slane %v345, 1
  %v596 = vsel %vm466, %v593, %v595
  %v597 = vrot.slane %v346, 1
  %v598 = vrot.slane %v347, 1
  %v599 = vsel %vm466, %v597, %v598
  %v600 = vrot.slane %v348, 1
  %v601 = vsel %vm466, %v598, %v600
  %v602 = vrot.slane %v349, 1
  %v603 = vrot.slane %v350, 1
  %v604 = vsel %vm466, %v602, %v603
  %v605 = vrot.slane %v351, 1
  %v606 = vsel %vm466, %v603, %v605
  %v607 = vrot.slane %v352, 1
  %v608 = vrot.slane %v353, 1
  %v609 = vsel %vm466, %v607, %v608
  %v610 = vrot.slane %v354, 1
  %v611 = vsel %vm466, %v608, %v610
  %v612 = vrot.slane %v355, 1
  %v613 = vrot.slane %v356, 1
  %v614 = vsel %vm466, %v612, %v613
  %v615 = vrot.slane %v357, 1
  %v616 = vsel %vm466, %v613, %v615
  %v617 = vrot.slane %v358, 1
  %v618 = vrot.slane %v359, 1
  %v619 = vsel %vm466, %v617, %v618
  %v620 = vrot.slane %v360, 1
  %v621 = vsel %vm466, %v618, %v620
  %v622 = vrot.slane %v361, 1
  %v623 = vrot.slane %v362, 1
  %v624 = vsel %vm466, %v622, %v623
  %v625 = vrot.slane %v363, 1
  %v626 = vsel %vm466, %v623, %v625
  %627 = vrot.lane.b32.xlu0 %v469, 4
  %v628 = vpop.permute.xlu0 %627
  %629 = vrot.lane.b32.xlu0 %v471, 4
  %v630 = vpop.permute.xlu0 %629
  %631 = vrot.lane.b32.xlu0 %v474, 4
  %v632 = vpop.permute.xlu0 %631
  %633 = vrot.lane.b32.xlu0 %v476, 4
  %v634 = vpop.permute.xlu0 %633
  %635 = vrot.lane.b32.xlu0 %v479, 4
  %v636 = vpop.permute.xlu0 %635
  %637 = vrot.lane.b32.xlu0 %v481, 4
  %v638 = vpop.permute.xlu0 %637
  %639 = vrot.lane.b32.xlu0 %v484, 4
  %v640 = vpop.permute.xlu0 %639
  %641 = vrot.lane.b32.xlu0 %v486, 4
  %v642 = vpop.permute.xlu0 %641
  %643 = vrot.lane.b32.xlu0 %v489, 4
  %v644 = vpop.permute.xlu0 %643
  %645 = vrot.lane.b32.xlu0 %v491, 4
  %v646 = vpop.permute.xlu0 %645
  %647 = vrot.lane.b32.xlu0 %v494, 4
  %v648 = vpop.permute.xlu0 %647
  %649 = vrot.lane.b32.xlu0 %v496, 4
  %v650 = vpop.permute.xlu0 %649
  %651 = vrot.lane.b32.xlu0 %v499, 4
  %v652 = vpop.permute.xlu0 %651
  %653 = vrot.lane.b32.xlu0 %v501, 4
  %v654 = vpop.permute.xlu0 %653
  %655 = vrot.lane.b32.xlu0 %v504, 4
  %v656 = vpop.permute.xlu0 %655
  %657 = vrot.lane.b32.xlu0 %v506, 4
  %v658 = vpop.permute.xlu0 %657
  %659 = vrot.lane.b32.xlu0 %v509, 4
  %v660 = vpop.permute.xlu0 %659
  %661 = vrot.lane.b32.xlu0 %v511, 4
  %v662 = vpop.permute.xlu0 %661
  %663 = vrot.lane.b32.xlu0 %v514, 4
  %v664 = vpop.permute.xlu0 %663
  %665 = vrot.lane.b32.xlu0 %v516, 4
  %v666 = vpop.permute.xlu0 %665
  %667 = vrot.lane.b32.xlu0 %v519, 4
  %v668 = vpop.permute.xlu0 %667
  %669 = vrot.lane.b32.xlu0 %v521, 4
  %v670 = vpop.permute.xlu0 %669
  %671 = vrot.lane.b32.xlu0 %v524, 4
  %v672 = vpop.permute.xlu0 %671
  %673 = vrot.lane.b32.xlu0 %v526, 4
  %v674 = vpop.permute.xlu0 %673
  %675 = vrot.lane.b32.xlu0 %v529, 4
  %v676 = vpop.permute.xlu0 %675
  %677 = vrot.lane.b32.xlu0 %v531, 4
  %v678 = vpop.permute.xlu0 %677
  %679 = vrot.lane.b32.xlu0 %v534, 4
  %v680 = vpop.permute.xlu0 %679
  %681 = vrot.lane.b32.xlu0 %v536, 4
  %v682 = vpop.permute.xlu0 %681
  %683 = vrot.lane.b32.xlu0 %v539, 4
  %v684 = vpop.permute.xlu0 %683
  %685 = vrot.lane.b32.xlu0 %v541, 4
  %v686 = vpop.permute.xlu0 %685
  %687 = vrot.lane.b32.xlu0 %v544, 4
  %v688 = vpop.permute.xlu0 %687
  %689 = vrot.lane.b32.xlu0 %v546, 4
  %v690 = vpop.permute.xlu0 %689
  %691 = vrot.lane.b32.xlu0 %v549, 4
  %v692 = vpop.permute.xlu0 %691
  %693 = vrot.lane.b32.xlu0 %v551, 4
  %v694 = vpop.permute.xlu0 %693
  %695 = vrot.lane.b32.xlu0 %v554, 4
  %v696 = vpop.permute.xlu0 %695
  %697 = vrot.lane.b32.xlu0 %v556, 4
  %v698 = vpop.permute.xlu0 %697
  %699 = vrot.lane.b32.xlu0 %v559, 4
  %v700 = vpop.permute.xlu0 %699
  %701 = vrot.lane.b32.xlu0 %v561, 4
  %v702 = vpop.permute.xlu0 %701
  %703 = vrot.lane.b32.xlu0 %v564, 4
  %v704 = vpop.permute.xlu0 %703
  %705 = vrot.lane.b32.xlu0 %v566, 4
  %v706 = vpop.permute.xlu0 %705
  %707 = vrot.lane.b32.xlu0 %v569, 4
  %v708 = vpop.permute.xlu0 %707
  %709 = vrot.lane.b32.xlu0 %v571, 4
  %v710 = vpop.permute.xlu0 %709
  %711 = vrot.lane.b32.xlu0 %v574, 4
  %v712 = vpop.permute.xlu0 %711
  %713 = vrot.lane.b32.xlu0 %v576, 4
  %v714 = vpop.permute.xlu0 %713
  %715 = vrot.lane.b32.xlu0 %v579, 4
  %v716 = vpop.permute.xlu0 %715
  %717 = vrot.lane.b32.xlu0 %v581, 4
  %v718 = vpop.permute.xlu0 %717
  %719 = vrot.lane.b32.xlu0 %v584, 4
  %v720 = vpop.permute.xlu0 %719
  %721 = vrot.lane.b32.xlu0 %v586, 4
  %v722 = vpop.permute.xlu0 %721
  %723 = vrot.lane.b32.xlu0 %v589, 4
  %v724 = vpop.permute.xlu0 %723
  %725 = vrot.lane.b32.xlu0 %v591, 4
  %v726 = vpop.permute.xlu0 %725
  %727 = vrot.lane.b32.xlu0 %v594, 4
  %v728 = vpop.permute.xlu0 %727
  %729 = vrot.lane.b32.xlu0 %v596, 4
  %v730 = vpop.permute.xlu0 %729
  %731 = vrot.lane.b32.xlu0 %v599, 4
  %v732 = vpop.permute.xlu0 %731
  %733 = vrot.lane.b32.xlu0 %v601, 4
  %v734 = vpop.permute.xlu0 %733
  %735 = vrot.lane.b32.xlu0 %v604, 4
  %v736 = vpop.permute.xlu0 %735
  %737 = vrot.lane.b32.xlu0 %v606, 4
  %v738 = vpop.permute.xlu0 %737
  %739 = vrot.lane.b32.xlu0 %v609, 4
  %v740 = vpop.permute.xlu0 %739
  %741 = vrot.lane.b32.xlu0 %v611, 4
  %v742 = vpop.permute.xlu0 %741
  %743 = vrot.lane.b32.xlu0 %v614, 4
  %v744 = vpop.permute.xlu0 %743
  %745 = vrot.lane.b32.xlu0 %v616, 4
  %v746 = vpop.permute.xlu0 %745
  %747 = vrot.lane.b32.xlu0 %v619, 4
  %v748 = vpop.permute.xlu0 %747
  %749 = vrot.lane.b32.xlu0 %v621, 4
  %v750 = vpop.permute.xlu0 %749
  %751 = vrot.lane.b32.xlu0 %v624, 4
  %v752 = vpop.permute.xlu0 %751
  %753 = vrot.lane.b32.xlu0 %v626, 4
  %v754 = vpop.permute.xlu0 %753
  %vm819 = vcmask 1045504
  %v820 = vrot.slane %v262, 2
  %v821 = vrot.slane %v263, 2
  %v822 = vsel %vm819, %v820, %v821
  %v823 = vrot.slane %v264, 2
  %v824 = vsel %vm819, %v821, %v823
  %v825 = vrot.slane %v265, 2
  %v826 = vrot.slane %v266, 2
  %v827 = vsel %vm819, %v825, %v826
  %v828 = vrot.slane %v267, 2
  %v829 = vsel %vm819, %v826, %v828
  %v830 = vrot.slane %v268, 2
  %v831 = vrot.slane %v269, 2
  %v832 = vsel %vm819, %v830, %v831
  %v833 = vrot.slane %v270, 2
  %v834 = vsel %vm819, %v831, %v833
  %v835 = vrot.slane %v271, 2
  %v836 = vrot.slane %v272, 2
  %v837 = vsel %vm819, %v835, %v836
  %v838 = vrot.slane %v273, 2
  %v839 = vsel %vm819, %v836, %v838
  %v840 = vrot.slane %v274, 2
  %v841 = vrot.slane %v275, 2
  %v842 = vsel %vm819, %v840, %v841
  %v843 = vrot.slane %v276, 2
  %v844 = vsel %vm819, %v841, %v843
  %v845 = vrot.slane %v277, 2
  %v846 = vrot.slane %v278, 2
  %v847 = vsel %vm819, %v845, %v846
  %v848 = vrot.slane %v279, 2
  %v849 = vsel %vm819, %v846, %v848
  %v850 = vrot.slane %v280, 2
  %v851 = vrot.slane %v281, 2
  %v852 = vsel %vm819, %v850, %v851
  %v853 = vrot.slane %v282, 2
  %v854 = vsel %vm819, %v851, %v853
  %v855 = vrot.slane %v283, 2
  %v856 = vrot.slane %v284, 2
  %v857 = vsel %vm819, %v855, %v856
  %v858 = vrot.slane %v285, 2
  %v859 = vsel %vm819, %v856, %v858
  %v860 = vrot.slane %v286, 2
  %v861 = vrot.slane %v287, 2
  %v862 = vsel %vm819, %v860, %v861
  %v863 = vrot.slane %v288, 2
  %v864 = vsel %vm819, %v861, %v863
  %v865 = vrot.slane %v289, 2
  %v866 = vrot.slane %v290, 2
  %v867 = vsel %vm819, %v865, %v866
  %v868 = vrot.slane %v291, 2
  %v869 = vsel %vm819, %v866, %v868
  %v870 = vrot.slane %v292, 2
  %v871 = vrot.slane %v293, 2
  %v872 = vsel %vm819, %v870, %v871
  %v873 = vrot.slane %v294, 2
  %v874 = vsel %vm819, %v871, %v873
  %v875 = vrot.slane %v295, 2
  %v876 = vrot.slane %v296, 2
  %v877 = vsel %vm819, %v875, %v876
  %v878 = vrot.slane %v297, 2
  %v879 = vsel %vm819, %v876, %v878
  %v880 = vrot.slane %v298, 2
  %v881 = vrot.slane %v299, 2
  %v882 = vsel %vm819, %v880, %v881
  %v883 = vrot.slane %v300, 2
  %v884 = vsel %vm819, %v881, %v883
  %v885 = vrot.slane %v301, 2
  %v886 = vrot.slane %v302, 2
  %v887 = vsel %vm819, %v885, %v886
  %v888 = vrot.slane %v303, 2
  %v889 = vsel %vm819, %v886, %v888
  %v890 = vrot.slane %v304, 2
  %v891 = vrot.slane %v305, 2
  %v892 = vsel %vm819, %v890, %v891
  %v893 = vrot.slane %v306, 2
  %v894 = vsel %vm819, %v891, %v893
  %v895 = vrot.slane %v307, 2
  %v896 = vrot.slane %v308, 2
  %v897 = vsel %vm819, %v895, %v896
  %v898 = vrot.slane %v309, 2
  %v899 = vsel %vm819, %v896, %v898
  %v900 = vrot.slane %v316, 2
  %v901 = vrot.slane %v317, 2
  %v902 = vsel %vm819, %v900, %v901
  %v903 = vrot.slane %v318, 2
  %v904 = vsel %vm819, %v901, %v903
  %v905 = vrot.slane %v319, 2
  %v906 = vrot.slane %v320, 2
  %v907 = vsel %vm819, %v905, %v906
  %v908 = vrot.slane %v321, 2
  %v909 = vsel %vm819, %v906, %v908
  %v910 = vrot.slane %v322, 2
  %v911 = vrot.slane %v323, 2
  %v912 = vsel %vm819, %v910, %v911
  %v913 = vrot.slane %v324, 2
  %v914 = vsel %vm819, %v911, %v913
  %v915 = vrot.slane %v325, 2
  %v916 = vrot.slane %v326, 2
  %v917 = vsel %vm819, %v915, %v916
  %v918 = vrot.slane %v327, 2
  %v919 = vsel %vm819, %v916, %v918
  %v920 = vrot.slane %v328, 2
  %v921 = vrot.slane %v329, 2
  %v922 = vsel %vm819, %v920, %v921
  %v923 = vrot.slane %v330, 2
  %v924 = vsel %vm819, %v921, %v923
  %v925 = vrot.slane %v331, 2
  %v926 = vrot.slane %v332, 2
  %v927 = vsel %vm819, %v925, %v926
  %v928 = vrot.slane %v333, 2
  %v929 = vsel %vm819, %v926, %v928
  %v930 = vrot.slane %v334, 2
  %v931 = vrot.slane %v335, 2
  %v932 = vsel %vm819, %v930, %v931
  %v933 = vrot.slane %v336, 2
  %v934 = vsel %vm819, %v931, %v933
  %v935 = vrot.slane %v337, 2
  %v936 = vrot.slane %v338, 2
  %v937 = vsel %vm819, %v935, %v936
  %v938 = vrot.slane %v339, 2
  %v939 = vsel %vm819, %v936, %v938
  %v940 = vrot.slane %v340, 2
  %v941 = vrot.slane %v341, 2
  %v942 = vsel %vm819, %v940, %v941
  %v943 = vrot.slane %v342, 2
  %v944 = vsel %vm819, %v941, %v943
  %v945 = vrot.slane %v343, 2
  %v946 = vrot.slane %v344, 2
  %v947 = vsel %vm819, %v945, %v946
  %v948 = vrot.slane %v345, 2
  %v949 = vsel %vm819, %v946, %v948
  %v950 = vrot.slane %v346, 2
  %v951 = vrot.slane %v347, 2
  %v952 = vsel %vm819, %v950, %v951
  %v953 = vrot.slane %v348, 2
  %v954 = vsel %vm819, %v951, %v953
  %v955 = vrot.slane %v349, 2
  %v956 = vrot.slane %v350, 2
  %v957 = vsel %vm819, %v955, %v956
  %v958 = vrot.slane %v351, 2
  %v959 = vsel %vm819, %v956, %v958
  %v960 = vrot.slane %v352, 2
  %v961 = vrot.slane %v353, 2
  %v962 = vsel %vm819, %v960, %v961
  %v963 = vrot.slane %v354, 2
  %v964 = vsel %vm819, %v961, %v963
  %v965 = vrot.slane %v355, 2
  %v966 = vrot.slane %v356, 2
  %v967 = vsel %vm819, %v965, %v966
  %v968 = vrot.slane %v357, 2
  %v969 = vsel %vm819, %v966, %v968
  %v970 = vrot.slane %v358, 2
  %v971 = vrot.slane %v359, 2
  %v972 = vsel %vm819, %v970, %v971
  %v973 = vrot.slane %v360, 2
  %v974 = vsel %vm819, %v971, %v973
  %v975 = vrot.slane %v361, 2
  %v976 = vrot.slane %v362, 2
  %v977 = vsel %vm819, %v975, %v976
  %v978 = vrot.slane %v363, 2
  %v979 = vsel %vm819, %v976, %v978
  %980 = vrot.lane.b32.xlu0 %v822, 8
  %v981 = vpop.permute.xlu0 %980
  %982 = vrot.lane.b32.xlu0 %v824, 8
  %v983 = vpop.permute.xlu0 %982
  %984 = vrot.lane.b32.xlu0 %v827, 8
  %v985 = vpop.permute.xlu0 %984
  %986 = vrot.lane.b32.xlu0 %v829, 8
  %v987 = vpop.permute.xlu0 %986
  %988 = vrot.lane.b32.xlu0 %v832, 8
  %v989 = vpop.permute.xlu0 %988
  %990 = vrot.lane.b32.xlu0 %v834, 8
  %v991 = vpop.permute.xlu0 %990
  %992 = vrot.lane.b32.xlu0 %v837, 8
  %v993 = vpop.permute.xlu0 %992
  %994 = vrot.lane.b32.xlu0 %v839, 8
  %v995 = vpop.permute.xlu0 %994
  %996 = vrot.lane.b32.xlu0 %v842, 8
  %v997 = vpop.permute.xlu0 %996
  %998 = vrot.lane.b32.xlu0 %v844, 8
  %v999 = vpop.permute.xlu0 %998
  %1000 = vrot.lane.b32.xlu0 %v847, 8
  %v1001 = vpop.permute.xlu0 %1000
  %1002 = vrot.lane.b32.xlu0 %v849, 8
  %v1003 = vpop.permute.xlu0 %1002
  %1004 = vrot.lane.b32.xlu0 %v852, 8
  %v1005 = vpop.permute.xlu0 %1004
  %1006 = vrot.lane.b32.xlu0 %v854, 8
  %v1007 = vpop.permute.xlu0 %1006
  %1008 = vrot.lane.b32.xlu0 %v857, 8
  %v1009 = vpop.permute.xlu0 %1008
  %1010 = vrot.lane.b32.xlu0 %v859, 8
  %v1011 = vpop.permute.xlu0 %1010
  %1012 = vrot.lane.b32.xlu0 %v862, 8
  %v1013 = vpop.permute.xlu0 %1012
  %1014 = vrot.lane.b32.xlu0 %v864, 8
  %v1015 = vpop.permute.xlu0 %1014
  %1016 = vrot.lane.b32.xlu0 %v867, 8
  %v1017 = vpop.permute.xlu0 %1016
  %1018 = vrot.lane.b32.xlu0 %v869, 8
  %v1019 = vpop.permute.xlu0 %1018
  %1020 = vrot.lane.b32.xlu0 %v872, 8
  %v1021 = vpop.permute.xlu0 %1020
  %1022 = vrot.lane.b32.xlu0 %v874, 8
  %v1023 = vpop.permute.xlu0 %1022
  %1024 = vrot.lane.b32.xlu0 %v877, 8
  %v1025 = vpop.permute.xlu0 %1024
  %1026 = vrot.lane.b32.xlu0 %v879, 8
  %v1027 = vpop.permute.xlu0 %1026
  %1028 = vrot.lane.b32.xlu0 %v882, 8
  %v1029 = vpop.permute.xlu0 %1028
  %1030 = vrot.lane.b32.xlu0 %v884, 8
  %v1031 = vpop.permute.xlu0 %1030
  %1032 = vrot.lane.b32.xlu0 %v887, 8
  %v1033 = vpop.permute.xlu0 %1032
  %1034 = vrot.lane.b32.xlu0 %v889, 8
  %v1035 = vpop.permute.xlu0 %1034
  %1036 = vrot.lane.b32.xlu0 %v892, 8
  %v1037 = vpop.permute.xlu0 %1036
  %1038 = vrot.lane.b32.xlu0 %v894, 8
  %v1039 = vpop.permute.xlu0 %1038
  %1040 = vrot.lane.b32.xlu0 %v897, 8
  %v1041 = vpop.permute.xlu0 %1040
  %1042 = vrot.lane.b32.xlu0 %v899, 8
  %v1043 = vpop.permute.xlu0 %1042
  %1044 = vrot.lane.b32.xlu0 %v902, 8
  %v1045 = vpop.permute.xlu0 %1044
  %1046 = vrot.lane.b32.xlu0 %v904, 8
  %v1047 = vpop.permute.xlu0 %1046
  %1048 = vrot.lane.b32.xlu0 %v907, 8
  %v1049 = vpop.permute.xlu0 %1048
  %1050 = vrot.lane.b32.xlu0 %v909, 8
  %v1051 = vpop.permute.xlu0 %1050
  %1052 = vrot.lane.b32.xlu0 %v912, 8
  %v1053 = vpop.permute.xlu0 %1052
  %1054 = vrot.lane.b32.xlu0 %v914, 8
  %v1055 = vpop.permute.xlu0 %1054
  %1056 = vrot.lane.b32.xlu0 %v917, 8
  %v1057 = vpop.permute.xlu0 %1056
  %1058 = vrot.lane.b32.xlu0 %v919, 8
  %v1059 = vpop.permute.xlu0 %1058
  %1060 = vrot.lane.b32.xlu0 %v922, 8
  %v1061 = vpop.permute.xlu0 %1060
  %1062 = vrot.lane.b32.xlu0 %v924, 8
  %v1063 = vpop.permute.xlu0 %1062
  %1064 = vrot.lane.b32.xlu0 %v927, 8
  %v1065 = vpop.permute.xlu0 %1064
  %1066 = vrot.lane.b32.xlu0 %v929, 8
  %v1067 = vpop.permute.xlu0 %1066
  %1068 = vrot.lane.b32.xlu0 %v932, 8
  %v1069 = vpop.permute.xlu0 %1068
  %1070 = vrot.lane.b32.xlu0 %v934, 8
  %v1071 = vpop.permute.xlu0 %1070
  %1072 = vrot.lane.b32.xlu0 %v937, 8
  %v1073 = vpop.permute.xlu0 %1072
  %1074 = vrot.lane.b32.xlu0 %v939, 8
  %v1075 = vpop.permute.xlu0 %1074
  %1076 = vrot.lane.b32.xlu0 %v942, 8
  %v1077 = vpop.permute.xlu0 %1076
  %1078 = vrot.lane.b32.xlu0 %v944, 8
  %v1079 = vpop.permute.xlu0 %1078
  %1080 = vrot.lane.b32.xlu0 %v947, 8
  %v1081 = vpop.permute.xlu0 %1080
  %1082 = vrot.lane.b32.xlu0 %v949, 8
  %v1083 = vpop.permute.xlu0 %1082
  %1084 = vrot.lane.b32.xlu0 %v952, 8
  %v1085 = vpop.permute.xlu0 %1084
  %1086 = vrot.lane.b32.xlu0 %v954, 8
  %v1087 = vpop.permute.xlu0 %1086
  %1088 = vrot.lane.b32.xlu0 %v957, 8
  %v1089 = vpop.permute.xlu0 %1088
  %1090 = vrot.lane.b32.xlu0 %v959, 8
  %v1091 = vpop.permute.xlu0 %1090
  %1092 = vrot.lane.b32.xlu0 %v962, 8
  %v1093 = vpop.permute.xlu0 %1092
  %1094 = vrot.lane.b32.xlu0 %v964, 8
  %v1095 = vpop.permute.xlu0 %1094
  %1096 = vrot.lane.b32.xlu0 %v967, 8
  %v1097 = vpop.permute.xlu0 %1096
  %1098 = vrot.lane.b32.xlu0 %v969, 8
  %v1099 = vpop.permute.xlu0 %1098
  %1100 = vrot.lane.b32.xlu0 %v972, 8
  %v1101 = vpop.permute.xlu0 %1100
  %1102 = vrot.lane.b32.xlu0 %v974, 8
  %v1103 = vpop.permute.xlu0 %1102
  %1104 = vrot.lane.b32.xlu0 %v977, 8
  %v1105 = vpop.permute.xlu0 %1104
  %1106 = vrot.lane.b32.xlu0 %v979, 8
  %v1107 = vpop.permute.xlu0 %1106
  %1176 = vrot.lane.b32.xlu0 %v265, 12
  %v1177 = vpop.permute.xlu0 %1176
  %1178 = vrot.lane.b32.xlu0 %v266, 12
  %v1179 = vpop.permute.xlu0 %1178
  %1180 = vrot.lane.b32.xlu0 %v268, 12
  %v1181 = vpop.permute.xlu0 %1180
  %1182 = vrot.lane.b32.xlu0 %v269, 12
  %v1183 = vpop.permute.xlu0 %1182
  %1184 = vrot.lane.b32.xlu0 %v271, 12
  %v1185 = vpop.permute.xlu0 %1184
  %1186 = vrot.lane.b32.xlu0 %v272, 12
  %v1187 = vpop.permute.xlu0 %1186
  %1188 = vrot.lane.b32.xlu0 %v274, 12
  %v1189 = vpop.permute.xlu0 %1188
  %1190 = vrot.lane.b32.xlu0 %v275, 12
  %v1191 = vpop.permute.xlu0 %1190
  %1192 = vrot.lane.b32.xlu0 %v277, 12
  %v1193 = vpop.permute.xlu0 %1192
  %1194 = vrot.lane.b32.xlu0 %v278, 12
  %v1195 = vpop.permute.xlu0 %1194
  %1196 = vrot.lane.b32.xlu0 %v280, 12
  %v1197 = vpop.permute.xlu0 %1196
  %1198 = vrot.lane.b32.xlu0 %v281, 12
  %v1199 = vpop.permute.xlu0 %1198
  %1200 = vrot.lane.b32.xlu0 %v283, 12
  %v1201 = vpop.permute.xlu0 %1200
  %1202 = vrot.lane.b32.xlu0 %v284, 12
  %v1203 = vpop.permute.xlu0 %1202
  %1204 = vrot.lane.b32.xlu0 %v286, 12
  %v1205 = vpop.permute.xlu0 %1204
  %1206 = vrot.lane.b32.xlu0 %v287, 12
  %v1207 = vpop.permute.xlu0 %1206
  %1208 = vrot.lane.b32.xlu0 %v289, 12
  %v1209 = vpop.permute.xlu0 %1208
  %1210 = vrot.lane.b32.xlu0 %v290, 12
  %v1211 = vpop.permute.xlu0 %1210
  %1212 = vrot.lane.b32.xlu0 %v292, 12
  %v1213 = vpop.permute.xlu0 %1212
  %1214 = vrot.lane.b32.xlu0 %v293, 12
  %v1215 = vpop.permute.xlu0 %1214
  %1216 = vrot.lane.b32.xlu0 %v295, 12
  %v1217 = vpop.permute.xlu0 %1216
  %1218 = vrot.lane.b32.xlu0 %v296, 12
  %v1219 = vpop.permute.xlu0 %1218
  %1220 = vrot.lane.b32.xlu0 %v298, 12
  %v1221 = vpop.permute.xlu0 %1220
  %1222 = vrot.lane.b32.xlu0 %v299, 12
  %v1223 = vpop.permute.xlu0 %1222
  %1224 = vrot.lane.b32.xlu0 %v301, 12
  %v1225 = vpop.permute.xlu0 %1224
  %1226 = vrot.lane.b32.xlu0 %v302, 12
  %v1227 = vpop.permute.xlu0 %1226
  %1228 = vrot.lane.b32.xlu0 %v304, 12
  %v1229 = vpop.permute.xlu0 %1228
  %1230 = vrot.lane.b32.xlu0 %v305, 12
  %v1231 = vpop.permute.xlu0 %1230
  %1232 = vrot.lane.b32.xlu0 %v307, 12
  %v1233 = vpop.permute.xlu0 %1232
  %1234 = vrot.lane.b32.xlu0 %v308, 12
  %v1235 = vpop.permute.xlu0 %1234
  %1236 = vrot.lane.b32.xlu0 %v310, 12
  %v1237 = vpop.permute.xlu0 %1236
  %1238 = vrot.lane.b32.xlu0 %v311, 12
  %v1239 = vpop.permute.xlu0 %1238
  %1240 = vrot.lane.b32.xlu0 %v319, 12
  %v1241 = vpop.permute.xlu0 %1240
  %1242 = vrot.lane.b32.xlu0 %v320, 12
  %v1243 = vpop.permute.xlu0 %1242
  %1244 = vrot.lane.b32.xlu0 %v322, 12
  %v1245 = vpop.permute.xlu0 %1244
  %1246 = vrot.lane.b32.xlu0 %v323, 12
  %v1247 = vpop.permute.xlu0 %1246
  %1248 = vrot.lane.b32.xlu0 %v325, 12
  %v1249 = vpop.permute.xlu0 %1248
  %1250 = vrot.lane.b32.xlu0 %v326, 12
  %v1251 = vpop.permute.xlu0 %1250
  %1252 = vrot.lane.b32.xlu0 %v328, 12
  %v1253 = vpop.permute.xlu0 %1252
  %1254 = vrot.lane.b32.xlu0 %v329, 12
  %v1255 = vpop.permute.xlu0 %1254
  %1256 = vrot.lane.b32.xlu0 %v331, 12
  %v1257 = vpop.permute.xlu0 %1256
  %1258 = vrot.lane.b32.xlu0 %v332, 12
  %v1259 = vpop.permute.xlu0 %1258
  %1260 = vrot.lane.b32.xlu0 %v334, 12
  %v1261 = vpop.permute.xlu0 %1260
  %1262 = vrot.lane.b32.xlu0 %v335, 12
  %v1263 = vpop.permute.xlu0 %1262
  %1264 = vrot.lane.b32.xlu0 %v337, 12
  %v1265 = vpop.permute.xlu0 %1264
  %1266 = vrot.lane.b32.xlu0 %v338, 12
  %v1267 = vpop.permute.xlu0 %1266
  %1268 = vrot.lane.b32.xlu0 %v340, 12
  %v1269 = vpop.permute.xlu0 %1268
  %1270 = vrot.lane.b32.xlu0 %v341, 12
  %v1271 = vpop.permute.xlu0 %1270
  %1272 = vrot.lane.b32.xlu0 %v343, 12
  %v1273 = vpop.permute.xlu0 %1272
  %1274 = vrot.lane.b32.xlu0 %v344, 12
  %v1275 = vpop.permute.xlu0 %1274
  %1276 = vrot.lane.b32.xlu0 %v346, 12
  %v1277 = vpop.permute.xlu0 %1276
  %1278 = vrot.lane.b32.xlu0 %v347, 12
  %v1279 = vpop.permute.xlu0 %1278
  %1280 = vrot.lane.b32.xlu0 %v349, 12
  %v1281 = vpop.permute.xlu0 %1280
  %1282 = vrot.lane.b32.xlu0 %v350, 12
  %v1283 = vpop.permute.xlu0 %1282
  %1284 = vrot.lane.b32.xlu0 %v352, 12
  %v1285 = vpop.permute.xlu0 %1284
  %1286 = vrot.lane.b32.xlu0 %v353, 12
  %v1287 = vpop.permute.xlu0 %1286
  %1288 = vrot.lane.b32.xlu0 %v355, 12
  %v1289 = vpop.permute.xlu0 %1288
  %1290 = vrot.lane.b32.xlu0 %v356, 12
  %v1291 = vpop.permute.xlu0 %1290
  %1292 = vrot.lane.b32.xlu0 %v358, 12
  %v1293 = vpop.permute.xlu0 %1292
  %1294 = vrot.lane.b32.xlu0 %v359, 12
  %v1295 = vpop.permute.xlu0 %1294
  %1296 = vrot.lane.b32.xlu0 %v361, 12
  %v1297 = vpop.permute.xlu0 %1296
  %1298 = vrot.lane.b32.xlu0 %v362, 12
  %v1299 = vpop.permute.xlu0 %1298
  %1300 = vrot.lane.b32.xlu0 %v364, 12
  %v1301 = vpop.permute.xlu0 %1300
  %1302 = vrot.lane.b32.xlu0 %v365, 12
  %v1303 = vpop.permute.xlu0 %1302
  %v1370 = vrot.slane %v310, 1
  %v1371 = vrot.slane %v311, 1
  %v1372 = vsel %vm466, %v1370, %v1371
  %v1373 = vrot.slane %v312, 1
  %v1374 = vsel %vm466, %v1371, %v1373
  %v1375 = vrot.slane %v364, 1
  %v1376 = vrot.slane %v365, 1
  %v1377 = vsel %vm466, %v1375, %v1376
  %v1378 = vrot.slane %v366, 1
  %v1379 = vsel %vm466, %v1376, %v1378
  %1380 = vrot.lane.b32.xlu0 %v474, 16
  %v1381 = vpop.permute.xlu0 %1380
  %1382 = vrot.lane.b32.xlu0 %v476, 16
  %v1383 = vpop.permute.xlu0 %1382
  %1384 = vrot.lane.b32.xlu0 %v479, 16
  %v1385 = vpop.permute.xlu0 %1384
  %1386 = vrot.lane.b32.xlu0 %v481, 16
  %v1387 = vpop.permute.xlu0 %1386
  %1388 = vrot.lane.b32.xlu0 %v484, 16
  %v1389 = vpop.permute.xlu0 %1388
  %1390 = vrot.lane.b32.xlu0 %v486, 16
  %v1391 = vpop.permute.xlu0 %1390
  %1392 = vrot.lane.b32.xlu0 %v489, 16
  %v1393 = vpop.permute.xlu0 %1392
  %1394 = vrot.lane.b32.xlu0 %v491, 16
  %v1395 = vpop.permute.xlu0 %1394
  %1396 = vrot.lane.b32.xlu0 %v494, 16
  %v1397 = vpop.permute.xlu0 %1396
  %1398 = vrot.lane.b32.xlu0 %v496, 16
  %v1399 = vpop.permute.xlu0 %1398
  %1400 = vrot.lane.b32.xlu0 %v499, 16
  %v1401 = vpop.permute.xlu0 %1400
  %1402 = vrot.lane.b32.xlu0 %v501, 16
  %v1403 = vpop.permute.xlu0 %1402
  %1404 = vrot.lane.b32.xlu0 %v504, 16
  %v1405 = vpop.permute.xlu0 %1404
  %1406 = vrot.lane.b32.xlu0 %v506, 16
  %v1407 = vpop.permute.xlu0 %1406
  %1408 = vrot.lane.b32.xlu0 %v509, 16
  %v1409 = vpop.permute.xlu0 %1408
  %1410 = vrot.lane.b32.xlu0 %v511, 16
  %v1411 = vpop.permute.xlu0 %1410
  %1412 = vrot.lane.b32.xlu0 %v514, 16
  %v1413 = vpop.permute.xlu0 %1412
  %1414 = vrot.lane.b32.xlu0 %v516, 16
  %v1415 = vpop.permute.xlu0 %1414
  %1416 = vrot.lane.b32.xlu0 %v519, 16
  %v1417 = vpop.permute.xlu0 %1416
  %1418 = vrot.lane.b32.xlu0 %v521, 16
  %v1419 = vpop.permute.xlu0 %1418
  %1420 = vrot.lane.b32.xlu0 %v524, 16
  %v1421 = vpop.permute.xlu0 %1420
  %1422 = vrot.lane.b32.xlu0 %v526, 16
  %v1423 = vpop.permute.xlu0 %1422
  %1424 = vrot.lane.b32.xlu0 %v529, 16
  %v1425 = vpop.permute.xlu0 %1424
  %1426 = vrot.lane.b32.xlu0 %v531, 16
  %v1427 = vpop.permute.xlu0 %1426
  %1428 = vrot.lane.b32.xlu0 %v534, 16
  %v1429 = vpop.permute.xlu0 %1428
  %1430 = vrot.lane.b32.xlu0 %v536, 16
  %v1431 = vpop.permute.xlu0 %1430
  %1432 = vrot.lane.b32.xlu0 %v539, 16
  %v1433 = vpop.permute.xlu0 %1432
  %1434 = vrot.lane.b32.xlu0 %v541, 16
  %v1435 = vpop.permute.xlu0 %1434
  %1436 = vrot.lane.b32.xlu0 %v544, 16
  %v1437 = vpop.permute.xlu0 %1436
  %1438 = vrot.lane.b32.xlu0 %v546, 16
  %v1439 = vpop.permute.xlu0 %1438
  %1440 = vrot.lane.b32.xlu0 %v1372, 16
  %v1441 = vpop.permute.xlu0 %1440
  %1442 = vrot.lane.b32.xlu0 %v1374, 16
  %v1443 = vpop.permute.xlu0 %1442
  %1444 = vrot.lane.b32.xlu0 %v554, 16
  %v1445 = vpop.permute.xlu0 %1444
  %1446 = vrot.lane.b32.xlu0 %v556, 16
  %v1447 = vpop.permute.xlu0 %1446
  %1448 = vrot.lane.b32.xlu0 %v559, 16
  %v1449 = vpop.permute.xlu0 %1448
  %1450 = vrot.lane.b32.xlu0 %v561, 16
  %v1451 = vpop.permute.xlu0 %1450
  %1452 = vrot.lane.b32.xlu0 %v564, 16
  %v1453 = vpop.permute.xlu0 %1452
  %1454 = vrot.lane.b32.xlu0 %v566, 16
  %v1455 = vpop.permute.xlu0 %1454
  %1456 = vrot.lane.b32.xlu0 %v569, 16
  %v1457 = vpop.permute.xlu0 %1456
  %1458 = vrot.lane.b32.xlu0 %v571, 16
  %v1459 = vpop.permute.xlu0 %1458
  %1460 = vrot.lane.b32.xlu0 %v574, 16
  %v1461 = vpop.permute.xlu0 %1460
  %1462 = vrot.lane.b32.xlu0 %v576, 16
  %v1463 = vpop.permute.xlu0 %1462
  %1464 = vrot.lane.b32.xlu0 %v579, 16
  %v1465 = vpop.permute.xlu0 %1464
  %1466 = vrot.lane.b32.xlu0 %v581, 16
  %v1467 = vpop.permute.xlu0 %1466
  %1468 = vrot.lane.b32.xlu0 %v584, 16
  %v1469 = vpop.permute.xlu0 %1468
  %1470 = vrot.lane.b32.xlu0 %v586, 16
  %v1471 = vpop.permute.xlu0 %1470
  %1472 = vrot.lane.b32.xlu0 %v589, 16
  %v1473 = vpop.permute.xlu0 %1472
  %1474 = vrot.lane.b32.xlu0 %v591, 16
  %v1475 = vpop.permute.xlu0 %1474
  %1476 = vrot.lane.b32.xlu0 %v594, 16
  %v1477 = vpop.permute.xlu0 %1476
  %1478 = vrot.lane.b32.xlu0 %v596, 16
  %v1479 = vpop.permute.xlu0 %1478
  %1480 = vrot.lane.b32.xlu0 %v599, 16
  %v1481 = vpop.permute.xlu0 %1480
  %1482 = vrot.lane.b32.xlu0 %v601, 16
  %v1483 = vpop.permute.xlu0 %1482
  %1484 = vrot.lane.b32.xlu0 %v604, 16
  %v1485 = vpop.permute.xlu0 %1484
  %1486 = vrot.lane.b32.xlu0 %v606, 16
  %v1487 = vpop.permute.xlu0 %1486
  %1488 = vrot.lane.b32.xlu0 %v609, 16
  %v1489 = vpop.permute.xlu0 %1488
  %1490 = vrot.lane.b32.xlu0 %v611, 16
  %v1491 = vpop.permute.xlu0 %1490
  %1492 = vrot.lane.b32.xlu0 %v614, 16
  %v1493 = vpop.permute.xlu0 %1492
  %1494 = vrot.lane.b32.xlu0 %v616, 16
  %v1495 = vpop.permute.xlu0 %1494
  %1496 = vrot.lane.b32.xlu0 %v619, 16
  %v1497 = vpop.permute.xlu0 %1496
  %1498 = vrot.lane.b32.xlu0 %v621, 16
  %v1499 = vpop.permute.xlu0 %1498
  %1500 = vrot.lane.b32.xlu0 %v624, 16
  %v1501 = vpop.permute.xlu0 %1500
  %1502 = vrot.lane.b32.xlu0 %v626, 16
  %v1503 = vpop.permute.xlu0 %1502
  %1504 = vrot.lane.b32.xlu0 %v1377, 16
  %v1505 = vpop.permute.xlu0 %1504
  %1506 = vrot.lane.b32.xlu0 %v1379, 16
  %v1507 = vpop.permute.xlu0 %1506
  %v1572 = vrot.slane %v310, 2
  %v1573 = vrot.slane %v311, 2
  %v1574 = vsel %vm819, %v1572, %v1573
  %v1575 = vrot.slane %v312, 2
  %v1576 = vsel %vm819, %v1573, %v1575
  %v1577 = vrot.slane %v364, 2
  %v1578 = vrot.slane %v365, 2
  %v1579 = vsel %vm819, %v1577, %v1578
  %v1580 = vrot.slane %v366, 2
  %v1581 = vsel %vm819, %v1578, %v1580
  %1582 = vrot.lane.b32.xlu0 %v827, 20
  %v1583 = vpop.permute.xlu0 %1582
  %1584 = vrot.lane.b32.xlu0 %v829, 20
  %v1585 = vpop.permute.xlu0 %1584
  %1586 = vrot.lane.b32.xlu0 %v832, 20
  %v1587 = vpop.permute.xlu0 %1586
  %1588 = vrot.lane.b32.xlu0 %v834, 20
  %v1589 = vpop.permute.xlu0 %1588
  %1590 = vrot.lane.b32.xlu0 %v837, 20
  %v1591 = vpop.permute.xlu0 %1590
  %1592 = vrot.lane.b32.xlu0 %v839, 20
  %v1593 = vpop.permute.xlu0 %1592
  %1594 = vrot.lane.b32.xlu0 %v842, 20
  %v1595 = vpop.permute.xlu0 %1594
  %1596 = vrot.lane.b32.xlu0 %v844, 20
  %v1597 = vpop.permute.xlu0 %1596
  %1598 = vrot.lane.b32.xlu0 %v847, 20
  %v1599 = vpop.permute.xlu0 %1598
  %1600 = vrot.lane.b32.xlu0 %v849, 20
  %v1601 = vpop.permute.xlu0 %1600
  %1602 = vrot.lane.b32.xlu0 %v852, 20
  %v1603 = vpop.permute.xlu0 %1602
  %1604 = vrot.lane.b32.xlu0 %v854, 20
  %v1605 = vpop.permute.xlu0 %1604
  %1606 = vrot.lane.b32.xlu0 %v857, 20
  %v1607 = vpop.permute.xlu0 %1606
  %1608 = vrot.lane.b32.xlu0 %v859, 20
  %v1609 = vpop.permute.xlu0 %1608
  %1610 = vrot.lane.b32.xlu0 %v862, 20
  %v1611 = vpop.permute.xlu0 %1610
  %1612 = vrot.lane.b32.xlu0 %v864, 20
  %v1613 = vpop.permute.xlu0 %1612
  %1614 = vrot.lane.b32.xlu0 %v867, 20
  %v1615 = vpop.permute.xlu0 %1614
  %1616 = vrot.lane.b32.xlu0 %v869, 20
  %v1617 = vpop.permute.xlu0 %1616
  %1618 = vrot.lane.b32.xlu0 %v872, 20
  %v1619 = vpop.permute.xlu0 %1618
  %1620 = vrot.lane.b32.xlu0 %v874, 20
  %v1621 = vpop.permute.xlu0 %1620
  %1622 = vrot.lane.b32.xlu0 %v877, 20
  %v1623 = vpop.permute.xlu0 %1622
  %1624 = vrot.lane.b32.xlu0 %v879, 20
  %v1625 = vpop.permute.xlu0 %1624
  %1626 = vrot.lane.b32.xlu0 %v882, 20
  %v1627 = vpop.permute.xlu0 %1626
  %1628 = vrot.lane.b32.xlu0 %v884, 20
  %v1629 = vpop.permute.xlu0 %1628
  %1630 = vrot.lane.b32.xlu0 %v887, 20
  %v1631 = vpop.permute.xlu0 %1630
  %1632 = vrot.lane.b32.xlu0 %v889, 20
  %v1633 = vpop.permute.xlu0 %1632
  %1634 = vrot.lane.b32.xlu0 %v892, 20
  %v1635 = vpop.permute.xlu0 %1634
  %1636 = vrot.lane.b32.xlu0 %v894, 20
  %v1637 = vpop.permute.xlu0 %1636
  %1638 = vrot.lane.b32.xlu0 %v897, 20
  %v1639 = vpop.permute.xlu0 %1638
  %1640 = vrot.lane.b32.xlu0 %v899, 20
  %v1641 = vpop.permute.xlu0 %1640
  %1642 = vrot.lane.b32.xlu0 %v1574, 20
  %v1643 = vpop.permute.xlu0 %1642
  %1644 = vrot.lane.b32.xlu0 %v1576, 20
  %v1645 = vpop.permute.xlu0 %1644
  %1646 = vrot.lane.b32.xlu0 %v907, 20
  %v1647 = vpop.permute.xlu0 %1646
  %1648 = vrot.lane.b32.xlu0 %v909, 20
  %v1649 = vpop.permute.xlu0 %1648
  %1650 = vrot.lane.b32.xlu0 %v912, 20
  %v1651 = vpop.permute.xlu0 %1650
  %1652 = vrot.lane.b32.xlu0 %v914, 20
  %v1653 = vpop.permute.xlu0 %1652
  %1654 = vrot.lane.b32.xlu0 %v917, 20
  %v1655 = vpop.permute.xlu0 %1654
  %1656 = vrot.lane.b32.xlu0 %v919, 20
  %v1657 = vpop.permute.xlu0 %1656
  %1658 = vrot.lane.b32.xlu0 %v922, 20
  %v1659 = vpop.permute.xlu0 %1658
  %1660 = vrot.lane.b32.xlu0 %v924, 20
  %v1661 = vpop.permute.xlu0 %1660
  %1662 = vrot.lane.b32.xlu0 %v927, 20
  %v1663 = vpop.permute.xlu0 %1662
  %1664 = vrot.lane.b32.xlu0 %v929, 20
  %v1665 = vpop.permute.xlu0 %1664
  %1666 = vrot.lane.b32.xlu0 %v932, 20
  %v1667 = vpop.permute.xlu0 %1666
  %1668 = vrot.lane.b32.xlu0 %v934, 20
  %v1669 = vpop.permute.xlu0 %1668
  %1670 = vrot.lane.b32.xlu0 %v937, 20
  %v1671 = vpop.permute.xlu0 %1670
  %1672 = vrot.lane.b32.xlu0 %v939, 20
  %v1673 = vpop.permute.xlu0 %1672
  %1674 = vrot.lane.b32.xlu0 %v942, 20
  %v1675 = vpop.permute.xlu0 %1674
  %1676 = vrot.lane.b32.xlu0 %v944, 20
  %v1677 = vpop.permute.xlu0 %1676
  %1678 = vrot.lane.b32.xlu0 %v947, 20
  %v1679 = vpop.permute.xlu0 %1678
  %1680 = vrot.lane.b32.xlu0 %v949, 20
  %v1681 = vpop.permute.xlu0 %1680
  %1682 = vrot.lane.b32.xlu0 %v952, 20
  %v1683 = vpop.permute.xlu0 %1682
  %1684 = vrot.lane.b32.xlu0 %v954, 20
  %v1685 = vpop.permute.xlu0 %1684
  %1686 = vrot.lane.b32.xlu0 %v957, 20
  %v1687 = vpop.permute.xlu0 %1686
  %1688 = vrot.lane.b32.xlu0 %v959, 20
  %v1689 = vpop.permute.xlu0 %1688
  %1690 = vrot.lane.b32.xlu0 %v962, 20
  %v1691 = vpop.permute.xlu0 %1690
  %1692 = vrot.lane.b32.xlu0 %v964, 20
  %v1693 = vpop.permute.xlu0 %1692
  %1694 = vrot.lane.b32.xlu0 %v967, 20
  %v1695 = vpop.permute.xlu0 %1694
  %1696 = vrot.lane.b32.xlu0 %v969, 20
  %v1697 = vpop.permute.xlu0 %1696
  %1698 = vrot.lane.b32.xlu0 %v972, 20
  %v1699 = vpop.permute.xlu0 %1698
  %1700 = vrot.lane.b32.xlu0 %v974, 20
  %v1701 = vpop.permute.xlu0 %1700
  %1702 = vrot.lane.b32.xlu0 %v977, 20
  %v1703 = vpop.permute.xlu0 %1702
  %1704 = vrot.lane.b32.xlu0 %v979, 20
  %v1705 = vpop.permute.xlu0 %1704
  %1706 = vrot.lane.b32.xlu0 %v1579, 20
  %v1707 = vpop.permute.xlu0 %1706
  %1708 = vrot.lane.b32.xlu0 %v1581, 20
  %v1709 = vpop.permute.xlu0 %1708
  %1778 = vrot.lane.b32.xlu0 %v268, 24
  %v1779 = vpop.permute.xlu0 %1778
  %1780 = vrot.lane.b32.xlu0 %v269, 24
  %v1781 = vpop.permute.xlu0 %1780
  %1782 = vrot.lane.b32.xlu0 %v271, 24
  %v1783 = vpop.permute.xlu0 %1782
  %1784 = vrot.lane.b32.xlu0 %v272, 24
  %v1785 = vpop.permute.xlu0 %1784
  %1786 = vrot.lane.b32.xlu0 %v274, 24
  %v1787 = vpop.permute.xlu0 %1786
  %1788 = vrot.lane.b32.xlu0 %v275, 24
  %v1789 = vpop.permute.xlu0 %1788
  %1790 = vrot.lane.b32.xlu0 %v277, 24
  %v1791 = vpop.permute.xlu0 %1790
  %1792 = vrot.lane.b32.xlu0 %v278, 24
  %v1793 = vpop.permute.xlu0 %1792
  %1794 = vrot.lane.b32.xlu0 %v280, 24
  %v1795 = vpop.permute.xlu0 %1794
  %1796 = vrot.lane.b32.xlu0 %v281, 24
  %v1797 = vpop.permute.xlu0 %1796
  %1798 = vrot.lane.b32.xlu0 %v283, 24
  %v1799 = vpop.permute.xlu0 %1798
  %1800 = vrot.lane.b32.xlu0 %v284, 24
  %v1801 = vpop.permute.xlu0 %1800
  %1802 = vrot.lane.b32.xlu0 %v286, 24
  %v1803 = vpop.permute.xlu0 %1802
  %1804 = vrot.lane.b32.xlu0 %v287, 24
  %v1805 = vpop.permute.xlu0 %1804
  %1806 = vrot.lane.b32.xlu0 %v289, 24
  %v1807 = vpop.permute.xlu0 %1806
  %1808 = vrot.lane.b32.xlu0 %v290, 24
  %v1809 = vpop.permute.xlu0 %1808
  %1810 = vrot.lane.b32.xlu0 %v292, 24
  %v1811 = vpop.permute.xlu0 %1810
  %1812 = vrot.lane.b32.xlu0 %v293, 24
  %v1813 = vpop.permute.xlu0 %1812
  %1814 = vrot.lane.b32.xlu0 %v295, 24
  %v1815 = vpop.permute.xlu0 %1814
  %1816 = vrot.lane.b32.xlu0 %v296, 24
  %v1817 = vpop.permute.xlu0 %1816
  %1818 = vrot.lane.b32.xlu0 %v298, 24
  %v1819 = vpop.permute.xlu0 %1818
  %1820 = vrot.lane.b32.xlu0 %v299, 24
  %v1821 = vpop.permute.xlu0 %1820
  %1822 = vrot.lane.b32.xlu0 %v301, 24
  %v1823 = vpop.permute.xlu0 %1822
  %1824 = vrot.lane.b32.xlu0 %v302, 24
  %v1825 = vpop.permute.xlu0 %1824
  %1826 = vrot.lane.b32.xlu0 %v304, 24
  %v1827 = vpop.permute.xlu0 %1826
  %1828 = vrot.lane.b32.xlu0 %v305, 24
  %v1829 = vpop.permute.xlu0 %1828
  %1830 = vrot.lane.b32.xlu0 %v307, 24
  %v1831 = vpop.permute.xlu0 %1830
  %1832 = vrot.lane.b32.xlu0 %v308, 24
  %v1833 = vpop.permute.xlu0 %1832
  %1834 = vrot.lane.b32.xlu0 %v310, 24
  %v1835 = vpop.permute.xlu0 %1834
  %1836 = vrot.lane.b32.xlu0 %v311, 24
  %v1837 = vpop.permute.xlu0 %1836
  %1838 = vrot.lane.b32.xlu0 %v313, 24
  %v1839 = vpop.permute.xlu0 %1838
  %1840 = vrot.lane.b32.xlu0 %v314, 24
  %v1841 = vpop.permute.xlu0 %1840
  %1842 = vrot.lane.b32.xlu0 %v322, 24
  %v1843 = vpop.permute.xlu0 %1842
  %1844 = vrot.lane.b32.xlu0 %v323, 24
  %v1845 = vpop.permute.xlu0 %1844
  %1846 = vrot.lane.b32.xlu0 %v325, 24
  %v1847 = vpop.permute.xlu0 %1846
  %1848 = vrot.lane.b32.xlu0 %v326, 24
  %v1849 = vpop.permute.xlu0 %1848
  %1850 = vrot.lane.b32.xlu0 %v328, 24
  %v1851 = vpop.permute.xlu0 %1850
  %1852 = vrot.lane.b32.xlu0 %v329, 24
  %v1853 = vpop.permute.xlu0 %1852
  %1854 = vrot.lane.b32.xlu0 %v331, 24
  %v1855 = vpop.permute.xlu0 %1854
  %1856 = vrot.lane.b32.xlu0 %v332, 24
  %v1857 = vpop.permute.xlu0 %1856
  %1858 = vrot.lane.b32.xlu0 %v334, 24
  %v1859 = vpop.permute.xlu0 %1858
  %1860 = vrot.lane.b32.xlu0 %v335, 24
  %v1861 = vpop.permute.xlu0 %1860
  %1862 = vrot.lane.b32.xlu0 %v337, 24
  %v1863 = vpop.permute.xlu0 %1862
  %1864 = vrot.lane.b32.xlu0 %v338, 24
  %v1865 = vpop.permute.xlu0 %1864
  %1866 = vrot.lane.b32.xlu0 %v340, 24
  %v1867 = vpop.permute.xlu0 %1866
  %1868 = vrot.lane.b32.xlu0 %v341, 24
  %v1869 = vpop.permute.xlu0 %1868
  %1870 = vrot.lane.b32.xlu0 %v343, 24
  %v1871 = vpop.permute.xlu0 %1870
  %1872 = vrot.lane.b32.xlu0 %v344, 24
  %v1873 = vpop.permute.xlu0 %1872
  %1874 = vrot.lane.b32.xlu0 %v346, 24
  %v1875 = vpop.permute.xlu0 %1874
  %1876 = vrot.lane.b32.xlu0 %v347, 24
  %v1877 = vpop.permute.xlu0 %1876
  %1878 = vrot.lane.b32.xlu0 %v349, 24
  %v1879 = vpop.permute.xlu0 %1878
  %1880 = vrot.lane.b32.xlu0 %v350, 24
  %v1881 = vpop.permute.xlu0 %1880
  %1882 = vrot.lane.b32.xlu0 %v352, 24
  %v1883 = vpop.permute.xlu0 %1882
  %1884 = vrot.lane.b32.xlu0 %v353, 24
  %v1885 = vpop.permute.xlu0 %1884
  %1886 = vrot.lane.b32.xlu0 %v355, 24
  %v1887 = vpop.permute.xlu0 %1886
  %1888 = vrot.lane.b32.xlu0 %v356, 24
  %v1889 = vpop.permute.xlu0 %1888
  %1890 = vrot.lane.b32.xlu0 %v358, 24
  %v1891 = vpop.permute.xlu0 %1890
  %1892 = vrot.lane.b32.xlu0 %v359, 24
  %v1893 = vpop.permute.xlu0 %1892
  %1894 = vrot.lane.b32.xlu0 %v361, 24
  %v1895 = vpop.permute.xlu0 %1894
  %1896 = vrot.lane.b32.xlu0 %v362, 24
  %v1897 = vpop.permute.xlu0 %1896
  %1898 = vrot.lane.b32.xlu0 %v364, 24
  %v1899 = vpop.permute.xlu0 %1898
  %1900 = vrot.lane.b32.xlu0 %v365, 24
  %v1901 = vpop.permute.xlu0 %1900
  %1902 = vrot.lane.b32.xlu0 %v367, 24
  %v1903 = vpop.permute.xlu0 %1902
  %1904 = vrot.lane.b32.xlu0 %v368, 24
  %v1905 = vpop.permute.xlu0 %1904
  %v1972 = vrot.slane %v313, 1
  %v1973 = vrot.slane %v314, 1
  %v1974 = vsel %vm466, %v1972, %v1973
  %v1975 = vrot.slane %v315, 1
  %v1976 = vsel %vm466, %v1973, %v1975
  %v1977 = vrot.slane %v367, 1
  %v1978 = vrot.slane %v368, 1
  %v1979 = vsel %vm466, %v1977, %v1978
  %v1980 = vrot.slane %v369, 1
  %v1981 = vsel %vm466, %v1978, %v1980
  %1982 = vrot.lane.b32.xlu0 %v479, 28
  %v1983 = vpop.permute.xlu0 %1982
  %1984 = vrot.lane.b32.xlu0 %v481, 28
  %v1985 = vpop.permute.xlu0 %1984
  %1986 = vrot.lane.b32.xlu0 %v484, 28
  %v1987 = vpop.permute.xlu0 %1986
  %1988 = vrot.lane.b32.xlu0 %v486, 28
  %v1989 = vpop.permute.xlu0 %1988
  %1990 = vrot.lane.b32.xlu0 %v489, 28
  %v1991 = vpop.permute.xlu0 %1990
  %1992 = vrot.lane.b32.xlu0 %v491, 28
  %v1993 = vpop.permute.xlu0 %1992
  %1994 = vrot.lane.b32.xlu0 %v494, 28
  %v1995 = vpop.permute.xlu0 %1994
  %1996 = vrot.lane.b32.xlu0 %v496, 28
  %v1997 = vpop.permute.xlu0 %1996
  %1998 = vrot.lane.b32.xlu0 %v499, 28
  %v1999 = vpop.permute.xlu0 %1998
  %2000 = vrot.lane.b32.xlu0 %v501, 28
  %v2001 = vpop.permute.xlu0 %2000
  %2002 = vrot.lane.b32.xlu0 %v504, 28
  %v2003 = vpop.permute.xlu0 %2002
  %2004 = vrot.lane.b32.xlu0 %v506, 28
  %v2005 = vpop.permute.xlu0 %2004
  %2006 = vrot.lane.b32.xlu0 %v509, 28
  %v2007 = vpop.permute.xlu0 %2006
  %2008 = vrot.lane.b32.xlu0 %v511, 28
  %v2009 = vpop.permute.xlu0 %2008
  %2010 = vrot.lane.b32.xlu0 %v514, 28
  %v2011 = vpop.permute.xlu0 %2010
  %2012 = vrot.lane.b32.xlu0 %v516, 28
  %v2013 = vpop.permute.xlu0 %2012
  %2014 = vrot.lane.b32.xlu0 %v519, 28
  %v2015 = vpop.permute.xlu0 %2014
  %2016 = vrot.lane.b32.xlu0 %v521, 28
  %v2017 = vpop.permute.xlu0 %2016
  %2018 = vrot.lane.b32.xlu0 %v524, 28
  %v2019 = vpop.permute.xlu0 %2018
  %2020 = vrot.lane.b32.xlu0 %v526, 28
  %v2021 = vpop.permute.xlu0 %2020
  %2022 = vrot.lane.b32.xlu0 %v529, 28
  %v2023 = vpop.permute.xlu0 %2022
  %2024 = vrot.lane.b32.xlu0 %v531, 28
  %v2025 = vpop.permute.xlu0 %2024
  %2026 = vrot.lane.b32.xlu0 %v534, 28
  %v2027 = vpop.permute.xlu0 %2026
  %2028 = vrot.lane.b32.xlu0 %v536, 28
  %v2029 = vpop.permute.xlu0 %2028
  %2030 = vrot.lane.b32.xlu0 %v539, 28
  %v2031 = vpop.permute.xlu0 %2030
  %2032 = vrot.lane.b32.xlu0 %v541, 28
  %v2033 = vpop.permute.xlu0 %2032
  %2034 = vrot.lane.b32.xlu0 %v544, 28
  %v2035 = vpop.permute.xlu0 %2034
  %2036 = vrot.lane.b32.xlu0 %v546, 28
  %v2037 = vpop.permute.xlu0 %2036
  %2038 = vrot.lane.b32.xlu0 %v1372, 28
  %v2039 = vpop.permute.xlu0 %2038
  %2040 = vrot.lane.b32.xlu0 %v1374, 28
  %v2041 = vpop.permute.xlu0 %2040
  %2042 = vrot.lane.b32.xlu0 %v1974, 28
  %v2043 = vpop.permute.xlu0 %2042
  %2044 = vrot.lane.b32.xlu0 %v1976, 28
  %v2045 = vpop.permute.xlu0 %2044
  %2046 = vrot.lane.b32.xlu0 %v559, 28
  %v2047 = vpop.permute.xlu0 %2046
  %2048 = vrot.lane.b32.xlu0 %v561, 28
  %v2049 = vpop.permute.xlu0 %2048
  %2050 = vrot.lane.b32.xlu0 %v564, 28
  %v2051 = vpop.permute.xlu0 %2050
  %2052 = vrot.lane.b32.xlu0 %v566, 28
  %v2053 = vpop.permute.xlu0 %2052
  %2054 = vrot.lane.b32.xlu0 %v569, 28
  %v2055 = vpop.permute.xlu0 %2054
  %2056 = vrot.lane.b32.xlu0 %v571, 28
  %v2057 = vpop.permute.xlu0 %2056
  %2058 = vrot.lane.b32.xlu0 %v574, 28
  %v2059 = vpop.permute.xlu0 %2058
  %2060 = vrot.lane.b32.xlu0 %v576, 28
  %v2061 = vpop.permute.xlu0 %2060
  %2062 = vrot.lane.b32.xlu0 %v579, 28
  %v2063 = vpop.permute.xlu0 %2062
  %2064 = vrot.lane.b32.xlu0 %v581, 28
  %v2065 = vpop.permute.xlu0 %2064
  %2066 = vrot.lane.b32.xlu0 %v584, 28
  %v2067 = vpop.permute.xlu0 %2066
  %2068 = vrot.lane.b32.xlu0 %v586, 28
  %v2069 = vpop.permute.xlu0 %2068
  %2070 = vrot.lane.b32.xlu0 %v589, 28
  %v2071 = vpop.permute.xlu0 %2070
  %2072 = vrot.lane.b32.xlu0 %v591, 28
  %v2073 = vpop.permute.xlu0 %2072
  %2074 = vrot.lane.b32.xlu0 %v594, 28
  %v2075 = vpop.permute.xlu0 %2074
  %2076 = vrot.lane.b32.xlu0 %v596, 28
  %v2077 = vpop.permute.xlu0 %2076
  %2078 = vrot.lane.b32.xlu0 %v599, 28
  %v2079 = vpop.permute.xlu0 %2078
  %2080 = vrot.lane.b32.xlu0 %v601, 28
  %v2081 = vpop.permute.xlu0 %2080
  %2082 = vrot.lane.b32.xlu0 %v604, 28
  %v2083 = vpop.permute.xlu0 %2082
  %2084 = vrot.lane.b32.xlu0 %v606, 28
  %v2085 = vpop.permute.xlu0 %2084
  %2086 = vrot.lane.b32.xlu0 %v609, 28
  %v2087 = vpop.permute.xlu0 %2086
  %2088 = vrot.lane.b32.xlu0 %v611, 28
  %v2089 = vpop.permute.xlu0 %2088
  %2090 = vrot.lane.b32.xlu0 %v614, 28
  %v2091 = vpop.permute.xlu0 %2090
  %2092 = vrot.lane.b32.xlu0 %v616, 28
  %v2093 = vpop.permute.xlu0 %2092
  %2094 = vrot.lane.b32.xlu0 %v619, 28
  %v2095 = vpop.permute.xlu0 %2094
  %2096 = vrot.lane.b32.xlu0 %v621, 28
  %v2097 = vpop.permute.xlu0 %2096
  %2098 = vrot.lane.b32.xlu0 %v624, 28
  %v2099 = vpop.permute.xlu0 %2098
  %2100 = vrot.lane.b32.xlu0 %v626, 28
  %v2101 = vpop.permute.xlu0 %2100
  %2102 = vrot.lane.b32.xlu0 %v1377, 28
  %v2103 = vpop.permute.xlu0 %2102
  %2104 = vrot.lane.b32.xlu0 %v1379, 28
  %v2105 = vpop.permute.xlu0 %2104
  %2106 = vrot.lane.b32.xlu0 %v1979, 28
  %v2107 = vpop.permute.xlu0 %2106
  %2108 = vrot.lane.b32.xlu0 %v1981, 28
  %v2109 = vpop.permute.xlu0 %2108
  %v2174 = vrot.slane %v313, 2
  %v2175 = vrot.slane %v314, 2
  %v2176 = vsel %vm819, %v2174, %v2175
  %v2177 = vrot.slane %v315, 2
  %v2178 = vsel %vm819, %v2175, %v2177
  %v2179 = vrot.slane %v367, 2
  %v2180 = vrot.slane %v368, 2
  %v2181 = vsel %vm819, %v2179, %v2180
  %v2182 = vrot.slane %v369, 2
  %v2183 = vsel %vm819, %v2180, %v2182
  %2184 = vrot.lane.b32.xlu0 %v832, 32
  %v2185 = vpop.permute.xlu0 %2184
  %2186 = vrot.lane.b32.xlu0 %v834, 32
  %v2187 = vpop.permute.xlu0 %2186
  %2188 = vrot.lane.b32.xlu0 %v837, 32
  %v2189 = vpop.permute.xlu0 %2188
  %2190 = vrot.lane.b32.xlu0 %v839, 32
  %v2191 = vpop.permute.xlu0 %2190
  %2192 = vrot.lane.b32.xlu0 %v842, 32
  %v2193 = vpop.permute.xlu0 %2192
  %2194 = vrot.lane.b32.xlu0 %v844, 32
  %v2195 = vpop.permute.xlu0 %2194
  %2196 = vrot.lane.b32.xlu0 %v847, 32
  %v2197 = vpop.permute.xlu0 %2196
  %2198 = vrot.lane.b32.xlu0 %v849, 32
  %v2199 = vpop.permute.xlu0 %2198
  %2200 = vrot.lane.b32.xlu0 %v852, 32
  %v2201 = vpop.permute.xlu0 %2200
  %2202 = vrot.lane.b32.xlu0 %v854, 32
  %v2203 = vpop.permute.xlu0 %2202
  %2204 = vrot.lane.b32.xlu0 %v857, 32
  %v2205 = vpop.permute.xlu0 %2204
  %2206 = vrot.lane.b32.xlu0 %v859, 32
  %v2207 = vpop.permute.xlu0 %2206
  %2208 = vrot.lane.b32.xlu0 %v862, 32
  %v2209 = vpop.permute.xlu0 %2208
  %2210 = vrot.lane.b32.xlu0 %v864, 32
  %v2211 = vpop.permute.xlu0 %2210
  %2212 = vrot.lane.b32.xlu0 %v867, 32
  %v2213 = vpop.permute.xlu0 %2212
  %2214 = vrot.lane.b32.xlu0 %v869, 32
  %v2215 = vpop.permute.xlu0 %2214
  %2216 = vrot.lane.b32.xlu0 %v872, 32
  %v2217 = vpop.permute.xlu0 %2216
  %2218 = vrot.lane.b32.xlu0 %v874, 32
  %v2219 = vpop.permute.xlu0 %2218
  %2220 = vrot.lane.b32.xlu0 %v877, 32
  %v2221 = vpop.permute.xlu0 %2220
  %2222 = vrot.lane.b32.xlu0 %v879, 32
  %v2223 = vpop.permute.xlu0 %2222
  %2224 = vrot.lane.b32.xlu0 %v882, 32
  %v2225 = vpop.permute.xlu0 %2224
  %2226 = vrot.lane.b32.xlu0 %v884, 32
  %v2227 = vpop.permute.xlu0 %2226
  %2228 = vrot.lane.b32.xlu0 %v887, 32
  %v2229 = vpop.permute.xlu0 %2228
  %2230 = vrot.lane.b32.xlu0 %v889, 32
  %v2231 = vpop.permute.xlu0 %2230
  %2232 = vrot.lane.b32.xlu0 %v892, 32
  %v2233 = vpop.permute.xlu0 %2232
  %2234 = vrot.lane.b32.xlu0 %v894, 32
  %v2235 = vpop.permute.xlu0 %2234
  %2236 = vrot.lane.b32.xlu0 %v897, 32
  %v2237 = vpop.permute.xlu0 %2236
  %2238 = vrot.lane.b32.xlu0 %v899, 32
  %v2239 = vpop.permute.xlu0 %2238
  %2240 = vrot.lane.b32.xlu0 %v1574, 32
  %v2241 = vpop.permute.xlu0 %2240
  %2242 = vrot.lane.b32.xlu0 %v1576, 32
  %v2243 = vpop.permute.xlu0 %2242
  %2244 = vrot.lane.b32.xlu0 %v2176, 32
  %v2245 = vpop.permute.xlu0 %2244
  %2246 = vrot.lane.b32.xlu0 %v2178, 32
  %v2247 = vpop.permute.xlu0 %2246
  %2248 = vrot.lane.b32.xlu0 %v912, 32
  %v2249 = vpop.permute.xlu0 %2248
  %2250 = vrot.lane.b32.xlu0 %v914, 32
  %v2251 = vpop.permute.xlu0 %2250
  %2252 = vrot.lane.b32.xlu0 %v917, 32
  %v2253 = vpop.permute.xlu0 %2252
  %2254 = vrot.lane.b32.xlu0 %v919, 32
  %v2255 = vpop.permute.xlu0 %2254
  %2256 = vrot.lane.b32.xlu0 %v922, 32
  %v2257 = vpop.permute.xlu0 %2256
  %2258 = vrot.lane.b32.xlu0 %v924, 32
  %v2259 = vpop.permute.xlu0 %2258
  %2260 = vrot.lane.b32.xlu0 %v927, 32
  %v2261 = vpop.permute.xlu0 %2260
  %2262 = vrot.lane.b32.xlu0 %v929, 32
  %v2263 = vpop.permute.xlu0 %2262
  %2264 = vrot.lane.b32.xlu0 %v932, 32
  %v2265 = vpop.permute.xlu0 %2264
  %2266 = vrot.lane.b32.xlu0 %v934, 32
  %v2267 = vpop.permute.xlu0 %2266
  %2268 = vrot.lane.b32.xlu0 %v937, 32
  %v2269 = vpop.permute.xlu0 %2268
  %2270 = vrot.lane.b32.xlu0 %v939, 32
  %v2271 = vpop.permute.xlu0 %2270
  %2272 = vrot.lane.b32.xlu0 %v942, 32
  %v2273 = vpop.permute.xlu0 %2272
  %2274 = vrot.lane.b32.xlu0 %v944, 32
  %v2275 = vpop.permute.xlu0 %2274
  %2276 = vrot.lane.b32.xlu0 %v947, 32
  %v2277 = vpop.permute.xlu0 %2276
  %2278 = vrot.lane.b32.xlu0 %v949, 32
  %v2279 = vpop.permute.xlu0 %2278
  %2280 = vrot.lane.b32.xlu0 %v952, 32
  %v2281 = vpop.permute.xlu0 %2280
  %2282 = vrot.lane.b32.xlu0 %v954, 32
  %v2283 = vpop.permute.xlu0 %2282
  %2284 = vrot.lane.b32.xlu0 %v957, 32
  %v2285 = vpop.permute.xlu0 %2284
  %2286 = vrot.lane.b32.xlu0 %v959, 32
  %v2287 = vpop.permute.xlu0 %2286
  %2288 = vrot.lane.b32.xlu0 %v962, 32
  %v2289 = vpop.permute.xlu0 %2288
  %2290 = vrot.lane.b32.xlu0 %v964, 32
  %v2291 = vpop.permute.xlu0 %2290
  %2292 = vrot.lane.b32.xlu0 %v967, 32
  %v2293 = vpop.permute.xlu0 %2292
  %2294 = vrot.lane.b32.xlu0 %v969, 32
  %v2295 = vpop.permute.xlu0 %2294
  %2296 = vrot.lane.b32.xlu0 %v972, 32
  %v2297 = vpop.permute.xlu0 %2296
  %2298 = vrot.lane.b32.xlu0 %v974, 32
  %v2299 = vpop.permute.xlu0 %2298
  %2300 = vrot.lane.b32.xlu0 %v977, 32
  %v2301 = vpop.permute.xlu0 %2300
  %2302 = vrot.lane.b32.xlu0 %v979, 32
  %v2303 = vpop.permute.xlu0 %2302
  %2304 = vrot.lane.b32.xlu0 %v1579, 32
  %v2305 = vpop.permute.xlu0 %2304
  %2306 = vrot.lane.b32.xlu0 %v1581, 32
  %v2307 = vpop.permute.xlu0 %2306
  %2308 = vrot.lane.b32.xlu0 %v2181, 32
  %v2309 = vpop.permute.xlu0 %2308
  %2310 = vrot.lane.b32.xlu0 %v2183, 32
  %v2311 = vpop.permute.xlu0 %2310
  %v2376 = vsel %vm23, %v262, %v628
  %v2377 = vsel %vm23, %v263, %v630
  %v2378 = vsel %vm23, %v265, %v632
  %v2379 = vsel %vm23, %v266, %v634
  %v2380 = vsel %vm23, %v268, %v636
  %v2381 = vsel %vm23, %v269, %v638
  %v2382 = vsel %vm23, %v271, %v640
  %v2383 = vsel %vm23, %v272, %v642
  %v2384 = vsel %vm23, %v274, %v644
  %v2385 = vsel %vm23, %v275, %v646
  %v2386 = vsel %vm23, %v277, %v648
  %v2387 = vsel %vm23, %v278, %v650
  %v2388 = vsel %vm23, %v280, %v652
  %v2389 = vsel %vm23, %v281, %v654
  %v2390 = vsel %vm23, %v283, %v656
  %v2391 = vsel %vm23, %v284, %v658
  %v2392 = vsel %vm23, %v286, %v660
  %v2393 = vsel %vm23, %v287, %v662
  %v2394 = vsel %vm23, %v289, %v664
  %v2395 = vsel %vm23, %v290, %v666
  %v2396 = vsel %vm23, %v292, %v668
  %v2397 = vsel %vm23, %v293, %v670
  %v2398 = vsel %vm23, %v295, %v672
  %v2399 = vsel %vm23, %v296, %v674
  %v2400 = vsel %vm23, %v298, %v676
  %v2401 = vsel %vm23, %v299, %v678
  %v2402 = vsel %vm23, %v301, %v680
  %v2403 = vsel %vm23, %v302, %v682
  %v2404 = vsel %vm23, %v304, %v684
  %v2405 = vsel %vm23, %v305, %v686
  %v2406 = vsel %vm23, %v307, %v688
  %v2407 = vsel %vm23, %v308, %v690
  %v2408 = vsel %vm23, %v316, %v692
  %v2409 = vsel %vm23, %v317, %v694
  %v2410 = vsel %vm23, %v319, %v696
  %v2411 = vsel %vm23, %v320, %v698
  %v2412 = vsel %vm23, %v322, %v700
  %v2413 = vsel %vm23, %v323, %v702
  %v2414 = vsel %vm23, %v325, %v704
  %v2415 = vsel %vm23, %v326, %v706
  %v2416 = vsel %vm23, %v328, %v708
  %v2417 = vsel %vm23, %v329, %v710
  %v2418 = vsel %vm23, %v331, %v712
  %v2419 = vsel %vm23, %v332, %v714
  %v2420 = vsel %vm23, %v334, %v716
  %v2421 = vsel %vm23, %v335, %v718
  %v2422 = vsel %vm23, %v337, %v720
  %v2423 = vsel %vm23, %v338, %v722
  %v2424 = vsel %vm23, %v340, %v724
  %v2425 = vsel %vm23, %v341, %v726
  %v2426 = vsel %vm23, %v343, %v728
  %v2427 = vsel %vm23, %v344, %v730
  %v2428 = vsel %vm23, %v346, %v732
  %v2429 = vsel %vm23, %v347, %v734
  %v2430 = vsel %vm23, %v349, %v736
  %v2431 = vsel %vm23, %v350, %v738
  %v2432 = vsel %vm23, %v352, %v740
  %v2433 = vsel %vm23, %v353, %v742
  %v2434 = vsel %vm23, %v355, %v744
  %v2435 = vsel %vm23, %v356, %v746
  %v2436 = vsel %vm23, %v358, %v748
  %v2437 = vsel %vm23, %v359, %v750
  %v2438 = vsel %vm23, %v361, %v752
  %v2439 = vsel %vm23, %v362, %v754
  %vm2440 = vcmask 64512
  %v2441 = vsel %vm2440, %v2376, %v981
  %v2442 = vsel %vm2440, %v2377, %v983
  %v2443 = vsel %vm2440, %v2378, %v985
  %v2444 = vsel %vm2440, %v2379, %v987
  %v2445 = vsel %vm2440, %v2380, %v989
  %v2446 = vsel %vm2440, %v2381, %v991
  %v2447 = vsel %vm2440, %v2382, %v993
  %v2448 = vsel %vm2440, %v2383, %v995
  %v2449 = vsel %vm2440, %v2384, %v997
  %v2450 = vsel %vm2440, %v2385, %v999
  %v2451 = vsel %vm2440, %v2386, %v1001
  %v2452 = vsel %vm2440, %v2387, %v1003
  %v2453 = vsel %vm2440, %v2388, %v1005
  %v2454 = vsel %vm2440, %v2389, %v1007
  %v2455 = vsel %vm2440, %v2390, %v1009
  %v2456 = vsel %vm2440, %v2391, %v1011
  %v2457 = vsel %vm2440, %v2392, %v1013
  %v2458 = vsel %vm2440, %v2393, %v1015
  %v2459 = vsel %vm2440, %v2394, %v1017
  %v2460 = vsel %vm2440, %v2395, %v1019
  %v2461 = vsel %vm2440, %v2396, %v1021
  %v2462 = vsel %vm2440, %v2397, %v1023
  %v2463 = vsel %vm2440, %v2398, %v1025
  %v2464 = vsel %vm2440, %v2399, %v1027
  %v2465 = vsel %vm2440, %v2400, %v1029
  %v2466 = vsel %vm2440, %v2401, %v1031
  %v2467 = vsel %vm2440, %v2402, %v1033
  %v2468 = vsel %vm2440, %v2403, %v1035
  %v2469 = vsel %vm2440, %v2404, %v1037
  %v2470 = vsel %vm2440, %v2405, %v1039
  %v2471 = vsel %vm2440, %v2406, %v1041
  %v2472 = vsel %vm2440, %v2407, %v1043
  %v2473 = vsel %vm2440, %v2408, %v1045
  %v2474 = vsel %vm2440, %v2409, %v1047
  %v2475 = vsel %vm2440, %v2410, %v1049
  %v2476 = vsel %vm2440, %v2411, %v1051
  %v2477 = vsel %vm2440, %v2412, %v1053
  %v2478 = vsel %vm2440, %v2413, %v1055
  %v2479 = vsel %vm2440, %v2414, %v1057
  %v2480 = vsel %vm2440, %v2415, %v1059
  %v2481 = vsel %vm2440, %v2416, %v1061
  %v2482 = vsel %vm2440, %v2417, %v1063
  %v2483 = vsel %vm2440, %v2418, %v1065
  %v2484 = vsel %vm2440, %v2419, %v1067
  %v2485 = vsel %vm2440, %v2420, %v1069
  %v2486 = vsel %vm2440, %v2421, %v1071
  %v2487 = vsel %vm2440, %v2422, %v1073
  %v2488 = vsel %vm2440, %v2423, %v1075
  %v2489 = vsel %vm2440, %v2424, %v1077
  %v2490 = vsel %vm2440, %v2425, %v1079
  %v2491 = vsel %vm2440, %v2426, %v1081
  %v2492 = vsel %vm2440, %v2427, %v1083
  %v2493 = vsel %vm2440, %v2428, %v1085
  %v2494 = vsel %vm2440, %v2429, %v1087
  %v2495 = vsel %vm2440, %v2430, %v1089
  %v2496 = vsel %vm2440, %v2431, %v1091
  %v2497 = vsel %vm2440, %v2432, %v1093
  %v2498 = vsel %vm2440, %v2433, %v1095
  %v2499 = vsel %vm2440, %v2434, %v1097
  %v2500 = vsel %vm2440, %v2435, %v1099
  %v2501 = vsel %vm2440, %v2436, %v1101
  %v2502 = vsel %vm2440, %v2437, %v1103
  %v2503 = vsel %vm2440, %v2438, %v1105
  %v2504 = vsel %vm2440, %v2439, %v1107
  %vm2505 = vcmask 97280
  %v2506 = vsel %vm2505, %v2441, %v1177
  %v2507 = vsel %vm2505, %v2442, %v1179
  %v2508 = vsel %vm2505, %v2443, %v1181
  %v2509 = vsel %vm2505, %v2444, %v1183
  %v2510 = vsel %vm2505, %v2445, %v1185
  %v2511 = vsel %vm2505, %v2446, %v1187
  %v2512 = vsel %vm2505, %v2447, %v1189
  %v2513 = vsel %vm2505, %v2448, %v1191
  %v2514 = vsel %vm2505, %v2449, %v1193
  %v2515 = vsel %vm2505, %v2450, %v1195
  %v2516 = vsel %vm2505, %v2451, %v1197
  %v2517 = vsel %vm2505, %v2452, %v1199
  %v2518 = vsel %vm2505, %v2453, %v1201
  %v2519 = vsel %vm2505, %v2454, %v1203
  %v2520 = vsel %vm2505, %v2455, %v1205
  %v2521 = vsel %vm2505, %v2456, %v1207
  %v2522 = vsel %vm2505, %v2457, %v1209
  %v2523 = vsel %vm2505, %v2458, %v1211
  %v2524 = vsel %vm2505, %v2459, %v1213
  %v2525 = vsel %vm2505, %v2460, %v1215
  %v2526 = vsel %vm2505, %v2461, %v1217
  %v2527 = vsel %vm2505, %v2462, %v1219
  %v2528 = vsel %vm2505, %v2463, %v1221
  %v2529 = vsel %vm2505, %v2464, %v1223
  %v2530 = vsel %vm2505, %v2465, %v1225
  %v2531 = vsel %vm2505, %v2466, %v1227
  %v2532 = vsel %vm2505, %v2467, %v1229
  %v2533 = vsel %vm2505, %v2468, %v1231
  %v2534 = vsel %vm2505, %v2469, %v1233
  %v2535 = vsel %vm2505, %v2470, %v1235
  %v2536 = vsel %vm2505, %v2471, %v1237
  %v2537 = vsel %vm2505, %v2472, %v1239
  %v2538 = vsel %vm2505, %v2473, %v1241
  %v2539 = vsel %vm2505, %v2474, %v1243
  %v2540 = vsel %vm2505, %v2475, %v1245
  %v2541 = vsel %vm2505, %v2476, %v1247
  %v2542 = vsel %vm2505, %v2477, %v1249
  %v2543 = vsel %vm2505, %v2478, %v1251
  %v2544 = vsel %vm2505, %v2479, %v1253
  %v2545 = vsel %vm2505, %v2480, %v1255
  %v2546 = vsel %vm2505, %v2481, %v1257
  %v2547 = vsel %vm2505, %v2482, %v1259
  %v2548 = vsel %vm2505, %v2483, %v1261
  %v2549 = vsel %vm2505, %v2484, %v1263
  %v2550 = vsel %vm2505, %v2485, %v1265
  %v2551 = vsel %vm2505, %v2486, %v1267
  %v2552 = vsel %vm2505, %v2487, %v1269
  %v2553 = vsel %vm2505, %v2488, %v1271
  %v2554 = vsel %vm2505, %v2489, %v1273
  %v2555 = vsel %vm2505, %v2490, %v1275
  %v2556 = vsel %vm2505, %v2491, %v1277
  %v2557 = vsel %vm2505, %v2492, %v1279
  %v2558 = vsel %vm2505, %v2493, %v1281
  %v2559 = vsel %vm2505, %v2494, %v1283
  %v2560 = vsel %vm2505, %v2495, %v1285
  %v2561 = vsel %vm2505, %v2496, %v1287
  %v2562 = vsel %vm2505, %v2497, %v1289
  %v2563 = vsel %vm2505, %v2498, %v1291
  %v2564 = vsel %vm2505, %v2499, %v1293
  %v2565 = vsel %vm2505, %v2500, %v1295
  %v2566 = vsel %vm2505, %v2501, %v1297
  %v2567 = vsel %vm2505, %v2502, %v1299
  %v2568 = vsel %vm2505, %v2503, %v1301
  %v2569 = vsel %vm2505, %v2504, %v1303
  %vm2570 = vcmask 130048
  %v2571 = vsel %vm2570, %v2506, %v1381
  %v2572 = vsel %vm2570, %v2507, %v1383
  %v2573 = vsel %vm2570, %v2508, %v1385
  %v2574 = vsel %vm2570, %v2509, %v1387
  %v2575 = vsel %vm2570, %v2510, %v1389
  %v2576 = vsel %vm2570, %v2511, %v1391
  %v2577 = vsel %vm2570, %v2512, %v1393
  %v2578 = vsel %vm2570, %v2513, %v1395
  %v2579 = vsel %vm2570, %v2514, %v1397
  %v2580 = vsel %vm2570, %v2515, %v1399
  %v2581 = vsel %vm2570, %v2516, %v1401
  %v2582 = vsel %vm2570, %v2517, %v1403
  %v2583 = vsel %vm2570, %v2518, %v1405
  %v2584 = vsel %vm2570, %v2519, %v1407
  %v2585 = vsel %vm2570, %v2520, %v1409
  %v2586 = vsel %vm2570, %v2521, %v1411
  %v2587 = vsel %vm2570, %v2522, %v1413
  %v2588 = vsel %vm2570, %v2523, %v1415
  %v2589 = vsel %vm2570, %v2524, %v1417
  %v2590 = vsel %vm2570, %v2525, %v1419
  %v2591 = vsel %vm2570, %v2526, %v1421
  %v2592 = vsel %vm2570, %v2527, %v1423
  %v2593 = vsel %vm2570, %v2528, %v1425
  %v2594 = vsel %vm2570, %v2529, %v1427
  %v2595 = vsel %vm2570, %v2530, %v1429
  %v2596 = vsel %vm2570, %v2531, %v1431
  %v2597 = vsel %vm2570, %v2532, %v1433
  %v2598 = vsel %vm2570, %v2533, %v1435
  %v2599 = vsel %vm2570, %v2534, %v1437
  %v2600 = vsel %vm2570, %v2535, %v1439
  %v2601 = vsel %vm2570, %v2536, %v1441
  %v2602 = vsel %vm2570, %v2537, %v1443
  %v2603 = vsel %vm2570, %v2538, %v1445
  %v2604 = vsel %vm2570, %v2539, %v1447
  %v2605 = vsel %vm2570, %v2540, %v1449
  %v2606 = vsel %vm2570, %v2541, %v1451
  %v2607 = vsel %vm2570, %v2542, %v1453
  %v2608 = vsel %vm2570, %v2543, %v1455
  %v2609 = vsel %vm2570, %v2544, %v1457
  %v2610 = vsel %vm2570, %v2545, %v1459
  %v2611 = vsel %vm2570, %v2546, %v1461
  %v2612 = vsel %vm2570, %v2547, %v1463
  %v2613 = vsel %vm2570, %v2548, %v1465
  %v2614 = vsel %vm2570, %v2549, %v1467
  %v2615 = vsel %vm2570, %v2550, %v1469
  %v2616 = vsel %vm2570, %v2551, %v1471
  %v2617 = vsel %vm2570, %v2552, %v1473
  %v2618 = vsel %vm2570, %v2553, %v1475
  %v2619 = vsel %vm2570, %v2554, %v1477
  %v2620 = vsel %vm2570, %v2555, %v1479
  %v2621 = vsel %vm2570, %v2556, %v1481
  %v2622 = vsel %vm2570, %v2557, %v1483
  %v2623 = vsel %vm2570, %v2558, %v1485
  %v2624 = vsel %vm2570, %v2559, %v1487
  %v2625 = vsel %vm2570, %v2560, %v1489
  %v2626 = vsel %vm2570, %v2561, %v1491
  %v2627 = vsel %vm2570, %v2562, %v1493
  %v2628 = vsel %vm2570, %v2563, %v1495
  %v2629 = vsel %vm2570, %v2564, %v1497
  %v2630 = vsel %vm2570, %v2565, %v1499
  %v2631 = vsel %vm2570, %v2566, %v1501
  %v2632 = vsel %vm2570, %v2567, %v1503
  %v2633 = vsel %vm2570, %v2568, %v1505
  %v2634 = vsel %vm2570, %v2569, %v1507
  %vm2635 = vcmask 162816
  %v2636 = vsel %vm2635, %v2571, %v1583
  %v2637 = vsel %vm2635, %v2572, %v1585
  %v2638 = vsel %vm2635, %v2573, %v1587
  %v2639 = vsel %vm2635, %v2574, %v1589
  %v2640 = vsel %vm2635, %v2575, %v1591
  %v2641 = vsel %vm2635, %v2576, %v1593
  %v2642 = vsel %vm2635, %v2577, %v1595
  %v2643 = vsel %vm2635, %v2578, %v1597
  %v2644 = vsel %vm2635, %v2579, %v1599
  %v2645 = vsel %vm2635, %v2580, %v1601
  %v2646 = vsel %vm2635, %v2581, %v1603
  %v2647 = vsel %vm2635, %v2582, %v1605
  %v2648 = vsel %vm2635, %v2583, %v1607
  %v2649 = vsel %vm2635, %v2584, %v1609
  %v2650 = vsel %vm2635, %v2585, %v1611
  %v2651 = vsel %vm2635, %v2586, %v1613
  %v2652 = vsel %vm2635, %v2587, %v1615
  %v2653 = vsel %vm2635, %v2588, %v1617
  %v2654 = vsel %vm2635, %v2589, %v1619
  %v2655 = vsel %vm2635, %v2590, %v1621
  %v2656 = vsel %vm2635, %v2591, %v1623
  %v2657 = vsel %vm2635, %v2592, %v1625
  %v2658 = vsel %vm2635, %v2593, %v1627
  %v2659 = vsel %vm2635, %v2594, %v1629
  %v2660 = vsel %vm2635, %v2595, %v1631
  %v2661 = vsel %vm2635, %v2596, %v1633
  %v2662 = vsel %vm2635, %v2597, %v1635
  %v2663 = vsel %vm2635, %v2598, %v1637
  %v2664 = vsel %vm2635, %v2599, %v1639
  %v2665 = vsel %vm2635, %v2600, %v1641
  %v2666 = vsel %vm2635, %v2601, %v1643
  %v2667 = vsel %vm2635, %v2602, %v1645
  %v2668 = vsel %vm2635, %v2603, %v1647
  %v2669 = vsel %vm2635, %v2604, %v1649
  %v2670 = vsel %vm2635, %v2605, %v1651
  %v2671 = vsel %vm2635, %v2606, %v1653
  %v2672 = vsel %vm2635, %v2607, %v1655
  %v2673 = vsel %vm2635, %v2608, %v1657
  %v2674 = vsel %vm2635, %v2609, %v1659
  %v2675 = vsel %vm2635, %v2610, %v1661
  %v2676 = vsel %vm2635, %v2611, %v1663
  %v2677 = vsel %vm2635, %v2612, %v1665
  %v2678 = vsel %vm2635, %v2613, %v1667
  %v2679 = vsel %vm2635, %v2614, %v1669
  %v2680 = vsel %vm2635, %v2615, %v1671
  %v2681 = vsel %vm2635, %v2616, %v1673
  %v2682 = vsel %vm2635, %v2617, %v1675
  %v2683 = vsel %vm2635, %v2618, %v1677
  %v2684 = vsel %vm2635, %v2619, %v1679
  %v2685 = vsel %vm2635, %v2620, %v1681
  %v2686 = vsel %vm2635, %v2621, %v1683
  %v2687 = vsel %vm2635, %v2622, %v1685
  %v2688 = vsel %vm2635, %v2623, %v1687
  %v2689 = vsel %vm2635, %v2624, %v1689
  %v2690 = vsel %vm2635, %v2625, %v1691
  %v2691 = vsel %vm2635, %v2626, %v1693
  %v2692 = vsel %vm2635, %v2627, %v1695
  %v2693 = vsel %vm2635, %v2628, %v1697
  %v2694 = vsel %vm2635, %v2629, %v1699
  %v2695 = vsel %vm2635, %v2630, %v1701
  %v2696 = vsel %vm2635, %v2631, %v1703
  %v2697 = vsel %vm2635, %v2632, %v1705
  %v2698 = vsel %vm2635, %v2633, %v1707
  %v2699 = vsel %vm2635, %v2634, %v1709
  %vm2700 = vcmask 195584
  %v2701 = vsel %vm2700, %v2636, %v1779
  %v2702 = vsel %vm2700, %v2637, %v1781
  %v2703 = vsel %vm2700, %v2638, %v1783
  %v2704 = vsel %vm2700, %v2639, %v1785
  %v2705 = vsel %vm2700, %v2640, %v1787
  %v2706 = vsel %vm2700, %v2641, %v1789
  %v2707 = vsel %vm2700, %v2642, %v1791
  %v2708 = vsel %vm2700, %v2643, %v1793
  %v2709 = vsel %vm2700, %v2644, %v1795
  %v2710 = vsel %vm2700, %v2645, %v1797
  %v2711 = vsel %vm2700, %v2646, %v1799
  %v2712 = vsel %vm2700, %v2647, %v1801
  %v2713 = vsel %vm2700, %v2648, %v1803
  %v2714 = vsel %vm2700, %v2649, %v1805
  %v2715 = vsel %vm2700, %v2650, %v1807
  %v2716 = vsel %vm2700, %v2651, %v1809
  %v2717 = vsel %vm2700, %v2652, %v1811
  %v2718 = vsel %vm2700, %v2653, %v1813
  %v2719 = vsel %vm2700, %v2654, %v1815
  %v2720 = vsel %vm2700, %v2655, %v1817
  %v2721 = vsel %vm2700, %v2656, %v1819
  %v2722 = vsel %vm2700, %v2657, %v1821
  %v2723 = vsel %vm2700, %v2658, %v1823
  %v2724 = vsel %vm2700, %v2659, %v1825
  %v2725 = vsel %vm2700, %v2660, %v1827
  %v2726 = vsel %vm2700, %v2661, %v1829
  %v2727 = vsel %vm2700, %v2662, %v1831
  %v2728 = vsel %vm2700, %v2663, %v1833
  %v2729 = vsel %vm2700, %v2664, %v1835
  %v2730 = vsel %vm2700, %v2665, %v1837
  %v2731 = vsel %vm2700, %v2666, %v1839
  %v2732 = vsel %vm2700, %v2667, %v1841
  %v2733 = vsel %vm2700, %v2668, %v1843
  %v2734 = vsel %vm2700, %v2669, %v1845
  %v2735 = vsel %vm2700, %v2670, %v1847
  %v2736 = vsel %vm2700, %v2671, %v1849
  %v2737 = vsel %vm2700, %v2672, %v1851
  %v2738 = vsel %vm2700, %v2673, %v1853
  %v2739 = vsel %vm2700, %v2674, %v1855
  %v2740 = vsel %vm2700, %v2675, %v1857
  %v2741 = vsel %vm2700, %v2676, %v1859
  %v2742 = vsel %vm2700, %v2677, %v1861
  %v2743 = vsel %vm2700, %v2678, %v1863
  %v2744 = vsel %vm2700, %v2679, %v1865
  %v2745 = vsel %vm2700, %v2680, %v1867
  %v2746 = vsel %vm2700, %v2681, %v1869
  %v2747 = vsel %vm2700, %v2682, %v1871
  %v2748 = vsel %vm2700, %v2683, %v1873
  %v2749 = vsel %vm2700, %v2684, %v1875
  %v2750 = vsel %vm2700, %v2685, %v1877
  %v2751 = vsel %vm2700, %v2686, %v1879
  %v2752 = vsel %vm2700, %v2687, %v1881
  %v2753 = vsel %vm2700, %v2688, %v1883
  %v2754 = vsel %vm2700, %v2689, %v1885
  %v2755 = vsel %vm2700, %v2690, %v1887
  %v2756 = vsel %vm2700, %v2691, %v1889
  %v2757 = vsel %vm2700, %v2692, %v1891
  %v2758 = vsel %vm2700, %v2693, %v1893
  %v2759 = vsel %vm2700, %v2694, %v1895
  %v2760 = vsel %vm2700, %v2695, %v1897
  %v2761 = vsel %vm2700, %v2696, %v1899
  %v2762 = vsel %vm2700, %v2697, %v1901
  %v2763 = vsel %vm2700, %v2698, %v1903
  %v2764 = vsel %vm2700, %v2699, %v1905
  %vm2765 = vcmask 228352
  %v2766 = vsel %vm2765, %v2701, %v1983
  %v2767 = vsel %vm2765, %v2702, %v1985
  %v2768 = vsel %vm2765, %v2703, %v1987
  %v2769 = vsel %vm2765, %v2704, %v1989
  %v2770 = vsel %vm2765, %v2705, %v1991
  %v2771 = vsel %vm2765, %v2706, %v1993
  %v2772 = vsel %vm2765, %v2707, %v1995
  %v2773 = vsel %vm2765, %v2708, %v1997
  %v2774 = vsel %vm2765, %v2709, %v1999
  %v2775 = vsel %vm2765, %v2710, %v2001
  %v2776 = vsel %vm2765, %v2711, %v2003
  %v2777 = vsel %vm2765, %v2712, %v2005
  %v2778 = vsel %vm2765, %v2713, %v2007
  %v2779 = vsel %vm2765, %v2714, %v2009
  %v2780 = vsel %vm2765, %v2715, %v2011
  %v2781 = vsel %vm2765, %v2716, %v2013
  %v2782 = vsel %vm2765, %v2717, %v2015
  %v2783 = vsel %vm2765, %v2718, %v2017
  %v2784 = vsel %vm2765, %v2719, %v2019
  %v2785 = vsel %vm2765, %v2720, %v2021
  %v2786 = vsel %vm2765, %v2721, %v2023
  %v2787 = vsel %vm2765, %v2722, %v2025
  %v2788 = vsel %vm2765, %v2723, %v2027
  %v2789 = vsel %vm2765, %v2724, %v2029
  %v2790 = vsel %vm2765, %v2725, %v2031
  %v2791 = vsel %vm2765, %v2726, %v2033
  %v2792 = vsel %vm2765, %v2727, %v2035
  %v2793 = vsel %vm2765, %v2728, %v2037
  %v2794 = vsel %vm2765, %v2729, %v2039
  %v2795 = vsel %vm2765, %v2730, %v2041
  %v2796 = vsel %vm2765, %v2731, %v2043
  %v2797 = vsel %vm2765, %v2732, %v2045
  %v2798 = vsel %vm2765, %v2733, %v2047
  %v2799 = vsel %vm2765, %v2734, %v2049
  %v2800 = vsel %vm2765, %v2735, %v2051
  %v2801 = vsel %vm2765, %v2736, %v2053
  %v2802 = vsel %vm2765, %v2737, %v2055
  %v2803 = vsel %vm2765, %v2738, %v2057
  %v2804 = vsel %vm2765, %v2739, %v2059
  %v2805 = vsel %vm2765, %v2740, %v2061
  %v2806 = vsel %vm2765, %v2741, %v2063
  %v2807 = vsel %vm2765, %v2742, %v2065
  %v2808 = vsel %vm2765, %v2743, %v2067
  %v2809 = vsel %vm2765, %v2744, %v2069
  %v2810 = vsel %vm2765, %v2745, %v2071
  %v2811 = vsel %vm2765, %v2746, %v2073
  %v2812 = vsel %vm2765, %v2747, %v2075
  %v2813 = vsel %vm2765, %v2748, %v2077
  %v2814 = vsel %vm2765, %v2749, %v2079
  %v2815 = vsel %vm2765, %v2750, %v2081
  %v2816 = vsel %vm2765, %v2751, %v2083
  %v2817 = vsel %vm2765, %v2752, %v2085
  %v2818 = vsel %vm2765, %v2753, %v2087
  %v2819 = vsel %vm2765, %v2754, %v2089
  %v2820 = vsel %vm2765, %v2755, %v2091
  %v2821 = vsel %vm2765, %v2756, %v2093
  %v2822 = vsel %vm2765, %v2757, %v2095
  %v2823 = vsel %vm2765, %v2758, %v2097
  %v2824 = vsel %vm2765, %v2759, %v2099
  %v2825 = vsel %vm2765, %v2760, %v2101
  %v2826 = vsel %vm2765, %v2761, %v2103
  %v2827 = vsel %vm2765, %v2762, %v2105
  %v2828 = vsel %vm2765, %v2763, %v2107
  %v2829 = vsel %vm2765, %v2764, %v2109
  %vm2830 = vcmask 261120
  %v2831 = vsel %vm2830, %v2766, %v2185
  %v2832 = vsel %vm2830, %v2767, %v2187
  %v2833 = vsel %vm2830, %v2768, %v2189
  %v2834 = vsel %vm2830, %v2769, %v2191
  %v2835 = vsel %vm2830, %v2770, %v2193
  %v2836 = vsel %vm2830, %v2771, %v2195
  %v2837 = vsel %vm2830, %v2772, %v2197
  %v2838 = vsel %vm2830, %v2773, %v2199
  %v2839 = vsel %vm2830, %v2774, %v2201
  %v2840 = vsel %vm2830, %v2775, %v2203
  %v2841 = vsel %vm2830, %v2776, %v2205
  %v2842 = vsel %vm2830, %v2777, %v2207
  %v2843 = vsel %vm2830, %v2778, %v2209
  %v2844 = vsel %vm2830, %v2779, %v2211
  %v2845 = vsel %vm2830, %v2780, %v2213
  %v2846 = vsel %vm2830, %v2781, %v2215
  %v2847 = vsel %vm2830, %v2782, %v2217
  %v2848 = vsel %vm2830, %v2783, %v2219
  %v2849 = vsel %vm2830, %v2784, %v2221
  %v2850 = vsel %vm2830, %v2785, %v2223
  %v2851 = vsel %vm2830, %v2786, %v2225
  %v2852 = vsel %vm2830, %v2787, %v2227
  %v2853 = vsel %vm2830, %v2788, %v2229
  %v2854 = vsel %vm2830, %v2789, %v2231
  %v2855 = vsel %vm2830, %v2790, %v2233
  %v2856 = vsel %vm2830, %v2791, %v2235
  %v2857 = vsel %vm2830, %v2792, %v2237
  %v2858 = vsel %vm2830, %v2793, %v2239
  %v2859 = vsel %vm2830, %v2794, %v2241
  %v2860 = vsel %vm2830, %v2795, %v2243
  %v2861 = vsel %vm2830, %v2796, %v2245
  %v2862 = vsel %vm2830, %v2797, %v2247
  %v2863 = vsel %vm2830, %v2798, %v2249
  %v2864 = vsel %vm2830, %v2799, %v2251
  %v2865 = vsel %vm2830, %v2800, %v2253
  %v2866 = vsel %vm2830, %v2801, %v2255
  %v2867 = vsel %vm2830, %v2802, %v2257
  %v2868 = vsel %vm2830, %v2803, %v2259
  %v2869 = vsel %vm2830, %v2804, %v2261
  %v2870 = vsel %vm2830, %v2805, %v2263
  %v2871 = vsel %vm2830, %v2806, %v2265
  %v2872 = vsel %vm2830, %v2807, %v2267
  %v2873 = vsel %vm2830, %v2808, %v2269
  %v2874 = vsel %vm2830, %v2809, %v2271
  %v2875 = vsel %vm2830, %v2810, %v2273
  %v2876 = vsel %vm2830, %v2811, %v2275
  %v2877 = vsel %vm2830, %v2812, %v2277
  %v2878 = vsel %vm2830, %v2813, %v2279
  %v2879 = vsel %vm2830, %v2814, %v2281
  %v2880 = vsel %vm2830, %v2815, %v2283
  %v2881 = vsel %vm2830, %v2816, %v2285
  %v2882 = vsel %vm2830, %v2817, %v2287
  %v2883 = vsel %vm2830, %v2818, %v2289
  %v2884 = vsel %vm2830, %v2819, %v2291
  %v2885 = vsel %vm2830, %v2820, %v2293
  %v2886 = vsel %vm2830, %v2821, %v2295
  %v2887 = vsel %vm2830, %v2822, %v2297
  %v2888 = vsel %vm2830, %v2823, %v2299
  %v2889 = vsel %vm2830, %v2824, %v2301
  %v2890 = vsel %vm2830, %v2825, %v2303
  %v2891 = vsel %vm2830, %v2826, %v2305
  %v2892 = vsel %vm2830, %v2827, %v2307
  %v2893 = vsel %vm2830, %v2828, %v2309
  %v2894 = vsel %vm2830, %v2829, %v2311
  %v2895 = vld [vmem:[%s1] sm:$0xff]
  %v2896 = vld [vmem:[%s1 + $0x8] sm:$0xff]
  %v2897 = vld [vmem:[%s1 + $0x10] sm:$0xff]
  %v2898 = vld [vmem:[%s1 + $0x18] sm:$0xff]
  %v2899 = vld [vmem:[%s1 + $0x20] sm:$0xf]
  %v2900 = vlaneseq
  %v2901 = vshrl.u32 %v2900, 7
  %v2902 = vsub.s32 0, %v2901
  %v2903 = vrot.slane %v17, %v2902
  %vm2904 = vcmask 293888
  %v2906 = vsel %vm2904, %v2831, 0
  %v2909 = vsel %vm2904, %v2832, 0
  %v2912 = vsel %vm2904, %v2833, 0
  %v2915 = vsel %vm2904, %v2834, 0
  %v2918 = vsel %vm2904, %v2835, 0
  %v2921 = vsel %vm2904, %v2836, 0
  %v2924 = vsel %vm2904, %v2837, 0
  %v2927 = vsel %vm2904, %v2838, 0
  %v2930 = vsel %vm2904, %v2839, 0
  %v2933 = vsel %vm2904, %v2840, 0
  %v2936 = vsel %vm2904, %v2841, 0
  %v2939 = vsel %vm2904, %v2842, 0
  %v2942 = vsel %vm2904, %v2843, 0
  %v2945 = vsel %vm2904, %v2844, 0
  %v2948 = vsel %vm2904, %v2845, 0
  %v2951 = vsel %vm2904, %v2846, 0
  %v2954 = vsel %vm2904, %v2847, 0
  %v2957 = vsel %vm2904, %v2848, 0
  %v2960 = vsel %vm2904, %v2849, 0
  %v2963 = vsel %vm2904, %v2850, 0
  %v2966 = vsel %vm2904, %v2851, 0
  %v2969 = vsel %vm2904, %v2852, 0
  %v2972 = vsel %vm2904, %v2853, 0
  %v2975 = vsel %vm2904, %v2854, 0
  %v2978 = vsel %vm2904, %v2855, 0
  %v2981 = vsel %vm2904, %v2856, 0
  %v2984 = vsel %vm2904, %v2857, 0
  %v2987 = vsel %vm2904, %v2858, 0
  %v2990 = vsel %vm2904, %v2859, 0
  %v2993 = vsel %vm2904, %v2860, 0
  %v2996 = vsel %vm2904, %v2861, 0
  %v2999 = vsel %vm2904, %v2862, 0
  %v3002 = vsel %vm2904, %v2863, 0
  %v3005 = vsel %vm2904, %v2864, 0
  %v3008 = vsel %vm2904, %v2865, 0
  %v3011 = vsel %vm2904, %v2866, 0
  %v3014 = vsel %vm2904, %v2867, 0
  %v3017 = vsel %vm2904, %v2868, 0
  %v3020 = vsel %vm2904, %v2869, 0
  %v3023 = vsel %vm2904, %v2870, 0
  %v3026 = vsel %vm2904, %v2871, 0
  %v3029 = vsel %vm2904, %v2872, 0
  %v3032 = vsel %vm2904, %v2873, 0
  %v3035 = vsel %vm2904, %v2874, 0
  %v3038 = vsel %vm2904, %v2875, 0
  %v3041 = vsel %vm2904, %v2876, 0
  %v3044 = vsel %vm2904, %v2877, 0
  %v3047 = vsel %vm2904, %v2878, 0
  %v3050 = vsel %vm2904, %v2879, 0
  %v3053 = vsel %vm2904, %v2880, 0
  %v3056 = vsel %vm2904, %v2881, 0
  %v3059 = vsel %vm2904, %v2882, 0
  %v3062 = vsel %vm2904, %v2883, 0
  %v3065 = vsel %vm2904, %v2884, 0
  %v3068 = vsel %vm2904, %v2885, 0
  %v3071 = vsel %vm2904, %v2886, 0
  %v3074 = vsel %vm2904, %v2887, 0
  %v3077 = vsel %vm2904, %v2888, 0
  %v3080 = vsel %vm2904, %v2889, 0
  %v3083 = vsel %vm2904, %v2890, 0
  %v3086 = vsel %vm2904, %v2891, 0
  %v3089 = vsel %vm2904, %v2892, 0
  %v3092 = vsel %vm2904, %v2893, 0
  %v3095 = vsel %vm2904, %v2894, 0
  %vm3097 = vcmask 1043456
  %v3099 = vsel %vm3097, %v2899, 0
  %3101 = vmatprep.subr.mxu0 0.0
  %3102 = vmatpush1.msra.mxu0 0.0
  %3103 = vmatprep.subr.mxu0 0.0
  %3104 = vmatpush1.msra.mxu0 0.0
  %3105 = vmatprep.subr.mxu0 0.0
  %3106 = vmatpush1.msra.mxu0 0.0
  %3107 = vmatprep.subr.mxu0 0.0
  %3108 = vmatpush1.msra.mxu0 0.0
  %3109 = vmatprep.subr.mxu0 0.0
  %3110 = vmatpush1.msra.mxu0 0.0
  %3111 = vmatprep.subr.mxu0 0.0
  %3112 = vmatpush1.msra.mxu0 0.0
  %3113 = vmatprep.subr.mxu0 0.0
  %3114 = vmatpush1.msra.mxu0 0.0
  %3115 = vmatprep.subr.mxu0 0.0
  %3116 = vmatpush1.msra.mxu0 0.0
  %3117 = vmatprep.subr.mxu0 0.0
  %3118 = vmatpush1.msra.mxu0 0.0
  %3119 = vmatprep.subr.mxu0 0.0
  %3120 = vmatpush1.msra.mxu0 0.0
  %3121 = vmatprep.subr.mxu0 0.0
  %3122 = vmatpush1.msra.mxu0 0.0
  %3123 = vmatprep.subr.mxu0 0.0
  %3124 = vmatpush1.msra.mxu0 %v3099
  %3125 = vmatprep.subr.mxu0 0.0
  %3126 = vmatpush1.msra.mxu0 %v2898
  %3127 = vmatprep.subr.mxu0 0.0
  %3128 = vmatpush1.msra.mxu0 %v2897
  %3129 = vmatprep.subr.mxu0 0.0
  %3130 = vmatpush1.msra.mxu0 %v2896
  %3131 = vmatprep.subr.mxu0 0.0
  %3132 = vmatpush1.msra.mxu0 %v2895
  %3133 = vmatprep.subr.mxu0 0.0
  %3134 = vmatpush2.msra.mxu0 0.0
  %3135 = vmatprep.subr.mxu0 0.0
  %3136 = vmatpush2.msra.mxu0 0.0
  %3137 = vmatprep.subr.mxu0 0.0
  %3138 = vmatpush2.msra.mxu0 0.0
  %3139 = vmatprep.subr.mxu0 0.0
  %3140 = vmatpush2.msra.mxu0 0.0
  %3141 = vmatprep.subr.mxu0 0.0
  %3142 = vmatpush2.msra.mxu0 0.0
  %3143 = vmatprep.subr.mxu0 0.0
  %3144 = vmatpush2.msra.mxu0 0.0
  %3145 = vmatprep.subr.mxu0 0.0
  %3146 = vmatpush2.msra.mxu0 0.0
  %3147 = vmatprep.subr.mxu0 0.0
  %3148 = vmatpush2.msra.mxu0 0.0
  %3149 = vmatprep.subr.mxu0 0.0
  %3150 = vmatpush2.msra.mxu0 0.0
  %3151 = vmatprep.subr.mxu0 0.0
  %3152 = vmatpush2.msra.mxu0 0.0
  %3153 = vmatprep.subr.mxu0 0.0
  %3154 = vmatpush2.msra.mxu0 0.0
  %3155 = vmatprep.subr.mxu0 0.0
  %3156 = vmatpush2.msra.mxu0 0.0
  %3157 = vmatprep.subr.mxu0 0.0
  %3158 = vmatpush2.msra.mxu0 0.0
  %3159 = vmatprep.subr.mxu0 0.0
  %3160 = vmatpush2.msra.mxu0 0.0
  %3161 = vmatprep.subr.mxu0 0.0
  %3162 = vmatpush2.msra.mxu0 0.0
  %3163 = vmatprep.subr.mxu0 0.0
  %3164 = vmatpush2.msra.mxu0 0.0
  %3165 = vmatprep.mubr.f32.mxu0 0.0
  %3166 = vmatmul.mubr.f32.gmra.mxu0 %v2906
  %v3167 = vpop.f32.mrf.mxu0
  %v3168 = vadd.f32 %v2903, %v3167
  %v3169 = vpop.f32.mrf.mxu0
  %3170 = vmatprep.mubr.f32.mxu0 0.0
  %3171 = vmatmul.mubr.f32.gmra.mxu0 %v2909
  %v3172 = vpop.f32.mrf.mxu0
  %v3173 = vadd.f32 %v2903, %v3172
  %v3174 = vpop.f32.mrf.mxu0
  %3175 = vmatprep.mubr.f32.mxu0 0.0
  %3176 = vmatmul.mubr.f32.gmra.mxu0 %v2912
  %v3177 = vpop.f32.mrf.mxu0
  %v3178 = vadd.f32 %v2903, %v3177
  %v3179 = vpop.f32.mrf.mxu0
  %3180 = vmatprep.mubr.f32.mxu0 0.0
  %3181 = vmatmul.mubr.f32.gmra.mxu0 %v2915
  %v3182 = vpop.f32.mrf.mxu0
  %v3183 = vadd.f32 %v2903, %v3182
  %v3184 = vpop.f32.mrf.mxu0
  %3185 = vmatprep.mubr.f32.mxu0 0.0
  %3186 = vmatmul.mubr.f32.gmra.mxu0 %v2918
  %v3187 = vpop.f32.mrf.mxu0
  %v3188 = vadd.f32 %v2903, %v3187
  %v3189 = vpop.f32.mrf.mxu0
  %3190 = vmatprep.mubr.f32.mxu0 0.0
  %3191 = vmatmul.mubr.f32.gmra.mxu0 %v2921
  %v3192 = vpop.f32.mrf.mxu0
  %v3193 = vadd.f32 %v2903, %v3192
  %v3194 = vpop.f32.mrf.mxu0
  %3195 = vmatprep.mubr.f32.mxu0 0.0
  %3196 = vmatmul.mubr.f32.gmra.mxu0 %v2924
  %v3197 = vpop.f32.mrf.mxu0
  %v3198 = vadd.f32 %v2903, %v3197
  %v3199 = vpop.f32.mrf.mxu0
  %3200 = vmatprep.mubr.f32.mxu0 0.0
  %3201 = vmatmul.mubr.f32.gmra.mxu0 %v2927
  %v3202 = vpop.f32.mrf.mxu0
  %v3203 = vadd.f32 %v2903, %v3202
  %v3204 = vpop.f32.mrf.mxu0
  %3205 = vmatprep.mubr.f32.mxu0 0.0
  %3206 = vmatmul.mubr.f32.gmra.mxu0 %v2930
  %v3207 = vpop.f32.mrf.mxu0
  %v3208 = vadd.f32 %v2903, %v3207
  %v3209 = vpop.f32.mrf.mxu0
  %3210 = vmatprep.mubr.f32.mxu0 0.0
  %3211 = vmatmul.mubr.f32.gmra.mxu0 %v2933
  %v3212 = vpop.f32.mrf.mxu0
  %v3213 = vadd.f32 %v2903, %v3212
  %v3214 = vpop.f32.mrf.mxu0
  %3215 = vmatprep.mubr.f32.mxu0 0.0
  %3216 = vmatmul.mubr.f32.gmra.mxu0 %v2936
  %v3217 = vpop.f32.mrf.mxu0
  %v3218 = vadd.f32 %v2903, %v3217
  %v3219 = vpop.f32.mrf.mxu0
  %3220 = vmatprep.mubr.f32.mxu0 0.0
  %3221 = vmatmul.mubr.f32.gmra.mxu0 %v2939
  %v3222 = vpop.f32.mrf.mxu0
  %v3223 = vadd.f32 %v2903, %v3222
  %v3224 = vpop.f32.mrf.mxu0
  %3225 = vmatprep.mubr.f32.mxu0 0.0
  %3226 = vmatmul.mubr.f32.gmra.mxu0 %v2942
  %v3227 = vpop.f32.mrf.mxu0
  %v3228 = vadd.f32 %v2903, %v3227
  %v3229 = vpop.f32.mrf.mxu0
  %3230 = vmatprep.mubr.f32.mxu0 0.0
  %3231 = vmatmul.mubr.f32.gmra.mxu0 %v2945
  %v3232 = vpop.f32.mrf.mxu0
  %v3233 = vadd.f32 %v2903, %v3232
  %v3234 = vpop.f32.mrf.mxu0
  %3235 = vmatprep.mubr.f32.mxu0 0.0
  %3236 = vmatmul.mubr.f32.gmra.mxu0 %v2948
  %v3237 = vpop.f32.mrf.mxu0
  %v3238 = vadd.f32 %v2903, %v3237
  %v3239 = vpop.f32.mrf.mxu0
  %3240 = vmatprep.mubr.f32.mxu0 0.0
  %3241 = vmatmul.mubr.f32.gmra.mxu0 %v2951
  %v3242 = vpop.f32.mrf.mxu0
  %v3243 = vadd.f32 %v2903, %v3242
  %v3244 = vpop.f32.mrf.mxu0
  %3245 = vmatprep.mubr.f32.mxu0 0.0
  %3246 = vmatmul.mubr.f32.gmra.mxu0 %v2954
  %v3247 = vpop.f32.mrf.mxu0
  %v3248 = vadd.f32 %v2903, %v3247
  %v3249 = vpop.f32.mrf.mxu0
  %3250 = vmatprep.mubr.f32.mxu0 0.0
  %3251 = vmatmul.mubr.f32.gmra.mxu0 %v2957
  %v3252 = vpop.f32.mrf.mxu0
  %v3253 = vadd.f32 %v2903, %v3252
  %v3254 = vpop.f32.mrf.mxu0
  %3255 = vmatprep.mubr.f32.mxu0 0.0
  %3256 = vmatmul.mubr.f32.gmra.mxu0 %v2960
  %v3257 = vpop.f32.mrf.mxu0
  %v3258 = vadd.f32 %v2903, %v3257
  %v3259 = vpop.f32.mrf.mxu0
  %3260 = vmatprep.mubr.f32.mxu0 0.0
  %3261 = vmatmul.mubr.f32.gmra.mxu0 %v2963
  %v3262 = vpop.f32.mrf.mxu0
  %v3263 = vadd.f32 %v2903, %v3262
  %v3264 = vpop.f32.mrf.mxu0
  %3265 = vmatprep.mubr.f32.mxu0 0.0
  %3266 = vmatmul.mubr.f32.gmra.mxu0 %v2966
  %v3267 = vpop.f32.mrf.mxu0
  %v3268 = vadd.f32 %v2903, %v3267
  %v3269 = vpop.f32.mrf.mxu0
  %3270 = vmatprep.mubr.f32.mxu0 0.0
  %3271 = vmatmul.mubr.f32.gmra.mxu0 %v2969
  %v3272 = vpop.f32.mrf.mxu0
  %v3273 = vadd.f32 %v2903, %v3272
  %v3274 = vpop.f32.mrf.mxu0
  %3275 = vmatprep.mubr.f32.mxu0 0.0
  %3276 = vmatmul.mubr.f32.gmra.mxu0 %v2972
  %v3277 = vpop.f32.mrf.mxu0
  %v3278 = vadd.f32 %v2903, %v3277
  %v3279 = vpop.f32.mrf.mxu0
  %3280 = vmatprep.mubr.f32.mxu0 0.0
  %3281 = vmatmul.mubr.f32.gmra.mxu0 %v2975
  %v3282 = vpop.f32.mrf.mxu0
  %v3283 = vadd.f32 %v2903, %v3282
  %v3284 = vpop.f32.mrf.mxu0
  %3285 = vmatprep.mubr.f32.mxu0 0.0
  %3286 = vmatmul.mubr.f32.gmra.mxu0 %v2978
  %v3287 = vpop.f32.mrf.mxu0
  %v3288 = vadd.f32 %v2903, %v3287
  %v3289 = vpop.f32.mrf.mxu0
  %3290 = vmatprep.mubr.f32.mxu0 0.0
  %3291 = vmatmul.mubr.f32.gmra.mxu0 %v2981
  %v3292 = vpop.f32.mrf.mxu0
  %v3293 = vadd.f32 %v2903, %v3292
  %v3294 = vpop.f32.mrf.mxu0
  %3295 = vmatprep.mubr.f32.mxu0 0.0
  %3296 = vmatmul.mubr.f32.gmra.mxu0 %v2984
  %v3297 = vpop.f32.mrf.mxu0
  %v3298 = vadd.f32 %v2903, %v3297
  %v3299 = vpop.f32.mrf.mxu0
  %3300 = vmatprep.mubr.f32.mxu0 0.0
  %3301 = vmatmul.mubr.f32.gmra.mxu0 %v2987
  %v3302 = vpop.f32.mrf.mxu0
  %v3303 = vadd.f32 %v2903, %v3302
  %v3304 = vpop.f32.mrf.mxu0
  %3305 = vmatprep.mubr.f32.mxu0 0.0
  %3306 = vmatmul.mubr.f32.gmra.mxu0 %v2990
  %v3307 = vpop.f32.mrf.mxu0
  %v3308 = vadd.f32 %v2903, %v3307
  %v3309 = vpop.f32.mrf.mxu0
  %3310 = vmatprep.mubr.f32.mxu0 0.0
  %3311 = vmatmul.mubr.f32.gmra.mxu0 %v2993
  %v3312 = vpop.f32.mrf.mxu0
  %v3313 = vadd.f32 %v2903, %v3312
  %v3314 = vpop.f32.mrf.mxu0
  %3315 = vmatprep.mubr.f32.mxu0 0.0
  %3316 = vmatmul.mubr.f32.gmra.mxu0 %v2996
  %v3317 = vpop.f32.mrf.mxu0
  %v3318 = vadd.f32 %v2903, %v3317
  %v3319 = vpop.f32.mrf.mxu0
  %3320 = vmatprep.mubr.f32.mxu0 0.0
  %3321 = vmatmul.mubr.f32.gmra.mxu0 %v2999
  %v3322 = vpop.f32.mrf.mxu0
  %v3323 = vadd.f32 %v2903, %v3322
  %v3324 = vpop.f32.mrf.mxu0
  %3325 = vmatprep.mubr.f32.mxu0 0.0
  %3326 = vmatmul.mubr.f32.gmra.mxu0 %v3002
  %v3327 = vpop.f32.mrf.mxu0
  %v3328 = vadd.f32 %v2903, %v3327
  %v3329 = vpop.f32.mrf.mxu0
  %3330 = vmatprep.mubr.f32.mxu0 0.0
  %3331 = vmatmul.mubr.f32.gmra.mxu0 %v3005
  %v3332 = vpop.f32.mrf.mxu0
  %v3333 = vadd.f32 %v2903, %v3332
  %v3334 = vpop.f32.mrf.mxu0
  %3335 = vmatprep.mubr.f32.mxu0 0.0
  %3336 = vmatmul.mubr.f32.gmra.mxu0 %v3008
  %v3337 = vpop.f32.mrf.mxu0
  %v3338 = vadd.f32 %v2903, %v3337
  %v3339 = vpop.f32.mrf.mxu0
  %3340 = vmatprep.mubr.f32.mxu0 0.0
  %3341 = vmatmul.mubr.f32.gmra.mxu0 %v3011
  %v3342 = vpop.f32.mrf.mxu0
  %v3343 = vadd.f32 %v2903, %v3342
  %v3344 = vpop.f32.mrf.mxu0
  %3345 = vmatprep.mubr.f32.mxu0 0.0
  %3346 = vmatmul.mubr.f32.gmra.mxu0 %v3014
  %v3347 = vpop.f32.mrf.mxu0
  %v3348 = vadd.f32 %v2903, %v3347
  %v3349 = vpop.f32.mrf.mxu0
  %3350 = vmatprep.mubr.f32.mxu0 0.0
  %3351 = vmatmul.mubr.f32.gmra.mxu0 %v3017
  %v3352 = vpop.f32.mrf.mxu0
  %v3353 = vadd.f32 %v2903, %v3352
  %v3354 = vpop.f32.mrf.mxu0
  %3355 = vmatprep.mubr.f32.mxu0 0.0
  %3356 = vmatmul.mubr.f32.gmra.mxu0 %v3020
  %v3357 = vpop.f32.mrf.mxu0
  %v3358 = vadd.f32 %v2903, %v3357
  %v3359 = vpop.f32.mrf.mxu0
  %3360 = vmatprep.mubr.f32.mxu0 0.0
  %3361 = vmatmul.mubr.f32.gmra.mxu0 %v3023
  %v3362 = vpop.f32.mrf.mxu0
  %v3363 = vadd.f32 %v2903, %v3362
  %v3364 = vpop.f32.mrf.mxu0
  %3365 = vmatprep.mubr.f32.mxu0 0.0
  %3366 = vmatmul.mubr.f32.gmra.mxu0 %v3026
  %v3367 = vpop.f32.mrf.mxu0
  %v3368 = vadd.f32 %v2903, %v3367
  %v3369 = vpop.f32.mrf.mxu0
  %3370 = vmatprep.mubr.f32.mxu0 0.0
  %3371 = vmatmul.mubr.f32.gmra.mxu0 %v3029
  %v3372 = vpop.f32.mrf.mxu0
  %v3373 = vadd.f32 %v2903, %v3372
  %v3374 = vpop.f32.mrf.mxu0
  %3375 = vmatprep.mubr.f32.mxu0 0.0
  %3376 = vmatmul.mubr.f32.gmra.mxu0 %v3032
  %v3377 = vpop.f32.mrf.mxu0
  %v3378 = vadd.f32 %v2903, %v3377
  %v3379 = vpop.f32.mrf.mxu0
  %3380 = vmatprep.mubr.f32.mxu0 0.0
  %3381 = vmatmul.mubr.f32.gmra.mxu0 %v3035
  %v3382 = vpop.f32.mrf.mxu0
  %v3383 = vadd.f32 %v2903, %v3382
  %v3384 = vpop.f32.mrf.mxu0
  %3385 = vmatprep.mubr.f32.mxu0 0.0
  %3386 = vmatmul.mubr.f32.gmra.mxu0 %v3038
  %v3387 = vpop.f32.mrf.mxu0
  %v3388 = vadd.f32 %v2903, %v3387
  %v3389 = vpop.f32.mrf.mxu0
  %3390 = vmatprep.mubr.f32.mxu0 0.0
  %3391 = vmatmul.mubr.f32.gmra.mxu0 %v3041
  %v3392 = vpop.f32.mrf.mxu0
  %v3393 = vadd.f32 %v2903, %v3392
  %v3394 = vpop.f32.mrf.mxu0
  %3395 = vmatprep.mubr.f32.mxu0 0.0
  %3396 = vmatmul.mubr.f32.gmra.mxu0 %v3044
  %v3397 = vpop.f32.mrf.mxu0
  %v3398 = vadd.f32 %v2903, %v3397
  %v3399 = vpop.f32.mrf.mxu0
  %3400 = vmatprep.mubr.f32.mxu0 0.0
  %3401 = vmatmul.mubr.f32.gmra.mxu0 %v3047
  %v3402 = vpop.f32.mrf.mxu0
  %v3403 = vadd.f32 %v2903, %v3402
  %v3404 = vpop.f32.mrf.mxu0
  %3405 = vmatprep.mubr.f32.mxu0 0.0
  %3406 = vmatmul.mubr.f32.gmra.mxu0 %v3050
  %v3407 = vpop.f32.mrf.mxu0
  %v3408 = vadd.f32 %v2903, %v3407
  %v3409 = vpop.f32.mrf.mxu0
  %3410 = vmatprep.mubr.f32.mxu0 0.0
  %3411 = vmatmul.mubr.f32.gmra.mxu0 %v3053
  %v3412 = vpop.f32.mrf.mxu0
  %v3413 = vadd.f32 %v2903, %v3412
  %v3414 = vpop.f32.mrf.mxu0
  %3415 = vmatprep.mubr.f32.mxu0 0.0
  %3416 = vmatmul.mubr.f32.gmra.mxu0 %v3056
  %v3417 = vpop.f32.mrf.mxu0
  %v3418 = vadd.f32 %v2903, %v3417
  %v3419 = vpop.f32.mrf.mxu0
  %3420 = vmatprep.mubr.f32.mxu0 0.0
  %3421 = vmatmul.mubr.f32.gmra.mxu0 %v3059
  %v3422 = vpop.f32.mrf.mxu0
  %v3423 = vadd.f32 %v2903, %v3422
  %v3424 = vpop.f32.mrf.mxu0
  %3425 = vmatprep.mubr.f32.mxu0 0.0
  %3426 = vmatmul.mubr.f32.gmra.mxu0 %v3062
  %v3427 = vpop.f32.mrf.mxu0
  %v3428 = vadd.f32 %v2903, %v3427
  %v3429 = vpop.f32.mrf.mxu0
  %3430 = vmatprep.mubr.f32.mxu0 0.0
  %3431 = vmatmul.mubr.f32.gmra.mxu0 %v3065
  %v3432 = vpop.f32.mrf.mxu0
  %v3433 = vadd.f32 %v2903, %v3432
  %v3434 = vpop.f32.mrf.mxu0
  %3435 = vmatprep.mubr.f32.mxu0 0.0
  %3436 = vmatmul.mubr.f32.gmra.mxu0 %v3068
  %v3437 = vpop.f32.mrf.mxu0
  %v3438 = vadd.f32 %v2903, %v3437
  %v3439 = vpop.f32.mrf.mxu0
  %3440 = vmatprep.mubr.f32.mxu0 0.0
  %3441 = vmatmul.mubr.f32.gmra.mxu0 %v3071
  %v3442 = vpop.f32.mrf.mxu0
  %v3443 = vadd.f32 %v2903, %v3442
  %v3444 = vpop.f32.mrf.mxu0
  %3445 = vmatprep.mubr.f32.mxu0 0.0
  %3446 = vmatmul.mubr.f32.gmra.mxu0 %v3074
  %v3447 = vpop.f32.mrf.mxu0
  %v3448 = vadd.f32 %v2903, %v3447
  %v3449 = vpop.f32.mrf.mxu0
  %3450 = vmatprep.mubr.f32.mxu0 0.0
  %3451 = vmatmul.mubr.f32.gmra.mxu0 %v3077
  %v3452 = vpop.f32.mrf.mxu0
  %v3453 = vadd.f32 %v2903, %v3452
  %v3454 = vpop.f32.mrf.mxu0
  %3455 = vmatprep.mubr.f32.mxu0 0.0
  %3456 = vmatmul.mubr.f32.gmra.mxu0 %v3080
  %v3457 = vpop.f32.mrf.mxu0
  %v3458 = vadd.f32 %v2903, %v3457
  %v3459 = vpop.f32.mrf.mxu0
  %3460 = vmatprep.mubr.f32.mxu0 0.0
  %3461 = vmatmul.mubr.f32.gmra.mxu0 %v3083
  %v3462 = vpop.f32.mrf.mxu0
  %v3463 = vadd.f32 %v2903, %v3462
  %v3464 = vpop.f32.mrf.mxu0
  %3465 = vmatprep.mubr.f32.mxu0 0.0
  %3466 = vmatmul.mubr.f32.gmra.mxu0 %v3086
  %v3467 = vpop.f32.mrf.mxu0
  %v3468 = vadd.f32 %v2903, %v3467
  %v3469 = vpop.f32.mrf.mxu0
  %3470 = vmatprep.mubr.f32.mxu0 0.0
  %3471 = vmatmul.mubr.f32.gmra.mxu0 %v3089
  %v3472 = vpop.f32.mrf.mxu0
  %v3473 = vadd.f32 %v2903, %v3472
  %v3474 = vpop.f32.mrf.mxu0
  %3475 = vmatprep.mubr.f32.mxu0 0.0
  %3476 = vmatmul.mubr.f32.gmra.mxu0 %v3092
  %v3477 = vpop.f32.mrf.mxu0
  %v3478 = vadd.f32 %v2903, %v3477
  %v3479 = vpop.f32.mrf.mxu0
  %3480 = vmatprep.mubr.f32.mxu0 0.0
  %3481 = vmatmul.mubr.f32.gmra.mxu0 %v3095
  %v3482 = vpop.f32.mrf.mxu0
  %v3483 = vadd.f32 %v2903, %v3482
  %v3484 = vpop.f32.mrf.mxu0
  %3485 = vdwg.mxu0
  %v3486 = vmul.f32 %v3168, %v3168
  %v3487 = vmul.f32 %v3173, %v3173
  %v3488 = vmul.f32 %v3178, %v3178
  %v3489 = vmul.f32 %v3183, %v3183
  %v3490 = vmul.f32 %v3188, %v3188
  %v3491 = vmul.f32 %v3193, %v3193
  %v3492 = vmul.f32 %v3198, %v3198
  %v3493 = vmul.f32 %v3203, %v3203
  %v3494 = vmul.f32 %v3208, %v3208
  %v3495 = vmul.f32 %v3213, %v3213
  %v3496 = vmul.f32 %v3218, %v3218
  %v3497 = vmul.f32 %v3223, %v3223
  %v3498 = vmul.f32 %v3228, %v3228
  %v3499 = vmul.f32 %v3233, %v3233
  %v3500 = vmul.f32 %v3238, %v3238
  %v3501 = vmul.f32 %v3243, %v3243
  %v3502 = vmul.f32 %v3248, %v3248
  %v3503 = vmul.f32 %v3253, %v3253
  %v3504 = vmul.f32 %v3258, %v3258
  %v3505 = vmul.f32 %v3263, %v3263
  %v3506 = vmul.f32 %v3268, %v3268
  %v3507 = vmul.f32 %v3273, %v3273
  %v3508 = vmul.f32 %v3278, %v3278
  %v3509 = vmul.f32 %v3283, %v3283
  %v3510 = vmul.f32 %v3288, %v3288
  %v3511 = vmul.f32 %v3293, %v3293
  %v3512 = vmul.f32 %v3298, %v3298
  %v3513 = vmul.f32 %v3303, %v3303
  %v3514 = vmul.f32 %v3308, %v3308
  %v3515 = vmul.f32 %v3313, %v3313
  %v3516 = vmul.f32 %v3318, %v3318
  %v3517 = vmul.f32 %v3323, %v3323
  %v3518 = vmul.f32 %v3328, %v3328
  %v3519 = vmul.f32 %v3333, %v3333
  %v3520 = vmul.f32 %v3338, %v3338
  %v3521 = vmul.f32 %v3343, %v3343
  %v3522 = vmul.f32 %v3348, %v3348
  %v3523 = vmul.f32 %v3353, %v3353
  %v3524 = vmul.f32 %v3358, %v3358
  %v3525 = vmul.f32 %v3363, %v3363
  %v3526 = vmul.f32 %v3368, %v3368
  %v3527 = vmul.f32 %v3373, %v3373
  %v3528 = vmul.f32 %v3378, %v3378
  %v3529 = vmul.f32 %v3383, %v3383
  %v3530 = vmul.f32 %v3388, %v3388
  %v3531 = vmul.f32 %v3393, %v3393
  %v3532 = vmul.f32 %v3398, %v3398
  %v3533 = vmul.f32 %v3403, %v3403
  %v3534 = vmul.f32 %v3408, %v3408
  %v3535 = vmul.f32 %v3413, %v3413
  %v3536 = vmul.f32 %v3418, %v3418
  %v3537 = vmul.f32 %v3423, %v3423
  %v3538 = vmul.f32 %v3428, %v3428
  %v3539 = vmul.f32 %v3433, %v3433
  %v3540 = vmul.f32 %v3438, %v3438
  %v3541 = vmul.f32 %v3443, %v3443
  %v3542 = vmul.f32 %v3448, %v3448
  %v3543 = vmul.f32 %v3453, %v3453
  %v3544 = vmul.f32 %v3458, %v3458
  %v3545 = vmul.f32 %v3463, %v3463
  %v3546 = vmul.f32 %v3468, %v3468
  %v3547 = vmul.f32 %v3473, %v3473
  %v3548 = vmul.f32 %v3478, %v3478
  %v3549 = vmul.f32 %v3483, %v3483
  %3614 = vrot.lane.b32.xlu0 %v3486, 8
  %v3615 = vpop.permute.xlu0 %3614
  %3616 = vrot.lane.b32.xlu0 %v3487, 8
  %v3617 = vpop.permute.xlu0 %3616
  %3618 = vrot.lane.b32.xlu0 %v3488, 8
  %v3619 = vpop.permute.xlu0 %3618
  %3620 = vrot.lane.b32.xlu0 %v3489, 8
  %v3621 = vpop.permute.xlu0 %3620
  %3622 = vrot.lane.b32.xlu0 %v3490, 8
  %v3623 = vpop.permute.xlu0 %3622
  %3624 = vrot.lane.b32.xlu0 %v3491, 8
  %v3625 = vpop.permute.xlu0 %3624
  %3626 = vrot.lane.b32.xlu0 %v3492, 8
  %v3627 = vpop.permute.xlu0 %3626
  %3628 = vrot.lane.b32.xlu0 %v3493, 8
  %v3629 = vpop.permute.xlu0 %3628
  %3630 = vrot.lane.b32.xlu0 %v3494, 8
  %v3631 = vpop.permute.xlu0 %3630
  %3632 = vrot.lane.b32.xlu0 %v3495, 8
  %v3633 = vpop.permute.xlu0 %3632
  %3634 = vrot.lane.b32.xlu0 %v3496, 8
  %v3635 = vpop.permute.xlu0 %3634
  %3636 = vrot.lane.b32.xlu0 %v3497, 8
  %v3637 = vpop.permute.xlu0 %3636
  %3638 = vrot.lane.b32.xlu0 %v3498, 8
  %v3639 = vpop.permute.xlu0 %3638
  %3640 = vrot.lane.b32.xlu0 %v3499, 8
  %v3641 = vpop.permute.xlu0 %3640
  %3642 = vrot.lane.b32.xlu0 %v3500, 8
  %v3643 = vpop.permute.xlu0 %3642
  %3644 = vrot.lane.b32.xlu0 %v3501, 8
  %v3645 = vpop.permute.xlu0 %3644
  %3646 = vrot.lane.b32.xlu0 %v3502, 8
  %v3647 = vpop.permute.xlu0 %3646
  %3648 = vrot.lane.b32.xlu0 %v3503, 8
  %v3649 = vpop.permute.xlu0 %3648
  %3650 = vrot.lane.b32.xlu0 %v3504, 8
  %v3651 = vpop.permute.xlu0 %3650
  %3652 = vrot.lane.b32.xlu0 %v3505, 8
  %v3653 = vpop.permute.xlu0 %3652
  %3654 = vrot.lane.b32.xlu0 %v3506, 8
  %v3655 = vpop.permute.xlu0 %3654
  %3656 = vrot.lane.b32.xlu0 %v3507, 8
  %v3657 = vpop.permute.xlu0 %3656
  %3658 = vrot.lane.b32.xlu0 %v3508, 8
  %v3659 = vpop.permute.xlu0 %3658
  %3660 = vrot.lane.b32.xlu0 %v3509, 8
  %v3661 = vpop.permute.xlu0 %3660
  %3662 = vrot.lane.b32.xlu0 %v3510, 8
  %v3663 = vpop.permute.xlu0 %3662
  %3664 = vrot.lane.b32.xlu0 %v3511, 8
  %v3665 = vpop.permute.xlu0 %3664
  %3666 = vrot.lane.b32.xlu0 %v3512, 8
  %v3667 = vpop.permute.xlu0 %3666
  %3668 = vrot.lane.b32.xlu0 %v3513, 8
  %v3669 = vpop.permute.xlu0 %3668
  %3670 = vrot.lane.b32.xlu0 %v3514, 8
  %v3671 = vpop.permute.xlu0 %3670
  %3672 = vrot.lane.b32.xlu0 %v3515, 8
  %v3673 = vpop.permute.xlu0 %3672
  %3674 = vrot.lane.b32.xlu0 %v3516, 8
  %v3675 = vpop.permute.xlu0 %3674
  %3676 = vrot.lane.b32.xlu0 %v3517, 8
  %v3677 = vpop.permute.xlu0 %3676
  %3678 = vrot.lane.b32.xlu0 %v3518, 8
  %v3679 = vpop.permute.xlu0 %3678
  %3680 = vrot.lane.b32.xlu0 %v3519, 8
  %v3681 = vpop.permute.xlu0 %3680
  %3682 = vrot.lane.b32.xlu0 %v3520, 8
  %v3683 = vpop.permute.xlu0 %3682
  %3684 = vrot.lane.b32.xlu0 %v3521, 8
  %v3685 = vpop.permute.xlu0 %3684
  %3686 = vrot.lane.b32.xlu0 %v3522, 8
  %v3687 = vpop.permute.xlu0 %3686
  %3688 = vrot.lane.b32.xlu0 %v3523, 8
  %v3689 = vpop.permute.xlu0 %3688
  %3690 = vrot.lane.b32.xlu0 %v3524, 8
  %v3691 = vpop.permute.xlu0 %3690
  %3692 = vrot.lane.b32.xlu0 %v3525, 8
  %v3693 = vpop.permute.xlu0 %3692
  %3694 = vrot.lane.b32.xlu0 %v3526, 8
  %v3695 = vpop.permute.xlu0 %3694
  %3696 = vrot.lane.b32.xlu0 %v3527, 8
  %v3697 = vpop.permute.xlu0 %3696
  %3698 = vrot.lane.b32.xlu0 %v3528, 8
  %v3699 = vpop.permute.xlu0 %3698
  %3700 = vrot.lane.b32.xlu0 %v3529, 8
  %v3701 = vpop.permute.xlu0 %3700
  %3702 = vrot.lane.b32.xlu0 %v3530, 8
  %v3703 = vpop.permute.xlu0 %3702
  %3704 = vrot.lane.b32.xlu0 %v3531, 8
  %v3705 = vpop.permute.xlu0 %3704
  %3706 = vrot.lane.b32.xlu0 %v3532, 8
  %v3707 = vpop.permute.xlu0 %3706
  %3708 = vrot.lane.b32.xlu0 %v3533, 8
  %v3709 = vpop.permute.xlu0 %3708
  %3710 = vrot.lane.b32.xlu0 %v3534, 8
  %v3711 = vpop.permute.xlu0 %3710
  %3712 = vrot.lane.b32.xlu0 %v3535, 8
  %v3713 = vpop.permute.xlu0 %3712
  %3714 = vrot.lane.b32.xlu0 %v3536, 8
  %v3715 = vpop.permute.xlu0 %3714
  %3716 = vrot.lane.b32.xlu0 %v3537, 8
  %v3717 = vpop.permute.xlu0 %3716
  %3718 = vrot.lane.b32.xlu0 %v3538, 8
  %v3719 = vpop.permute.xlu0 %3718
  %3720 = vrot.lane.b32.xlu0 %v3539, 8
  %v3721 = vpop.permute.xlu0 %3720
  %3722 = vrot.lane.b32.xlu0 %v3540, 8
  %v3723 = vpop.permute.xlu0 %3722
  %3724 = vrot.lane.b32.xlu0 %v3541, 8
  %v3725 = vpop.permute.xlu0 %3724
  %3726 = vrot.lane.b32.xlu0 %v3542, 8
  %v3727 = vpop.permute.xlu0 %3726
  %3728 = vrot.lane.b32.xlu0 %v3543, 8
  %v3729 = vpop.permute.xlu0 %3728
  %3730 = vrot.lane.b32.xlu0 %v3544, 8
  %v3731 = vpop.permute.xlu0 %3730
  %3732 = vrot.lane.b32.xlu0 %v3545, 8
  %v3733 = vpop.permute.xlu0 %3732
  %3734 = vrot.lane.b32.xlu0 %v3546, 8
  %v3735 = vpop.permute.xlu0 %3734
  %3736 = vrot.lane.b32.xlu0 %v3547, 8
  %v3737 = vpop.permute.xlu0 %3736
  %3738 = vrot.lane.b32.xlu0 %v3548, 8
  %v3739 = vpop.permute.xlu0 %3738
  %3740 = vrot.lane.b32.xlu0 %v3549, 8
  %v3741 = vpop.permute.xlu0 %3740
  %v3806 = vsel %vm2440, %v3168, %v3615
  %v3807 = vsel %vm2440, %v3173, %v3617
  %v3808 = vsel %vm2440, %v3178, %v3619
  %v3809 = vsel %vm2440, %v3183, %v3621
  %v3810 = vsel %vm2440, %v3188, %v3623
  %v3811 = vsel %vm2440, %v3193, %v3625
  %v3812 = vsel %vm2440, %v3198, %v3627
  %v3813 = vsel %vm2440, %v3203, %v3629
  %v3814 = vsel %vm2440, %v3208, %v3631
  %v3815 = vsel %vm2440, %v3213, %v3633
  %v3816 = vsel %vm2440, %v3218, %v3635
  %v3817 = vsel %vm2440, %v3223, %v3637
  %v3818 = vsel %vm2440, %v3228, %v3639
  %v3819 = vsel %vm2440, %v3233, %v3641
  %v3820 = vsel %vm2440, %v3238, %v3643
  %v3821 = vsel %vm2440, %v3243, %v3645
  %v3822 = vsel %vm2440, %v3248, %v3647
  %v3823 = vsel %vm2440, %v3253, %v3649
  %v3824 = vsel %vm2440, %v3258, %v3651
  %v3825 = vsel %vm2440, %v3263, %v3653
  %v3826 = vsel %vm2440, %v3268, %v3655
  %v3827 = vsel %vm2440, %v3273, %v3657
  %v3828 = vsel %vm2440, %v3278, %v3659
  %v3829 = vsel %vm2440, %v3283, %v3661
  %v3830 = vsel %vm2440, %v3288, %v3663
  %v3831 = vsel %vm2440, %v3293, %v3665
  %v3832 = vsel %vm2440, %v3298, %v3667
  %v3833 = vsel %vm2440, %v3303, %v3669
  %v3834 = vsel %vm2440, %v3308, %v3671
  %v3835 = vsel %vm2440, %v3313, %v3673
  %v3836 = vsel %vm2440, %v3318, %v3675
  %v3837 = vsel %vm2440, %v3323, %v3677
  %v3838 = vsel %vm2440, %v3328, %v3679
  %v3839 = vsel %vm2440, %v3333, %v3681
  %v3840 = vsel %vm2440, %v3338, %v3683
  %v3841 = vsel %vm2440, %v3343, %v3685
  %v3842 = vsel %vm2440, %v3348, %v3687
  %v3843 = vsel %vm2440, %v3353, %v3689
  %v3844 = vsel %vm2440, %v3358, %v3691
  %v3845 = vsel %vm2440, %v3363, %v3693
  %v3846 = vsel %vm2440, %v3368, %v3695
  %v3847 = vsel %vm2440, %v3373, %v3697
  %v3848 = vsel %vm2440, %v3378, %v3699
  %v3849 = vsel %vm2440, %v3383, %v3701
  %v3850 = vsel %vm2440, %v3388, %v3703
  %v3851 = vsel %vm2440, %v3393, %v3705
  %v3852 = vsel %vm2440, %v3398, %v3707
  %v3853 = vsel %vm2440, %v3403, %v3709
  %v3854 = vsel %vm2440, %v3408, %v3711
  %v3855 = vsel %vm2440, %v3413, %v3713
  %v3856 = vsel %vm2440, %v3418, %v3715
  %v3857 = vsel %vm2440, %v3423, %v3717
  %v3858 = vsel %vm2440, %v3428, %v3719
  %v3859 = vsel %vm2440, %v3433, %v3721
  %v3860 = vsel %vm2440, %v3438, %v3723
  %v3861 = vsel %vm2440, %v3443, %v3725
  %v3862 = vsel %vm2440, %v3448, %v3727
  %v3863 = vsel %vm2440, %v3453, %v3729
  %v3864 = vsel %vm2440, %v3458, %v3731
  %v3865 = vsel %vm2440, %v3463, %v3733
  %v3866 = vsel %vm2440, %v3468, %v3735
  %v3867 = vsel %vm2440, %v3473, %v3737
  %v3868 = vsel %vm2440, %v3478, %v3739
  %v3869 = vsel %vm2440, %v3483, %v3741
  %3870 = vmatprep.subr.mxu0 0.0
  %3871 = vmatpush1.msra.mxu0 %v3821
  %3872 = vmatprep.subr.mxu0 0.0
  %3873 = vmatpush1.msra.mxu0 %v3820
  %3874 = vmatprep.subr.mxu0 0.0
  %3875 = vmatpush1.msra.mxu0 %v3819
  %3876 = vmatprep.subr.mxu0 0.0
  %3877 = vmatpush1.msra.mxu0 %v3818
  %3878 = vmatprep.subr.mxu0 0.0
  %3879 = vmatpush1.msra.mxu0 %v3817
  %3880 = vmatprep.subr.mxu0 0.0
  %3881 = vmatpush1.msra.mxu0 %v3816
  %3882 = vmatprep.subr.mxu0 0.0
  %3883 = vmatpush1.msra.mxu0 %v3815
  %3884 = vmatprep.subr.mxu0 0.0
  %3885 = vmatpush1.msra.mxu0 %v3814
  %3886 = vmatprep.subr.mxu0 0.0
  %3887 = vmatpush1.msra.mxu0 %v3813
  %3888 = vmatprep.subr.mxu0 0.0
  %3889 = vmatpush1.msra.mxu0 %v3812
  %3890 = vmatprep.subr.mxu0 0.0
  %3891 = vmatpush1.msra.mxu0 %v3811
  %3892 = vmatprep.subr.mxu0 0.0
  %3893 = vmatpush1.msra.mxu0 %v3810
  %3894 = vmatprep.subr.mxu0 0.0
  %3895 = vmatpush1.msra.mxu0 %v3809
  %3896 = vmatprep.subr.mxu0 0.0
  %3897 = vmatpush1.msra.mxu0 %v3808
  %3898 = vmatprep.subr.mxu0 0.0
  %3899 = vmatpush1.msra.mxu0 %v3807
  %3900 = vmatprep.subr.mxu0 0.0
  %3901 = vmatpush1.msra.mxu0 %v3806
  %3902 = vmatprep.subr.mxu0 0.0
  %3903 = vmatpush2.msra.mxu0 %v3837
  %3904 = vmatprep.subr.mxu0 0.0
  %3905 = vmatpush2.msra.mxu0 %v3836
  %3906 = vmatprep.subr.mxu0 0.0
  %3907 = vmatpush2.msra.mxu0 %v3835
  %3908 = vmatprep.subr.mxu0 0.0
  %3909 = vmatpush2.msra.mxu0 %v3834
  %3910 = vmatprep.subr.mxu0 0.0
  %3911 = vmatpush2.msra.mxu0 %v3833
  %3912 = vmatprep.subr.mxu0 0.0
  %3913 = vmatpush2.msra.mxu0 %v3832
  %3914 = vmatprep.subr.mxu0 0.0
  %3915 = vmatpush2.msra.mxu0 %v3831
  %3916 = vmatprep.subr.mxu0 0.0
  %3917 = vmatpush2.msra.mxu0 %v3830
  %3918 = vmatprep.subr.mxu0 0.0
  %3919 = vmatpush2.msra.mxu0 %v3829
  %3920 = vmatprep.subr.mxu0 0.0
  %3921 = vmatpush2.msra.mxu0 %v3828
  %3922 = vmatprep.subr.mxu0 0.0
  %3923 = vmatpush2.msra.mxu0 %v3827
  %3924 = vmatprep.subr.mxu0 0.0
  %3925 = vmatpush2.msra.mxu0 %v3826
  %3926 = vmatprep.subr.mxu0 0.0
  %3927 = vmatpush2.msra.mxu0 %v3825
  %3928 = vmatprep.subr.mxu0 0.0
  %3929 = vmatpush2.msra.mxu0 %v3824
  %3930 = vmatprep.subr.mxu0 0.0
  %3931 = vmatpush2.msra.mxu0 %v3823
  %3932 = vmatprep.subr.mxu0 0.0
  %3933 = vmatpush2.msra.mxu0 %v3822
  %3934 = vmatprep.mubr.f32.mxu0 1.0
  %3935 = vmatmul.mubr.f32.gmra.mxu0 1.0
  %v3936 = vpop.f32.mrf.mxu0
  %v3937 = vadd.f32 0.0, %v3936
  %v3938 = vpop.f32.mrf.mxu0
  %3939 = vdwg.mxu0
  %3940 = vmatprep.subr.mxu0 0.0
  %3941 = vmatpush1.msra.mxu0 %v3853
  %3942 = vmatprep.subr.mxu0 0.0
  %3943 = vmatpush1.msra.mxu0 %v3852
  %3944 = vmatprep.subr.mxu0 0.0
  %3945 = vmatpush1.msra.mxu0 %v3851
  %3946 = vmatprep.subr.mxu0 0.0
  %3947 = vmatpush1.msra.mxu0 %v3850
  %3948 = vmatprep.subr.mxu0 0.0
  %3949 = vmatpush1.msra.mxu0 %v3849
  %3950 = vmatprep.subr.mxu0 0.0
  %3951 = vmatpush1.msra.mxu0 %v3848
  %3952 = vmatprep.subr.mxu0 0.0
  %3953 = vmatpush1.msra.mxu0 %v3847
  %3954 = vmatprep.subr.mxu0 0.0
  %3955 = vmatpush1.msra.mxu0 %v3846
  %3956 = vmatprep.subr.mxu0 0.0
  %3957 = vmatpush1.msra.mxu0 %v3845
  %3958 = vmatprep.subr.mxu0 0.0
  %3959 = vmatpush1.msra.mxu0 %v3844
  %3960 = vmatprep.subr.mxu0 0.0
  %3961 = vmatpush1.msra.mxu0 %v3843
  %3962 = vmatprep.subr.mxu0 0.0
  %3963 = vmatpush1.msra.mxu0 %v3842
  %3964 = vmatprep.subr.mxu0 0.0
  %3965 = vmatpush1.msra.mxu0 %v3841
  %3966 = vmatprep.subr.mxu0 0.0
  %3967 = vmatpush1.msra.mxu0 %v3840
  %3968 = vmatprep.subr.mxu0 0.0
  %3969 = vmatpush1.msra.mxu0 %v3839
  %3970 = vmatprep.subr.mxu0 0.0
  %3971 = vmatpush1.msra.mxu0 %v3838
  %3972 = vmatprep.subr.mxu0 0.0
  %3973 = vmatpush2.msra.mxu0 %v3869
  %3974 = vmatprep.subr.mxu0 0.0
  %3975 = vmatpush2.msra.mxu0 %v3868
  %3976 = vmatprep.subr.mxu0 0.0
  %3977 = vmatpush2.msra.mxu0 %v3867
  %3978 = vmatprep.subr.mxu0 0.0
  %3979 = vmatpush2.msra.mxu0 %v3866
  %3980 = vmatprep.subr.mxu0 0.0
  %3981 = vmatpush2.msra.mxu0 %v3865
  %3982 = vmatprep.subr.mxu0 0.0
  %3983 = vmatpush2.msra.mxu0 %v3864
  %3984 = vmatprep.subr.mxu0 0.0
  %3985 = vmatpush2.msra.mxu0 %v3863
  %3986 = vmatprep.subr.mxu0 0.0
  %3987 = vmatpush2.msra.mxu0 %v3862
  %3988 = vmatprep.subr.mxu0 0.0
  %3989 = vmatpush2.msra.mxu0 %v3861
  %3990 = vmatprep.subr.mxu0 0.0
  %3991 = vmatpush2.msra.mxu0 %v3860
  %3992 = vmatprep.subr.mxu0 0.0
  %3993 = vmatpush2.msra.mxu0 %v3859
  %3994 = vmatprep.subr.mxu0 0.0
  %3995 = vmatpush2.msra.mxu0 %v3858
  %3996 = vmatprep.subr.mxu0 0.0
  %3997 = vmatpush2.msra.mxu0 %v3857
  %3998 = vmatprep.subr.mxu0 0.0
  %3999 = vmatpush2.msra.mxu0 %v3856
  %4000 = vmatprep.subr.mxu0 0.0
  %4001 = vmatpush2.msra.mxu0 %v3855
  %4002 = vmatprep.subr.mxu0 0.0
  %4003 = vmatpush2.msra.mxu0 %v3854
  %4004 = vmatprep.mubr.f32.mxu0 1.0
  %4005 = vmatmul.mubr.f32.gmra.mxu0 1.0
  %v4006 = vpop.f32.mrf.mxu0
  %v4007 = vadd.f32 %v3937, %v4006
  %v4008 = vpop.f32.mrf.mxu0
  %4009 = vdwg.mxu0
  %v4010 = vmul.f32 %v4007, 0.001953125
  %v4011 = vmul.f32 %v4010, %v4010
  %4013 = vrot.lane.b32.xlu0 %v4011, 8
  %v4014 = vpop.permute.xlu0 %4013
  %v4016 = vsub.f32 %v4010, %v4014
  %v4017 = vmax.f32 %v4016, 0.0
  %v4018 = vadd.f32 %v4017, 1e-05
  %v4019 = vrsqrt.pop %v4018
  %4021 = vrot.lane.b32.xlu0 %v4019, 120
  %v4022 = vpop.permute.xlu0 %4021
  %v4024 = vmul.f32 %v18, %v4022
  %v4025 = vmul.f32 %v4010, %v4024
  %v4026 = vsub.f32 %v19, %v4025
  %v4027 = vlaneseq
  %v4028 = vshrl.u32 %v4027, 7
  %v4029 = vsub.s32 0, %v4028
  %v4030 = vrot.slane %v4024, %v4029
  %v4031 = vmul.f32 %v3168, %v4030
  %v4032 = vmul.f32 %v3173, %v4030
  %v4033 = vmul.f32 %v3178, %v4030
  %v4034 = vmul.f32 %v3183, %v4030
  %v4035 = vmul.f32 %v3188, %v4030
  %v4036 = vmul.f32 %v3193, %v4030
  %v4037 = vmul.f32 %v3198, %v4030
  %v4038 = vmul.f32 %v3203, %v4030
  %v4039 = vmul.f32 %v3208, %v4030
  %v4040 = vmul.f32 %v3213, %v4030
  %v4041 = vmul.f32 %v3218, %v4030
  %v4042 = vmul.f32 %v3223, %v4030
  %v4043 = vmul.f32 %v3228, %v4030
  %v4044 = vmul.f32 %v3233, %v4030
  %v4045 = vmul.f32 %v3238, %v4030
  %v4046 = vmul.f32 %v3243, %v4030
  %v4047 = vmul.f32 %v3248, %v4030
  %v4048 = vmul.f32 %v3253, %v4030
  %v4049 = vmul.f32 %v3258, %v4030
  %v4050 = vmul.f32 %v3263, %v4030
  %v4051 = vmul.f32 %v3268, %v4030
  %v4052 = vmul.f32 %v3273, %v4030
  %v4053 = vmul.f32 %v3278, %v4030
  %v4054 = vmul.f32 %v3283, %v4030
  %v4055 = vmul.f32 %v3288, %v4030
  %v4056 = vmul.f32 %v3293, %v4030
  %v4057 = vmul.f32 %v3298, %v4030
  %v4058 = vmul.f32 %v3303, %v4030
  %v4059 = vmul.f32 %v3308, %v4030
  %v4060 = vmul.f32 %v3313, %v4030
  %v4061 = vmul.f32 %v3318, %v4030
  %v4062 = vmul.f32 %v3323, %v4030
  %v4063 = vmul.f32 %v3328, %v4030
  %v4064 = vmul.f32 %v3333, %v4030
  %v4065 = vmul.f32 %v3338, %v4030
  %v4066 = vmul.f32 %v3343, %v4030
  %v4067 = vmul.f32 %v3348, %v4030
  %v4068 = vmul.f32 %v3353, %v4030
  %v4069 = vmul.f32 %v3358, %v4030
  %v4070 = vmul.f32 %v3363, %v4030
  %v4071 = vmul.f32 %v3368, %v4030
  %v4072 = vmul.f32 %v3373, %v4030
  %v4073 = vmul.f32 %v3378, %v4030
  %v4074 = vmul.f32 %v3383, %v4030
  %v4075 = vmul.f32 %v3388, %v4030
  %v4076 = vmul.f32 %v3393, %v4030
  %v4077 = vmul.f32 %v3398, %v4030
  %v4078 = vmul.f32 %v3403, %v4030
  %v4079 = vmul.f32 %v3408, %v4030
  %v4080 = vmul.f32 %v3413, %v4030
  %v4081 = vmul.f32 %v3418, %v4030
  %v4082 = vmul.f32 %v3423, %v4030
  %v4083 = vmul.f32 %v3428, %v4030
  %v4084 = vmul.f32 %v3433, %v4030
  %v4085 = vmul.f32 %v3438, %v4030
  %v4086 = vmul.f32 %v3443, %v4030
  %v4087 = vmul.f32 %v3448, %v4030
  %v4088 = vmul.f32 %v3453, %v4030
  %v4089 = vmul.f32 %v3458, %v4030
  %v4090 = vmul.f32 %v3463, %v4030
  %v4091 = vmul.f32 %v3468, %v4030
  %v4092 = vmul.f32 %v3473, %v4030
  %v4093 = vmul.f32 %v3478, %v4030
  %v4094 = vmul.f32 %v3483, %v4030
  %v4095 = vlaneseq
  %v4096 = vshrl.u32 %v4095, 7
  %v4097 = vsub.s32 0, %v4096
  %v4098 = vrot.slane %v4026, %v4097
  %v4099 = vadd.f32 %v4031, %v4098
  %v4100 = vadd.f32 %v4032, %v4098
  %v4101 = vadd.f32 %v4033, %v4098
  %v4102 = vadd.f32 %v4034, %v4098
  %v4103 = vadd.f32 %v4035, %v4098
  %v4104 = vadd.f32 %v4036, %v4098
  %v4105 = vadd.f32 %v4037, %v4098
  %v4106 = vadd.f32 %v4038, %v4098
  %v4107 = vadd.f32 %v4039, %v4098
  %v4108 = vadd.f32 %v4040, %v4098
  %v4109 = vadd.f32 %v4041, %v4098
  %v4110 = vadd.f32 %v4042, %v4098
  %v4111 = vadd.f32 %v4043, %v4098
  %v4112 = vadd.f32 %v4044, %v4098
  %v4113 = vadd.f32 %v4045, %v4098
  %v4114 = vadd.f32 %v4046, %v4098
  %v4115 = vadd.f32 %v4047, %v4098
  %v4116 = vadd.f32 %v4048, %v4098
  %v4117 = vadd.f32 %v4049, %v4098
  %v4118 = vadd.f32 %v4050, %v4098
  %v4119 = vadd.f32 %v4051, %v4098
  %v4120 = vadd.f32 %v4052, %v4098
  %v4121 = vadd.f32 %v4053, %v4098
  %v4122 = vadd.f32 %v4054, %v4098
  %v4123 = vadd.f32 %v4055, %v4098
  %v4124 = vadd.f32 %v4056, %v4098
  %v4125 = vadd.f32 %v4057, %v4098
  %v4126 = vadd.f32 %v4058, %v4098
  %v4127 = vadd.f32 %v4059, %v4098
  %v4128 = vadd.f32 %v4060, %v4098
  %v4129 = vadd.f32 %v4061, %v4098
  %v4130 = vadd.f32 %v4062, %v4098
  %v4131 = vadd.f32 %v4063, %v4098
  %v4132 = vadd.f32 %v4064, %v4098
  %v4133 = vadd.f32 %v4065, %v4098
  %v4134 = vadd.f32 %v4066, %v4098
  %v4135 = vadd.f32 %v4067, %v4098
  %v4136 = vadd.f32 %v4068, %v4098
  %v4137 = vadd.f32 %v4069, %v4098
  %v4138 = vadd.f32 %v4070, %v4098
  %v4139 = vadd.f32 %v4071, %v4098
  %v4140 = vadd.f32 %v4072, %v4098
  %v4141 = vadd.f32 %v4073, %v4098
  %v4142 = vadd.f32 %v4074, %v4098
  %v4143 = vadd.f32 %v4075, %v4098
  %v4144 = vadd.f32 %v4076, %v4098
  %v4145 = vadd.f32 %v4077, %v4098
  %v4146 = vadd.f32 %v4078, %v4098
  %v4147 = vadd.f32 %v4079, %v4098
  %v4148 = vadd.f32 %v4080, %v4098
  %v4149 = vadd.f32 %v4081, %v4098
  %v4150 = vadd.f32 %v4082, %v4098
  %v4151 = vadd.f32 %v4083, %v4098
  %v4152 = vadd.f32 %v4084, %v4098
  %v4153 = vadd.f32 %v4085, %v4098
  %v4154 = vadd.f32 %v4086, %v4098
  %v4155 = vadd.f32 %v4087, %v4098
  %v4156 = vadd.f32 %v4088, %v4098
  %v4157 = vadd.f32 %v4089, %v4098
  %v4158 = vadd.f32 %v4090, %v4098
  %v4159 = vadd.f32 %v4091, %v4098
  %v4160 = vadd.f32 %v4092, %v4098
  %v4161 = vadd.f32 %v4093, %v4098
  %v4162 = vadd.f32 %v4094, %v4098
  %v4163 = vmax.f32 %v4099, 0.0
  %v4164 = vmax.f32 %v4100, 0.0
  %v4165 = vmax.f32 %v4101, 0.0
  %v4166 = vmax.f32 %v4102, 0.0
  %v4167 = vmax.f32 %v4103, 0.0
  %v4168 = vmax.f32 %v4104, 0.0
  %v4169 = vmax.f32 %v4105, 0.0
  %v4170 = vmax.f32 %v4106, 0.0
  %v4171 = vmax.f32 %v4107, 0.0
  %v4172 = vmax.f32 %v4108, 0.0
  %v4173 = vmax.f32 %v4109, 0.0
  %v4174 = vmax.f32 %v4110, 0.0
  %v4175 = vmax.f32 %v4111, 0.0
  %v4176 = vmax.f32 %v4112, 0.0
  %v4177 = vmax.f32 %v4113, 0.0
  %v4178 = vmax.f32 %v4114, 0.0
  %v4179 = vmax.f32 %v4115, 0.0
  %v4180 = vmax.f32 %v4116, 0.0
  %v4181 = vmax.f32 %v4117, 0.0
  %v4182 = vmax.f32 %v4118, 0.0
  %v4183 = vmax.f32 %v4119, 0.0
  %v4184 = vmax.f32 %v4120, 0.0
  %v4185 = vmax.f32 %v4121, 0.0
  %v4186 = vmax.f32 %v4122, 0.0
  %v4187 = vmax.f32 %v4123, 0.0
  %v4188 = vmax.f32 %v4124, 0.0
  %v4189 = vmax.f32 %v4125, 0.0
  %v4190 = vmax.f32 %v4126, 0.0
  %v4191 = vmax.f32 %v4127, 0.0
  %v4192 = vmax.f32 %v4128, 0.0
  %v4193 = vmax.f32 %v4129, 0.0
  %v4194 = vmax.f32 %v4130, 0.0
  %v4195 = vmax.f32 %v4131, 0.0
  %v4196 = vmax.f32 %v4132, 0.0
  %v4197 = vmax.f32 %v4133, 0.0
  %v4198 = vmax.f32 %v4134, 0.0
  %v4199 = vmax.f32 %v4135, 0.0
  %v4200 = vmax.f32 %v4136, 0.0
  %v4201 = vmax.f32 %v4137, 0.0
  %v4202 = vmax.f32 %v4138, 0.0
  %v4203 = vmax.f32 %v4139, 0.0
  %v4204 = vmax.f32 %v4140, 0.0
  %v4205 = vmax.f32 %v4141, 0.0
  %v4206 = vmax.f32 %v4142, 0.0
  %v4207 = vmax.f32 %v4143, 0.0
  %v4208 = vmax.f32 %v4144, 0.0
  %v4209 = vmax.f32 %v4145, 0.0
  %v4210 = vmax.f32 %v4146, 0.0
  %v4211 = vmax.f32 %v4147, 0.0
  %v4212 = vmax.f32 %v4148, 0.0
  %v4213 = vmax.f32 %v4149, 0.0
  %v4214 = vmax.f32 %v4150, 0.0
  %v4215 = vmax.f32 %v4151, 0.0
  %v4216 = vmax.f32 %v4152, 0.0
  %v4217 = vmax.f32 %v4153, 0.0
  %v4218 = vmax.f32 %v4154, 0.0
  %v4219 = vmax.f32 %v4155, 0.0
  %v4220 = vmax.f32 %v4156, 0.0
  %v4221 = vmax.f32 %v4157, 0.0
  %v4222 = vmax.f32 %v4158, 0.0
  %v4223 = vmax.f32 %v4159, 0.0
  %v4224 = vmax.f32 %v4160, 0.0
  %v4225 = vmax.f32 %v4161, 0.0
  %v4226 = vmax.f32 %v4162, 0.0
  %4227 = vst.msk [vmem:[#allocation3] sm:$0xff] %vm2440, 0.0
  %4228 = vst.msk [vmem:[#allocation3 + $0x8] sm:$0xff] %vm2440, 0.0
  %vm4229 = vcmask 58368
  %4230 = vst.msk [vmem:[#allocation3 + $0x10] sm:$0x3] %vm4229, 0.0
  %4231 = vst.msk [vmem:[#allocation3 + $0x18] sm:$0xff] %vm2440, 0.0
  %4232 = vst.msk [vmem:[#allocation3 + $0x20] sm:$0xff] %vm2440, 0.0
  %4233 = vst.msk [vmem:[#allocation3 + $0x28] sm:$0x3] %vm4229, 0.0
  %4234 = vst.msk [vmem:[#allocation3 + $0x30] sm:$0xff] %vm2440, 0.0
  %4235 = vst.msk [vmem:[#allocation3 + $0x38] sm:$0xff] %vm2440, 0.0
  %4236 = vst.msk [vmem:[#allocation3 + $0x40] sm:$0x3] %vm4229, 0.0
  %4237 = vst.msk [vmem:[#allocation3 + $0x48] sm:$0xff] %vm2440, 0.0
  %4238 = vst.msk [vmem:[#allocation3 + $0x50] sm:$0xff] %vm2440, 0.0
  %4239 = vst.msk [vmem:[#allocation3 + $0x58] sm:$0x3] %vm4229, 0.0
  %4240 = vst.msk [vmem:[#allocation3 + $0x60] sm:$0xff] %vm2440, 0.0
  %4241 = vst.msk [vmem:[#allocation3 + $0x68] sm:$0xff] %vm2440, 0.0
  %4242 = vst.msk [vmem:[#allocation3 + $0x70] sm:$0x3] %vm4229, 0.0
  %4243 = vst.msk [vmem:[#allocation3 + $0x78] sm:$0xff] %vm2440, 0.0
  %4244 = vst.msk [vmem:[#allocation3 + $0x80] sm:$0xff] %vm2440, 0.0
  %4245 = vst.msk [vmem:[#allocation3 + $0x88] sm:$0x3] %vm4229, 0.0
  %4246 = vst.msk [vmem:[#allocation3 + $0x90] sm:$0xff] %vm2440, 0.0
  %4247 = vst.msk [vmem:[#allocation3 + $0x98] sm:$0xff] %vm2440, 0.0
  %4248 = vst.msk [vmem:[#allocation3 + $0xa0] sm:$0x3] %vm4229, 0.0
  %4249 = vst.msk [vmem:[#allocation3 + $0xa8] sm:$0xff] %vm2440, 0.0
  %4250 = vst.msk [vmem:[#allocation3 + $0xb0] sm:$0xff] %vm2440, 0.0
  %4251 = vst.msk [vmem:[#allocation3 + $0xb8] sm:$0x3] %vm4229, 0.0
  %4252 = vst.msk [vmem:[#allocation3 + $0xc0] sm:$0xff] %vm2440, 0.0
  %4253 = vst.msk [vmem:[#allocation3 + $0xc8] sm:$0xff] %vm2440, 0.0
  %4254 = vst.msk [vmem:[#allocation3 + $0xd0] sm:$0x3] %vm4229, 0.0
  %4255 = vst.msk [vmem:[#allocation3 + $0xd8] sm:$0xff] %vm2440, 0.0
  %4256 = vst.msk [vmem:[#allocation3 + $0xe0] sm:$0xff] %vm2440, 0.0
  %4257 = vst.msk [vmem:[#allocation3 + $0xe8] sm:$0x3] %vm4229, 0.0
  %4258 = vst.msk [vmem:[#allocation3 + $0xf0] sm:$0xff] %vm2440, 0.0
  %4259 = vst.msk [vmem:[#allocation3 + $0xf8] sm:$0xff] %vm2440, 0.0
  %4260 = vst.msk [vmem:[#allocation3 + $0x100] sm:$0x3] %vm4229, 0.0
  %4261 = vst.msk [vmem:[#allocation3 + $0x108] sm:$0xff] %vm2440, 0.0
  %4262 = vst.msk [vmem:[#allocation3 + $0x110] sm:$0xff] %vm2440, 0.0
  %4263 = vst.msk [vmem:[#allocation3 + $0x118] sm:$0x3] %vm4229, 0.0
  %4264 = vst.msk [vmem:[#allocation3 + $0x120] sm:$0xff] %vm2440, 0.0
  %4265 = vst.msk [vmem:[#allocation3 + $0x128] sm:$0xff] %vm2440, 0.0
  %4266 = vst.msk [vmem:[#allocation3 + $0x130] sm:$0x3] %vm4229, 0.0
  %4267 = vst.msk [vmem:[#allocation3 + $0x138] sm:$0xff] %vm2440, 0.0
  %4268 = vst.msk [vmem:[#allocation3 + $0x140] sm:$0xff] %vm2440, 0.0
  %4269 = vst.msk [vmem:[#allocation3 + $0x148] sm:$0x3] %vm4229, 0.0
  %4270 = vst.msk [vmem:[#allocation3 + $0x150] sm:$0xff] %vm2440, 0.0
  %4271 = vst.msk [vmem:[#allocation3 + $0x158] sm:$0xff] %vm2440, 0.0
  %4272 = vst.msk [vmem:[#allocation3 + $0x160] sm:$0x3] %vm4229, 0.0
  %4273 = vst.msk [vmem:[#allocation3 + $0x168] sm:$0xff] %vm2440, 0.0
  %4274 = vst.msk [vmem:[#allocation3 + $0x170] sm:$0xff] %vm2440, 0.0
  %4275 = vst.msk [vmem:[#allocation3 + $0x178] sm:$0x3] %vm4229, 0.0
  %4276 = vst.msk [vmem:[#allocation3 + $0x180] sm:$0xff] %vm2440, 0.0
  %4277 = vst.msk [vmem:[#allocation3 + $0x188] sm:$0xff] %vm2440, 0.0
  %4278 = vst.msk [vmem:[#allocation3 + $0x190] sm:$0x3] %vm4229, 0.0
  %4279 = vst.msk [vmem:[#allocation3 + $0x198] sm:$0xff] %vm2440, 0.0
  %4280 = vst.msk [vmem:[#allocation3 + $0x1a0] sm:$0xff] %vm2440, 0.0
  %4281 = vst.msk [vmem:[#allocation3 + $0x1a8] sm:$0x3] %vm4229, 0.0
  %4282 = vst.msk [vmem:[#allocation3 + $0x1b0] sm:$0xff] %vm2440, 0.0
  %4283 = vst.msk [vmem:[#allocation3 + $0x1b8] sm:$0xff] %vm2440, 0.0
  %4284 = vst.msk [vmem:[#allocation3 + $0x1c0] sm:$0x3] %vm4229, 0.0
  %4285 = vst.msk [vmem:[#allocation3 + $0x1c8] sm:$0xff] %vm2440, 0.0
  %4286 = vst.msk [vmem:[#allocation3 + $0x1d0] sm:$0xff] %vm2440, 0.0
  %4287 = vst.msk [vmem:[#allocation3 + $0x1d8] sm:$0x3] %vm4229, 0.0
  %4288 = vst.msk [vmem:[#allocation3 + $0x1e0] sm:$0xff] %vm2440, 0.0
  %4289 = vst.msk [vmem:[#allocation3 + $0x1e8] sm:$0xff] %vm2440, 0.0
  %4290 = vst.msk [vmem:[#allocation3 + $0x1f0] sm:$0x3] %vm4229, 0.0
  %4291 = vst.msk [vmem:[#allocation3 + $0x1f8] sm:$0xff] %vm2440, 0.0
  %4292 = vst.msk [vmem:[#allocation3 + $0x200] sm:$0xff] %vm2440, 0.0
  %4293 = vst.msk [vmem:[#allocation3 + $0x208] sm:$0x3] %vm4229, 0.0
  %4294 = vst.msk [vmem:[#allocation3 + $0x210] sm:$0xff] %vm2440, 0.0
  %4295 = vst.msk [vmem:[#allocation3 + $0x218] sm:$0xff] %vm2440, 0.0
  %4296 = vst.msk [vmem:[#allocation3 + $0x220] sm:$0x3] %vm4229, 0.0
  %4297 = vst.msk [vmem:[#allocation3 + $0x228] sm:$0xff] %vm2440, 0.0
  %4298 = vst.msk [vmem:[#allocation3 + $0x230] sm:$0xff] %vm2440, 0.0
  %4299 = vst.msk [vmem:[#allocation3 + $0x238] sm:$0x3] %vm4229, 0.0
  %4300 = vst.msk [vmem:[#allocation3 + $0x240] sm:$0xff] %vm2440, 0.0
  %4301 = vst.msk [vmem:[#allocation3 + $0x248] sm:$0xff] %vm2440, 0.0
  %4302 = vst.msk [vmem:[#allocation3 + $0x250] sm:$0x3] %vm4229, 0.0
  %4303 = vst.msk [vmem:[#allocation3 + $0x258] sm:$0xff] %vm2440, 0.0
  %4304 = vst.msk [vmem:[#allocation3 + $0x260] sm:$0xff] %vm2440, 0.0
  %4305 = vst.msk [vmem:[#allocation3 + $0x268] sm:$0x3] %vm4229, 0.0
  %4306 = vst.msk [vmem:[#allocation3 + $0x270] sm:$0xff] %vm2440, 0.0
  %4307 = vst.msk [vmem:[#allocation3 + $0x278] sm:$0xff] %vm2440, 0.0
  %4308 = vst.msk [vmem:[#allocation3 + $0x280] sm:$0x3] %vm4229, 0.0
  %4309 = vst.msk [vmem:[#allocation3 + $0x288] sm:$0xff] %vm2440, 0.0
  %4310 = vst.msk [vmem:[#allocation3 + $0x290] sm:$0xff] %vm2440, 0.0
  %4311 = vst.msk [vmem:[#allocation3 + $0x298] sm:$0x3] %vm4229, 0.0
  %4312 = vst.msk [vmem:[#allocation3 + $0x2a0] sm:$0xff] %vm2440, 0.0
  %4313 = vst.msk [vmem:[#allocation3 + $0x2a8] sm:$0xff] %vm2440, 0.0
  %4314 = vst.msk [vmem:[#allocation3 + $0x2b0] sm:$0x3] %vm4229, 0.0
  %4315 = vst.msk [vmem:[#allocation3 + $0x2b8] sm:$0xff] %vm2440, 0.0
  %4316 = vst.msk [vmem:[#allocation3 + $0x2c0] sm:$0xff] %vm2440, 0.0
  %4317 = vst.msk [vmem:[#allocation3 + $0x2c8] sm:$0x3] %vm4229, 0.0
  %4318 = vst.msk [vmem:[#allocation3 + $0x2d0] sm:$0xff] %vm2440, 0.0
  %4319 = vst.msk [vmem:[#allocation3 + $0x2d8] sm:$0xff] %vm2440, 0.0
  %4320 = vst.msk [vmem:[#allocation3 + $0x2e0] sm:$0x3] %vm4229, 0.0
  %4321 = vst.msk [vmem:[#allocation3 + $0x2e8] sm:$0xff] %vm2440, 0.0
  %4322 = vst.msk [vmem:[#allocation3 + $0x2f0] sm:$0xff] %vm2440, 0.0
  %4323 = vst.msk [vmem:[#allocation3 + $0x2f8] sm:$0x3] %vm4229, 0.0
  %4324 = vst.msk [vmem:[#allocation3 + $0x300] sm:$0xff] %vm2440, 0.0
  %4325 = vst.msk [vmem:[#allocation3 + $0x308] sm:$0xff] %vm2440, 0.0
  %4326 = vst.msk [vmem:[#allocation3 + $0x310] sm:$0x3] %vm4229, 0.0
  %4327 = vst.msk [vmem:[#allocation3 + $0x318] sm:$0xff] %vm2440, 0.0
  %4328 = vst.msk [vmem:[#allocation3 + $0x320] sm:$0xff] %vm2440, 0.0
  %4329 = vst.msk [vmem:[#allocation3 + $0x328] sm:$0x3] %vm4229, 0.0
  %4330 = vst.msk [vmem:[#allocation3 + $0x330] sm:$0xff] %vm2440, 0.0
  %4331 = vst.msk [vmem:[#allocation3 + $0x338] sm:$0xff] %vm2440, 0.0
  %4332 = vst.msk [vmem:[#allocation3 + $0x340] sm:$0x3] %vm4229, 0.0
  %4333 = vst.msk [vmem:[#allocation3 + $0x348] sm:$0xff] %vm2440, 0.0
  %4334 = vst.msk [vmem:[#allocation3 + $0x350] sm:$0xff] %vm2440, 0.0
  %4335 = vst.msk [vmem:[#allocation3 + $0x358] sm:$0x3] %vm4229, 0.0
  %s4336 = scalar_lea.vmem [#allocation3], 24
  %4337 = vst.msk [vmem:[%s4336 + $0x1] sm:$0xff] %vm2440, %v4163
  %4338 = vst.msk [vmem:[%s4336 + $0x9] sm:$0xff] %vm2440, %v4164
  %4339 = vst.msk [vmem:[%s4336 + $0x19] sm:$0xff] %vm2440, %v4165
  %4340 = vst.msk [vmem:[%s4336 + $0x21] sm:$0xff] %vm2440, %v4166
  %4341 = vst.msk [vmem:[%s4336 + $0x31] sm:$0xff] %vm2440, %v4167
  %4342 = vst.msk [vmem:[%s4336 + $0x39] sm:$0xff] %vm2440, %v4168
  %4343 = vst.msk [vmem:[%s4336 + $0x49] sm:$0xff] %vm2440, %v4169
  %4344 = vst.msk [vmem:[%s4336 + $0x51] sm:$0xff] %vm2440, %v4170
  %4345 = vst.msk [vmem:[%s4336 + $0x61] sm:$0xff] %vm2440, %v4171
  %4346 = vst.msk [vmem:[%s4336 + $0x69] sm:$0xff] %vm2440, %v4172
  %4347 = vst.msk [vmem:[%s4336 + $0x79] sm:$0xff] %vm2440, %v4173
  %4348 = vst.msk [vmem:[%s4336 + $0x81] sm:$0xff] %vm2440, %v4174
  %4349 = vst.msk [vmem:[%s4336 + $0x91] sm:$0xff] %vm2440, %v4175
  %4350 = vst.msk [vmem:[%s4336 + $0x99] sm:$0xff] %vm2440, %v4176
  %4351 = vst.msk [vmem:[%s4336 + $0xa9] sm:$0xff] %vm2440, %v4177
  %4352 = vst.msk [vmem:[%s4336 + $0xb1] sm:$0xff] %vm2440, %v4178
  %4353 = vst.msk [vmem:[%s4336 + $0xc1] sm:$0xff] %vm2440, %v4179
  %4354 = vst.msk [vmem:[%s4336 + $0xc9] sm:$0xff] %vm2440, %v4180
  %4355 = vst.msk [vmem:[%s4336 + $0xd9] sm:$0xff] %vm2440, %v4181
  %4356 = vst.msk [vmem:[%s4336 + $0xe1] sm:$0xff] %vm2440, %v4182
  %4357 = vst.msk [vmem:[%s4336 + $0xf1] sm:$0xff] %vm2440, %v4183
  %4358 = vst.msk [vmem:[%s4336 + $0xf9] sm:$0xff] %vm2440, %v4184
  %4359 = vst.msk [vmem:[%s4336 + $0x109] sm:$0xff] %vm2440, %v4185
  %4360 = vst.msk [vmem:[%s4336 + $0x111] sm:$0xff] %vm2440, %v4186
  %4361 = vst.msk [vmem:[%s4336 + $0x121] sm:$0xff] %vm2440, %v4187
  %4362 = vst.msk [vmem:[%s4336 + $0x129] sm:$0xff] %vm2440, %v4188
  %4363 = vst.msk [vmem:[%s4336 + $0x139] sm:$0xff] %vm2440, %v4189
  %4364 = vst.msk [vmem:[%s4336 + $0x141] sm:$0xff] %vm2440, %v4190
  %4365 = vst.msk [vmem:[%s4336 + $0x151] sm:$0xff] %vm2440, %v4191
  %4366 = vst.msk [vmem:[%s4336 + $0x159] sm:$0xff] %vm2440, %v4192
  %4367 = vst.msk [vmem:[%s4336 + $0x169] sm:$0xff] %vm2440, %v4193
  %4368 = vst.msk [vmem:[%s4336 + $0x171] sm:$0xff] %vm2440, %v4194
  %4369 = vst.msk [vmem:[%s4336 + $0x1b1] sm:$0xff] %vm2440, %v4195
  %4370 = vst.msk [vmem:[%s4336 + $0x1b9] sm:$0xff] %vm2440, %v4196
  %4371 = vst.msk [vmem:[%s4336 + $0x1c9] sm:$0xff] %vm2440, %v4197
  %4372 = vst.msk [vmem:[%s4336 + $0x1d1] sm:$0xff] %vm2440, %v4198
  %4373 = vst.msk [vmem:[%s4336 + $0x1e1] sm:$0xff] %vm2440, %v4199
  %4374 = vst.msk [vmem:[%s4336 + $0x1e9] sm:$0xff] %vm2440, %v4200
  %4375 = vst.msk [vmem:[%s4336 + $0x1f9] sm:$0xff] %vm2440, %v4201
  %4376 = vst.msk [vmem:[%s4336 + $0x201] sm:$0xff] %vm2440, %v4202
  %4377 = vst.msk [vmem:[%s4336 + $0x211] sm:$0xff] %vm2440, %v4203
  %4378 = vst.msk [vmem:[%s4336 + $0x219] sm:$0xff] %vm2440, %v4204
  %4379 = vst.msk [vmem:[%s4336 + $0x229] sm:$0xff] %vm2440, %v4205
  %4380 = vst.msk [vmem:[%s4336 + $0x231] sm:$0xff] %vm2440, %v4206
  %4381 = vst.msk [vmem:[%s4336 + $0x241] sm:$0xff] %vm2440, %v4207
  %4382 = vst.msk [vmem:[%s4336 + $0x249] sm:$0xff] %vm2440, %v4208
  %4383 = vst.msk [vmem:[%s4336 + $0x259] sm:$0xff] %vm2440, %v4209
  %4384 = vst.msk [vmem:[%s4336 + $0x261] sm:$0xff] %vm2440, %v4210
  %4385 = vst.msk [vmem:[%s4336 + $0x271] sm:$0xff] %vm2440, %v4211
  %4386 = vst.msk [vmem:[%s4336 + $0x279] sm:$0xff] %vm2440, %v4212
  %4387 = vst.msk [vmem:[%s4336 + $0x289] sm:$0xff] %vm2440, %v4213
  %4388 = vst.msk [vmem:[%s4336 + $0x291] sm:$0xff] %vm2440, %v4214
  %4389 = vst.msk [vmem:[%s4336 + $0x2a1] sm:$0xff] %vm2440, %v4215
  %4390 = vst.msk [vmem:[%s4336 + $0x2a9] sm:$0xff] %vm2440, %v4216
  %4391 = vst.msk [vmem:[%s4336 + $0x2b9] sm:$0xff] %vm2440, %v4217
  %4392 = vst.msk [vmem:[%s4336 + $0x2c1] sm:$0xff] %vm2440, %v4218
  %4393 = vst.msk [vmem:[%s4336 + $0x2d1] sm:$0xff] %vm2440, %v4219
  %4394 = vst.msk [vmem:[%s4336 + $0x2d9] sm:$0xff] %vm2440, %v4220
  %4395 = vst.msk [vmem:[%s4336 + $0x2e9] sm:$0xff] %vm2440, %v4221
  %4396 = vst.msk [vmem:[%s4336 + $0x2f1] sm:$0xff] %vm2440, %v4222
  %4397 = vst.msk [vmem:[%s4336 + $0x301] sm:$0xff] %vm2440, %v4223
  %4398 = vst.msk [vmem:[%s4336 + $0x309] sm:$0xff] %vm2440, %v4224
  %4399 = vst.msk [vmem:[%s4336 + $0x319] sm:$0xff] %vm2440, %v4225
  %4400 = vst.msk [vmem:[%s4336 + $0x321] sm:$0xff] %vm2440, %v4226
  %v4401 = vld [vmem:[#allocation3] sm:$0xff]
  %v4402 = vld [vmem:[#allocation3 + $0x8] sm:$0xff]
  %v4403 = vld [vmem:[#allocation3 + $0x10] sm:$0x3]
  %v4404 = vld [vmem:[#allocation3 + $0x18] sm:$0xff]
  %v4405 = vld [vmem:[#allocation3 + $0x20] sm:$0xff]
  %v4406 = vld [vmem:[#allocation3 + $0x28] sm:$0x3]
  %v4407 = vld [vmem:[#allocation3 + $0x30] sm:$0xff]
  %v4408 = vld [vmem:[#allocation3 + $0x38] sm:$0xff]
  %v4409 = vld [vmem:[#allocation3 + $0x40] sm:$0x3]
  %v4410 = vld [vmem:[#allocation3 + $0x48] sm:$0xff]
  %v4411 = vld [vmem:[#allocation3 + $0x50] sm:$0xff]
  %v4412 = vld [vmem:[#allocation3 + $0x58] sm:$0x3]
  %v4413 = vld [vmem:[#allocation3 + $0x60] sm:$0xff]
  %v4414 = vld [vmem:[#allocation3 + $0x68] sm:$0xff]
  %v4415 = vld [vmem:[#allocation3 + $0x70] sm:$0x3]
  %v4416 = vld [vmem:[#allocation3 + $0x78] sm:$0xff]
  %v4417 = vld [vmem:[#allocation3 + $0x80] sm:$0xff]
  %v4418 = vld [vmem:[#allocation3 + $0x88] sm:$0x3]
  %v4419 = vld [vmem:[#allocation3 + $0x90] sm:$0xff]
  %v4420 = vld [vmem:[#allocation3 + $0x98] sm:$0xff]
  %v4421 = vld [vmem:[#allocation3 + $0xa0] sm:$0x3]
  %v4422 = vld [vmem:[#allocation3 + $0xa8] sm:$0xff]
  %v4423 = vld [vmem:[#allocation3 + $0xb0] sm:$0xff]
  %v4424 = vld [vmem:[#allocation3 + $0xb8] sm:$0x3]
  %v4425 = vld [vmem:[#allocation3 + $0xc0] sm:$0xff]
  %v4426 = vld [vmem:[#allocation3 + $0xc8] sm:$0xff]
  %v4427 = vld [vmem:[#allocation3 + $0xd0] sm:$0x3]
  %v4428 = vld [vmem:[#allocation3 + $0xd8] sm:$0xff]
  %v4429 = vld [vmem:[#allocation3 + $0xe0] sm:$0xff]
  %v4430 = vld [vmem:[#allocation3 + $0xe8] sm:$0x3]
  %v4431 = vld [vmem:[#allocation3 + $0xf0] sm:$0xff]
  %v4432 = vld [vmem:[#allocation3 + $0xf8] sm:$0xff]
  %v4433 = vld [vmem:[#allocation3 + $0x100] sm:$0x3]
  %v4434 = vld [vmem:[#allocation3 + $0x108] sm:$0xff]
  %v4435 = vld [vmem:[#allocation3 + $0x110] sm:$0xff]
  %v4436 = vld [vmem:[#allocation3 + $0x118] sm:$0x3]
  %v4437 = vld [vmem:[#allocation3 + $0x120] sm:$0xff]
  %v4438 = vld [vmem:[#allocation3 + $0x128] sm:$0xff]
  %v4439 = vld [vmem:[#allocation3 + $0x130] sm:$0x3]
  %v4440 = vld [vmem:[#allocation3 + $0x138] sm:$0xff]
  %v4441 = vld [vmem:[#allocation3 + $0x140] sm:$0xff]
  %v4442 = vld [vmem:[#allocation3 + $0x148] sm:$0x3]
  %v4443 = vld [vmem:[#allocation3 + $0x150] sm:$0xff]
  %v4444 = vld [vmem:[#allocation3 + $0x158] sm:$0xff]
  %v4445 = vld [vmem:[#allocation3 + $0x160] sm:$0x3]
  %v4446 = vld [vmem:[#allocation3 + $0x168] sm:$0xff]
  %v4447 = vld [vmem:[#allocation3 + $0x170] sm:$0xff]
  %v4448 = vld [vmem:[#allocation3 + $0x178] sm:$0x3]
  %v4449 = vld [vmem:[#allocation3 + $0x180] sm:$0xff]
  %v4450 = vld [vmem:[#allocation3 + $0x188] sm:$0xff]
  %v4451 = vld [vmem:[#allocation3 + $0x190] sm:$0x3]
  %v4452 = vld [vmem:[#allocation3 + $0x198] sm:$0xff]
  %v4453 = vld [vmem:[#allocation3 + $0x1a0] sm:$0xff]
  %v4454 = vld [vmem:[#allocation3 + $0x1a8] sm:$0x3]
  %v4455 = vld [vmem:[#allocation3 + $0x1b0] sm:$0xff]
  %v4456 = vld [vmem:[#allocation3 + $0x1b8] sm:$0xff]
  %v4457 = vld [vmem:[#allocation3 + $0x1c0] sm:$0x3]
  %v4458 = vld [vmem:[#allocation3 + $0x1c8] sm:$0xff]
  %v4459 = vld [vmem:[#allocation3 + $0x1d0] sm:$0xff]
  %v4460 = vld [vmem:[#allocation3 + $0x1d8] sm:$0x3]
  %v4461 = vld [vmem:[#allocation3 + $0x1e0] sm:$0xff]
  %v4462 = vld [vmem:[#allocation3 + $0x1e8] sm:$0xff]
  %v4463 = vld [vmem:[#allocation3 + $0x1f0] sm:$0x3]
  %v4464 = vld [vmem:[#allocation3 + $0x1f8] sm:$0xff]
  %v4465 = vld [vmem:[#allocation3 + $0x200] sm:$0xff]
  %v4466 = vld [vmem:[#allocation3 + $0x208] sm:$0x3]
  %v4467 = vld [vmem:[#allocation3 + $0x210] sm:$0xff]
  %v4468 = vld [vmem:[#allocation3 + $0x218] sm:$0xff]
  %v4469 = vld [vmem:[#allocation3 + $0x220] sm:$0x3]
  %v4470 = vld [vmem:[#allocation3 + $0x228] sm:$0xff]
  %v4471 = vld [vmem:[#allocation3 + $0x230] sm:$0xff]
  %v4472 = vld [vmem:[#allocation3 + $0x238] sm:$0x3]
  %v4473 = vld [vmem:[#allocation3 + $0x240] sm:$0xff]
  %v4474 = vld [vmem:[#allocation3 + $0x248] sm:$0xff]
  %v4475 = vld [vmem:[#allocation3 + $0x250] sm:$0x3]
  %v4476 = vld [vmem:[#allocation3 + $0x258] sm:$0xff]
  %v4477 = vld [vmem:[#allocation3 + $0x260] sm:$0xff]
  %v4478 = vld [vmem:[#allocation3 + $0x268] sm:$0x3]
  %v4479 = vld [vmem:[#allocation3 + $0x270] sm:$0xff]
  %v4480 = vld [vmem:[#allocation3 + $0x278] sm:$0xff]
  %v4481 = vld [vmem:[#allocation3 + $0x280] sm:$0x3]
  %v4482 = vld [vmem:[#allocation3 + $0x288] sm:$0xff]
  %v4483 = vld [vmem:[#allocation3 + $0x290] sm:$0xff]
  %v4484 = vld [vmem:[#allocation3 + $0x298] sm:$0x3]
  %v4485 = vld [vmem:[#allocation3 + $0x2a0] sm:$0xff]
  %v4486 = vld [vmem:[#allocation3 + $0x2a8] sm:$0xff]
  %v4487 = vld [vmem:[#allocation3 + $0x2b0] sm:$0x3]
  %v4488 = vld [vmem:[#allocation3 + $0x2b8] sm:$0xff]
  %v4489 = vld [vmem:[#allocation3 + $0x2c0] sm:$0xff]
  %v4490 = vld [vmem:[#allocation3 + $0x2c8] sm:$0x3]
  %v4491 = vld [vmem:[#allocation3 + $0x2d0] sm:$0xff]
  %v4492 = vld [vmem:[#allocation3 + $0x2d8] sm:$0xff]
  %v4493 = vld [vmem:[#allocation3 + $0x2e0] sm:$0x3]
  %v4494 = vld [vmem:[#allocation3 + $0x2e8] sm:$0xff]
  %v4495 = vld [vmem:[#allocation3 + $0x2f0] sm:$0xff]
  %v4496 = vld [vmem:[#allocation3 + $0x2f8] sm:$0x3]
  %v4497 = vld [vmem:[#allocation3 + $0x300] sm:$0xff]
  %v4498 = vld [vmem:[#allocation3 + $0x308] sm:$0xff]
  %v4499 = vld [vmem:[#allocation3 + $0x310] sm:$0x3]
  %v4500 = vld [vmem:[#allocation3 + $0x318] sm:$0xff]
  %v4501 = vld [vmem:[#allocation3 + $0x320] sm:$0xff]
  %v4502 = vld [vmem:[#allocation3 + $0x328] sm:$0x3]
  %v4503 = vld [vmem:[#allocation3 + $0x330] sm:$0xff]
  %v4504 = vld [vmem:[#allocation3 + $0x338] sm:$0xff]
  %v4505 = vld [vmem:[#allocation3 + $0x340] sm:$0x3]
  %v4506 = vld [vmem:[#allocation3 + $0x348] sm:$0xff]
  %v4507 = vld [vmem:[#allocation3 + $0x350] sm:$0xff]
  %v4508 = vld [vmem:[#allocation3 + $0x358] sm:$0x3]
  %v4605 = vrot.slane %v4401, 1
  %v4606 = vrot.slane %v4402, 1
  %v4607 = vsel %vm466, %v4605, %v4606
  %v4608 = vrot.slane %v4403, 1
  %v4609 = vsel %vm466, %v4606, %v4608
  %v4610 = vrot.slane %v4404, 1
  %v4611 = vrot.slane %v4405, 1
  %v4612 = vsel %vm466, %v4610, %v4611
  %v4613 = vrot.slane %v4406, 1
  %v4614 = vsel %vm466, %v4611, %v4613
  %v4615 = vrot.slane %v4407, 1
  %v4616 = vrot.slane %v4408, 1
  %v4617 = vsel %vm466, %v4615, %v4616
  %v4618 = vrot.slane %v4409, 1
  %v4619 = vsel %vm466, %v4616, %v4618
  %v4620 = vrot.slane %v4410, 1
  %v4621 = vrot.slane %v4411, 1
  %v4622 = vsel %vm466, %v4620, %v4621
  %v4623 = vrot.slane %v4412, 1
  %v4624 = vsel %vm466, %v4621, %v4623
  %v4625 = vrot.slane %v4413, 1
  %v4626 = vrot.slane %v4414, 1
  %v4627 = vsel %vm466, %v4625, %v4626
  %v4628 = vrot.slane %v4415, 1
  %v4629 = vsel %vm466, %v4626, %v4628
  %v4630 = vrot.slane %v4416, 1
  %v4631 = vrot.slane %v4417, 1
  %v4632 = vsel %vm466, %v4630, %v4631
  %v4633 = vrot.slane %v4418, 1
  %v4634 = vsel %vm466, %v4631, %v4633
  %v4635 = vrot.slane %v4419, 1
  %v4636 = vrot.slane %v4420, 1
  %v4637 = vsel %vm466, %v4635, %v4636
  %v4638 = vrot.slane %v4421, 1
  %v4639 = vsel %vm466, %v4636, %v4638
  %v4640 = vrot.slane %v4422, 1
  %v4641 = vrot.slane %v4423, 1
  %v4642 = vsel %vm466, %v4640, %v4641
  %v4643 = vrot.slane %v4424, 1
  %v4644 = vsel %vm466, %v4641, %v4643
  %v4645 = vrot.slane %v4425, 1
  %v4646 = vrot.slane %v4426, 1
  %v4647 = vsel %vm466, %v4645, %v4646
  %v4648 = vrot.slane %v4427, 1
  %v4649 = vsel %vm466, %v4646, %v4648
  %v4650 = vrot.slane %v4428, 1
  %v4651 = vrot.slane %v4429, 1
  %v4652 = vsel %vm466, %v4650, %v4651
  %v4653 = vrot.slane %v4430, 1
  %v4654 = vsel %vm466, %v4651, %v4653
  %v4655 = vrot.slane %v4431, 1
  %v4656 = vrot.slane %v4432, 1
  %v4657 = vsel %vm466, %v4655, %v4656
  %v4658 = vrot.slane %v4433, 1
  %v4659 = vsel %vm466, %v4656, %v4658
  %v4660 = vrot.slane %v4434, 1
  %v4661 = vrot.slane %v4435, 1
  %v4662 = vsel %vm466, %v4660, %v4661
  %v4663 = vrot.slane %v4436, 1
  %v4664 = vsel %vm466, %v4661, %v4663
  %v4665 = vrot.slane %v4437, 1
  %v4666 = vrot.slane %v4438, 1
  %v4667 = vsel %vm466, %v4665, %v4666
  %v4668 = vrot.slane %v4439, 1
  %v4669 = vsel %vm466, %v4666, %v4668
  %v4670 = vrot.slane %v4440, 1
  %v4671 = vrot.slane %v4441, 1
  %v4672 = vsel %vm466, %v4670, %v4671
  %v4673 = vrot.slane %v4442, 1
  %v4674 = vsel %vm466, %v4671, %v4673
  %v4675 = vrot.slane %v4443, 1
  %v4676 = vrot.slane %v4444, 1
  %v4677 = vsel %vm466, %v4675, %v4676
  %v4678 = vrot.slane %v4445, 1
  %v4679 = vsel %vm466, %v4676, %v4678
  %v4680 = vrot.slane %v4446, 1
  %v4681 = vrot.slane %v4447, 1
  %v4682 = vsel %vm466, %v4680, %v4681
  %v4683 = vrot.slane %v4448, 1
  %v4684 = vsel %vm466, %v4681, %v4683
  %v4685 = vrot.slane %v4455, 1
  %v4686 = vrot.slane %v4456, 1
  %v4687 = vsel %vm466, %v4685, %v4686
  %v4688 = vrot.slane %v4457, 1
  %v4689 = vsel %vm466, %v4686, %v4688
  %v4690 = vrot.slane %v4458, 1
  %v4691 = vrot.slane %v4459, 1
  %v4692 = vsel %vm466, %v4690, %v4691
  %v4693 = vrot.slane %v4460, 1
  %v4694 = vsel %vm466, %v4691, %v4693
  %v4695 = vrot.slane %v4461, 1
  %v4696 = vrot.slane %v4462, 1
  %v4697 = vsel %vm466, %v4695, %v4696
  %v4698 = vrot.slane %v4463, 1
  %v4699 = vsel %vm466, %v4696, %v4698
  %v4700 = vrot.slane %v4464, 1
  %v4701 = vrot.slane %v4465, 1
  %v4702 = vsel %vm466, %v4700, %v4701
  %v4703 = vrot.slane %v4466, 1
  %v4704 = vsel %vm466, %v4701, %v4703
  %v4705 = vrot.slane %v4467, 1
  %v4706 = vrot.slane %v4468, 1
  %v4707 = vsel %vm466, %v4705, %v4706
  %v4708 = vrot.slane %v4469, 1
  %v4709 = vsel %vm466, %v4706, %v4708
  %v4710 = vrot.slane %v4470, 1
  %v4711 = vrot.slane %v4471, 1
  %v4712 = vsel %vm466, %v4710, %v4711
  %v4713 = vrot.slane %v4472, 1
  %v4714 = vsel %vm466, %v4711, %v4713
  %v4715 = vrot.slane %v4473, 1
  %v4716 = vrot.slane %v4474, 1
  %v4717 = vsel %vm466, %v4715, %v4716
  %v4718 = vrot.slane %v4475, 1
  %v4719 = vsel %vm466, %v4716, %v4718
  %v4720 = vrot.slane %v4476, 1
  %v4721 = vrot.slane %v4477, 1
  %v4722 = vsel %vm466, %v4720, %v4721
  %v4723 = vrot.slane %v4478, 1
  %v4724 = vsel %vm466, %v4721, %v4723
  %v4725 = vrot.slane %v4479, 1
  %v4726 = vrot.slane %v4480, 1
  %v4727 = vsel %vm466, %v4725, %v4726
  %v4728 = vrot.slane %v4481, 1
  %v4729 = vsel %vm466, %v4726, %v4728
  %v4730 = vrot.slane %v4482, 1
  %v4731 = vrot.slane %v4483, 1
  %v4732 = vsel %vm466, %v4730, %v4731
  %v4733 = vrot.slane %v4484, 1
  %v4734 = vsel %vm466, %v4731, %v4733
  %v4735 = vrot.slane %v4485, 1
  %v4736 = vrot.slane %v4486, 1
  %v4737 = vsel %vm466, %v4735, %v4736
  %v4738 = vrot.slane %v4487, 1
  %v4739 = vsel %vm466, %v4736, %v4738
  %v4740 = vrot.slane %v4488, 1
  %v4741 = vrot.slane %v4489, 1
  %v4742 = vsel %vm466, %v4740, %v4741
  %v4743 = vrot.slane %v4490, 1
  %v4744 = vsel %vm466, %v4741, %v4743
  %v4745 = vrot.slane %v4491, 1
  %v4746 = vrot.slane %v4492, 1
  %v4747 = vsel %vm466, %v4745, %v4746
  %v4748 = vrot.slane %v4493, 1
  %v4749 = vsel %vm466, %v4746, %v4748
  %v4750 = vrot.slane %v4494, 1
  %v4751 = vrot.slane %v4495, 1
  %v4752 = vsel %vm466, %v4750, %v4751
  %v4753 = vrot.slane %v4496, 1
  %v4754 = vsel %vm466, %v4751, %v4753
  %v4755 = vrot.slane %v4497, 1
  %v4756 = vrot.slane %v4498, 1
  %v4757 = vsel %vm466, %v4755, %v4756
  %v4758 = vrot.slane %v4499, 1
  %v4759 = vsel %vm466, %v4756, %v4758
  %v4760 = vrot.slane %v4500, 1
  %v4761 = vrot.slane %v4501, 1
  %v4762 = vsel %vm466, %v4760, %v4761
  %v4763 = vrot.slane %v4502, 1
  %v4764 = vsel %vm466, %v4761, %v4763
  %4765 = vrot.lane.b32.xlu0 %v4607, 8
  %v4766 = vpop.permute.xlu0 %4765
  %4767 = vrot.lane.b32.xlu0 %v4609, 8
  %v4768 = vpop.permute.xlu0 %4767
  %4769 = vrot.lane.b32.xlu0 %v4612, 8
  %v4770 = vpop.permute.xlu0 %4769
  %4771 = vrot.lane.b32.xlu0 %v4614, 8
  %v4772 = vpop.permute.xlu0 %4771
  %4773 = vrot.lane.b32.xlu0 %v4617, 8
  %v4774 = vpop.permute.xlu0 %4773
  %4775 = vrot.lane.b32.xlu0 %v4619, 8
  %v4776 = vpop.permute.xlu0 %4775
  %4777 = vrot.lane.b32.xlu0 %v4622, 8
  %v4778 = vpop.permute.xlu0 %4777
  %4779 = vrot.lane.b32.xlu0 %v4624, 8
  %v4780 = vpop.permute.xlu0 %4779
  %4781 = vrot.lane.b32.xlu0 %v4627, 8
  %v4782 = vpop.permute.xlu0 %4781
  %4783 = vrot.lane.b32.xlu0 %v4629, 8
  %v4784 = vpop.permute.xlu0 %4783
  %4785 = vrot.lane.b32.xlu0 %v4632, 8
  %v4786 = vpop.permute.xlu0 %4785
  %4787 = vrot.lane.b32.xlu0 %v4634, 8
  %v4788 = vpop.permute.xlu0 %4787
  %4789 = vrot.lane.b32.xlu0 %v4637, 8
  %v4790 = vpop.permute.xlu0 %4789
  %4791 = vrot.lane.b32.xlu0 %v4639, 8
  %v4792 = vpop.permute.xlu0 %4791
  %4793 = vrot.lane.b32.xlu0 %v4642, 8
  %v4794 = vpop.permute.xlu0 %4793
  %4795 = vrot.lane.b32.xlu0 %v4644, 8
  %v4796 = vpop.permute.xlu0 %4795
  %4797 = vrot.lane.b32.xlu0 %v4647, 8
  %v4798 = vpop.permute.xlu0 %4797
  %4799 = vrot.lane.b32.xlu0 %v4649, 8
  %v4800 = vpop.permute.xlu0 %4799
  %4801 = vrot.lane.b32.xlu0 %v4652, 8
  %v4802 = vpop.permute.xlu0 %4801
  %4803 = vrot.lane.b32.xlu0 %v4654, 8
  %v4804 = vpop.permute.xlu0 %4803
  %4805 = vrot.lane.b32.xlu0 %v4657, 8
  %v4806 = vpop.permute.xlu0 %4805
  %4807 = vrot.lane.b32.xlu0 %v4659, 8
  %v4808 = vpop.permute.xlu0 %4807
  %4809 = vrot.lane.b32.xlu0 %v4662, 8
  %v4810 = vpop.permute.xlu0 %4809
  %4811 = vrot.lane.b32.xlu0 %v4664, 8
  %v4812 = vpop.permute.xlu0 %4811
  %4813 = vrot.lane.b32.xlu0 %v4667, 8
  %v4814 = vpop.permute.xlu0 %4813
  %4815 = vrot.lane.b32.xlu0 %v4669, 8
  %v4816 = vpop.permute.xlu0 %4815
  %4817 = vrot.lane.b32.xlu0 %v4672, 8
  %v4818 = vpop.permute.xlu0 %4817
  %4819 = vrot.lane.b32.xlu0 %v4674, 8
  %v4820 = vpop.permute.xlu0 %4819
  %4821 = vrot.lane.b32.xlu0 %v4677, 8
  %v4822 = vpop.permute.xlu0 %4821
  %4823 = vrot.lane.b32.xlu0 %v4679, 8
  %v4824 = vpop.permute.xlu0 %4823
  %4825 = vrot.lane.b32.xlu0 %v4682, 8
  %v4826 = vpop.permute.xlu0 %4825
  %4827 = vrot.lane.b32.xlu0 %v4684, 8
  %v4828 = vpop.permute.xlu0 %4827
  %4829 = vrot.lane.b32.xlu0 %v4687, 8
  %v4830 = vpop.permute.xlu0 %4829
  %4831 = vrot.lane.b32.xlu0 %v4689, 8
  %v4832 = vpop.permute.xlu0 %4831
  %4833 = vrot.lane.b32.xlu0 %v4692, 8
  %v4834 = vpop.permute.xlu0 %4833
  %4835 = vrot.lane.b32.xlu0 %v4694, 8
  %v4836 = vpop.permute.xlu0 %4835
  %4837 = vrot.lane.b32.xlu0 %v4697, 8
  %v4838 = vpop.permute.xlu0 %4837
  %4839 = vrot.lane.b32.xlu0 %v4699, 8
  %v4840 = vpop.permute.xlu0 %4839
  %4841 = vrot.lane.b32.xlu0 %v4702, 8
  %v4842 = vpop.permute.xlu0 %4841
  %4843 = vrot.lane.b32.xlu0 %v4704, 8
  %v4844 = vpop.permute.xlu0 %4843
  %4845 = vrot.lane.b32.xlu0 %v4707, 8
  %v4846 = vpop.permute.xlu0 %4845
  %4847 = vrot.lane.b32.xlu0 %v4709, 8
  %v4848 = vpop.permute.xlu0 %4847
  %4849 = vrot.lane.b32.xlu0 %v4712, 8
  %v4850 = vpop.permute.xlu0 %4849
  %4851 = vrot.lane.b32.xlu0 %v4714, 8
  %v4852 = vpop.permute.xlu0 %4851
  %4853 = vrot.lane.b32.xlu0 %v4717, 8
  %v4854 = vpop.permute.xlu0 %4853
  %4855 = vrot.lane.b32.xlu0 %v4719, 8
  %v4856 = vpop.permute.xlu0 %4855
  %4857 = vrot.lane.b32.xlu0 %v4722, 8
  %v4858 = vpop.permute.xlu0 %4857
  %4859 = vrot.lane.b32.xlu0 %v4724, 8
  %v4860 = vpop.permute.xlu0 %4859
  %4861 = vrot.lane.b32.xlu0 %v4727, 8
  %v4862 = vpop.permute.xlu0 %4861
  %4863 = vrot.lane.b32.xlu0 %v4729, 8
  %v4864 = vpop.permute.xlu0 %4863
  %4865 = vrot.lane.b32.xlu0 %v4732, 8
  %v4866 = vpop.permute.xlu0 %4865
  %4867 = vrot.lane.b32.xlu0 %v4734, 8
  %v4868 = vpop.permute.xlu0 %4867
  %4869 = vrot.lane.b32.xlu0 %v4737, 8
  %v4870 = vpop.permute.xlu0 %4869
  %4871 = vrot.lane.b32.xlu0 %v4739, 8
  %v4872 = vpop.permute.xlu0 %4871
  %4873 = vrot.lane.b32.xlu0 %v4742, 8
  %v4874 = vpop.permute.xlu0 %4873
  %4875 = vrot.lane.b32.xlu0 %v4744, 8
  %v4876 = vpop.permute.xlu0 %4875
  %4877 = vrot.lane.b32.xlu0 %v4747, 8
  %v4878 = vpop.permute.xlu0 %4877
  %4879 = vrot.lane.b32.xlu0 %v4749, 8
  %v4880 = vpop.permute.xlu0 %4879
  %4881 = vrot.lane.b32.xlu0 %v4752, 8
  %v4882 = vpop.permute.xlu0 %4881
  %4883 = vrot.lane.b32.xlu0 %v4754, 8
  %v4884 = vpop.permute.xlu0 %4883
  %4885 = vrot.lane.b32.xlu0 %v4757, 8
  %v4886 = vpop.permute.xlu0 %4885
  %4887 = vrot.lane.b32.xlu0 %v4759, 8
  %v4888 = vpop.permute.xlu0 %4887
  %4889 = vrot.lane.b32.xlu0 %v4762, 8
  %v4890 = vpop.permute.xlu0 %4889
  %4891 = vrot.lane.b32.xlu0 %v4764, 8
  %v4892 = vpop.permute.xlu0 %4891
  %v4957 = vrot.slane %v4401, 2
  %v4958 = vrot.slane %v4402, 2
  %v4959 = vsel %vm819, %v4957, %v4958
  %v4960 = vrot.slane %v4403, 2
  %v4961 = vsel %vm819, %v4958, %v4960
  %v4962 = vrot.slane %v4404, 2
  %v4963 = vrot.slane %v4405, 2
  %v4964 = vsel %vm819, %v4962, %v4963
  %v4965 = vrot.slane %v4406, 2
  %v4966 = vsel %vm819, %v4963, %v4965
  %v4967 = vrot.slane %v4407, 2
  %v4968 = vrot.slane %v4408, 2
  %v4969 = vsel %vm819, %v4967, %v4968
  %v4970 = vrot.slane %v4409, 2
  %v4971 = vsel %vm819, %v4968, %v4970
  %v4972 = vrot.slane %v4410, 2
  %v4973 = vrot.slane %v4411, 2
  %v4974 = vsel %vm819, %v4972, %v4973
  %v4975 = vrot.slane %v4412, 2
  %v4976 = vsel %vm819, %v4973, %v4975
  %v4977 = vrot.slane %v4413, 2
  %v4978 = vrot.slane %v4414, 2
  %v4979 = vsel %vm819, %v4977, %v4978
  %v4980 = vrot.slane %v4415, 2
  %v4981 = vsel %vm819, %v4978, %v4980
  %v4982 = vrot.slane %v4416, 2
  %v4983 = vrot.slane %v4417, 2
  %v4984 = vsel %vm819, %v4982, %v4983
  %v4985 = vrot.slane %v4418, 2
  %v4986 = vsel %vm819, %v4983, %v4985
  %v4987 = vrot.slane %v4419, 2
  %v4988 = vrot.slane %v4420, 2
  %v4989 = vsel %vm819, %v4987, %v4988
  %v4990 = vrot.slane %v4421, 2
  %v4991 = vsel %vm819, %v4988, %v4990
  %v4992 = vrot.slane %v4422, 2
  %v4993 = vrot.slane %v4423, 2
  %v4994 = vsel %vm819, %v4992, %v4993
  %v4995 = vrot.slane %v4424, 2
  %v4996 = vsel %vm819, %v4993, %v4995
  %v4997 = vrot.slane %v4425, 2
  %v4998 = vrot.slane %v4426, 2
  %v4999 = vsel %vm819, %v4997, %v4998
  %v5000 = vrot.slane %v4427, 2
  %v5001 = vsel %vm819, %v4998, %v5000
  %v5002 = vrot.slane %v4428, 2
  %v5003 = vrot.slane %v4429, 2
  %v5004 = vsel %vm819, %v5002, %v5003
  %v5005 = vrot.slane %v4430, 2
  %v5006 = vsel %vm819, %v5003, %v5005
  %v5007 = vrot.slane %v4431, 2
  %v5008 = vrot.slane %v4432, 2
  %v5009 = vsel %vm819, %v5007, %v5008
  %v5010 = vrot.slane %v4433, 2
  %v5011 = vsel %vm819, %v5008, %v5010
  %v5012 = vrot.slane %v4434, 2
  %v5013 = vrot.slane %v4435, 2
  %v5014 = vsel %vm819, %v5012, %v5013
  %v5015 = vrot.slane %v4436, 2
  %v5016 = vsel %vm819, %v5013, %v5015
  %v5017 = vrot.slane %v4437, 2
  %v5018 = vrot.slane %v4438, 2
  %v5019 = vsel %vm819, %v5017, %v5018
  %v5020 = vrot.slane %v4439, 2
  %v5021 = vsel %vm819, %v5018, %v5020
  %v5022 = vrot.slane %v4440, 2
  %v5023 = vrot.slane %v4441, 2
  %v5024 = vsel %vm819, %v5022, %v5023
  %v5025 = vrot.slane %v4442, 2
  %v5026 = vsel %vm819, %v5023, %v5025
  %v5027 = vrot.slane %v4443, 2
  %v5028 = vrot.slane %v4444, 2
  %v5029 = vsel %vm819, %v5027, %v5028
  %v5030 = vrot.slane %v4445, 2
  %v5031 = vsel %vm819, %v5028, %v5030
  %v5032 = vrot.slane %v4446, 2
  %v5033 = vrot.slane %v4447, 2
  %v5034 = vsel %vm819, %v5032, %v5033
  %v5035 = vrot.slane %v4448, 2
  %v5036 = vsel %vm819, %v5033, %v5035
  %v5037 = vrot.slane %v4455, 2
  %v5038 = vrot.slane %v4456, 2
  %v5039 = vsel %vm819, %v5037, %v5038
  %v5040 = vrot.slane %v4457, 2
  %v5041 = vsel %vm819, %v5038, %v5040
  %v5042 = vrot.slane %v4458, 2
  %v5043 = vrot.slane %v4459, 2
  %v5044 = vsel %vm819, %v5042, %v5043
  %v5045 = vrot.slane %v4460, 2
  %v5046 = vsel %vm819, %v5043, %v5045
  %v5047 = vrot.slane %v4461, 2
  %v5048 = vrot.slane %v4462, 2
  %v5049 = vsel %vm819, %v5047, %v5048
  %v5050 = vrot.slane %v4463, 2
  %v5051 = vsel %vm819, %v5048, %v5050
  %v5052 = vrot.slane %v4464, 2
  %v5053 = vrot.slane %v4465, 2
  %v5054 = vsel %vm819, %v5052, %v5053
  %v5055 = vrot.slane %v4466, 2
  %v5056 = vsel %vm819, %v5053, %v5055
  %v5057 = vrot.slane %v4467, 2
  %v5058 = vrot.slane %v4468, 2
  %v5059 = vsel %vm819, %v5057, %v5058
  %v5060 = vrot.slane %v4469, 2
  %v5061 = vsel %vm819, %v5058, %v5060
  %v5062 = vrot.slane %v4470, 2
  %v5063 = vrot.slane %v4471, 2
  %v5064 = vsel %vm819, %v5062, %v5063
  %v5065 = vrot.slane %v4472, 2
  %v5066 = vsel %vm819, %v5063, %v5065
  %v5067 = vrot.slane %v4473, 2
  %v5068 = vrot.slane %v4474, 2
  %v5069 = vsel %vm819, %v5067, %v5068
  %v5070 = vrot.slane %v4475, 2
  %v5071 = vsel %vm819, %v5068, %v5070
  %v5072 = vrot.slane %v4476, 2
  %v5073 = vrot.slane %v4477, 2
  %v5074 = vsel %vm819, %v5072, %v5073
  %v5075 = vrot.slane %v4478, 2
  %v5076 = vsel %vm819, %v5073, %v5075
  %v5077 = vrot.slane %v4479, 2
  %v5078 = vrot.slane %v4480, 2
  %v5079 = vsel %vm819, %v5077, %v5078
  %v5080 = vrot.slane %v4481, 2
  %v5081 = vsel %vm819, %v5078, %v5080
  %v5082 = vrot.slane %v4482, 2
  %v5083 = vrot.slane %v4483, 2
  %v5084 = vsel %vm819, %v5082, %v5083
  %v5085 = vrot.slane %v4484, 2
  %v5086 = vsel %vm819, %v5083, %v5085
  %v5087 = vrot.slane %v4485, 2
  %v5088 = vrot.slane %v4486, 2
  %v5089 = vsel %vm819, %v5087, %v5088
  %v5090 = vrot.slane %v4487, 2
  %v5091 = vsel %vm819, %v5088, %v5090
  %v5092 = vrot.slane %v4488, 2
  %v5093 = vrot.slane %v4489, 2
  %v5094 = vsel %vm819, %v5092, %v5093
  %v5095 = vrot.slane %v4490, 2
  %v5096 = vsel %vm819, %v5093, %v5095
  %v5097 = vrot.slane %v4491, 2
  %v5098 = vrot.slane %v4492, 2
  %v5099 = vsel %vm819, %v5097, %v5098
  %v5100 = vrot.slane %v4493, 2
  %v5101 = vsel %vm819, %v5098, %v5100
  %v5102 = vrot.slane %v4494, 2
  %v5103 = vrot.slane %v4495, 2
  %v5104 = vsel %vm819, %v5102, %v5103
  %v5105 = vrot.slane %v4496, 2
  %v5106 = vsel %vm819, %v5103, %v5105
  %v5107 = vrot.slane %v4497, 2
  %v5108 = vrot.slane %v4498, 2
  %v5109 = vsel %vm819, %v5107, %v5108
  %v5110 = vrot.slane %v4499, 2
  %v5111 = vsel %vm819, %v5108, %v5110
  %v5112 = vrot.slane %v4500, 2
  %v5113 = vrot.slane %v4501, 2
  %v5114 = vsel %vm819, %v5112, %v5113
  %v5115 = vrot.slane %v4502, 2
  %v5116 = vsel %vm819, %v5113, %v5115
  %5117 = vrot.lane.b32.xlu0 %v4959, 16
  %v5118 = vpop.permute.xlu0 %5117
  %5119 = vrot.lane.b32.xlu0 %v4961, 16
  %v5120 = vpop.permute.xlu0 %5119
  %5121 = vrot.lane.b32.xlu0 %v4964, 16
  %v5122 = vpop.permute.xlu0 %5121
  %5123 = vrot.lane.b32.xlu0 %v4966, 16
  %v5124 = vpop.permute.xlu0 %5123
  %5125 = vrot.lane.b32.xlu0 %v4969, 16
  %v5126 = vpop.permute.xlu0 %5125
  %5127 = vrot.lane.b32.xlu0 %v4971, 16
  %v5128 = vpop.permute.xlu0 %5127
  %5129 = vrot.lane.b32.xlu0 %v4974, 16
  %v5130 = vpop.permute.xlu0 %5129
  %5131 = vrot.lane.b32.xlu0 %v4976, 16
  %v5132 = vpop.permute.xlu0 %5131
  %5133 = vrot.lane.b32.xlu0 %v4979, 16
  %v5134 = vpop.permute.xlu0 %5133
  %5135 = vrot.lane.b32.xlu0 %v4981, 16
  %v5136 = vpop.permute.xlu0 %5135
  %5137 = vrot.lane.b32.xlu0 %v4984, 16
  %v5138 = vpop.permute.xlu0 %5137
  %5139 = vrot.lane.b32.xlu0 %v4986, 16
  %v5140 = vpop.permute.xlu0 %5139
  %5141 = vrot.lane.b32.xlu0 %v4989, 16
  %v5142 = vpop.permute.xlu0 %5141
  %5143 = vrot.lane.b32.xlu0 %v4991, 16
  %v5144 = vpop.permute.xlu0 %5143
  %5145 = vrot.lane.b32.xlu0 %v4994, 16
  %v5146 = vpop.permute.xlu0 %5145
  %5147 = vrot.lane.b32.xlu0 %v4996, 16
  %v5148 = vpop.permute.xlu0 %5147
  %5149 = vrot.lane.b32.xlu0 %v4999, 16
  %v5150 = vpop.permute.xlu0 %5149
  %5151 = vrot.lane.b32.xlu0 %v5001, 16
  %v5152 = vpop.permute.xlu0 %5151
  %5153 = vrot.lane.b32.xlu0 %v5004, 16
  %v5154 = vpop.permute.xlu0 %5153
  %5155 = vrot.lane.b32.xlu0 %v5006, 16
  %v5156 = vpop.permute.xlu0 %5155
  %5157 = vrot.lane.b32.xlu0 %v5009, 16
  %v5158 = vpop.permute.xlu0 %5157
  %5159 = vrot.lane.b32.xlu0 %v5011, 16
  %v5160 = vpop.permute.xlu0 %5159
  %5161 = vrot.lane.b32.xlu0 %v5014, 16
  %v5162 = vpop.permute.xlu0 %5161
  %5163 = vrot.lane.b32.xlu0 %v5016, 16
  %v5164 = vpop.permute.xlu0 %5163
  %5165 = vrot.lane.b32.xlu0 %v5019, 16
  %v5166 = vpop.permute.xlu0 %5165
  %5167 = vrot.lane.b32.xlu0 %v5021, 16
  %v5168 = vpop.permute.xlu0 %5167
  %5169 = vrot.lane.b32.xlu0 %v5024, 16
  %v5170 = vpop.permute.xlu0 %5169
  %5171 = vrot.lane.b32.xlu0 %v5026, 16
  %v5172 = vpop.permute.xlu0 %5171
  %5173 = vrot.lane.b32.xlu0 %v5029, 16
  %v5174 = vpop.permute.xlu0 %5173
  %5175 = vrot.lane.b32.xlu0 %v5031, 16
  %v5176 = vpop.permute.xlu0 %5175
  %5177 = vrot.lane.b32.xlu0 %v5034, 16
  %v5178 = vpop.permute.xlu0 %5177
  %5179 = vrot.lane.b32.xlu0 %v5036, 16
  %v5180 = vpop.permute.xlu0 %5179
  %5181 = vrot.lane.b32.xlu0 %v5039, 16
  %v5182 = vpop.permute.xlu0 %5181
  %5183 = vrot.lane.b32.xlu0 %v5041, 16
  %v5184 = vpop.permute.xlu0 %5183
  %5185 = vrot.lane.b32.xlu0 %v5044, 16
  %v5186 = vpop.permute.xlu0 %5185
  %5187 = vrot.lane.b32.xlu0 %v5046, 16
  %v5188 = vpop.permute.xlu0 %5187
  %5189 = vrot.lane.b32.xlu0 %v5049, 16
  %v5190 = vpop.permute.xlu0 %5189
  %5191 = vrot.lane.b32.xlu0 %v5051, 16
  %v5192 = vpop.permute.xlu0 %5191
  %5193 = vrot.lane.b32.xlu0 %v5054, 16
  %v5194 = vpop.permute.xlu0 %5193
  %5195 = vrot.lane.b32.xlu0 %v5056, 16
  %v5196 = vpop.permute.xlu0 %5195
  %5197 = vrot.lane.b32.xlu0 %v5059, 16
  %v5198 = vpop.permute.xlu0 %5197
  %5199 = vrot.lane.b32.xlu0 %v5061, 16
  %v5200 = vpop.permute.xlu0 %5199
  %5201 = vrot.lane.b32.xlu0 %v5064, 16
  %v5202 = vpop.permute.xlu0 %5201
  %5203 = vrot.lane.b32.xlu0 %v5066, 16
  %v5204 = vpop.permute.xlu0 %5203
  %5205 = vrot.lane.b32.xlu0 %v5069, 16
  %v5206 = vpop.permute.xlu0 %5205
  %5207 = vrot.lane.b32.xlu0 %v5071, 16
  %v5208 = vpop.permute.xlu0 %5207
  %5209 = vrot.lane.b32.xlu0 %v5074, 16
  %v5210 = vpop.permute.xlu0 %5209
  %5211 = vrot.lane.b32.xlu0 %v5076, 16
  %v5212 = vpop.permute.xlu0 %5211
  %5213 = vrot.lane.b32.xlu0 %v5079, 16
  %v5214 = vpop.permute.xlu0 %5213
  %5215 = vrot.lane.b32.xlu0 %v5081, 16
  %v5216 = vpop.permute.xlu0 %5215
  %5217 = vrot.lane.b32.xlu0 %v5084, 16
  %v5218 = vpop.permute.xlu0 %5217
  %5219 = vrot.lane.b32.xlu0 %v5086, 16
  %v5220 = vpop.permute.xlu0 %5219
  %5221 = vrot.lane.b32.xlu0 %v5089, 16
  %v5222 = vpop.permute.xlu0 %5221
  %5223 = vrot.lane.b32.xlu0 %v5091, 16
  %v5224 = vpop.permute.xlu0 %5223
  %5225 = vrot.lane.b32.xlu0 %v5094, 16
  %v5226 = vpop.permute.xlu0 %5225
  %5227 = vrot.lane.b32.xlu0 %v5096, 16
  %v5228 = vpop.permute.xlu0 %5227
  %5229 = vrot.lane.b32.xlu0 %v5099, 16
  %v5230 = vpop.permute.xlu0 %5229
  %5231 = vrot.lane.b32.xlu0 %v5101, 16
  %v5232 = vpop.permute.xlu0 %5231
  %5233 = vrot.lane.b32.xlu0 %v5104, 16
  %v5234 = vpop.permute.xlu0 %5233
  %5235 = vrot.lane.b32.xlu0 %v5106, 16
  %v5236 = vpop.permute.xlu0 %5235
  %5237 = vrot.lane.b32.xlu0 %v5109, 16
  %v5238 = vpop.permute.xlu0 %5237
  %5239 = vrot.lane.b32.xlu0 %v5111, 16
  %v5240 = vpop.permute.xlu0 %5239
  %5241 = vrot.lane.b32.xlu0 %v5114, 16
  %v5242 = vpop.permute.xlu0 %5241
  %5243 = vrot.lane.b32.xlu0 %v5116, 16
  %v5244 = vpop.permute.xlu0 %5243
  %5313 = vrot.lane.b32.xlu0 %v4404, 24
  %v5314 = vpop.permute.xlu0 %5313
  %5315 = vrot.lane.b32.xlu0 %v4405, 24
  %v5316 = vpop.permute.xlu0 %5315
  %5317 = vrot.lane.b32.xlu0 %v4407, 24
  %v5318 = vpop.permute.xlu0 %5317
  %5319 = vrot.lane.b32.xlu0 %v4408, 24
  %v5320 = vpop.permute.xlu0 %5319
  %5321 = vrot.lane.b32.xlu0 %v4410, 24
  %v5322 = vpop.permute.xlu0 %5321
  %5323 = vrot.lane.b32.xlu0 %v4411, 24
  %v5324 = vpop.permute.xlu0 %5323
  %5325 = vrot.lane.b32.xlu0 %v4413, 24
  %v5326 = vpop.permute.xlu0 %5325
  %5327 = vrot.lane.b32.xlu0 %v4414, 24
  %v5328 = vpop.permute.xlu0 %5327
  %5329 = vrot.lane.b32.xlu0 %v4416, 24
  %v5330 = vpop.permute.xlu0 %5329
  %5331 = vrot.lane.b32.xlu0 %v4417, 24
  %v5332 = vpop.permute.xlu0 %5331
  %5333 = vrot.lane.b32.xlu0 %v4419, 24
  %v5334 = vpop.permute.xlu0 %5333
  %5335 = vrot.lane.b32.xlu0 %v4420, 24
  %v5336 = vpop.permute.xlu0 %5335
  %5337 = vrot.lane.b32.xlu0 %v4422, 24
  %v5338 = vpop.permute.xlu0 %5337
  %5339 = vrot.lane.b32.xlu0 %v4423, 24
  %v5340 = vpop.permute.xlu0 %5339
  %5341 = vrot.lane.b32.xlu0 %v4425, 24
  %v5342 = vpop.permute.xlu0 %5341
  %5343 = vrot.lane.b32.xlu0 %v4426, 24
  %v5344 = vpop.permute.xlu0 %5343
  %5345 = vrot.lane.b32.xlu0 %v4428, 24
  %v5346 = vpop.permute.xlu0 %5345
  %5347 = vrot.lane.b32.xlu0 %v4429, 24
  %v5348 = vpop.permute.xlu0 %5347
  %5349 = vrot.lane.b32.xlu0 %v4431, 24
  %v5350 = vpop.permute.xlu0 %5349
  %5351 = vrot.lane.b32.xlu0 %v4432, 24
  %v5352 = vpop.permute.xlu0 %5351
  %5353 = vrot.lane.b32.xlu0 %v4434, 24
  %v5354 = vpop.permute.xlu0 %5353
  %5355 = vrot.lane.b32.xlu0 %v4435, 24
  %v5356 = vpop.permute.xlu0 %5355
  %5357 = vrot.lane.b32.xlu0 %v4437, 24
  %v5358 = vpop.permute.xlu0 %5357
  %5359 = vrot.lane.b32.xlu0 %v4438, 24
  %v5360 = vpop.permute.xlu0 %5359
  %5361 = vrot.lane.b32.xlu0 %v4440, 24
  %v5362 = vpop.permute.xlu0 %5361
  %5363 = vrot.lane.b32.xlu0 %v4441, 24
  %v5364 = vpop.permute.xlu0 %5363
  %5365 = vrot.lane.b32.xlu0 %v4443, 24
  %v5366 = vpop.permute.xlu0 %5365
  %5367 = vrot.lane.b32.xlu0 %v4444, 24
  %v5368 = vpop.permute.xlu0 %5367
  %5369 = vrot.lane.b32.xlu0 %v4446, 24
  %v5370 = vpop.permute.xlu0 %5369
  %5371 = vrot.lane.b32.xlu0 %v4447, 24
  %v5372 = vpop.permute.xlu0 %5371
  %5373 = vrot.lane.b32.xlu0 %v4449, 24
  %v5374 = vpop.permute.xlu0 %5373
  %5375 = vrot.lane.b32.xlu0 %v4450, 24
  %v5376 = vpop.permute.xlu0 %5375
  %5377 = vrot.lane.b32.xlu0 %v4458, 24
  %v5378 = vpop.permute.xlu0 %5377
  %5379 = vrot.lane.b32.xlu0 %v4459, 24
  %v5380 = vpop.permute.xlu0 %5379
  %5381 = vrot.lane.b32.xlu0 %v4461, 24
  %v5382 = vpop.permute.xlu0 %5381
  %5383 = vrot.lane.b32.xlu0 %v4462, 24
  %v5384 = vpop.permute.xlu0 %5383
  %5385 = vrot.lane.b32.xlu0 %v4464, 24
  %v5386 = vpop.permute.xlu0 %5385
  %5387 = vrot.lane.b32.xlu0 %v4465, 24
  %v5388 = vpop.permute.xlu0 %5387
  %5389 = vrot.lane.b32.xlu0 %v4467, 24
  %v5390 = vpop.permute.xlu0 %5389
  %5391 = vrot.lane.b32.xlu0 %v4468, 24
  %v5392 = vpop.permute.xlu0 %5391
  %5393 = vrot.lane.b32.xlu0 %v4470, 24
  %v5394 = vpop.permute.xlu0 %5393
  %5395 = vrot.lane.b32.xlu0 %v4471, 24
  %v5396 = vpop.permute.xlu0 %5395
  %5397 = vrot.lane.b32.xlu0 %v4473, 24
  %v5398 = vpop.permute.xlu0 %5397
  %5399 = vrot.lane.b32.xlu0 %v4474, 24
  %v5400 = vpop.permute.xlu0 %5399
  %5401 = vrot.lane.b32.xlu0 %v4476, 24
  %v5402 = vpop.permute.xlu0 %5401
  %5403 = vrot.lane.b32.xlu0 %v4477, 24
  %v5404 = vpop.permute.xlu0 %5403
  %5405 = vrot.lane.b32.xlu0 %v4479, 24
  %v5406 = vpop.permute.xlu0 %5405
  %5407 = vrot.lane.b32.xlu0 %v4480, 24
  %v5408 = vpop.permute.xlu0 %5407
  %5409 = vrot.lane.b32.xlu0 %v4482, 24
  %v5410 = vpop.permute.xlu0 %5409
  %5411 = vrot.lane.b32.xlu0 %v4483, 24
  %v5412 = vpop.permute.xlu0 %5411
  %5413 = vrot.lane.b32.xlu0 %v4485, 24
  %v5414 = vpop.permute.xlu0 %5413
  %5415 = vrot.lane.b32.xlu0 %v4486, 24
  %v5416 = vpop.permute.xlu0 %5415
  %5417 = vrot.lane.b32.xlu0 %v4488, 24
  %v5418 = vpop.permute.xlu0 %5417
  %5419 = vrot.lane.b32.xlu0 %v4489, 24
  %v5420 = vpop.permute.xlu0 %5419
  %5421 = vrot.lane.b32.xlu0 %v4491, 24
  %v5422 = vpop.permute.xlu0 %5421
  %5423 = vrot.lane.b32.xlu0 %v4492, 24
  %v5424 = vpop.permute.xlu0 %5423
  %5425 = vrot.lane.b32.xlu0 %v4494, 24
  %v5426 = vpop.permute.xlu0 %5425
  %5427 = vrot.lane.b32.xlu0 %v4495, 24
  %v5428 = vpop.permute.xlu0 %5427
  %5429 = vrot.lane.b32.xlu0 %v4497, 24
  %v5430 = vpop.permute.xlu0 %5429
  %5431 = vrot.lane.b32.xlu0 %v4498, 24
  %v5432 = vpop.permute.xlu0 %5431
  %5433 = vrot.lane.b32.xlu0 %v4500, 24
  %v5434 = vpop.permute.xlu0 %5433
  %5435 = vrot.lane.b32.xlu0 %v4501, 24
  %v5436 = vpop.permute.xlu0 %5435
  %5437 = vrot.lane.b32.xlu0 %v4503, 24
  %v5438 = vpop.permute.xlu0 %5437
  %5439 = vrot.lane.b32.xlu0 %v4504, 24
  %v5440 = vpop.permute.xlu0 %5439
  %v5507 = vrot.slane %v4449, 1
  %v5508 = vrot.slane %v4450, 1
  %v5509 = vsel %vm466, %v5507, %v5508
  %v5510 = vrot.slane %v4451, 1
  %v5511 = vsel %vm466, %v5508, %v5510
  %v5512 = vrot.slane %v4503, 1
  %v5513 = vrot.slane %v4504, 1
  %v5514 = vsel %vm466, %v5512, %v5513
  %v5515 = vrot.slane %v4505, 1
  %v5516 = vsel %vm466, %v5513, %v5515
  %5517 = vrot.lane.b32.xlu0 %v4612, 32
  %v5518 = vpop.permute.xlu0 %5517
  %5519 = vrot.lane.b32.xlu0 %v4614, 32
  %v5520 = vpop.permute.xlu0 %5519
  %5521 = vrot.lane.b32.xlu0 %v4617, 32
  %v5522 = vpop.permute.xlu0 %5521
  %5523 = vrot.lane.b32.xlu0 %v4619, 32
  %v5524 = vpop.permute.xlu0 %5523
  %5525 = vrot.lane.b32.xlu0 %v4622, 32
  %v5526 = vpop.permute.xlu0 %5525
  %5527 = vrot.lane.b32.xlu0 %v4624, 32
  %v5528 = vpop.permute.xlu0 %5527
  %5529 = vrot.lane.b32.xlu0 %v4627, 32
  %v5530 = vpop.permute.xlu0 %5529
  %5531 = vrot.lane.b32.xlu0 %v4629, 32
  %v5532 = vpop.permute.xlu0 %5531
  %5533 = vrot.lane.b32.xlu0 %v4632, 32
  %v5534 = vpop.permute.xlu0 %5533
  %5535 = vrot.lane.b32.xlu0 %v4634, 32
  %v5536 = vpop.permute.xlu0 %5535
  %5537 = vrot.lane.b32.xlu0 %v4637, 32
  %v5538 = vpop.permute.xlu0 %5537
  %5539 = vrot.lane.b32.xlu0 %v4639, 32
  %v5540 = vpop.permute.xlu0 %5539
  %5541 = vrot.lane.b32.xlu0 %v4642, 32
  %v5542 = vpop.permute.xlu0 %5541
  %5543 = vrot.lane.b32.xlu0 %v4644, 32
  %v5544 = vpop.permute.xlu0 %5543
  %5545 = vrot.lane.b32.xlu0 %v4647, 32
  %v5546 = vpop.permute.xlu0 %5545
  %5547 = vrot.lane.b32.xlu0 %v4649, 32
  %v5548 = vpop.permute.xlu0 %5547
  %5549 = vrot.lane.b32.xlu0 %v4652, 32
  %v5550 = vpop.permute.xlu0 %5549
  %5551 = vrot.lane.b32.xlu0 %v4654, 32
  %v5552 = vpop.permute.xlu0 %5551
  %5553 = vrot.lane.b32.xlu0 %v4657, 32
  %v5554 = vpop.permute.xlu0 %5553
  %5555 = vrot.lane.b32.xlu0 %v4659, 32
  %v5556 = vpop.permute.xlu0 %5555
  %5557 = vrot.lane.b32.xlu0 %v4662, 32
  %v5558 = vpop.permute.xlu0 %5557
  %5559 = vrot.lane.b32.xlu0 %v4664, 32
  %v5560 = vpop.permute.xlu0 %5559
  %5561 = vrot.lane.b32.xlu0 %v4667, 32
  %v5562 = vpop.permute.xlu0 %5561
  %5563 = vrot.lane.b32.xlu0 %v4669, 32
  %v5564 = vpop.permute.xlu0 %5563
  %5565 = vrot.lane.b32.xlu0 %v4672, 32
  %v5566 = vpop.permute.xlu0 %5565
  %5567 = vrot.lane.b32.xlu0 %v4674, 32
  %v5568 = vpop.permute.xlu0 %5567
  %5569 = vrot.lane.b32.xlu0 %v4677, 32
  %v5570 = vpop.permute.xlu0 %5569
  %5571 = vrot.lane.b32.xlu0 %v4679, 32
  %v5572 = vpop.permute.xlu0 %5571
  %5573 = vrot.lane.b32.xlu0 %v4682, 32
  %v5574 = vpop.permute.xlu0 %5573
  %5575 = vrot.lane.b32.xlu0 %v4684, 32
  %v5576 = vpop.permute.xlu0 %5575
  %5577 = vrot.lane.b32.xlu0 %v5509, 32
  %v5578 = vpop.permute.xlu0 %5577
  %5579 = vrot.lane.b32.xlu0 %v5511, 32
  %v5580 = vpop.permute.xlu0 %5579
  %5581 = vrot.lane.b32.xlu0 %v4692, 32
  %v5582 = vpop.permute.xlu0 %5581
  %5583 = vrot.lane.b32.xlu0 %v4694, 32
  %v5584 = vpop.permute.xlu0 %5583
  %5585 = vrot.lane.b32.xlu0 %v4697, 32
  %v5586 = vpop.permute.xlu0 %5585
  %5587 = vrot.lane.b32.xlu0 %v4699, 32
  %v5588 = vpop.permute.xlu0 %5587
  %5589 = vrot.lane.b32.xlu0 %v4702, 32
  %v5590 = vpop.permute.xlu0 %5589
  %5591 = vrot.lane.b32.xlu0 %v4704, 32
  %v5592 = vpop.permute.xlu0 %5591
  %5593 = vrot.lane.b32.xlu0 %v4707, 32
  %v5594 = vpop.permute.xlu0 %5593
  %5595 = vrot.lane.b32.xlu0 %v4709, 32
  %v5596 = vpop.permute.xlu0 %5595
  %5597 = vrot.lane.b32.xlu0 %v4712, 32
  %v5598 = vpop.permute.xlu0 %5597
  %5599 = vrot.lane.b32.xlu0 %v4714, 32
  %v5600 = vpop.permute.xlu0 %5599
  %5601 = vrot.lane.b32.xlu0 %v4717, 32
  %v5602 = vpop.permute.xlu0 %5601
  %5603 = vrot.lane.b32.xlu0 %v4719, 32
  %v5604 = vpop.permute.xlu0 %5603
  %5605 = vrot.lane.b32.xlu0 %v4722, 32
  %v5606 = vpop.permute.xlu0 %5605
  %5607 = vrot.lane.b32.xlu0 %v4724, 32
  %v5608 = vpop.permute.xlu0 %5607
  %5609 = vrot.lane.b32.xlu0 %v4727, 32
  %v5610 = vpop.permute.xlu0 %5609
  %5611 = vrot.lane.b32.xlu0 %v4729, 32
  %v5612 = vpop.permute.xlu0 %5611
  %5613 = vrot.lane.b32.xlu0 %v4732, 32
  %v5614 = vpop.permute.xlu0 %5613
  %5615 = vrot.lane.b32.xlu0 %v4734, 32
  %v5616 = vpop.permute.xlu0 %5615
  %5617 = vrot.lane.b32.xlu0 %v4737, 32
  %v5618 = vpop.permute.xlu0 %5617
  %5619 = vrot.lane.b32.xlu0 %v4739, 32
  %v5620 = vpop.permute.xlu0 %5619
  %5621 = vrot.lane.b32.xlu0 %v4742, 32
  %v5622 = vpop.permute.xlu0 %5621
  %5623 = vrot.lane.b32.xlu0 %v4744, 32
  %v5624 = vpop.permute.xlu0 %5623
  %5625 = vrot.lane.b32.xlu0 %v4747, 32
  %v5626 = vpop.permute.xlu0 %5625
  %5627 = vrot.lane.b32.xlu0 %v4749, 32
  %v5628 = vpop.permute.xlu0 %5627
  %5629 = vrot.lane.b32.xlu0 %v4752, 32
  %v5630 = vpop.permute.xlu0 %5629
  %5631 = vrot.lane.b32.xlu0 %v4754, 32
  %v5632 = vpop.permute.xlu0 %5631
  %5633 = vrot.lane.b32.xlu0 %v4757, 32
  %v5634 = vpop.permute.xlu0 %5633
  %5635 = vrot.lane.b32.xlu0 %v4759, 32
  %v5636 = vpop.permute.xlu0 %5635
  %5637 = vrot.lane.b32.xlu0 %v4762, 32
  %v5638 = vpop.permute.xlu0 %5637
  %5639 = vrot.lane.b32.xlu0 %v4764, 32
  %v5640 = vpop.permute.xlu0 %5639
  %5641 = vrot.lane.b32.xlu0 %v5514, 32
  %v5642 = vpop.permute.xlu0 %5641
  %5643 = vrot.lane.b32.xlu0 %v5516, 32
  %v5644 = vpop.permute.xlu0 %5643
  %v5709 = vrot.slane %v4449, 2
  %v5710 = vrot.slane %v4450, 2
  %v5711 = vsel %vm819, %v5709, %v5710
  %v5712 = vrot.slane %v4451, 2
  %v5713 = vsel %vm819, %v5710, %v5712
  %v5714 = vrot.slane %v4503, 2
  %v5715 = vrot.slane %v4504, 2
  %v5716 = vsel %vm819, %v5714, %v5715
  %v5717 = vrot.slane %v4505, 2
  %v5718 = vsel %vm819, %v5715, %v5717
  %5719 = vrot.lane.b32.xlu0 %v4964, 40
  %v5720 = vpop.permute.xlu0 %5719
  %5721 = vrot.lane.b32.xlu0 %v4966, 40
  %v5722 = vpop.permute.xlu0 %5721
  %5723 = vrot.lane.b32.xlu0 %v4969, 40
  %v5724 = vpop.permute.xlu0 %5723
  %5725 = vrot.lane.b32.xlu0 %v4971, 40
  %v5726 = vpop.permute.xlu0 %5725
  %5727 = vrot.lane.b32.xlu0 %v4974, 40
  %v5728 = vpop.permute.xlu0 %5727
  %5729 = vrot.lane.b32.xlu0 %v4976, 40
  %v5730 = vpop.permute.xlu0 %5729
  %5731 = vrot.lane.b32.xlu0 %v4979, 40
  %v5732 = vpop.permute.xlu0 %5731
  %5733 = vrot.lane.b32.xlu0 %v4981, 40
  %v5734 = vpop.permute.xlu0 %5733
  %5735 = vrot.lane.b32.xlu0 %v4984, 40
  %v5736 = vpop.permute.xlu0 %5735
  %5737 = vrot.lane.b32.xlu0 %v4986, 40
  %v5738 = vpop.permute.xlu0 %5737
  %5739 = vrot.lane.b32.xlu0 %v4989, 40
  %v5740 = vpop.permute.xlu0 %5739
  %5741 = vrot.lane.b32.xlu0 %v4991, 40
  %v5742 = vpop.permute.xlu0 %5741
  %5743 = vrot.lane.b32.xlu0 %v4994, 40
  %v5744 = vpop.permute.xlu0 %5743
  %5745 = vrot.lane.b32.xlu0 %v4996, 40
  %v5746 = vpop.permute.xlu0 %5745
  %5747 = vrot.lane.b32.xlu0 %v4999, 40
  %v5748 = vpop.permute.xlu0 %5747
  %5749 = vrot.lane.b32.xlu0 %v5001, 40
  %v5750 = vpop.permute.xlu0 %5749
  %5751 = vrot.lane.b32.xlu0 %v5004, 40
  %v5752 = vpop.permute.xlu0 %5751
  %5753 = vrot.lane.b32.xlu0 %v5006, 40
  %v5754 = vpop.permute.xlu0 %5753
  %5755 = vrot.lane.b32.xlu0 %v5009, 40
  %v5756 = vpop.permute.xlu0 %5755
  %5757 = vrot.lane.b32.xlu0 %v5011, 40
  %v5758 = vpop.permute.xlu0 %5757
  %5759 = vrot.lane.b32.xlu0 %v5014, 40
  %v5760 = vpop.permute.xlu0 %5759
  %5761 = vrot.lane.b32.xlu0 %v5016, 40
  %v5762 = vpop.permute.xlu0 %5761
  %5763 = vrot.lane.b32.xlu0 %v5019, 40
  %v5764 = vpop.permute.xlu0 %5763
  %5765 = vrot.lane.b32.xlu0 %v5021, 40
  %v5766 = vpop.permute.xlu0 %5765
  %5767 = vrot.lane.b32.xlu0 %v5024, 40
  %v5768 = vpop.permute.xlu0 %5767
  %5769 = vrot.lane.b32.xlu0 %v5026, 40
  %v5770 = vpop.permute.xlu0 %5769
  %5771 = vrot.lane.b32.xlu0 %v5029, 40
  %v5772 = vpop.permute.xlu0 %5771
  %5773 = vrot.lane.b32.xlu0 %v5031, 40
  %v5774 = vpop.permute.xlu0 %5773
  %5775 = vrot.lane.b32.xlu0 %v5034, 40
  %v5776 = vpop.permute.xlu0 %5775
  %5777 = vrot.lane.b32.xlu0 %v5036, 40
  %v5778 = vpop.permute.xlu0 %5777
  %5779 = vrot.lane.b32.xlu0 %v5711, 40
  %v5780 = vpop.permute.xlu0 %5779
  %5781 = vrot.lane.b32.xlu0 %v5713, 40
  %v5782 = vpop.permute.xlu0 %5781
  %5783 = vrot.lane.b32.xlu0 %v5044, 40
  %v5784 = vpop.permute.xlu0 %5783
  %5785 = vrot.lane.b32.xlu0 %v5046, 40
  %v5786 = vpop.permute.xlu0 %5785
  %5787 = vrot.lane.b32.xlu0 %v5049, 40
  %v5788 = vpop.permute.xlu0 %5787
  %5789 = vrot.lane.b32.xlu0 %v5051, 40
  %v5790 = vpop.permute.xlu0 %5789
  %5791 = vrot.lane.b32.xlu0 %v5054, 40
  %v5792 = vpop.permute.xlu0 %5791
  %5793 = vrot.lane.b32.xlu0 %v5056, 40
  %v5794 = vpop.permute.xlu0 %5793
  %5795 = vrot.lane.b32.xlu0 %v5059, 40
  %v5796 = vpop.permute.xlu0 %5795
  %5797 = vrot.lane.b32.xlu0 %v5061, 40
  %v5798 = vpop.permute.xlu0 %5797
  %5799 = vrot.lane.b32.xlu0 %v5064, 40
  %v5800 = vpop.permute.xlu0 %5799
  %5801 = vrot.lane.b32.xlu0 %v5066, 40
  %v5802 = vpop.permute.xlu0 %5801
  %5803 = vrot.lane.b32.xlu0 %v5069, 40
  %v5804 = vpop.permute.xlu0 %5803
  %5805 = vrot.lane.b32.xlu0 %v5071, 40
  %v5806 = vpop.permute.xlu0 %5805
  %5807 = vrot.lane.b32.xlu0 %v5074, 40
  %v5808 = vpop.permute.xlu0 %5807
  %5809 = vrot.lane.b32.xlu0 %v5076, 40
  %v5810 = vpop.permute.xlu0 %5809
  %5811 = vrot.lane.b32.xlu0 %v5079, 40
  %v5812 = vpop.permute.xlu0 %5811
  %5813 = vrot.lane.b32.xlu0 %v5081, 40
  %v5814 = vpop.permute.xlu0 %5813
  %5815 = vrot.lane.b32.xlu0 %v5084, 40
  %v5816 = vpop.permute.xlu0 %5815
  %5817 = vrot.lane.b32.xlu0 %v5086, 40
  %v5818 = vpop.permute.xlu0 %5817
  %5819 = vrot.lane.b32.xlu0 %v5089, 40
  %v5820 = vpop.permute.xlu0 %5819
  %5821 = vrot.lane.b32.xlu0 %v5091, 40
  %v5822 = vpop.permute.xlu0 %5821
  %5823 = vrot.lane.b32.xlu0 %v5094, 40
  %v5824 = vpop.permute.xlu0 %5823
  %5825 = vrot.lane.b32.xlu0 %v5096, 40
  %v5826 = vpop.permute.xlu0 %5825
  %5827 = vrot.lane.b32.xlu0 %v5099, 40
  %v5828 = vpop.permute.xlu0 %5827
  %5829 = vrot.lane.b32.xlu0 %v5101, 40
  %v5830 = vpop.permute.xlu0 %5829
  %5831 = vrot.lane.b32.xlu0 %v5104, 40
  %v5832 = vpop.permute.xlu0 %5831
  %5833 = vrot.lane.b32.xlu0 %v5106, 40
  %v5834 = vpop.permute.xlu0 %5833
  %5835 = vrot.lane.b32.xlu0 %v5109, 40
  %v5836 = vpop.permute.xlu0 %5835
  %5837 = vrot.lane.b32.xlu0 %v5111, 40
  %v5838 = vpop.permute.xlu0 %5837
  %5839 = vrot.lane.b32.xlu0 %v5114, 40
  %v5840 = vpop.permute.xlu0 %5839
  %5841 = vrot.lane.b32.xlu0 %v5116, 40
  %v5842 = vpop.permute.xlu0 %5841
  %5843 = vrot.lane.b32.xlu0 %v5716, 40
  %v5844 = vpop.permute.xlu0 %5843
  %5845 = vrot.lane.b32.xlu0 %v5718, 40
  %v5846 = vpop.permute.xlu0 %5845
  %5915 = vrot.lane.b32.xlu0 %v4407, 48
  %v5916 = vpop.permute.xlu0 %5915
  %5917 = vrot.lane.b32.xlu0 %v4408, 48
  %v5918 = vpop.permute.xlu0 %5917
  %5919 = vrot.lane.b32.xlu0 %v4410, 48
  %v5920 = vpop.permute.xlu0 %5919
  %5921 = vrot.lane.b32.xlu0 %v4411, 48
  %v5922 = vpop.permute.xlu0 %5921
  %5923 = vrot.lane.b32.xlu0 %v4413, 48
  %v5924 = vpop.permute.xlu0 %5923
  %5925 = vrot.lane.b32.xlu0 %v4414, 48
  %v5926 = vpop.permute.xlu0 %5925
  %5927 = vrot.lane.b32.xlu0 %v4416, 48
  %v5928 = vpop.permute.xlu0 %5927
  %5929 = vrot.lane.b32.xlu0 %v4417, 48
  %v5930 = vpop.permute.xlu0 %5929
  %5931 = vrot.lane.b32.xlu0 %v4419, 48
  %v5932 = vpop.permute.xlu0 %5931
  %5933 = vrot.lane.b32.xlu0 %v4420, 48
  %v5934 = vpop.permute.xlu0 %5933
  %5935 = vrot.lane.b32.xlu0 %v4422, 48
  %v5936 = vpop.permute.xlu0 %5935
  %5937 = vrot.lane.b32.xlu0 %v4423, 48
  %v5938 = vpop.permute.xlu0 %5937
  %5939 = vrot.lane.b32.xlu0 %v4425, 48
  %v5940 = vpop.permute.xlu0 %5939
  %5941 = vrot.lane.b32.xlu0 %v4426, 48
  %v5942 = vpop.permute.xlu0 %5941
  %5943 = vrot.lane.b32.xlu0 %v4428, 48
  %v5944 = vpop.permute.xlu0 %5943
  %5945 = vrot.lane.b32.xlu0 %v4429, 48
  %v5946 = vpop.permute.xlu0 %5945
  %5947 = vrot.lane.b32.xlu0 %v4431, 48
  %v5948 = vpop.permute.xlu0 %5947
  %5949 = vrot.lane.b32.xlu0 %v4432, 48
  %v5950 = vpop.permute.xlu0 %5949
  %5951 = vrot.lane.b32.xlu0 %v4434, 48
  %v5952 = vpop.permute.xlu0 %5951
  %5953 = vrot.lane.b32.xlu0 %v4435, 48
  %v5954 = vpop.permute.xlu0 %5953
  %5955 = vrot.lane.b32.xlu0 %v4437, 48
  %v5956 = vpop.permute.xlu0 %5955
  %5957 = vrot.lane.b32.xlu0 %v4438, 48
  %v5958 = vpop.permute.xlu0 %5957
  %5959 = vrot.lane.b32.xlu0 %v4440, 48
  %v5960 = vpop.permute.xlu0 %5959
  %5961 = vrot.lane.b32.xlu0 %v4441, 48
  %v5962 = vpop.permute.xlu0 %5961
  %5963 = vrot.lane.b32.xlu0 %v4443, 48
  %v5964 = vpop.permute.xlu0 %5963
  %5965 = vrot.lane.b32.xlu0 %v4444, 48
  %v5966 = vpop.permute.xlu0 %5965
  %5967 = vrot.lane.b32.xlu0 %v4446, 48
  %v5968 = vpop.permute.xlu0 %5967
  %5969 = vrot.lane.b32.xlu0 %v4447, 48
  %v5970 = vpop.permute.xlu0 %5969
  %5971 = vrot.lane.b32.xlu0 %v4449, 48
  %v5972 = vpop.permute.xlu0 %5971
  %5973 = vrot.lane.b32.xlu0 %v4450, 48
  %v5974 = vpop.permute.xlu0 %5973
  %5975 = vrot.lane.b32.xlu0 %v4452, 48
  %v5976 = vpop.permute.xlu0 %5975
  %5977 = vrot.lane.b32.xlu0 %v4453, 48
  %v5978 = vpop.permute.xlu0 %5977
  %5979 = vrot.lane.b32.xlu0 %v4461, 48
  %v5980 = vpop.permute.xlu0 %5979
  %5981 = vrot.lane.b32.xlu0 %v4462, 48
  %v5982 = vpop.permute.xlu0 %5981
  %5983 = vrot.lane.b32.xlu0 %v4464, 48
  %v5984 = vpop.permute.xlu0 %5983
  %5985 = vrot.lane.b32.xlu0 %v4465, 48
  %v5986 = vpop.permute.xlu0 %5985
  %5987 = vrot.lane.b32.xlu0 %v4467, 48
  %v5988 = vpop.permute.xlu0 %5987
  %5989 = vrot.lane.b32.xlu0 %v4468, 48
  %v5990 = vpop.permute.xlu0 %5989
  %5991 = vrot.lane.b32.xlu0 %v4470, 48
  %v5992 = vpop.permute.xlu0 %5991
  %5993 = vrot.lane.b32.xlu0 %v4471, 48
  %v5994 = vpop.permute.xlu0 %5993
  %5995 = vrot.lane.b32.xlu0 %v4473, 48
  %v5996 = vpop.permute.xlu0 %5995
  %5997 = vrot.lane.b32.xlu0 %v4474, 48
  %v5998 = vpop.permute.xlu0 %5997
  %5999 = vrot.lane.b32.xlu0 %v4476, 48
  %v6000 = vpop.permute.xlu0 %5999
  %6001 = vrot.lane.b32.xlu0 %v4477, 48
  %v6002 = vpop.permute.xlu0 %6001
  %6003 = vrot.lane.b32.xlu0 %v4479, 48
  %v6004 = vpop.permute.xlu0 %6003
  %6005 = vrot.lane.b32.xlu0 %v4480, 48
  %v6006 = vpop.permute.xlu0 %6005
  %6007 = vrot.lane.b32.xlu0 %v4482, 48
  %v6008 = vpop.permute.xlu0 %6007
  %6009 = vrot.lane.b32.xlu0 %v4483, 48
  %v6010 = vpop.permute.xlu0 %6009
  %6011 = vrot.lane.b32.xlu0 %v4485, 48
  %v6012 = vpop.permute.xlu0 %6011
  %6013 = vrot.lane.b32.xlu0 %v4486, 48
  %v6014 = vpop.permute.xlu0 %6013
  %6015 = vrot.lane.b32.xlu0 %v4488, 48
  %v6016 = vpop.permute.xlu0 %6015
  %6017 = vrot.lane.b32.xlu0 %v4489, 48
  %v6018 = vpop.permute.xlu0 %6017
  %6019 = vrot.lane.b32.xlu0 %v4491, 48
  %v6020 = vpop.permute.xlu0 %6019
  %6021 = vrot.lane.b32.xlu0 %v4492, 48
  %v6022 = vpop.permute.xlu0 %6021
  %6023 = vrot.lane.b32.xlu0 %v4494, 48
  %v6024 = vpop.permute.xlu0 %6023
  %6025 = vrot.lane.b32.xlu0 %v4495, 48
  %v6026 = vpop.permute.xlu0 %6025
  %6027 = vrot.lane.b32.xlu0 %v4497, 48
  %v6028 = vpop.permute.xlu0 %6027
  %6029 = vrot.lane.b32.xlu0 %v4498, 48
  %v6030 = vpop.permute.xlu0 %6029
  %6031 = vrot.lane.b32.xlu0 %v4500, 48
  %v6032 = vpop.permute.xlu0 %6031
  %6033 = vrot.lane.b32.xlu0 %v4501, 48
  %v6034 = vpop.permute.xlu0 %6033
  %6035 = vrot.lane.b32.xlu0 %v4503, 48
  %v6036 = vpop.permute.xlu0 %6035
  %6037 = vrot.lane.b32.xlu0 %v4504, 48
  %v6038 = vpop.permute.xlu0 %6037
  %6039 = vrot.lane.b32.xlu0 %v4506, 48
  %v6040 = vpop.permute.xlu0 %6039
  %6041 = vrot.lane.b32.xlu0 %v4507, 48
  %v6042 = vpop.permute.xlu0 %6041
  %v6109 = vrot.slane %v4452, 1
  %v6110 = vrot.slane %v4453, 1
  %v6111 = vsel %vm466, %v6109, %v6110
  %v6112 = vrot.slane %v4454, 1
  %v6113 = vsel %vm466, %v6110, %v6112
  %v6114 = vrot.slane %v4506, 1
  %v6115 = vrot.slane %v4507, 1
  %v6116 = vsel %vm466, %v6114, %v6115
  %v6117 = vrot.slane %v4508, 1
  %v6118 = vsel %vm466, %v6115, %v6117
  %6119 = vrot.lane.b32.xlu0 %v4617, 56
  %v6120 = vpop.permute.xlu0 %6119
  %6121 = vrot.lane.b32.xlu0 %v4619, 56
  %v6122 = vpop.permute.xlu0 %6121
  %6123 = vrot.lane.b32.xlu0 %v4622, 56
  %v6124 = vpop.permute.xlu0 %6123
  %6125 = vrot.lane.b32.xlu0 %v4624, 56
  %v6126 = vpop.permute.xlu0 %6125
  %6127 = vrot.lane.b32.xlu0 %v4627, 56
  %v6128 = vpop.permute.xlu0 %6127
  %6129 = vrot.lane.b32.xlu0 %v4629, 56
  %v6130 = vpop.permute.xlu0 %6129
  %6131 = vrot.lane.b32.xlu0 %v4632, 56
  %v6132 = vpop.permute.xlu0 %6131
  %6133 = vrot.lane.b32.xlu0 %v4634, 56
  %v6134 = vpop.permute.xlu0 %6133
  %6135 = vrot.lane.b32.xlu0 %v4637, 56
  %v6136 = vpop.permute.xlu0 %6135
  %6137 = vrot.lane.b32.xlu0 %v4639, 56
  %v6138 = vpop.permute.xlu0 %6137
  %6139 = vrot.lane.b32.xlu0 %v4642, 56
  %v6140 = vpop.permute.xlu0 %6139
  %6141 = vrot.lane.b32.xlu0 %v4644, 56
  %v6142 = vpop.permute.xlu0 %6141
  %6143 = vrot.lane.b32.xlu0 %v4647, 56
  %v6144 = vpop.permute.xlu0 %6143
  %6145 = vrot.lane.b32.xlu0 %v4649, 56
  %v6146 = vpop.permute.xlu0 %6145
  %6147 = vrot.lane.b32.xlu0 %v4652, 56
  %v6148 = vpop.permute.xlu0 %6147
  %6149 = vrot.lane.b32.xlu0 %v4654, 56
  %v6150 = vpop.permute.xlu0 %6149
  %6151 = vrot.lane.b32.xlu0 %v4657, 56
  %v6152 = vpop.permute.xlu0 %6151
  %6153 = vrot.lane.b32.xlu0 %v4659, 56
  %v6154 = vpop.permute.xlu0 %6153
  %6155 = vrot.lane.b32.xlu0 %v4662, 56
  %v6156 = vpop.permute.xlu0 %6155
  %6157 = vrot.lane.b32.xlu0 %v4664, 56
  %v6158 = vpop.permute.xlu0 %6157
  %6159 = vrot.lane.b32.xlu0 %v4667, 56
  %v6160 = vpop.permute.xlu0 %6159
  %6161 = vrot.lane.b32.xlu0 %v4669, 56
  %v6162 = vpop.permute.xlu0 %6161
  %6163 = vrot.lane.b32.xlu0 %v4672, 56
  %v6164 = vpop.permute.xlu0 %6163
  %6165 = vrot.lane.b32.xlu0 %v4674, 56
  %v6166 = vpop.permute.xlu0 %6165
  %6167 = vrot.lane.b32.xlu0 %v4677, 56
  %v6168 = vpop.permute.xlu0 %6167
  %6169 = vrot.lane.b32.xlu0 %v4679, 56
  %v6170 = vpop.permute.xlu0 %6169
  %6171 = vrot.lane.b32.xlu0 %v4682, 56
  %v6172 = vpop.permute.xlu0 %6171
  %6173 = vrot.lane.b32.xlu0 %v4684, 56
  %v6174 = vpop.permute.xlu0 %6173
  %6175 = vrot.lane.b32.xlu0 %v5509, 56
  %v6176 = vpop.permute.xlu0 %6175
  %6177 = vrot.lane.b32.xlu0 %v5511, 56
  %v6178 = vpop.permute.xlu0 %6177
  %6179 = vrot.lane.b32.xlu0 %v6111, 56
  %v6180 = vpop.permute.xlu0 %6179
  %6181 = vrot.lane.b32.xlu0 %v6113, 56
  %v6182 = vpop.permute.xlu0 %6181
  %6183 = vrot.lane.b32.xlu0 %v4697, 56
  %v6184 = vpop.permute.xlu0 %6183
  %6185 = vrot.lane.b32.xlu0 %v4699, 56
  %v6186 = vpop.permute.xlu0 %6185
  %6187 = vrot.lane.b32.xlu0 %v4702, 56
  %v6188 = vpop.permute.xlu0 %6187
  %6189 = vrot.lane.b32.xlu0 %v4704, 56
  %v6190 = vpop.permute.xlu0 %6189
  %6191 = vrot.lane.b32.xlu0 %v4707, 56
  %v6192 = vpop.permute.xlu0 %6191
  %6193 = vrot.lane.b32.xlu0 %v4709, 56
  %v6194 = vpop.permute.xlu0 %6193
  %6195 = vrot.lane.b32.xlu0 %v4712, 56
  %v6196 = vpop.permute.xlu0 %6195
  %6197 = vrot.lane.b32.xlu0 %v4714, 56
  %v6198 = vpop.permute.xlu0 %6197
  %6199 = vrot.lane.b32.xlu0 %v4717, 56
  %v6200 = vpop.permute.xlu0 %6199
  %6201 = vrot.lane.b32.xlu0 %v4719, 56
  %v6202 = vpop.permute.xlu0 %6201
  %6203 = vrot.lane.b32.xlu0 %v4722, 56
  %v6204 = vpop.permute.xlu0 %6203
  %6205 = vrot.lane.b32.xlu0 %v4724, 56
  %v6206 = vpop.permute.xlu0 %6205
  %6207 = vrot.lane.b32.xlu0 %v4727, 56
  %v6208 = vpop.permute.xlu0 %6207
  %6209 = vrot.lane.b32.xlu0 %v4729, 56
  %v6210 = vpop.permute.xlu0 %6209
  %6211 = vrot.lane.b32.xlu0 %v4732, 56
  %v6212 = vpop.permute.xlu0 %6211
  %6213 = vrot.lane.b32.xlu0 %v4734, 56
  %v6214 = vpop.permute.xlu0 %6213
  %6215 = vrot.lane.b32.xlu0 %v4737, 56
  %v6216 = vpop.permute.xlu0 %6215
  %6217 = vrot.lane.b32.xlu0 %v4739, 56
  %v6218 = vpop.permute.xlu0 %6217
  %6219 = vrot.lane.b32.xlu0 %v4742, 56
  %v6220 = vpop.permute.xlu0 %6219
  %6221 = vrot.lane.b32.xlu0 %v4744, 56
  %v6222 = vpop.permute.xlu0 %6221
  %6223 = vrot.lane.b32.xlu0 %v4747, 56
  %v6224 = vpop.permute.xlu0 %6223
  %6225 = vrot.lane.b32.xlu0 %v4749, 56
  %v6226 = vpop.permute.xlu0 %6225
  %6227 = vrot.lane.b32.xlu0 %v4752, 56
  %v6228 = vpop.permute.xlu0 %6227
  %6229 = vrot.lane.b32.xlu0 %v4754, 56
  %v6230 = vpop.permute.xlu0 %6229
  %6231 = vrot.lane.b32.xlu0 %v4757, 56
  %v6232 = vpop.permute.xlu0 %6231
  %6233 = vrot.lane.b32.xlu0 %v4759, 56
  %v6234 = vpop.permute.xlu0 %6233
  %6235 = vrot.lane.b32.xlu0 %v4762, 56
  %v6236 = vpop.permute.xlu0 %6235
  %6237 = vrot.lane.b32.xlu0 %v4764, 56
  %v6238 = vpop.permute.xlu0 %6237
  %6239 = vrot.lane.b32.xlu0 %v5514, 56
  %v6240 = vpop.permute.xlu0 %6239
  %6241 = vrot.lane.b32.xlu0 %v5516, 56
  %v6242 = vpop.permute.xlu0 %6241
  %6243 = vrot.lane.b32.xlu0 %v6116, 56
  %v6244 = vpop.permute.xlu0 %6243
  %6245 = vrot.lane.b32.xlu0 %v6118, 56
  %v6246 = vpop.permute.xlu0 %6245
  %v6311 = vrot.slane %v4452, 2
  %v6312 = vrot.slane %v4453, 2
  %v6313 = vsel %vm819, %v6311, %v6312
  %v6314 = vrot.slane %v4454, 2
  %v6315 = vsel %vm819, %v6312, %v6314
  %v6316 = vrot.slane %v4506, 2
  %v6317 = vrot.slane %v4507, 2
  %v6318 = vsel %vm819, %v6316, %v6317
  %v6319 = vrot.slane %v4508, 2
  %v6320 = vsel %vm819, %v6317, %v6319
  %6321 = vrot.lane.b32.xlu0 %v4969, 64
  %v6322 = vpop.permute.xlu0 %6321
  %6323 = vrot.lane.b32.xlu0 %v4971, 64
  %v6324 = vpop.permute.xlu0 %6323
  %6325 = vrot.lane.b32.xlu0 %v4974, 64
  %v6326 = vpop.permute.xlu0 %6325
  %6327 = vrot.lane.b32.xlu0 %v4976, 64
  %v6328 = vpop.permute.xlu0 %6327
  %6329 = vrot.lane.b32.xlu0 %v4979, 64
  %v6330 = vpop.permute.xlu0 %6329
  %6331 = vrot.lane.b32.xlu0 %v4981, 64
  %v6332 = vpop.permute.xlu0 %6331
  %6333 = vrot.lane.b32.xlu0 %v4984, 64
  %v6334 = vpop.permute.xlu0 %6333
  %6335 = vrot.lane.b32.xlu0 %v4986, 64
  %v6336 = vpop.permute.xlu0 %6335
  %6337 = vrot.lane.b32.xlu0 %v4989, 64
  %v6338 = vpop.permute.xlu0 %6337
  %6339 = vrot.lane.b32.xlu0 %v4991, 64
  %v6340 = vpop.permute.xlu0 %6339
  %6341 = vrot.lane.b32.xlu0 %v4994, 64
  %v6342 = vpop.permute.xlu0 %6341
  %6343 = vrot.lane.b32.xlu0 %v4996, 64
  %v6344 = vpop.permute.xlu0 %6343
  %6345 = vrot.lane.b32.xlu0 %v4999, 64
  %v6346 = vpop.permute.xlu0 %6345
  %6347 = vrot.lane.b32.xlu0 %v5001, 64
  %v6348 = vpop.permute.xlu0 %6347
  %6349 = vrot.lane.b32.xlu0 %v5004, 64
  %v6350 = vpop.permute.xlu0 %6349
  %6351 = vrot.lane.b32.xlu0 %v5006, 64
  %v6352 = vpop.permute.xlu0 %6351
  %6353 = vrot.lane.b32.xlu0 %v5009, 64
  %v6354 = vpop.permute.xlu0 %6353
  %6355 = vrot.lane.b32.xlu0 %v5011, 64
  %v6356 = vpop.permute.xlu0 %6355
  %6357 = vrot.lane.b32.xlu0 %v5014, 64
  %v6358 = vpop.permute.xlu0 %6357
  %6359 = vrot.lane.b32.xlu0 %v5016, 64
  %v6360 = vpop.permute.xlu0 %6359
  %6361 = vrot.lane.b32.xlu0 %v5019, 64
  %v6362 = vpop.permute.xlu0 %6361
  %6363 = vrot.lane.b32.xlu0 %v5021, 64
  %v6364 = vpop.permute.xlu0 %6363
  %6365 = vrot.lane.b32.xlu0 %v5024, 64
  %v6366 = vpop.permute.xlu0 %6365
  %6367 = vrot.lane.b32.xlu0 %v5026, 64
  %v6368 = vpop.permute.xlu0 %6367
  %6369 = vrot.lane.b32.xlu0 %v5029, 64
  %v6370 = vpop.permute.xlu0 %6369
  %6371 = vrot.lane.b32.xlu0 %v5031, 64
  %v6372 = vpop.permute.xlu0 %6371
  %6373 = vrot.lane.b32.xlu0 %v5034, 64
  %v6374 = vpop.permute.xlu0 %6373
  %6375 = vrot.lane.b32.xlu0 %v5036, 64
  %v6376 = vpop.permute.xlu0 %6375
  %6377 = vrot.lane.b32.xlu0 %v5711, 64
  %v6378 = vpop.permute.xlu0 %6377
  %6379 = vrot.lane.b32.xlu0 %v5713, 64
  %v6380 = vpop.permute.xlu0 %6379
  %6381 = vrot.lane.b32.xlu0 %v6313, 64
  %v6382 = vpop.permute.xlu0 %6381
  %6383 = vrot.lane.b32.xlu0 %v6315, 64
  %v6384 = vpop.permute.xlu0 %6383
  %6385 = vrot.lane.b32.xlu0 %v5049, 64
  %v6386 = vpop.permute.xlu0 %6385
  %6387 = vrot.lane.b32.xlu0 %v5051, 64
  %v6388 = vpop.permute.xlu0 %6387
  %6389 = vrot.lane.b32.xlu0 %v5054, 64
  %v6390 = vpop.permute.xlu0 %6389
  %6391 = vrot.lane.b32.xlu0 %v5056, 64
  %v6392 = vpop.permute.xlu0 %6391
  %6393 = vrot.lane.b32.xlu0 %v5059, 64
  %v6394 = vpop.permute.xlu0 %6393
  %6395 = vrot.lane.b32.xlu0 %v5061, 64
  %v6396 = vpop.permute.xlu0 %6395
  %6397 = vrot.lane.b32.xlu0 %v5064, 64
  %v6398 = vpop.permute.xlu0 %6397
  %6399 = vrot.lane.b32.xlu0 %v5066, 64
  %v6400 = vpop.permute.xlu0 %6399
  %6401 = vrot.lane.b32.xlu0 %v5069, 64
  %v6402 = vpop.permute.xlu0 %6401
  %6403 = vrot.lane.b32.xlu0 %v5071, 64
  %v6404 = vpop.permute.xlu0 %6403
  %6405 = vrot.lane.b32.xlu0 %v5074, 64
  %v6406 = vpop.permute.xlu0 %6405
  %6407 = vrot.lane.b32.xlu0 %v5076, 64
  %v6408 = vpop.permute.xlu0 %6407
  %6409 = vrot.lane.b32.xlu0 %v5079, 64
  %v6410 = vpop.permute.xlu0 %6409
  %6411 = vrot.lane.b32.xlu0 %v5081, 64
  %v6412 = vpop.permute.xlu0 %6411
  %6413 = vrot.lane.b32.xlu0 %v5084, 64
  %v6414 = vpop.permute.xlu0 %6413
  %6415 = vrot.lane.b32.xlu0 %v5086, 64
  %v6416 = vpop.permute.xlu0 %6415
  %6417 = vrot.lane.b32.xlu0 %v5089, 64
  %v6418 = vpop.permute.xlu0 %6417
  %6419 = vrot.lane.b32.xlu0 %v5091, 64
  %v6420 = vpop.permute.xlu0 %6419
  %6421 = vrot.lane.b32.xlu0 %v5094, 64
  %v6422 = vpop.permute.xlu0 %6421
  %6423 = vrot.lane.b32.xlu0 %v5096, 64
  %v6424 = vpop.permute.xlu0 %6423
  %6425 = vrot.lane.b32.xlu0 %v5099, 64
  %v6426 = vpop.permute.xlu0 %6425
  %6427 = vrot.lane.b32.xlu0 %v5101, 64
  %v6428 = vpop.permute.xlu0 %6427
  %6429 = vrot.lane.b32.xlu0 %v5104, 64
  %v6430 = vpop.permute.xlu0 %6429
  %6431 = vrot.lane.b32.xlu0 %v5106, 64
  %v6432 = vpop.permute.xlu0 %6431
  %6433 = vrot.lane.b32.xlu0 %v5109, 64
  %v6434 = vpop.permute.xlu0 %6433
  %6435 = vrot.lane.b32.xlu0 %v5111, 64
  %v6436 = vpop.permute.xlu0 %6435
  %6437 = vrot.lane.b32.xlu0 %v5114, 64
  %v6438 = vpop.permute.xlu0 %6437
  %6439 = vrot.lane.b32.xlu0 %v5116, 64
  %v6440 = vpop.permute.xlu0 %6439
  %6441 = vrot.lane.b32.xlu0 %v5716, 64
  %v6442 = vpop.permute.xlu0 %6441
  %6443 = vrot.lane.b32.xlu0 %v5718, 64
  %v6444 = vpop.permute.xlu0 %6443
  %6445 = vrot.lane.b32.xlu0 %v6318, 64
  %v6446 = vpop.permute.xlu0 %6445
  %6447 = vrot.lane.b32.xlu0 %v6320, 64
  %v6448 = vpop.permute.xlu0 %6447
  %v6513 = vsel %vm2440, %v4401, %v4766
  %v6514 = vsel %vm2440, %v4402, %v4768
  %v6515 = vsel %vm2440, %v4404, %v4770
  %v6516 = vsel %vm2440, %v4405, %v4772
  %v6517 = vsel %vm2440, %v4407, %v4774
  %v6518 = vsel %vm2440, %v4408, %v4776
  %v6519 = vsel %vm2440, %v4410, %v4778
  %v6520 = vsel %vm2440, %v4411, %v4780
  %v6521 = vsel %vm2440, %v4413, %v4782
  %v6522 = vsel %vm2440, %v4414, %v4784
  %v6523 = vsel %vm2440, %v4416, %v4786
  %v6524 = vsel %vm2440, %v4417, %v4788
  %v6525 = vsel %vm2440, %v4419, %v4790
  %v6526 = vsel %vm2440, %v4420, %v4792
  %v6527 = vsel %vm2440, %v4422, %v4794
  %v6528 = vsel %vm2440, %v4423, %v4796
  %v6529 = vsel %vm2440, %v4425, %v4798
  %v6530 = vsel %vm2440, %v4426, %v4800
  %v6531 = vsel %vm2440, %v4428, %v4802
  %v6532 = vsel %vm2440, %v4429, %v4804
  %v6533 = vsel %vm2440, %v4431, %v4806
  %v6534 = vsel %vm2440, %v4432, %v4808
  %v6535 = vsel %vm2440, %v4434, %v4810
  %v6536 = vsel %vm2440, %v4435, %v4812
  %v6537 = vsel %vm2440, %v4437, %v4814
  %v6538 = vsel %vm2440, %v4438, %v4816
  %v6539 = vsel %vm2440, %v4440, %v4818
  %v6540 = vsel %vm2440, %v4441, %v4820
  %v6541 = vsel %vm2440, %v4443, %v4822
  %v6542 = vsel %vm2440, %v4444, %v4824
  %v6543 = vsel %vm2440, %v4446, %v4826
  %v6544 = vsel %vm2440, %v4447, %v4828
  %v6545 = vsel %vm2440, %v4455, %v4830
  %v6546 = vsel %vm2440, %v4456, %v4832
  %v6547 = vsel %vm2440, %v4458, %v4834
  %v6548 = vsel %vm2440, %v4459, %v4836
  %v6549 = vsel %vm2440, %v4461, %v4838
  %v6550 = vsel %vm2440, %v4462, %v4840
  %v6551 = vsel %vm2440, %v4464, %v4842
  %v6552 = vsel %vm2440, %v4465, %v4844
  %v6553 = vsel %vm2440, %v4467, %v4846
  %v6554 = vsel %vm2440, %v4468, %v4848
  %v6555 = vsel %vm2440, %v4470, %v4850
  %v6556 = vsel %vm2440, %v4471, %v4852
  %v6557 = vsel %vm2440, %v4473, %v4854
  %v6558 = vsel %vm2440, %v4474, %v4856
  %v6559 = vsel %vm2440, %v4476, %v4858
  %v6560 = vsel %vm2440, %v4477, %v4860
  %v6561 = vsel %vm2440, %v4479, %v4862
  %v6562 = vsel %vm2440, %v4480, %v4864
  %v6563 = vsel %vm2440, %v4482, %v4866
  %v6564 = vsel %vm2440, %v4483, %v4868
  %v6565 = vsel %vm2440, %v4485, %v4870
  %v6566 = vsel %vm2440, %v4486, %v4872
  %v6567 = vsel %vm2440, %v4488, %v4874
  %v6568 = vsel %vm2440, %v4489, %v4876
  %v6569 = vsel %vm2440, %v4491, %v4878
  %v6570 = vsel %vm2440, %v4492, %v4880
  %v6571 = vsel %vm2440, %v4494, %v4882
  %v6572 = vsel %vm2440, %v4495, %v4884
  %v6573 = vsel %vm2440, %v4497, %v4886
  %v6574 = vsel %vm2440, %v4498, %v4888
  %v6575 = vsel %vm2440, %v4500, %v4890
  %v6576 = vsel %vm2440, %v4501, %v4892
  %v6577 = vsel %vm2570, %v6513, %v5118
  %v6578 = vsel %vm2570, %v6514, %v5120
  %v6579 = vsel %vm2570, %v6515, %v5122
  %v6580 = vsel %vm2570, %v6516, %v5124
  %v6581 = vsel %vm2570, %v6517, %v5126
  %v6582 = vsel %vm2570, %v6518, %v5128
  %v6583 = vsel %vm2570, %v6519, %v5130
  %v6584 = vsel %vm2570, %v6520, %v5132
  %v6585 = vsel %vm2570, %v6521, %v5134
  %v6586 = vsel %vm2570, %v6522, %v5136
  %v6587 = vsel %vm2570, %v6523, %v5138
  %v6588 = vsel %vm2570, %v6524, %v5140
  %v6589 = vsel %vm2570, %v6525, %v5142
  %v6590 = vsel %vm2570, %v6526, %v5144
  %v6591 = vsel %vm2570, %v6527, %v5146
  %v6592 = vsel %vm2570, %v6528, %v5148
  %v6593 = vsel %vm2570, %v6529, %v5150
  %v6594 = vsel %vm2570, %v6530, %v5152
  %v6595 = vsel %vm2570, %v6531, %v5154
  %v6596 = vsel %vm2570, %v6532, %v5156
  %v6597 = vsel %vm2570, %v6533, %v5158
  %v6598 = vsel %vm2570, %v6534, %v5160
  %v6599 = vsel %vm2570, %v6535, %v5162
  %v6600 = vsel %vm2570, %v6536, %v5164
  %v6601 = vsel %vm2570, %v6537, %v5166
  %v6602 = vsel %vm2570, %v6538, %v5168
  %v6603 = vsel %vm2570, %v6539, %v5170
  %v6604 = vsel %vm2570, %v6540, %v5172
  %v6605 = vsel %vm2570, %v6541, %v5174
  %v6606 = vsel %vm2570, %v6542, %v5176
  %v6607 = vsel %vm2570, %v6543, %v5178
  %v6608 = vsel %vm2570, %v6544, %v5180
  %v6609 = vsel %vm2570, %v6545, %v5182
  %v6610 = vsel %vm2570, %v6546, %v5184
  %v6611 = vsel %vm2570, %v6547, %v5186
  %v6612 = vsel %vm2570, %v6548, %v5188
  %v6613 = vsel %vm2570, %v6549, %v5190
  %v6614 = vsel %vm2570, %v6550, %v5192
  %v6615 = vsel %vm2570, %v6551, %v5194
  %v6616 = vsel %vm2570, %v6552, %v5196
  %v6617 = vsel %vm2570, %v6553, %v5198
  %v6618 = vsel %vm2570, %v6554, %v5200
  %v6619 = vsel %vm2570, %v6555, %v5202
  %v6620 = vsel %vm2570, %v6556, %v5204
  %v6621 = vsel %vm2570, %v6557, %v5206
  %v6622 = vsel %vm2570, %v6558, %v5208
  %v6623 = vsel %vm2570, %v6559, %v5210
  %v6624 = vsel %vm2570, %v6560, %v5212
  %v6625 = vsel %vm2570, %v6561, %v5214
  %v6626 = vsel %vm2570, %v6562, %v5216
  %v6627 = vsel %vm2570, %v6563, %v5218
  %v6628 = vsel %vm2570, %v6564, %v5220
  %v6629 = vsel %vm2570, %v6565, %v5222
  %v6630 = vsel %vm2570, %v6566, %v5224
  %v6631 = vsel %vm2570, %v6567, %v5226
  %v6632 = vsel %vm2570, %v6568, %v5228
  %v6633 = vsel %vm2570, %v6569, %v5230
  %v6634 = vsel %vm2570, %v6570, %v5232
  %v6635 = vsel %vm2570, %v6571, %v5234
  %v6636 = vsel %vm2570, %v6572, %v5236
  %v6637 = vsel %vm2570, %v6573, %v5238
  %v6638 = vsel %vm2570, %v6574, %v5240
  %v6639 = vsel %vm2570, %v6575, %v5242
  %v6640 = vsel %vm2570, %v6576, %v5244
  %v6641 = vsel %vm2700, %v6577, %v5314
  %v6642 = vsel %vm2700, %v6578, %v5316
  %v6643 = vsel %vm2700, %v6579, %v5318
  %v6644 = vsel %vm2700, %v6580, %v5320
  %v6645 = vsel %vm2700, %v6581, %v5322
  %v6646 = vsel %vm2700, %v6582, %v5324
  %v6647 = vsel %vm2700, %v6583, %v5326
  %v6648 = vsel %vm2700, %v6584, %v5328
  %v6649 = vsel %vm2700, %v6585, %v5330
  %v6650 = vsel %vm2700, %v6586, %v5332
  %v6651 = vsel %vm2700, %v6587, %v5334
  %v6652 = vsel %vm2700, %v6588, %v5336
  %v6653 = vsel %vm2700, %v6589, %v5338
  %v6654 = vsel %vm2700, %v6590, %v5340
  %v6655 = vsel %vm2700, %v6591, %v5342
  %v6656 = vsel %vm2700, %v6592, %v5344
  %v6657 = vsel %vm2700, %v6593, %v5346
  %v6658 = vsel %vm2700, %v6594, %v5348
  %v6659 = vsel %vm2700, %v6595, %v5350
  %v6660 = vsel %vm2700, %v6596, %v5352
  %v6661 = vsel %vm2700, %v6597, %v5354
  %v6662 = vsel %vm2700, %v6598, %v5356
  %v6663 = vsel %vm2700, %v6599, %v5358
  %v6664 = vsel %vm2700, %v6600, %v5360
  %v6665 = vsel %vm2700, %v6601, %v5362
  %v6666 = vsel %vm2700, %v6602, %v5364
  %v6667 = vsel %vm2700, %v6603, %v5366
  %v6668 = vsel %vm2700, %v6604, %v5368
  %v6669 = vsel %vm2700, %v6605, %v5370
  %v6670 = vsel %vm2700, %v6606, %v5372
  %v6671 = vsel %vm2700, %v6607, %v5374
  %v6672 = vsel %vm2700, %v6608, %v5376
  %v6673 = vsel %vm2700, %v6609, %v5378
  %v6674 = vsel %vm2700, %v6610, %v5380
  %v6675 = vsel %vm2700, %v6611, %v5382
  %v6676 = vsel %vm2700, %v6612, %v5384
  %v6677 = vsel %vm2700, %v6613, %v5386
  %v6678 = vsel %vm2700, %v6614, %v5388
  %v6679 = vsel %vm2700, %v6615, %v5390
  %v6680 = vsel %vm2700, %v6616, %v5392
  %v6681 = vsel %vm2700, %v6617, %v5394
  %v6682 = vsel %vm2700, %v6618, %v5396
  %v6683 = vsel %vm2700, %v6619, %v5398
  %v6684 = vsel %vm2700, %v6620, %v5400
  %v6685 = vsel %vm2700, %v6621, %v5402
  %v6686 = vsel %vm2700, %v6622, %v5404
  %v6687 = vsel %vm2700, %v6623, %v5406
  %v6688 = vsel %vm2700, %v6624, %v5408
  %v6689 = vsel %vm2700, %v6625, %v5410
  %v6690 = vsel %vm2700, %v6626, %v5412
  %v6691 = vsel %vm2700, %v6627, %v5414
  %v6692 = vsel %vm2700, %v6628, %v5416
  %v6693 = vsel %vm2700, %v6629, %v5418
  %v6694 = vsel %vm2700, %v6630, %v5420
  %v6695 = vsel %vm2700, %v6631, %v5422
  %v6696 = vsel %vm2700, %v6632, %v5424
  %v6697 = vsel %vm2700, %v6633, %v5426
  %v6698 = vsel %vm2700, %v6634, %v5428
  %v6699 = vsel %vm2700, %v6635, %v5430
  %v6700 = vsel %vm2700, %v6636, %v5432
  %v6701 = vsel %vm2700, %v6637, %v5434
  %v6702 = vsel %vm2700, %v6638, %v5436
  %v6703 = vsel %vm2700, %v6639, %v5438
  %v6704 = vsel %vm2700, %v6640, %v5440
  %v6705 = vsel %vm2830, %v6641, %v5518
  %v6706 = vsel %vm2830, %v6642, %v5520
  %v6707 = vsel %vm2830, %v6643, %v5522
  %v6708 = vsel %vm2830, %v6644, %v5524
  %v6709 = vsel %vm2830, %v6645, %v5526
  %v6710 = vsel %vm2830, %v6646, %v5528
  %v6711 = vsel %vm2830, %v6647, %v5530
  %v6712 = vsel %vm2830, %v6648, %v5532
  %v6713 = vsel %vm2830, %v6649, %v5534
  %v6714 = vsel %vm2830, %v6650, %v5536
  %v6715 = vsel %vm2830, %v6651, %v5538
  %v6716 = vsel %vm2830, %v6652, %v5540
  %v6717 = vsel %vm2830, %v6653, %v5542
  %v6718 = vsel %vm2830, %v6654, %v5544
  %v6719 = vsel %vm2830, %v6655, %v5546
  %v6720 = vsel %vm2830, %v6656, %v5548
  %v6721 = vsel %vm2830, %v6657, %v5550
  %v6722 = vsel %vm2830, %v6658, %v5552
  %v6723 = vsel %vm2830, %v6659, %v5554
  %v6724 = vsel %vm2830, %v6660, %v5556
  %v6725 = vsel %vm2830, %v6661, %v5558
  %v6726 = vsel %vm2830, %v6662, %v5560
  %v6727 = vsel %vm2830, %v6663, %v5562
  %v6728 = vsel %vm2830, %v6664, %v5564
  %v6729 = vsel %vm2830, %v6665, %v5566
  %v6730 = vsel %vm2830, %v6666, %v5568
  %v6731 = vsel %vm2830, %v6667, %v5570
  %v6732 = vsel %vm2830, %v6668, %v5572
  %v6733 = vsel %vm2830, %v6669, %v5574
  %v6734 = vsel %vm2830, %v6670, %v5576
  %v6735 = vsel %vm2830, %v6671, %v5578
  %v6736 = vsel %vm2830, %v6672, %v5580
  %v6737 = vsel %vm2830, %v6673, %v5582
  %v6738 = vsel %vm2830, %v6674, %v5584
  %v6739 = vsel %vm2830, %v6675, %v5586
  %v6740 = vsel %vm2830, %v6676, %v5588
  %v6741 = vsel %vm2830, %v6677, %v5590
  %v6742 = vsel %vm2830, %v6678, %v5592
  %v6743 = vsel %vm2830, %v6679, %v5594
  %v6744 = vsel %vm2830, %v6680, %v5596
  %v6745 = vsel %vm2830, %v6681, %v5598
  %v6746 = vsel %vm2830, %v6682, %v5600
  %v6747 = vsel %vm2830, %v6683, %v5602
  %v6748 = vsel %vm2830, %v6684, %v5604
  %v6749 = vsel %vm2830, %v6685, %v5606
  %v6750 = vsel %vm2830, %v6686, %v5608
  %v6751 = vsel %vm2830, %v6687, %v5610
  %v6752 = vsel %vm2830, %v6688, %v5612
  %v6753 = vsel %vm2830, %v6689, %v5614
  %v6754 = vsel %vm2830, %v6690, %v5616
  %v6755 = vsel %vm2830, %v6691, %v5618
  %v6756 = vsel %vm2830, %v6692, %v5620
  %v6757 = vsel %vm2830, %v6693, %v5622
  %v6758 = vsel %vm2830, %v6694, %v5624
  %v6759 = vsel %vm2830, %v6695, %v5626
  %v6760 = vsel %vm2830, %v6696, %v5628
  %v6761 = vsel %vm2830, %v6697, %v5630
  %v6762 = vsel %vm2830, %v6698, %v5632
  %v6763 = vsel %vm2830, %v6699, %v5634
  %v6764 = vsel %vm2830, %v6700, %v5636
  %v6765 = vsel %vm2830, %v6701, %v5638
  %v6766 = vsel %vm2830, %v6702, %v5640
  %v6767 = vsel %vm2830, %v6703, %v5642
  %v6768 = vsel %vm2830, %v6704, %v5644
  %vm6769 = vcmask 326656
  %v6770 = vsel %vm6769, %v6705, %v5720
  %v6771 = vsel %vm6769, %v6706, %v5722
  %v6772 = vsel %vm6769, %v6707, %v5724
  %v6773 = vsel %vm6769, %v6708, %v5726
  %v6774 = vsel %vm6769, %v6709, %v5728
  %v6775 = vsel %vm6769, %v6710, %v5730
  %v6776 = vsel %vm6769, %v6711, %v5732
  %v6777 = vsel %vm6769, %v6712, %v5734
  %v6778 = vsel %vm6769, %v6713, %v5736
  %v6779 = vsel %vm6769, %v6714, %v5738
  %v6780 = vsel %vm6769, %v6715, %v5740
  %v6781 = vsel %vm6769, %v6716, %v5742
  %v6782 = vsel %vm6769, %v6717, %v5744
  %v6783 = vsel %vm6769, %v6718, %v5746
  %v6784 = vsel %vm6769, %v6719, %v5748
  %v6785 = vsel %vm6769, %v6720, %v5750
  %v6786 = vsel %vm6769, %v6721, %v5752
  %v6787 = vsel %vm6769, %v6722, %v5754
  %v6788 = vsel %vm6769, %v6723, %v5756
  %v6789 = vsel %vm6769, %v6724, %v5758
  %v6790 = vsel %vm6769, %v6725, %v5760
  %v6791 = vsel %vm6769, %v6726, %v5762
  %v6792 = vsel %vm6769, %v6727, %v5764
  %v6793 = vsel %vm6769, %v6728, %v5766
  %v6794 = vsel %vm6769, %v6729, %v5768
  %v6795 = vsel %vm6769, %v6730, %v5770
  %v6796 = vsel %vm6769, %v6731, %v5772
  %v6797 = vsel %vm6769, %v6732, %v5774
  %v6798 = vsel %vm6769, %v6733, %v5776
  %v6799 = vsel %vm6769, %v6734, %v5778
  %v6800 = vsel %vm6769, %v6735, %v5780
  %v6801 = vsel %vm6769, %v6736, %v5782
  %v6802 = vsel %vm6769, %v6737, %v5784
  %v6803 = vsel %vm6769, %v6738, %v5786
  %v6804 = vsel %vm6769, %v6739, %v5788
  %v6805 = vsel %vm6769, %v6740, %v5790
  %v6806 = vsel %vm6769, %v6741, %v5792
  %v6807 = vsel %vm6769, %v6742, %v5794
  %v6808 = vsel %vm6769, %v6743, %v5796
  %v6809 = vsel %vm6769, %v6744, %v5798
  %v6810 = vsel %vm6769, %v6745, %v5800
  %v6811 = vsel %vm6769, %v6746, %v5802
  %v6812 = vsel %vm6769, %v6747, %v5804
  %v6813 = vsel %vm6769, %v6748, %v5806
  %v6814 = vsel %vm6769, %v6749, %v5808
  %v6815 = vsel %vm6769, %v6750, %v5810
  %v6816 = vsel %vm6769, %v6751, %v5812
  %v6817 = vsel %vm6769, %v6752, %v5814
  %v6818 = vsel %vm6769, %v6753, %v5816
  %v6819 = vsel %vm6769, %v6754, %v5818
  %v6820 = vsel %vm6769, %v6755, %v5820
  %v6821 = vsel %vm6769, %v6756, %v5822
  %v6822 = vsel %vm6769, %v6757, %v5824
  %v6823 = vsel %vm6769, %v6758, %v5826
  %v6824 = vsel %vm6769, %v6759, %v5828
  %v6825 = vsel %vm6769, %v6760, %v5830
  %v6826 = vsel %vm6769, %v6761, %v5832
  %v6827 = vsel %vm6769, %v6762, %v5834
  %v6828 = vsel %vm6769, %v6763, %v5836
  %v6829 = vsel %vm6769, %v6764, %v5838
  %v6830 = vsel %vm6769, %v6765, %v5840
  %v6831 = vsel %vm6769, %v6766, %v5842
  %v6832 = vsel %vm6769, %v6767, %v5844
  %v6833 = vsel %vm6769, %v6768, %v5846
  %vm6834 = vcmask 392192
  %v6835 = vsel %vm6834, %v6770, %v5916
  %v6836 = vsel %vm6834, %v6771, %v5918
  %v6837 = vsel %vm6834, %v6772, %v5920
  %v6838 = vsel %vm6834, %v6773, %v5922
  %v6839 = vsel %vm6834, %v6774, %v5924
  %v6840 = vsel %vm6834, %v6775, %v5926
  %v6841 = vsel %vm6834, %v6776, %v5928
  %v6842 = vsel %vm6834, %v6777, %v5930
  %v6843 = vsel %vm6834, %v6778, %v5932
  %v6844 = vsel %vm6834, %v6779, %v5934
  %v6845 = vsel %vm6834, %v6780, %v5936
  %v6846 = vsel %vm6834, %v6781, %v5938
  %v6847 = vsel %vm6834, %v6782, %v5940
  %v6848 = vsel %vm6834, %v6783, %v5942
  %v6849 = vsel %vm6834, %v6784, %v5944
  %v6850 = vsel %vm6834, %v6785, %v5946
  %v6851 = vsel %vm6834, %v6786, %v5948
  %v6852 = vsel %vm6834, %v6787, %v5950
  %v6853 = vsel %vm6834, %v6788, %v5952
  %v6854 = vsel %vm6834, %v6789, %v5954
  %v6855 = vsel %vm6834, %v6790, %v5956
  %v6856 = vsel %vm6834, %v6791, %v5958
  %v6857 = vsel %vm6834, %v6792, %v5960
  %v6858 = vsel %vm6834, %v6793, %v5962
  %v6859 = vsel %vm6834, %v6794, %v5964
  %v6860 = vsel %vm6834, %v6795, %v5966
  %v6861 = vsel %vm6834, %v6796, %v5968
  %v6862 = vsel %vm6834, %v6797, %v5970
  %v6863 = vsel %vm6834, %v6798, %v5972
  %v6864 = vsel %vm6834, %v6799, %v5974
  %v6865 = vsel %vm6834, %v6800, %v5976
  %v6866 = vsel %vm6834, %v6801, %v5978
  %v6867 = vsel %vm6834, %v6802, %v5980
  %v6868 = vsel %vm6834, %v6803, %v5982
  %v6869 = vsel %vm6834, %v6804, %v5984
  %v6870 = vsel %vm6834, %v6805, %v5986
  %v6871 = vsel %vm6834, %v6806, %v5988
  %v6872 = vsel %vm6834, %v6807, %v5990
  %v6873 = vsel %vm6834, %v6808, %v5992
  %v6874 = vsel %vm6834, %v6809, %v5994
  %v6875 = vsel %vm6834, %v6810, %v5996
  %v6876 = vsel %vm6834, %v6811, %v5998
  %v6877 = vsel %vm6834, %v6812, %v6000
  %v6878 = vsel %vm6834, %v6813, %v6002
  %v6879 = vsel %vm6834, %v6814, %v6004
  %v6880 = vsel %vm6834, %v6815, %v6006
  %v6881 = vsel %vm6834, %v6816, %v6008
  %v6882 = vsel %vm6834, %v6817, %v6010
  %v6883 = vsel %vm6834, %v6818, %v6012
  %v6884 = vsel %vm6834, %v6819, %v6014
  %v6885 = vsel %vm6834, %v6820, %v6016
  %v6886 = vsel %vm6834, %v6821, %v6018
  %v6887 = vsel %vm6834, %v6822, %v6020
  %v6888 = vsel %vm6834, %v6823, %v6022
  %v6889 = vsel %vm6834, %v6824, %v6024
  %v6890 = vsel %vm6834, %v6825, %v6026
  %v6891 = vsel %vm6834, %v6826, %v6028
  %v6892 = vsel %vm6834, %v6827, %v6030
  %v6893 = vsel %vm6834, %v6828, %v6032
  %v6894 = vsel %vm6834, %v6829, %v6034
  %v6895 = vsel %vm6834, %v6830, %v6036
  %v6896 = vsel %vm6834, %v6831, %v6038
  %v6897 = vsel %vm6834, %v6832, %v6040
  %v6898 = vsel %vm6834, %v6833, %v6042
  %vm6899 = vcmask 457728
  %v6900 = vsel %vm6899, %v6835, %v6120
  %v6901 = vsel %vm6899, %v6836, %v6122
  %v6902 = vsel %vm6899, %v6837, %v6124
  %v6903 = vsel %vm6899, %v6838, %v6126
  %v6904 = vsel %vm6899, %v6839, %v6128
  %v6905 = vsel %vm6899, %v6840, %v6130
  %v6906 = vsel %vm6899, %v6841, %v6132
  %v6907 = vsel %vm6899, %v6842, %v6134
  %v6908 = vsel %vm6899, %v6843, %v6136
  %v6909 = vsel %vm6899, %v6844, %v6138
  %v6910 = vsel %vm6899, %v6845, %v6140
  %v6911 = vsel %vm6899, %v6846, %v6142
  %v6912 = vsel %vm6899, %v6847, %v6144
  %v6913 = vsel %vm6899, %v6848, %v6146
  %v6914 = vsel %vm6899, %v6849, %v6148
  %v6915 = vsel %vm6899, %v6850, %v6150
  %v6916 = vsel %vm6899, %v6851, %v6152
  %v6917 = vsel %vm6899, %v6852, %v6154
  %v6918 = vsel %vm6899, %v6853, %v6156
  %v6919 = vsel %vm6899, %v6854, %v6158
  %v6920 = vsel %vm6899, %v6855, %v6160
  %v6921 = vsel %vm6899, %v6856, %v6162
  %v6922 = vsel %vm6899, %v6857, %v6164
  %v6923 = vsel %vm6899, %v6858, %v6166
  %v6924 = vsel %vm6899, %v6859, %v6168
  %v6925 = vsel %vm6899, %v6860, %v6170
  %v6926 = vsel %vm6899, %v6861, %v6172
  %v6927 = vsel %vm6899, %v6862, %v6174
  %v6928 = vsel %vm6899, %v6863, %v6176
  %v6929 = vsel %vm6899, %v6864, %v6178
  %v6930 = vsel %vm6899, %v6865, %v6180
  %v6931 = vsel %vm6899, %v6866, %v6182
  %v6932 = vsel %vm6899, %v6867, %v6184
  %v6933 = vsel %vm6899, %v6868, %v6186
  %v6934 = vsel %vm6899, %v6869, %v6188
  %v6935 = vsel %vm6899, %v6870, %v6190
  %v6936 = vsel %vm6899, %v6871, %v6192
  %v6937 = vsel %vm6899, %v6872, %v6194
  %v6938 = vsel %vm6899, %v6873, %v6196
  %v6939 = vsel %vm6899, %v6874, %v6198
  %v6940 = vsel %vm6899, %v6875, %v6200
  %v6941 = vsel %vm6899, %v6876, %v6202
  %v6942 = vsel %vm6899, %v6877, %v6204
  %v6943 = vsel %vm6899, %v6878, %v6206
  %v6944 = vsel %vm6899, %v6879, %v6208
  %v6945 = vsel %vm6899, %v6880, %v6210
  %v6946 = vsel %vm6899, %v6881, %v6212
  %v6947 = vsel %vm6899, %v6882, %v6214
  %v6948 = vsel %vm6899, %v6883, %v6216
  %v6949 = vsel %vm6899, %v6884, %v6218
  %v6950 = vsel %vm6899, %v6885, %v6220
  %v6951 = vsel %vm6899, %v6886, %v6222
  %v6952 = vsel %vm6899, %v6887, %v6224
  %v6953 = vsel %vm6899, %v6888, %v6226
  %v6954 = vsel %vm6899, %v6889, %v6228
  %v6955 = vsel %vm6899, %v6890, %v6230
  %v6956 = vsel %vm6899, %v6891, %v6232
  %v6957 = vsel %vm6899, %v6892, %v6234
  %v6958 = vsel %vm6899, %v6893, %v6236
  %v6959 = vsel %vm6899, %v6894, %v6238
  %v6960 = vsel %vm6899, %v6895, %v6240
  %v6961 = vsel %vm6899, %v6896, %v6242
  %v6962 = vsel %vm6899, %v6897, %v6244
  %v6963 = vsel %vm6899, %v6898, %v6246
  %vm6964 = vcmask 523264
  %v6965 = vsel %vm6964, %v6900, %v6322
  %v6966 = vsel %vm6964, %v6901, %v6324
  %v6967 = vsel %vm6964, %v6902, %v6326
  %v6968 = vsel %vm6964, %v6903, %v6328
  %v6969 = vsel %vm6964, %v6904, %v6330
  %v6970 = vsel %vm6964, %v6905, %v6332
  %v6971 = vsel %vm6964, %v6906, %v6334
  %v6972 = vsel %vm6964, %v6907, %v6336
  %v6973 = vsel %vm6964, %v6908, %v6338
  %v6974 = vsel %vm6964, %v6909, %v6340
  %v6975 = vsel %vm6964, %v6910, %v6342
  %v6976 = vsel %vm6964, %v6911, %v6344
  %v6977 = vsel %vm6964, %v6912, %v6346
  %v6978 = vsel %vm6964, %v6913, %v6348
  %v6979 = vsel %vm6964, %v6914, %v6350
  %v6980 = vsel %vm6964, %v6915, %v6352
  %v6981 = vsel %vm6964, %v6916, %v6354
  %v6982 = vsel %vm6964, %v6917, %v6356
  %v6983 = vsel %vm6964, %v6918, %v6358
  %v6984 = vsel %vm6964, %v6919, %v6360
  %v6985 = vsel %vm6964, %v6920, %v6362
  %v6986 = vsel %vm6964, %v6921, %v6364
  %v6987 = vsel %vm6964, %v6922, %v6366
  %v6988 = vsel %vm6964, %v6923, %v6368
  %v6989 = vsel %vm6964, %v6924, %v6370
  %v6990 = vsel %vm6964, %v6925, %v6372
  %v6991 = vsel %vm6964, %v6926, %v6374
  %v6992 = vsel %vm6964, %v6927, %v6376
  %v6993 = vsel %vm6964, %v6928, %v6378
  %v6994 = vsel %vm6964, %v6929, %v6380
  %v6995 = vsel %vm6964, %v6930, %v6382
  %v6996 = vsel %vm6964, %v6931, %v6384
  %v6997 = vsel %vm6964, %v6932, %v6386
  %v6998 = vsel %vm6964, %v6933, %v6388
  %v6999 = vsel %vm6964, %v6934, %v6390
  %v7000 = vsel %vm6964, %v6935, %v6392
  %v7001 = vsel %vm6964, %v6936, %v6394
  %v7002 = vsel %vm6964, %v6937, %v6396
  %v7003 = vsel %vm6964, %v6938, %v6398
  %v7004 = vsel %vm6964, %v6939, %v6400
  %v7005 = vsel %vm6964, %v6940, %v6402
  %v7006 = vsel %vm6964, %v6941, %v6404
  %v7007 = vsel %vm6964, %v6942, %v6406
  %v7008 = vsel %vm6964, %v6943, %v6408
  %v7009 = vsel %vm6964, %v6944, %v6410
  %v7010 = vsel %vm6964, %v6945, %v6412
  %v7011 = vsel %vm6964, %v6946, %v6414
  %v7012 = vsel %vm6964, %v6947, %v6416
  %v7013 = vsel %vm6964, %v6948, %v6418
  %v7014 = vsel %vm6964, %v6949, %v6420
  %v7015 = vsel %vm6964, %v6950, %v6422
  %v7016 = vsel %vm6964, %v6951, %v6424
  %v7017 = vsel %vm6964, %v6952, %v6426
  %v7018 = vsel %vm6964, %v6953, %v6428
  %v7019 = vsel %vm6964, %v6954, %v6430
  %v7020 = vsel %vm6964, %v6955, %v6432
  %v7021 = vsel %vm6964, %v6956, %v6434
  %v7022 = vsel %vm6964, %v6957, %v6436
  %v7023 = vsel %vm6964, %v6958, %v6438
  %v7024 = vsel %vm6964, %v6959, %v6440
  %v7025 = vsel %vm6964, %v6960, %v6442
  %v7026 = vsel %vm6964, %v6961, %v6444
  %v7027 = vsel %vm6964, %v6962, %v6446
  %v7028 = vsel %vm6964, %v6963, %v6448
  %v7029 = vld [vmem:[%s2] sm:$0xff]
  %v7030 = vld [vmem:[%s2 + $0x8] sm:$0xff]
  %v7031 = vld [vmem:[%s2 + $0x10] sm:$0xff]
  %v7032 = vld [vmem:[%s2 + $0x18] sm:$0xff]
  %v7033 = vld [vmem:[%s2 + $0x20] sm:$0xff]
  %v7034 = vld [vmem:[%s2 + $0x28] sm:$0xff]
  %v7035 = vld [vmem:[%s2 + $0x30] sm:$0xff]
  %v7036 = vld [vmem:[%s2 + $0x38] sm:$0xff]
  %v7037 = vld [vmem:[%s2 + $0x40] sm:$0xff]
  %v7038 = vlaneseq
  %v7039 = vshrl.u32 %v7038, 7
  %v7040 = vsub.s32 0, %v7039
  %v7041 = vrot.slane %v20, %v7040
  %vm7042 = vcmask 588800
  %v7044 = vsel %vm7042, %v6965, 0
  %v7047 = vsel %vm7042, %v6966, 0
  %v7050 = vsel %vm7042, %v6967, 0
  %v7053 = vsel %vm7042, %v6968, 0
  %v7056 = vsel %vm7042, %v6969, 0
  %v7059 = vsel %vm7042, %v6970, 0
  %v7062 = vsel %vm7042, %v6971, 0
  %v7065 = vsel %vm7042, %v6972, 0
  %v7068 = vsel %vm7042, %v6973, 0
  %v7071 = vsel %vm7042, %v6974, 0
  %v7074 = vsel %vm7042, %v6975, 0
  %v7077 = vsel %vm7042, %v6976, 0
  %v7080 = vsel %vm7042, %v6977, 0
  %v7083 = vsel %vm7042, %v6978, 0
  %v7086 = vsel %vm7042, %v6979, 0
  %v7089 = vsel %vm7042, %v6980, 0
  %v7092 = vsel %vm7042, %v6981, 0
  %v7095 = vsel %vm7042, %v6982, 0
  %v7098 = vsel %vm7042, %v6983, 0
  %v7101 = vsel %vm7042, %v6984, 0
  %v7104 = vsel %vm7042, %v6985, 0
  %v7107 = vsel %vm7042, %v6986, 0
  %v7110 = vsel %vm7042, %v6987, 0
  %v7113 = vsel %vm7042, %v6988, 0
  %v7116 = vsel %vm7042, %v6989, 0
  %v7119 = vsel %vm7042, %v6990, 0
  %v7122 = vsel %vm7042, %v6991, 0
  %v7125 = vsel %vm7042, %v6992, 0
  %v7128 = vsel %vm7042, %v6993, 0
  %v7131 = vsel %vm7042, %v6994, 0
  %v7134 = vsel %vm7042, %v6995, 0
  %v7137 = vsel %vm7042, %v6996, 0
  %v7140 = vsel %vm7042, %v6997, 0
  %v7143 = vsel %vm7042, %v6998, 0
  %v7146 = vsel %vm7042, %v6999, 0
  %v7149 = vsel %vm7042, %v7000, 0
  %v7152 = vsel %vm7042, %v7001, 0
  %v7155 = vsel %vm7042, %v7002, 0
  %v7158 = vsel %vm7042, %v7003, 0
  %v7161 = vsel %vm7042, %v7004, 0
  %v7164 = vsel %vm7042, %v7005, 0
  %v7167 = vsel %vm7042, %v7006, 0
  %v7170 = vsel %vm7042, %v7007, 0
  %v7173 = vsel %vm7042, %v7008, 0
  %v7176 = vsel %vm7042, %v7009, 0
  %v7179 = vsel %vm7042, %v7010, 0
  %v7182 = vsel %vm7042, %v7011, 0
  %v7185 = vsel %vm7042, %v7012, 0
  %v7188 = vsel %vm7042, %v7013, 0
  %v7191 = vsel %vm7042, %v7014, 0
  %v7194 = vsel %vm7042, %v7015, 0
  %v7197 = vsel %vm7042, %v7016, 0
  %v7200 = vsel %vm7042, %v7017, 0
  %v7203 = vsel %vm7042, %v7018, 0
  %v7206 = vsel %vm7042, %v7019, 0
  %v7209 = vsel %vm7042, %v7020, 0
  %v7212 = vsel %vm7042, %v7021, 0
  %v7215 = vsel %vm7042, %v7022, 0
  %v7218 = vsel %vm7042, %v7023, 0
  %v7221 = vsel %vm7042, %v7024, 0
  %v7224 = vsel %vm7042, %v7025, 0
  %v7227 = vsel %vm7042, %v7026, 0
  %v7230 = vsel %vm7042, %v7027, 0
  %v7233 = vsel %vm7042, %v7028, 0
  %7235 = vmatprep.subr.mxu0 0.0
  %7236 = vmatpush1.msra.mxu0 0.0
  %7237 = vmatprep.subr.mxu0 0.0
  %7238 = vmatpush1.msra.mxu0 0.0
  %7239 = vmatprep.subr.mxu0 0.0
  %7240 = vmatpush1.msra.mxu0 0.0
  %7241 = vmatprep.subr.mxu0 0.0
  %7242 = vmatpush1.msra.mxu0 0.0
  %7243 = vmatprep.subr.mxu0 0.0
  %7244 = vmatpush1.msra.mxu0 0.0
  %7245 = vmatprep.subr.mxu0 0.0
  %7246 = vmatpush1.msra.mxu0 0.0
  %7247 = vmatprep.subr.mxu0 0.0
  %7248 = vmatpush1.msra.mxu0 0.0
  %7249 = vmatprep.subr.mxu0 0.0
  %7250 = vmatpush1.msra.mxu0 %v7037
  %7251 = vmatprep.subr.mxu0 0.0
  %7252 = vmatpush1.msra.mxu0 %v7036
  %7253 = vmatprep.subr.mxu0 0.0
  %7254 = vmatpush1.msra.mxu0 %v7035
  %7255 = vmatprep.subr.mxu0 0.0
  %7256 = vmatpush1.msra.mxu0 %v7034
  %7257 = vmatprep.subr.mxu0 0.0
  %7258 = vmatpush1.msra.mxu0 %v7033
  %7259 = vmatprep.subr.mxu0 0.0
  %7260 = vmatpush1.msra.mxu0 %v7032
  %7261 = vmatprep.subr.mxu0 0.0
  %7262 = vmatpush1.msra.mxu0 %v7031
  %7263 = vmatprep.subr.mxu0 0.0
  %7264 = vmatpush1.msra.mxu0 %v7030
  %7265 = vmatprep.subr.mxu0 0.0
  %7266 = vmatpush1.msra.mxu0 %v7029
  %7267 = vmatprep.subr.mxu0 0.0
  %7268 = vmatpush2.msra.mxu0 0.0
  %7269 = vmatprep.subr.mxu0 0.0
  %7270 = vmatpush2.msra.mxu0 0.0
  %7271 = vmatprep.subr.mxu0 0.0
  %7272 = vmatpush2.msra.mxu0 0.0
  %7273 = vmatprep.subr.mxu0 0.0
  %7274 = vmatpush2.msra.mxu0 0.0
  %7275 = vmatprep.subr.mxu0 0.0
  %7276 = vmatpush2.msra.mxu0 0.0
  %7277 = vmatprep.subr.mxu0 0.0
  %7278 = vmatpush2.msra.mxu0 0.0
  %7279 = vmatprep.subr.mxu0 0.0
  %7280 = vmatpush2.msra.mxu0 0.0
  %7281 = vmatprep.subr.mxu0 0.0
  %7282 = vmatpush2.msra.mxu0 0.0
  %7283 = vmatprep.subr.mxu0 0.0
  %7284 = vmatpush2.msra.mxu0 0.0
  %7285 = vmatprep.subr.mxu0 0.0
  %7286 = vmatpush2.msra.mxu0 0.0
  %7287 = vmatprep.subr.mxu0 0.0
  %7288 = vmatpush2.msra.mxu0 0.0
  %7289 = vmatprep.subr.mxu0 0.0
  %7290 = vmatpush2.msra.mxu0 0.0
  %7291 = vmatprep.subr.mxu0 0.0
  %7292 = vmatpush2.msra.mxu0 0.0
  %7293 = vmatprep.subr.mxu0 0.0
  %7294 = vmatpush2.msra.mxu0 0.0
  %7295 = vmatprep.subr.mxu0 0.0
  %7296 = vmatpush2.msra.mxu0 0.0
  %7297 = vmatprep.subr.mxu0 0.0
  %7298 = vmatpush2.msra.mxu0 0.0
  %7299 = vmatprep.mubr.f32.mxu0 0.0
  %7300 = vmatmul.mubr.f32.gmra.mxu0 %v7044
  %v7301 = vpop.f32.mrf.mxu0
  %v7302 = vadd.f32 %v7041, %v7301
  %v7303 = vpop.f32.mrf.mxu0
  %7304 = vmatprep.mubr.f32.mxu0 0.0
  %7305 = vmatmul.mubr.f32.gmra.mxu0 %v7047
  %v7306 = vpop.f32.mrf.mxu0
  %v7307 = vadd.f32 %v7041, %v7306
  %v7308 = vpop.f32.mrf.mxu0
  %7309 = vmatprep.mubr.f32.mxu0 0.0
  %7310 = vmatmul.mubr.f32.gmra.mxu0 %v7050
  %v7311 = vpop.f32.mrf.mxu0
  %v7312 = vadd.f32 %v7041, %v7311
  %v7313 = vpop.f32.mrf.mxu0
  %7314 = vmatprep.mubr.f32.mxu0 0.0
  %7315 = vmatmul.mubr.f32.gmra.mxu0 %v7053
  %v7316 = vpop.f32.mrf.mxu0
  %v7317 = vadd.f32 %v7041, %v7316
  %v7318 = vpop.f32.mrf.mxu0
  %7319 = vmatprep.mubr.f32.mxu0 0.0
  %7320 = vmatmul.mubr.f32.gmra.mxu0 %v7056
  %v7321 = vpop.f32.mrf.mxu0
  %v7322 = vadd.f32 %v7041, %v7321
  %v7323 = vpop.f32.mrf.mxu0
  %7324 = vmatprep.mubr.f32.mxu0 0.0
  %7325 = vmatmul.mubr.f32.gmra.mxu0 %v7059
  %v7326 = vpop.f32.mrf.mxu0
  %v7327 = vadd.f32 %v7041, %v7326
  %v7328 = vpop.f32.mrf.mxu0
  %7329 = vmatprep.mubr.f32.mxu0 0.0
  %7330 = vmatmul.mubr.f32.gmra.mxu0 %v7062
  %v7331 = vpop.f32.mrf.mxu0
  %v7332 = vadd.f32 %v7041, %v7331
  %v7333 = vpop.f32.mrf.mxu0
  %7334 = vmatprep.mubr.f32.mxu0 0.0
  %7335 = vmatmul.mubr.f32.gmra.mxu0 %v7065
  %v7336 = vpop.f32.mrf.mxu0
  %v7337 = vadd.f32 %v7041, %v7336
  %v7338 = vpop.f32.mrf.mxu0
  %7339 = vmatprep.mubr.f32.mxu0 0.0
  %7340 = vmatmul.mubr.f32.gmra.mxu0 %v7068
  %v7341 = vpop.f32.mrf.mxu0
  %v7342 = vadd.f32 %v7041, %v7341
  %v7343 = vpop.f32.mrf.mxu0
  %7344 = vmatprep.mubr.f32.mxu0 0.0
  %7345 = vmatmul.mubr.f32.gmra.mxu0 %v7071
  %v7346 = vpop.f32.mrf.mxu0
  %v7347 = vadd.f32 %v7041, %v7346
  %v7348 = vpop.f32.mrf.mxu0
  %7349 = vmatprep.mubr.f32.mxu0 0.0
  %7350 = vmatmul.mubr.f32.gmra.mxu0 %v7074
  %v7351 = vpop.f32.mrf.mxu0
  %v7352 = vadd.f32 %v7041, %v7351
  %v7353 = vpop.f32.mrf.mxu0
  %7354 = vmatprep.mubr.f32.mxu0 0.0
  %7355 = vmatmul.mubr.f32.gmra.mxu0 %v7077
  %v7356 = vpop.f32.mrf.mxu0
  %v7357 = vadd.f32 %v7041, %v7356
  %v7358 = vpop.f32.mrf.mxu0
  %7359 = vmatprep.mubr.f32.mxu0 0.0
  %7360 = vmatmul.mubr.f32.gmra.mxu0 %v7080
  %v7361 = vpop.f32.mrf.mxu0
  %v7362 = vadd.f32 %v7041, %v7361
  %v7363 = vpop.f32.mrf.mxu0
  %7364 = vmatprep.mubr.f32.mxu0 0.0
  %7365 = vmatmul.mubr.f32.gmra.mxu0 %v7083
  %v7366 = vpop.f32.mrf.mxu0
  %v7367 = vadd.f32 %v7041, %v7366
  %v7368 = vpop.f32.mrf.mxu0
  %7369 = vmatprep.mubr.f32.mxu0 0.0
  %7370 = vmatmul.mubr.f32.gmra.mxu0 %v7086
  %v7371 = vpop.f32.mrf.mxu0
  %v7372 = vadd.f32 %v7041, %v7371
  %v7373 = vpop.f32.mrf.mxu0
  %7374 = vmatprep.mubr.f32.mxu0 0.0
  %7375 = vmatmul.mubr.f32.gmra.mxu0 %v7089
  %v7376 = vpop.f32.mrf.mxu0
  %v7377 = vadd.f32 %v7041, %v7376
  %v7378 = vpop.f32.mrf.mxu0
  %7379 = vmatprep.mubr.f32.mxu0 0.0
  %7380 = vmatmul.mubr.f32.gmra.mxu0 %v7092
  %v7381 = vpop.f32.mrf.mxu0
  %v7382 = vadd.f32 %v7041, %v7381
  %v7383 = vpop.f32.mrf.mxu0
  %7384 = vmatprep.mubr.f32.mxu0 0.0
  %7385 = vmatmul.mubr.f32.gmra.mxu0 %v7095
  %v7386 = vpop.f32.mrf.mxu0
  %v7387 = vadd.f32 %v7041, %v7386
  %v7388 = vpop.f32.mrf.mxu0
  %7389 = vmatprep.mubr.f32.mxu0 0.0
  %7390 = vmatmul.mubr.f32.gmra.mxu0 %v7098
  %v7391 = vpop.f32.mrf.mxu0
  %v7392 = vadd.f32 %v7041, %v7391
  %v7393 = vpop.f32.mrf.mxu0
  %7394 = vmatprep.mubr.f32.mxu0 0.0
  %7395 = vmatmul.mubr.f32.gmra.mxu0 %v7101
  %v7396 = vpop.f32.mrf.mxu0
  %v7397 = vadd.f32 %v7041, %v7396
  %v7398 = vpop.f32.mrf.mxu0
  %7399 = vmatprep.mubr.f32.mxu0 0.0
  %7400 = vmatmul.mubr.f32.gmra.mxu0 %v7104
  %v7401 = vpop.f32.mrf.mxu0
  %v7402 = vadd.f32 %v7041, %v7401
  %v7403 = vpop.f32.mrf.mxu0
  %7404 = vmatprep.mubr.f32.mxu0 0.0
  %7405 = vmatmul.mubr.f32.gmra.mxu0 %v7107
  %v7406 = vpop.f32.mrf.mxu0
  %v7407 = vadd.f32 %v7041, %v7406
  %v7408 = vpop.f32.mrf.mxu0
  %7409 = vmatprep.mubr.f32.mxu0 0.0
  %7410 = vmatmul.mubr.f32.gmra.mxu0 %v7110
  %v7411 = vpop.f32.mrf.mxu0
  %v7412 = vadd.f32 %v7041, %v7411
  %v7413 = vpop.f32.mrf.mxu0
  %7414 = vmatprep.mubr.f32.mxu0 0.0
  %7415 = vmatmul.mubr.f32.gmra.mxu0 %v7113
  %v7416 = vpop.f32.mrf.mxu0
  %v7417 = vadd.f32 %v7041, %v7416
  %v7418 = vpop.f32.mrf.mxu0
  %7419 = vmatprep.mubr.f32.mxu0 0.0
  %7420 = vmatmul.mubr.f32.gmra.mxu0 %v7116
  %v7421 = vpop.f32.mrf.mxu0
  %v7422 = vadd.f32 %v7041, %v7421
  %v7423 = vpop.f32.mrf.mxu0
  %7424 = vmatprep.mubr.f32.mxu0 0.0
  %7425 = vmatmul.mubr.f32.gmra.mxu0 %v7119
  %v7426 = vpop.f32.mrf.mxu0
  %v7427 = vadd.f32 %v7041, %v7426
  %v7428 = vpop.f32.mrf.mxu0
  %7429 = vmatprep.mubr.f32.mxu0 0.0
  %7430 = vmatmul.mubr.f32.gmra.mxu0 %v7122
  %v7431 = vpop.f32.mrf.mxu0
  %v7432 = vadd.f32 %v7041, %v7431
  %v7433 = vpop.f32.mrf.mxu0
  %7434 = vmatprep.mubr.f32.mxu0 0.0
  %7435 = vmatmul.mubr.f32.gmra.mxu0 %v7125
  %v7436 = vpop.f32.mrf.mxu0
  %v7437 = vadd.f32 %v7041, %v7436
  %v7438 = vpop.f32.mrf.mxu0
  %7439 = vmatprep.mubr.f32.mxu0 0.0
  %7440 = vmatmul.mubr.f32.gmra.mxu0 %v7128
  %v7441 = vpop.f32.mrf.mxu0
  %v7442 = vadd.f32 %v7041, %v7441
  %v7443 = vpop.f32.mrf.mxu0
  %7444 = vmatprep.mubr.f32.mxu0 0.0
  %7445 = vmatmul.mubr.f32.gmra.mxu0 %v7131
  %v7446 = vpop.f32.mrf.mxu0
  %v7447 = vadd.f32 %v7041, %v7446
  %v7448 = vpop.f32.mrf.mxu0
  %7449 = vmatprep.mubr.f32.mxu0 0.0
  %7450 = vmatmul.mubr.f32.gmra.mxu0 %v7134
  %v7451 = vpop.f32.mrf.mxu0
  %v7452 = vadd.f32 %v7041, %v7451
  %v7453 = vpop.f32.mrf.mxu0
  %7454 = vmatprep.mubr.f32.mxu0 0.0
  %7455 = vmatmul.mubr.f32.gmra.mxu0 %v7137
  %v7456 = vpop.f32.mrf.mxu0
  %v7457 = vadd.f32 %v7041, %v7456
  %v7458 = vpop.f32.mrf.mxu0
  %7459 = vmatprep.mubr.f32.mxu0 0.0
  %7460 = vmatmul.mubr.f32.gmra.mxu0 %v7140
  %v7461 = vpop.f32.mrf.mxu0
  %v7462 = vadd.f32 %v7041, %v7461
  %v7463 = vpop.f32.mrf.mxu0
  %7464 = vmatprep.mubr.f32.mxu0 0.0
  %7465 = vmatmul.mubr.f32.gmra.mxu0 %v7143
  %v7466 = vpop.f32.mrf.mxu0
  %v7467 = vadd.f32 %v7041, %v7466
  %v7468 = vpop.f32.mrf.mxu0
  %7469 = vmatprep.mubr.f32.mxu0 0.0
  %7470 = vmatmul.mubr.f32.gmra.mxu0 %v7146
  %v7471 = vpop.f32.mrf.mxu0
  %v7472 = vadd.f32 %v7041, %v7471
  %v7473 = vpop.f32.mrf.mxu0
  %7474 = vmatprep.mubr.f32.mxu0 0.0
  %7475 = vmatmul.mubr.f32.gmra.mxu0 %v7149
  %v7476 = vpop.f32.mrf.mxu0
  %v7477 = vadd.f32 %v7041, %v7476
  %v7478 = vpop.f32.mrf.mxu0
  %7479 = vmatprep.mubr.f32.mxu0 0.0
  %7480 = vmatmul.mubr.f32.gmra.mxu0 %v7152
  %v7481 = vpop.f32.mrf.mxu0
  %v7482 = vadd.f32 %v7041, %v7481
  %v7483 = vpop.f32.mrf.mxu0
  %7484 = vmatprep.mubr.f32.mxu0 0.0
  %7485 = vmatmul.mubr.f32.gmra.mxu0 %v7155
  %v7486 = vpop.f32.mrf.mxu0
  %v7487 = vadd.f32 %v7041, %v7486
  %v7488 = vpop.f32.mrf.mxu0
  %7489 = vmatprep.mubr.f32.mxu0 0.0
  %7490 = vmatmul.mubr.f32.gmra.mxu0 %v7158
  %v7491 = vpop.f32.mrf.mxu0
  %v7492 = vadd.f32 %v7041, %v7491
  %v7493 = vpop.f32.mrf.mxu0
  %7494 = vmatprep.mubr.f32.mxu0 0.0
  %7495 = vmatmul.mubr.f32.gmra.mxu0 %v7161
  %v7496 = vpop.f32.mrf.mxu0
  %v7497 = vadd.f32 %v7041, %v7496
  %v7498 = vpop.f32.mrf.mxu0
  %7499 = vmatprep.mubr.f32.mxu0 0.0
  %7500 = vmatmul.mubr.f32.gmra.mxu0 %v7164
  %v7501 = vpop.f32.mrf.mxu0
  %v7502 = vadd.f32 %v7041, %v7501
  %v7503 = vpop.f32.mrf.mxu0
  %7504 = vmatprep.mubr.f32.mxu0 0.0
  %7505 = vmatmul.mubr.f32.gmra.mxu0 %v7167
  %v7506 = vpop.f32.mrf.mxu0
  %v7507 = vadd.f32 %v7041, %v7506
  %v7508 = vpop.f32.mrf.mxu0
  %7509 = vmatprep.mubr.f32.mxu0 0.0
  %7510 = vmatmul.mubr.f32.gmra.mxu0 %v7170
  %v7511 = vpop.f32.mrf.mxu0
  %v7512 = vadd.f32 %v7041, %v7511
  %v7513 = vpop.f32.mrf.mxu0
  %7514 = vmatprep.mubr.f32.mxu0 0.0
  %7515 = vmatmul.mubr.f32.gmra.mxu0 %v7173
  %v7516 = vpop.f32.mrf.mxu0
  %v7517 = vadd.f32 %v7041, %v7516
  %v7518 = vpop.f32.mrf.mxu0
  %7519 = vmatprep.mubr.f32.mxu0 0.0
  %7520 = vmatmul.mubr.f32.gmra.mxu0 %v7176
  %v7521 = vpop.f32.mrf.mxu0
  %v7522 = vadd.f32 %v7041, %v7521
  %v7523 = vpop.f32.mrf.mxu0
  %7524 = vmatprep.mubr.f32.mxu0 0.0
  %7525 = vmatmul.mubr.f32.gmra.mxu0 %v7179
  %v7526 = vpop.f32.mrf.mxu0
  %v7527 = vadd.f32 %v7041, %v7526
  %v7528 = vpop.f32.mrf.mxu0
  %7529 = vmatprep.mubr.f32.mxu0 0.0
  %7530 = vmatmul.mubr.f32.gmra.mxu0 %v7182
  %v7531 = vpop.f32.mrf.mxu0
  %v7532 = vadd.f32 %v7041, %v7531
  %v7533 = vpop.f32.mrf.mxu0
  %7534 = vmatprep.mubr.f32.mxu0 0.0
  %7535 = vmatmul.mubr.f32.gmra.mxu0 %v7185
  %v7536 = vpop.f32.mrf.mxu0
  %v7537 = vadd.f32 %v7041, %v7536
  %v7538 = vpop.f32.mrf.mxu0
  %7539 = vmatprep.mubr.f32.mxu0 0.0
  %7540 = vmatmul.mubr.f32.gmra.mxu0 %v7188
  %v7541 = vpop.f32.mrf.mxu0
  %v7542 = vadd.f32 %v7041, %v7541
  %v7543 = vpop.f32.mrf.mxu0
  %7544 = vmatprep.mubr.f32.mxu0 0.0
  %7545 = vmatmul.mubr.f32.gmra.mxu0 %v7191
  %v7546 = vpop.f32.mrf.mxu0
  %v7547 = vadd.f32 %v7041, %v7546
  %v7548 = vpop.f32.mrf.mxu0
  %7549 = vmatprep.mubr.f32.mxu0 0.0
  %7550 = vmatmul.mubr.f32.gmra.mxu0 %v7194
  %v7551 = vpop.f32.mrf.mxu0
  %v7552 = vadd.f32 %v7041, %v7551
  %v7553 = vpop.f32.mrf.mxu0
  %7554 = vmatprep.mubr.f32.mxu0 0.0
  %7555 = vmatmul.mubr.f32.gmra.mxu0 %v7197
  %v7556 = vpop.f32.mrf.mxu0
  %v7557 = vadd.f32 %v7041, %v7556
  %v7558 = vpop.f32.mrf.mxu0
  %7559 = vmatprep.mubr.f32.mxu0 0.0
  %7560 = vmatmul.mubr.f32.gmra.mxu0 %v7200
  %v7561 = vpop.f32.mrf.mxu0
  %v7562 = vadd.f32 %v7041, %v7561
  %v7563 = vpop.f32.mrf.mxu0
  %7564 = vmatprep.mubr.f32.mxu0 0.0
  %7565 = vmatmul.mubr.f32.gmra.mxu0 %v7203
  %v7566 = vpop.f32.mrf.mxu0
  %v7567 = vadd.f32 %v7041, %v7566
  %v7568 = vpop.f32.mrf.mxu0
  %7569 = vmatprep.mubr.f32.mxu0 0.0
  %7570 = vmatmul.mubr.f32.gmra.mxu0 %v7206
  %v7571 = vpop.f32.mrf.mxu0
  %v7572 = vadd.f32 %v7041, %v7571
  %v7573 = vpop.f32.mrf.mxu0
  %7574 = vmatprep.mubr.f32.mxu0 0.0
  %7575 = vmatmul.mubr.f32.gmra.mxu0 %v7209
  %v7576 = vpop.f32.mrf.mxu0
  %v7577 = vadd.f32 %v7041, %v7576
  %v7578 = vpop.f32.mrf.mxu0
  %7579 = vmatprep.mubr.f32.mxu0 0.0
  %7580 = vmatmul.mubr.f32.gmra.mxu0 %v7212
  %v7581 = vpop.f32.mrf.mxu0
  %v7582 = vadd.f32 %v7041, %v7581
  %v7583 = vpop.f32.mrf.mxu0
  %7584 = vmatprep.mubr.f32.mxu0 0.0
  %7585 = vmatmul.mubr.f32.gmra.mxu0 %v7215
  %v7586 = vpop.f32.mrf.mxu0
  %v7587 = vadd.f32 %v7041, %v7586
  %v7588 = vpop.f32.mrf.mxu0
  %7589 = vmatprep.mubr.f32.mxu0 0.0
  %7590 = vmatmul.mubr.f32.gmra.mxu0 %v7218
  %v7591 = vpop.f32.mrf.mxu0
  %v7592 = vadd.f32 %v7041, %v7591
  %v7593 = vpop.f32.mrf.mxu0
  %7594 = vmatprep.mubr.f32.mxu0 0.0
  %7595 = vmatmul.mubr.f32.gmra.mxu0 %v7221
  %v7596 = vpop.f32.mrf.mxu0
  %v7597 = vadd.f32 %v7041, %v7596
  %v7598 = vpop.f32.mrf.mxu0
  %7599 = vmatprep.mubr.f32.mxu0 0.0
  %7600 = vmatmul.mubr.f32.gmra.mxu0 %v7224
  %v7601 = vpop.f32.mrf.mxu0
  %v7602 = vadd.f32 %v7041, %v7601
  %v7603 = vpop.f32.mrf.mxu0
  %7604 = vmatprep.mubr.f32.mxu0 0.0
  %7605 = vmatmul.mubr.f32.gmra.mxu0 %v7227
  %v7606 = vpop.f32.mrf.mxu0
  %v7607 = vadd.f32 %v7041, %v7606
  %v7608 = vpop.f32.mrf.mxu0
  %7609 = vmatprep.mubr.f32.mxu0 0.0
  %7610 = vmatmul.mubr.f32.gmra.mxu0 %v7230
  %v7611 = vpop.f32.mrf.mxu0
  %v7612 = vadd.f32 %v7041, %v7611
  %v7613 = vpop.f32.mrf.mxu0
  %7614 = vmatprep.mubr.f32.mxu0 0.0
  %7615 = vmatmul.mubr.f32.gmra.mxu0 %v7233
  %v7616 = vpop.f32.mrf.mxu0
  %v7617 = vadd.f32 %v7041, %v7616
  %v7618 = vpop.f32.mrf.mxu0
  %7619 = vdwg.mxu0
  %v7620 = vmul.f32 %v7302, %v7302
  %v7621 = vmul.f32 %v7307, %v7307
  %v7622 = vmul.f32 %v7312, %v7312
  %v7623 = vmul.f32 %v7317, %v7317
  %v7624 = vmul.f32 %v7322, %v7322
  %v7625 = vmul.f32 %v7327, %v7327
  %v7626 = vmul.f32 %v7332, %v7332
  %v7627 = vmul.f32 %v7337, %v7337
  %v7628 = vmul.f32 %v7342, %v7342
  %v7629 = vmul.f32 %v7347, %v7347
  %v7630 = vmul.f32 %v7352, %v7352
  %v7631 = vmul.f32 %v7357, %v7357
  %v7632 = vmul.f32 %v7362, %v7362
  %v7633 = vmul.f32 %v7367, %v7367
  %v7634 = vmul.f32 %v7372, %v7372
  %v7635 = vmul.f32 %v7377, %v7377
  %v7636 = vmul.f32 %v7382, %v7382
  %v7637 = vmul.f32 %v7387, %v7387
  %v7638 = vmul.f32 %v7392, %v7392
  %v7639 = vmul.f32 %v7397, %v7397
  %v7640 = vmul.f32 %v7402, %v7402
  %v7641 = vmul.f32 %v7407, %v7407
  %v7642 = vmul.f32 %v7412, %v7412
  %v7643 = vmul.f32 %v7417, %v7417
  %v7644 = vmul.f32 %v7422, %v7422
  %v7645 = vmul.f32 %v7427, %v7427
  %v7646 = vmul.f32 %v7432, %v7432
  %v7647 = vmul.f32 %v7437, %v7437
  %v7648 = vmul.f32 %v7442, %v7442
  %v7649 = vmul.f32 %v7447, %v7447
  %v7650 = vmul.f32 %v7452, %v7452
  %v7651 = vmul.f32 %v7457, %v7457
  %v7652 = vmul.f32 %v7462, %v7462
  %v7653 = vmul.f32 %v7467, %v7467
  %v7654 = vmul.f32 %v7472, %v7472
  %v7655 = vmul.f32 %v7477, %v7477
  %v7656 = vmul.f32 %v7482, %v7482
  %v7657 = vmul.f32 %v7487, %v7487
  %v7658 = vmul.f32 %v7492, %v7492
  %v7659 = vmul.f32 %v7497, %v7497
  %v7660 = vmul.f32 %v7502, %v7502
  %v7661 = vmul.f32 %v7507, %v7507
  %v7662 = vmul.f32 %v7512, %v7512
  %v7663 = vmul.f32 %v7517, %v7517
  %v7664 = vmul.f32 %v7522, %v7522
  %v7665 = vmul.f32 %v7527, %v7527
  %v7666 = vmul.f32 %v7532, %v7532
  %v7667 = vmul.f32 %v7537, %v7537
  %v7668 = vmul.f32 %v7542, %v7542
  %v7669 = vmul.f32 %v7547, %v7547
  %v7670 = vmul.f32 %v7552, %v7552
  %v7671 = vmul.f32 %v7557, %v7557
  %v7672 = vmul.f32 %v7562, %v7562
  %v7673 = vmul.f32 %v7567, %v7567
  %v7674 = vmul.f32 %v7572, %v7572
  %v7675 = vmul.f32 %v7577, %v7577
  %v7676 = vmul.f32 %v7582, %v7582
  %v7677 = vmul.f32 %v7587, %v7587
  %v7678 = vmul.f32 %v7592, %v7592
  %v7679 = vmul.f32 %v7597, %v7597
  %v7680 = vmul.f32 %v7602, %v7602
  %v7681 = vmul.f32 %v7607, %v7607
  %v7682 = vmul.f32 %v7612, %v7612
  %v7683 = vmul.f32 %v7617, %v7617
  %7748 = vrot.lane.b32.xlu0 %v7620, 8
  %v7749 = vpop.permute.xlu0 %7748
  %7750 = vrot.lane.b32.xlu0 %v7621, 8
  %v7751 = vpop.permute.xlu0 %7750
  %7752 = vrot.lane.b32.xlu0 %v7622, 8
  %v7753 = vpop.permute.xlu0 %7752
  %7754 = vrot.lane.b32.xlu0 %v7623, 8
  %v7755 = vpop.permute.xlu0 %7754
  %7756 = vrot.lane.b32.xlu0 %v7624, 8
  %v7757 = vpop.permute.xlu0 %7756
  %7758 = vrot.lane.b32.xlu0 %v7625, 8
  %v7759 = vpop.permute.xlu0 %7758
  %7760 = vrot.lane.b32.xlu0 %v7626, 8
  %v7761 = vpop.permute.xlu0 %7760
  %7762 = vrot.lane.b32.xlu0 %v7627, 8
  %v7763 = vpop.permute.xlu0 %7762
  %7764 = vrot.lane.b32.xlu0 %v7628, 8
  %v7765 = vpop.permute.xlu0 %7764
  %7766 = vrot.lane.b32.xlu0 %v7629, 8
  %v7767 = vpop.permute.xlu0 %7766
  %7768 = vrot.lane.b32.xlu0 %v7630, 8
  %v7769 = vpop.permute.xlu0 %7768
  %7770 = vrot.lane.b32.xlu0 %v7631, 8
  %v7771 = vpop.permute.xlu0 %7770
  %7772 = vrot.lane.b32.xlu0 %v7632, 8
  %v7773 = vpop.permute.xlu0 %7772
  %7774 = vrot.lane.b32.xlu0 %v7633, 8
  %v7775 = vpop.permute.xlu0 %7774
  %7776 = vrot.lane.b32.xlu0 %v7634, 8
  %v7777 = vpop.permute.xlu0 %7776
  %7778 = vrot.lane.b32.xlu0 %v7635, 8
  %v7779 = vpop.permute.xlu0 %7778
  %7780 = vrot.lane.b32.xlu0 %v7636, 8
  %v7781 = vpop.permute.xlu0 %7780
  %7782 = vrot.lane.b32.xlu0 %v7637, 8
  %v7783 = vpop.permute.xlu0 %7782
  %7784 = vrot.lane.b32.xlu0 %v7638, 8
  %v7785 = vpop.permute.xlu0 %7784
  %7786 = vrot.lane.b32.xlu0 %v7639, 8
  %v7787 = vpop.permute.xlu0 %7786
  %7788 = vrot.lane.b32.xlu0 %v7640, 8
  %v7789 = vpop.permute.xlu0 %7788
  %7790 = vrot.lane.b32.xlu0 %v7641, 8
  %v7791 = vpop.permute.xlu0 %7790
  %7792 = vrot.lane.b32.xlu0 %v7642, 8
  %v7793 = vpop.permute.xlu0 %7792
  %7794 = vrot.lane.b32.xlu0 %v7643, 8
  %v7795 = vpop.permute.xlu0 %7794
  %7796 = vrot.lane.b32.xlu0 %v7644, 8
  %v7797 = vpop.permute.xlu0 %7796
  %7798 = vrot.lane.b32.xlu0 %v7645, 8
  %v7799 = vpop.permute.xlu0 %7798
  %7800 = vrot.lane.b32.xlu0 %v7646, 8
  %v7801 = vpop.permute.xlu0 %7800
  %7802 = vrot.lane.b32.xlu0 %v7647, 8
  %v7803 = vpop.permute.xlu0 %7802
  %7804 = vrot.lane.b32.xlu0 %v7648, 8
  %v7805 = vpop.permute.xlu0 %7804
  %7806 = vrot.lane.b32.xlu0 %v7649, 8
  %v7807 = vpop.permute.xlu0 %7806
  %7808 = vrot.lane.b32.xlu0 %v7650, 8
  %v7809 = vpop.permute.xlu0 %7808
  %7810 = vrot.lane.b32.xlu0 %v7651, 8
  %v7811 = vpop.permute.xlu0 %7810
  %7812 = vrot.lane.b32.xlu0 %v7652, 8
  %v7813 = vpop.permute.xlu0 %7812
  %7814 = vrot.lane.b32.xlu0 %v7653, 8
  %v7815 = vpop.permute.xlu0 %7814
  %7816 = vrot.lane.b32.xlu0 %v7654, 8
  %v7817 = vpop.permute.xlu0 %7816
  %7818 = vrot.lane.b32.xlu0 %v7655, 8
  %v7819 = vpop.permute.xlu0 %7818
  %7820 = vrot.lane.b32.xlu0 %v7656, 8
  %v7821 = vpop.permute.xlu0 %7820
  %7822 = vrot.lane.b32.xlu0 %v7657, 8
  %v7823 = vpop.permute.xlu0 %7822
  %7824 = vrot.lane.b32.xlu0 %v7658, 8
  %v7825 = vpop.permute.xlu0 %7824
  %7826 = vrot.lane.b32.xlu0 %v7659, 8
  %v7827 = vpop.permute.xlu0 %7826
  %7828 = vrot.lane.b32.xlu0 %v7660, 8
  %v7829 = vpop.permute.xlu0 %7828
  %7830 = vrot.lane.b32.xlu0 %v7661, 8
  %v7831 = vpop.permute.xlu0 %7830
  %7832 = vrot.lane.b32.xlu0 %v7662, 8
  %v7833 = vpop.permute.xlu0 %7832
  %7834 = vrot.lane.b32.xlu0 %v7663, 8
  %v7835 = vpop.permute.xlu0 %7834
  %7836 = vrot.lane.b32.xlu0 %v7664, 8
  %v7837 = vpop.permute.xlu0 %7836
  %7838 = vrot.lane.b32.xlu0 %v7665, 8
  %v7839 = vpop.permute.xlu0 %7838
  %7840 = vrot.lane.b32.xlu0 %v7666, 8
  %v7841 = vpop.permute.xlu0 %7840
  %7842 = vrot.lane.b32.xlu0 %v7667, 8
  %v7843 = vpop.permute.xlu0 %7842
  %7844 = vrot.lane.b32.xlu0 %v7668, 8
  %v7845 = vpop.permute.xlu0 %7844
  %7846 = vrot.lane.b32.xlu0 %v7669, 8
  %v7847 = vpop.permute.xlu0 %7846
  %7848 = vrot.lane.b32.xlu0 %v7670, 8
  %v7849 = vpop.permute.xlu0 %7848
  %7850 = vrot.lane.b32.xlu0 %v7671, 8
  %v7851 = vpop.permute.xlu0 %7850
  %7852 = vrot.lane.b32.xlu0 %v7672, 8
  %v7853 = vpop.permute.xlu0 %7852
  %7854 = vrot.lane.b32.xlu0 %v7673, 8
  %v7855 = vpop.permute.xlu0 %7854
  %7856 = vrot.lane.b32.xlu0 %v7674, 8
  %v7857 = vpop.permute.xlu0 %7856
  %7858 = vrot.lane.b32.xlu0 %v7675, 8
  %v7859 = vpop.permute.xlu0 %7858
  %7860 = vrot.lane.b32.xlu0 %v7676, 8
  %v7861 = vpop.permute.xlu0 %7860
  %7862 = vrot.lane.b32.xlu0 %v7677, 8
  %v7863 = vpop.permute.xlu0 %7862
  %7864 = vrot.lane.b32.xlu0 %v7678, 8
  %v7865 = vpop.permute.xlu0 %7864
  %7866 = vrot.lane.b32.xlu0 %v7679, 8
  %v7867 = vpop.permute.xlu0 %7866
  %7868 = vrot.lane.b32.xlu0 %v7680, 8
  %v7869 = vpop.permute.xlu0 %7868
  %7870 = vrot.lane.b32.xlu0 %v7681, 8
  %v7871 = vpop.permute.xlu0 %7870
  %7872 = vrot.lane.b32.xlu0 %v7682, 8
  %v7873 = vpop.permute.xlu0 %7872
  %7874 = vrot.lane.b32.xlu0 %v7683, 8
  %v7875 = vpop.permute.xlu0 %7874
  %v7940 = vsel %vm2440, %v7302, %v7749
  %v7941 = vsel %vm2440, %v7307, %v7751
  %v7942 = vsel %vm2440, %v7312, %v7753
  %v7943 = vsel %vm2440, %v7317, %v7755
  %v7944 = vsel %vm2440, %v7322, %v7757
  %v7945 = vsel %vm2440, %v7327, %v7759
  %v7946 = vsel %vm2440, %v7332, %v7761
  %v7947 = vsel %vm2440, %v7337, %v7763
  %v7948 = vsel %vm2440, %v7342, %v7765
  %v7949 = vsel %vm2440, %v7347, %v7767
  %v7950 = vsel %vm2440, %v7352, %v7769
  %v7951 = vsel %vm2440, %v7357, %v7771
  %v7952 = vsel %vm2440, %v7362, %v7773
  %v7953 = vsel %vm2440, %v7367, %v7775
  %v7954 = vsel %vm2440, %v7372, %v7777
  %v7955 = vsel %vm2440, %v7377, %v7779
  %v7956 = vsel %vm2440, %v7382, %v7781
  %v7957 = vsel %vm2440, %v7387, %v7783
  %v7958 = vsel %vm2440, %v7392, %v7785
  %v7959 = vsel %vm2440, %v7397, %v7787
  %v7960 = vsel %vm2440, %v7402, %v7789
  %v7961 = vsel %vm2440, %v7407, %v7791
  %v7962 = vsel %vm2440, %v7412, %v7793
  %v7963 = vsel %vm2440, %v7417, %v7795
  %v7964 = vsel %vm2440, %v7422, %v7797
  %v7965 = vsel %vm2440, %v7427, %v7799
  %v7966 = vsel %vm2440, %v7432, %v7801
  %v7967 = vsel %vm2440, %v7437, %v7803
  %v7968 = vsel %vm2440, %v7442, %v7805
  %v7969 = vsel %vm2440, %v7447, %v7807
  %v7970 = vsel %vm2440, %v7452, %v7809
  %v7971 = vsel %vm2440, %v7457, %v7811
  %v7972 = vsel %vm2440, %v7462, %v7813
  %v7973 = vsel %vm2440, %v7467, %v7815
  %v7974 = vsel %vm2440, %v7472, %v7817
  %v7975 = vsel %vm2440, %v7477, %v7819
  %v7976 = vsel %vm2440, %v7482, %v7821
  %v7977 = vsel %vm2440, %v7487, %v7823
  %v7978 = vsel %vm2440, %v7492, %v7825
  %v7979 = vsel %vm2440, %v7497, %v7827
  %v7980 = vsel %vm2440, %v7502, %v7829
  %v7981 = vsel %vm2440, %v7507, %v7831
  %v7982 = vsel %vm2440, %v7512, %v7833
  %v7983 = vsel %vm2440, %v7517, %v7835
  %v7984 = vsel %vm2440, %v7522, %v7837
  %v7985 = vsel %vm2440, %v7527, %v7839
  %v7986 = vsel %vm2440, %v7532, %v7841
  %v7987 = vsel %vm2440, %v7537, %v7843
  %v7988 = vsel %vm2440, %v7542, %v7845
  %v7989 = vsel %vm2440, %v7547, %v7847
  %v7990 = vsel %vm2440, %v7552, %v7849
  %v7991 = vsel %vm2440, %v7557, %v7851
  %v7992 = vsel %vm2440, %v7562, %v7853
  %v7993 = vsel %vm2440, %v7567, %v7855
  %v7994 = vsel %vm2440, %v7572, %v7857
  %v7995 = vsel %vm2440, %v7577, %v7859
  %v7996 = vsel %vm2440, %v7582, %v7861
  %v7997 = vsel %vm2440, %v7587, %v7863
  %v7998 = vsel %vm2440, %v7592, %v7865
  %v7999 = vsel %vm2440, %v7597, %v7867
  %v8000 = vsel %vm2440, %v7602, %v7869
  %v8001 = vsel %vm2440, %v7607, %v7871
  %v8002 = vsel %vm2440, %v7612, %v7873
  %v8003 = vsel %vm2440, %v7617, %v7875
  %8004 = vmatprep.subr.mxu0 0.0
  %8005 = vmatpush1.msra.mxu0 %v7955
  %8006 = vmatprep.subr.mxu0 0.0
  %8007 = vmatpush1.msra.mxu0 %v7954
  %8008 = vmatprep.subr.mxu0 0.0
  %8009 = vmatpush1.msra.mxu0 %v7953
  %8010 = vmatprep.subr.mxu0 0.0
  %8011 = vmatpush1.msra.mxu0 %v7952
  %8012 = vmatprep.subr.mxu0 0.0
  %8013 = vmatpush1.msra.mxu0 %v7951
  %8014 = vmatprep.subr.mxu0 0.0
  %8015 = vmatpush1.msra.mxu0 %v7950
  %8016 = vmatprep.subr.mxu0 0.0
  %8017 = vmatpush1.msra.mxu0 %v7949
  %8018 = vmatprep.subr.mxu0 0.0
  %8019 = vmatpush1.msra.mxu0 %v7948
  %8020 = vmatprep.subr.mxu0 0.0
  %8021 = vmatpush1.msra.mxu0 %v7947
  %8022 = vmatprep.subr.mxu0 0.0
  %8023 = vmatpush1.msra.mxu0 %v7946
  %8024 = vmatprep.subr.mxu0 0.0
  %8025 = vmatpush1.msra.mxu0 %v7945
  %8026 = vmatprep.subr.mxu0 0.0
  %8027 = vmatpush1.msra.mxu0 %v7944
  %8028 = vmatprep.subr.mxu0 0.0
  %8029 = vmatpush1.msra.mxu0 %v7943
  %8030 = vmatprep.subr.mxu0 0.0
  %8031 = vmatpush1.msra.mxu0 %v7942
  %8032 = vmatprep.subr.mxu0 0.0
  %8033 = vmatpush1.msra.mxu0 %v7941
  %8034 = vmatprep.subr.mxu0 0.0
  %8035 = vmatpush1.msra.mxu0 %v7940
  %8036 = vmatprep.subr.mxu0 0.0
  %8037 = vmatpush2.msra.mxu0 %v7971
  %8038 = vmatprep.subr.mxu0 0.0
  %8039 = vmatpush2.msra.mxu0 %v7970
  %8040 = vmatprep.subr.mxu0 0.0
  %8041 = vmatpush2.msra.mxu0 %v7969
  %8042 = vmatprep.subr.mxu0 0.0
  %8043 = vmatpush2.msra.mxu0 %v7968
  %8044 = vmatprep.subr.mxu0 0.0
  %8045 = vmatpush2.msra.mxu0 %v7967
  %8046 = vmatprep.subr.mxu0 0.0
  %8047 = vmatpush2.msra.mxu0 %v7966
  %8048 = vmatprep.subr.mxu0 0.0
  %8049 = vmatpush2.msra.mxu0 %v7965
  %8050 = vmatprep.subr.mxu0 0.0
  %8051 = vmatpush2.msra.mxu0 %v7964
  %8052 = vmatprep.subr.mxu0 0.0
  %8053 = vmatpush2.msra.mxu0 %v7963
  %8054 = vmatprep.subr.mxu0 0.0
  %8055 = vmatpush2.msra.mxu0 %v7962
  %8056 = vmatprep.subr.mxu0 0.0
  %8057 = vmatpush2.msra.mxu0 %v7961
  %8058 = vmatprep.subr.mxu0 0.0
  %8059 = vmatpush2.msra.mxu0 %v7960
  %8060 = vmatprep.subr.mxu0 0.0
  %8061 = vmatpush2.msra.mxu0 %v7959
  %8062 = vmatprep.subr.mxu0 0.0
  %8063 = vmatpush2.msra.mxu0 %v7958
  %8064 = vmatprep.subr.mxu0 0.0
  %8065 = vmatpush2.msra.mxu0 %v7957
  %8066 = vmatprep.subr.mxu0 0.0
  %8067 = vmatpush2.msra.mxu0 %v7956
  %8068 = vmatprep.mubr.f32.mxu0 1.0
  %8069 = vmatmul.mubr.f32.gmra.mxu0 1.0
  %v8070 = vpop.f32.mrf.mxu0
  %v8071 = vadd.f32 0.0, %v8070
  %v8072 = vpop.f32.mrf.mxu0
  %8073 = vdwg.mxu0
  %8074 = vmatprep.subr.mxu0 0.0
  %8075 = vmatpush1.msra.mxu0 %v7987
  %8076 = vmatprep.subr.mxu0 0.0
  %8077 = vmatpush1.msra.mxu0 %v7986
  %8078 = vmatprep.subr.mxu0 0.0
  %8079 = vmatpush1.msra.mxu0 %v7985
  %8080 = vmatprep.subr.mxu0 0.0
  %8081 = vmatpush1.msra.mxu0 %v7984
  %8082 = vmatprep.subr.mxu0 0.0
  %8083 = vmatpush1.msra.mxu0 %v7983
  %8084 = vmatprep.subr.mxu0 0.0
  %8085 = vmatpush1.msra.mxu0 %v7982
  %8086 = vmatprep.subr.mxu0 0.0
  %8087 = vmatpush1.msra.mxu0 %v7981
  %8088 = vmatprep.subr.mxu0 0.0
  %8089 = vmatpush1.msra.mxu0 %v7980
  %8090 = vmatprep.subr.mxu0 0.0
  %8091 = vmatpush1.msra.mxu0 %v7979
  %8092 = vmatprep.subr.mxu0 0.0
  %8093 = vmatpush1.msra.mxu0 %v7978
  %8094 = vmatprep.subr.mxu0 0.0
  %8095 = vmatpush1.msra.mxu0 %v7977
  %8096 = vmatprep.subr.mxu0 0.0
  %8097 = vmatpush1.msra.mxu0 %v7976
  %8098 = vmatprep.subr.mxu0 0.0
  %8099 = vmatpush1.msra.mxu0 %v7975
  %8100 = vmatprep.subr.mxu0 0.0
  %8101 = vmatpush1.msra.mxu0 %v7974
  %8102 = vmatprep.subr.mxu0 0.0
  %8103 = vmatpush1.msra.mxu0 %v7973
  %8104 = vmatprep.subr.mxu0 0.0
  %8105 = vmatpush1.msra.mxu0 %v7972
  %8106 = vmatprep.subr.mxu0 0.0
  %8107 = vmatpush2.msra.mxu0 %v8003
  %8108 = vmatprep.subr.mxu0 0.0
  %8109 = vmatpush2.msra.mxu0 %v8002
  %8110 = vmatprep.subr.mxu0 0.0
  %8111 = vmatpush2.msra.mxu0 %v8001
  %8112 = vmatprep.subr.mxu0 0.0
  %8113 = vmatpush2.msra.mxu0 %v8000
  %8114 = vmatprep.subr.mxu0 0.0
  %8115 = vmatpush2.msra.mxu0 %v7999
  %8116 = vmatprep.subr.mxu0 0.0
  %8117 = vmatpush2.msra.mxu0 %v7998
  %8118 = vmatprep.subr.mxu0 0.0
  %8119 = vmatpush2.msra.mxu0 %v7997
  %8120 = vmatprep.subr.mxu0 0.0
  %8121 = vmatpush2.msra.mxu0 %v7996
  %8122 = vmatprep.subr.mxu0 0.0
  %8123 = vmatpush2.msra.mxu0 %v7995
  %8124 = vmatprep.subr.mxu0 0.0
  %8125 = vmatpush2.msra.mxu0 %v7994
  %8126 = vmatprep.subr.mxu0 0.0
  %8127 = vmatpush2.msra.mxu0 %v7993
  %8128 = vmatprep.subr.mxu0 0.0
  %8129 = vmatpush2.msra.mxu0 %v7992
  %8130 = vmatprep.subr.mxu0 0.0
  %8131 = vmatpush2.msra.mxu0 %v7991
  %8132 = vmatprep.subr.mxu0 0.0
  %8133 = vmatpush2.msra.mxu0 %v7990
  %8134 = vmatprep.subr.mxu0 0.0
  %8135 = vmatpush2.msra.mxu0 %v7989
  %8136 = vmatprep.subr.mxu0 0.0
  %8137 = vmatpush2.msra.mxu0 %v7988
  %8138 = vmatprep.mubr.f32.mxu0 1.0
  %8139 = vmatmul.mubr.f32.gmra.mxu0 1.0
  %v8140 = vpop.f32.mrf.mxu0
  %v8141 = vadd.f32 %v8071, %v8140
  %v8142 = vpop.f32.mrf.mxu0
  %8143 = vdwg.mxu0
  %v8144 = vmul.f32 %v8141, 0.001953125
  %v8145 = vmul.f32 %v8144, %v8144
  %8147 = vrot.lane.b32.xlu0 %v8145, 8
  %v8148 = vpop.permute.xlu0 %8147
  %v8150 = vsub.f32 %v8144, %v8148
  %v8151 = vmax.f32 %v8150, 0.0
  %v8152 = vadd.f32 %v8151, 1e-05
  %v8153 = vrsqrt.pop %v8152
  %8155 = vrot.lane.b32.xlu0 %v8153, 120
  %v8156 = vpop.permute.xlu0 %8155
  %v8158 = vmul.f32 %v21, %v8156
  %v8159 = vmul.f32 %v8144, %v8158
  %v8160 = vsub.f32 %v22, %v8159
  %v8161 = vlaneseq
  %v8162 = vshrl.u32 %v8161, 7
  %v8163 = vsub.s32 0, %v8162
  %v8164 = vrot.slane %v8158, %v8163
  %v8165 = vmul.f32 %v7302, %v8164
  %v8166 = vmul.f32 %v7307, %v8164
  %v8167 = vmul.f32 %v7312, %v8164
  %v8168 = vmul.f32 %v7317, %v8164
  %v8169 = vmul.f32 %v7322, %v8164
  %v8170 = vmul.f32 %v7327, %v8164
  %v8171 = vmul.f32 %v7332, %v8164
  %v8172 = vmul.f32 %v7337, %v8164
  %v8173 = vmul.f32 %v7342, %v8164
  %v8174 = vmul.f32 %v7347, %v8164
  %v8175 = vmul.f32 %v7352, %v8164
  %v8176 = vmul.f32 %v7357, %v8164
  %v8177 = vmul.f32 %v7362, %v8164
  %v8178 = vmul.f32 %v7367, %v8164
  %v8179 = vmul.f32 %v7372, %v8164
  %v8180 = vmul.f32 %v7377, %v8164
  %v8181 = vmul.f32 %v7382, %v8164
  %v8182 = vmul.f32 %v7387, %v8164
  %v8183 = vmul.f32 %v7392, %v8164
  %v8184 = vmul.f32 %v7397, %v8164
  %v8185 = vmul.f32 %v7402, %v8164
  %v8186 = vmul.f32 %v7407, %v8164
  %v8187 = vmul.f32 %v7412, %v8164
  %v8188 = vmul.f32 %v7417, %v8164
  %v8189 = vmul.f32 %v7422, %v8164
  %v8190 = vmul.f32 %v7427, %v8164
  %v8191 = vmul.f32 %v7432, %v8164
  %v8192 = vmul.f32 %v7437, %v8164
  %v8193 = vmul.f32 %v7442, %v8164
  %v8194 = vmul.f32 %v7447, %v8164
  %v8195 = vmul.f32 %v7452, %v8164
  %v8196 = vmul.f32 %v7457, %v8164
  %v8197 = vmul.f32 %v7462, %v8164
  %v8198 = vmul.f32 %v7467, %v8164
  %v8199 = vmul.f32 %v7472, %v8164
  %v8200 = vmul.f32 %v7477, %v8164
  %v8201 = vmul.f32 %v7482, %v8164
  %v8202 = vmul.f32 %v7487, %v8164
  %v8203 = vmul.f32 %v7492, %v8164
  %v8204 = vmul.f32 %v7497, %v8164
  %v8205 = vmul.f32 %v7502, %v8164
  %v8206 = vmul.f32 %v7507, %v8164
  %v8207 = vmul.f32 %v7512, %v8164
  %v8208 = vmul.f32 %v7517, %v8164
  %v8209 = vmul.f32 %v7522, %v8164
  %v8210 = vmul.f32 %v7527, %v8164
  %v8211 = vmul.f32 %v7532, %v8164
  %v8212 = vmul.f32 %v7537, %v8164
  %v8213 = vmul.f32 %v7542, %v8164
  %v8214 = vmul.f32 %v7547, %v8164
  %v8215 = vmul.f32 %v7552, %v8164
  %v8216 = vmul.f32 %v7557, %v8164
  %v8217 = vmul.f32 %v7562, %v8164
  %v8218 = vmul.f32 %v7567, %v8164
  %v8219 = vmul.f32 %v7572, %v8164
  %v8220 = vmul.f32 %v7577, %v8164
  %v8221 = vmul.f32 %v7582, %v8164
  %v8222 = vmul.f32 %v7587, %v8164
  %v8223 = vmul.f32 %v7592, %v8164
  %v8224 = vmul.f32 %v7597, %v8164
  %v8225 = vmul.f32 %v7602, %v8164
  %v8226 = vmul.f32 %v7607, %v8164
  %v8227 = vmul.f32 %v7612, %v8164
  %v8228 = vmul.f32 %v7617, %v8164
  %v8229 = vlaneseq
  %v8230 = vshrl.u32 %v8229, 7
  %v8231 = vsub.s32 0, %v8230
  %v8232 = vrot.slane %v8160, %v8231
  %v8233 = vadd.f32 %v8165, %v8232
  %v8234 = vadd.f32 %v8166, %v8232
  %v8235 = vadd.f32 %v8167, %v8232
  %v8236 = vadd.f32 %v8168, %v8232
  %v8237 = vadd.f32 %v8169, %v8232
  %v8238 = vadd.f32 %v8170, %v8232
  %v8239 = vadd.f32 %v8171, %v8232
  %v8240 = vadd.f32 %v8172, %v8232
  %v8241 = vadd.f32 %v8173, %v8232
  %v8242 = vadd.f32 %v8174, %v8232
  %v8243 = vadd.f32 %v8175, %v8232
  %v8244 = vadd.f32 %v8176, %v8232
  %v8245 = vadd.f32 %v8177, %v8232
  %v8246 = vadd.f32 %v8178, %v8232
  %v8247 = vadd.f32 %v8179, %v8232
  %v8248 = vadd.f32 %v8180, %v8232
  %v8249 = vadd.f32 %v8181, %v8232
  %v8250 = vadd.f32 %v8182, %v8232
  %v8251 = vadd.f32 %v8183, %v8232
  %v8252 = vadd.f32 %v8184, %v8232
  %v8253 = vadd.f32 %v8185, %v8232
  %v8254 = vadd.f32 %v8186, %v8232
  %v8255 = vadd.f32 %v8187, %v8232
  %v8256 = vadd.f32 %v8188, %v8232
  %v8257 = vadd.f32 %v8189, %v8232
  %v8258 = vadd.f32 %v8190, %v8232
  %v8259 = vadd.f32 %v8191, %v8232
  %v8260 = vadd.f32 %v8192, %v8232
  %v8261 = vadd.f32 %v8193, %v8232
  %v8262 = vadd.f32 %v8194, %v8232
  %v8263 = vadd.f32 %v8195, %v8232
  %v8264 = vadd.f32 %v8196, %v8232
  %v8265 = vadd.f32 %v8197, %v8232
  %v8266 = vadd.f32 %v8198, %v8232
  %v8267 = vadd.f32 %v8199, %v8232
  %v8268 = vadd.f32 %v8200, %v8232
  %v8269 = vadd.f32 %v8201, %v8232
  %v8270 = vadd.f32 %v8202, %v8232
  %v8271 = vadd.f32 %v8203, %v8232
  %v8272 = vadd.f32 %v8204, %v8232
  %v8273 = vadd.f32 %v8205, %v8232
  %v8274 = vadd.f32 %v8206, %v8232
  %v8275 = vadd.f32 %v8207, %v8232
  %v8276 = vadd.f32 %v8208, %v8232
  %v8277 = vadd.f32 %v8209, %v8232
  %v8278 = vadd.f32 %v8210, %v8232
  %v8279 = vadd.f32 %v8211, %v8232
  %v8280 = vadd.f32 %v8212, %v8232
  %v8281 = vadd.f32 %v8213, %v8232
  %v8282 = vadd.f32 %v8214, %v8232
  %v8283 = vadd.f32 %v8215, %v8232
  %v8284 = vadd.f32 %v8216, %v8232
  %v8285 = vadd.f32 %v8217, %v8232
  %v8286 = vadd.f32 %v8218, %v8232
  %v8287 = vadd.f32 %v8219, %v8232
  %v8288 = vadd.f32 %v8220, %v8232
  %v8289 = vadd.f32 %v8221, %v8232
  %v8290 = vadd.f32 %v8222, %v8232
  %v8291 = vadd.f32 %v8223, %v8232
  %v8292 = vadd.f32 %v8224, %v8232
  %v8293 = vadd.f32 %v8225, %v8232
  %v8294 = vadd.f32 %v8226, %v8232
  %v8295 = vadd.f32 %v8227, %v8232
  %v8296 = vadd.f32 %v8228, %v8232
  %v8297 = vmax.f32 %v8233, 0.0
  %v8298 = vmax.f32 %v8234, 0.0
  %v8299 = vmax.f32 %v8235, 0.0
  %v8300 = vmax.f32 %v8236, 0.0
  %v8301 = vmax.f32 %v8237, 0.0
  %v8302 = vmax.f32 %v8238, 0.0
  %v8303 = vmax.f32 %v8239, 0.0
  %v8304 = vmax.f32 %v8240, 0.0
  %v8305 = vmax.f32 %v8241, 0.0
  %v8306 = vmax.f32 %v8242, 0.0
  %v8307 = vmax.f32 %v8243, 0.0
  %v8308 = vmax.f32 %v8244, 0.0
  %v8309 = vmax.f32 %v8245, 0.0
  %v8310 = vmax.f32 %v8246, 0.0
  %v8311 = vmax.f32 %v8247, 0.0
  %v8312 = vmax.f32 %v8248, 0.0
  %v8313 = vmax.f32 %v8249, 0.0
  %v8314 = vmax.f32 %v8250, 0.0
  %v8315 = vmax.f32 %v8251, 0.0
  %v8316 = vmax.f32 %v8252, 0.0
  %v8317 = vmax.f32 %v8253, 0.0
  %v8318 = vmax.f32 %v8254, 0.0
  %v8319 = vmax.f32 %v8255, 0.0
  %v8320 = vmax.f32 %v8256, 0.0
  %v8321 = vmax.f32 %v8257, 0.0
  %v8322 = vmax.f32 %v8258, 0.0
  %v8323 = vmax.f32 %v8259, 0.0
  %v8324 = vmax.f32 %v8260, 0.0
  %v8325 = vmax.f32 %v8261, 0.0
  %v8326 = vmax.f32 %v8262, 0.0
  %v8327 = vmax.f32 %v8263, 0.0
  %v8328 = vmax.f32 %v8264, 0.0
  %v8329 = vmax.f32 %v8265, 0.0
  %v8330 = vmax.f32 %v8266, 0.0
  %v8331 = vmax.f32 %v8267, 0.0
  %v8332 = vmax.f32 %v8268, 0.0
  %v8333 = vmax.f32 %v8269, 0.0
  %v8334 = vmax.f32 %v8270, 0.0
  %v8335 = vmax.f32 %v8271, 0.0
  %v8336 = vmax.f32 %v8272, 0.0
  %v8337 = vmax.f32 %v8273, 0.0
  %v8338 = vmax.f32 %v8274, 0.0
  %v8339 = vmax.f32 %v8275, 0.0
  %v8340 = vmax.f32 %v8276, 0.0
  %v8341 = vmax.f32 %v8277, 0.0
  %v8342 = vmax.f32 %v8278, 0.0
  %v8343 = vmax.f32 %v8279, 0.0
  %v8344 = vmax.f32 %v8280, 0.0
  %v8345 = vmax.f32 %v8281, 0.0
  %v8346 = vmax.f32 %v8282, 0.0
  %v8347 = vmax.f32 %v8283, 0.0
  %v8348 = vmax.f32 %v8284, 0.0
  %v8349 = vmax.f32 %v8285, 0.0
  %v8350 = vmax.f32 %v8286, 0.0
  %v8351 = vmax.f32 %v8287, 0.0
  %v8352 = vmax.f32 %v8288, 0.0
  %v8353 = vmax.f32 %v8289, 0.0
  %v8354 = vmax.f32 %v8290, 0.0
  %v8355 = vmax.f32 %v8291, 0.0
  %v8356 = vmax.f32 %v8292, 0.0
  %v8357 = vmax.f32 %v8293, 0.0
  %v8358 = vmax.f32 %v8294, 0.0
  %v8359 = vmax.f32 %v8295, 0.0
  %v8360 = vmax.f32 %v8296, 0.0
  %8361 = vst.msk [vmem:[%s4] sm:$0xff] %vm2440, %v8297
  %8362 = vst.msk [vmem:[%s4 + $0x8] sm:$0xff] %vm2440, %v8298
  %8363 = vst.msk [vmem:[%s4 + $0x10] sm:$0xff] %vm2440, %v8299
  %8364 = vst.msk [vmem:[%s4 + $0x18] sm:$0xff] %vm2440, %v8300
  %8365 = vst.msk [vmem:[%s4 + $0x20] sm:$0xff] %vm2440, %v8301
  %8366 = vst.msk [vmem:[%s4 + $0x28] sm:$0xff] %vm2440, %v8302
  %8367 = vst.msk [vmem:[%s4 + $0x30] sm:$0xff] %vm2440, %v8303
  %8368 = vst.msk [vmem:[%s4 + $0x38] sm:$0xff] %vm2440, %v8304
  %8369 = vst.msk [vmem:[%s4 + $0x40] sm:$0xff] %vm2440, %v8305
  %8370 = vst.msk [vmem:[%s4 + $0x48] sm:$0xff] %vm2440, %v8306
  %8371 = vst.msk [vmem:[%s4 + $0x50] sm:$0xff] %vm2440, %v8307
  %8372 = vst.msk [vmem:[%s4 + $0x58] sm:$0xff] %vm2440, %v8308
  %8373 = vst.msk [vmem:[%s4 + $0x60] sm:$0xff] %vm2440, %v8309
  %8374 = vst.msk [vmem:[%s4 + $0x68] sm:$0xff] %vm2440, %v8310
  %8375 = vst.msk [vmem:[%s4 + $0x70] sm:$0xff] %vm2440, %v8311
  %8376 = vst.msk [vmem:[%s4 + $0x78] sm:$0xff] %vm2440, %v8312
  %8377 = vst.msk [vmem:[%s4 + $0x80] sm:$0xff] %vm2440, %v8313
  %8378 = vst.msk [vmem:[%s4 + $0x88] sm:$0xff] %vm2440, %v8314
  %8379 = vst.msk [vmem:[%s4 + $0x90] sm:$0xff] %vm2440, %v8315
  %8380 = vst.msk [vmem:[%s4 + $0x98] sm:$0xff] %vm2440, %v8316
  %8381 = vst.msk [vmem:[%s4 + $0xa0] sm:$0xff] %vm2440, %v8317
  %8382 = vst.msk [vmem:[%s4 + $0xa8] sm:$0xff] %vm2440, %v8318
  %8383 = vst.msk [vmem:[%s4 + $0xb0] sm:$0xff] %vm2440, %v8319
  %8384 = vst.msk [vmem:[%s4 + $0xb8] sm:$0xff] %vm2440, %v8320
  %8385 = vst.msk [vmem:[%s4 + $0xc0] sm:$0xff] %vm2440, %v8321
  %8386 = vst.msk [vmem:[%s4 + $0xc8] sm:$0xff] %vm2440, %v8322
  %8387 = vst.msk [vmem:[%s4 + $0xd0] sm:$0xff] %vm2440, %v8323
  %8388 = vst.msk [vmem:[%s4 + $0xd8] sm:$0xff] %vm2440, %v8324
  %8389 = vst.msk [vmem:[%s4 + $0xe0] sm:$0xff] %vm2440, %v8325
  %8390 = vst.msk [vmem:[%s4 + $0xe8] sm:$0xff] %vm2440, %v8326
  %8391 = vst.msk [vmem:[%s4 + $0xf0] sm:$0xff] %vm2440, %v8327
  %8392 = vst.msk [vmem:[%s4 + $0xf8] sm:$0xff] %vm2440, %v8328
  %8393 = vst.msk [vmem:[%s4 + $0x100] sm:$0xff] %vm2440, %v8329
  %8394 = vst.msk [vmem:[%s4 + $0x108] sm:$0xff] %vm2440, %v8330
  %8395 = vst.msk [vmem:[%s4 + $0x110] sm:$0xff] %vm2440, %v8331
  %8396 = vst.msk [vmem:[%s4 + $0x118] sm:$0xff] %vm2440, %v8332
  %8397 = vst.msk [vmem:[%s4 + $0x120] sm:$0xff] %vm2440, %v8333
  %8398 = vst.msk [vmem:[%s4 + $0x128] sm:$0xff] %vm2440, %v8334
  %8399 = vst.msk [vmem:[%s4 + $0x130] sm:$0xff] %vm2440, %v8335
  %8400 = vst.msk [vmem:[%s4 + $0x138] sm:$0xff] %vm2440, %v8336
  %8401 = vst.msk [vmem:[%s4 + $0x140] sm:$0xff] %vm2440, %v8337
  %8402 = vst.msk [vmem:[%s4 + $0x148] sm:$0xff] %vm2440, %v8338
  %8403 = vst.msk [vmem:[%s4 + $0x150] sm:$0xff] %vm2440, %v8339
  %8404 = vst.msk [vmem:[%s4 + $0x158] sm:$0xff] %vm2440, %v8340
  %8405 = vst.msk [vmem:[%s4 + $0x160] sm:$0xff] %vm2440, %v8341
  %8406 = vst.msk [vmem:[%s4 + $0x168] sm:$0xff] %vm2440, %v8342
  %8407 = vst.msk [vmem:[%s4 + $0x170] sm:$0xff] %vm2440, %v8343
  %8408 = vst.msk [vmem:[%s4 + $0x178] sm:$0xff] %vm2440, %v8344
  %8409 = vst.msk [vmem:[%s4 + $0x180] sm:$0xff] %vm2440, %v8345
  %8410 = vst.msk [vmem:[%s4 + $0x188] sm:$0xff] %vm2440, %v8346
  %8411 = vst.msk [vmem:[%s4 + $0x190] sm:$0xff] %vm2440, %v8347
  %8412 = vst.msk [vmem:[%s4 + $0x198] sm:$0xff] %vm2440, %v8348
  %8413 = vst.msk [vmem:[%s4 + $0x1a0] sm:$0xff] %vm2440, %v8349
  %8414 = vst.msk [vmem:[%s4 + $0x1a8] sm:$0xff] %vm2440, %v8350
  %8415 = vst.msk [vmem:[%s4 + $0x1b0] sm:$0xff] %vm2440, %v8351
  %8416 = vst.msk [vmem:[%s4 + $0x1b8] sm:$0xff] %vm2440, %v8352
  %8417 = vst.msk [vmem:[%s4 + $0x1c0] sm:$0xff] %vm2440, %v8353
  %8418 = vst.msk [vmem:[%s4 + $0x1c8] sm:$0xff] %vm2440, %v8354
  %8419 = vst.msk [vmem:[%s4 + $0x1d0] sm:$0xff] %vm2440, %v8355
  %8420 = vst.msk [vmem:[%s4 + $0x1d8] sm:$0xff] %vm2440, %v8356
  %8421 = vst.msk [vmem:[%s4 + $0x1e0] sm:$0xff] %vm2440, %v8357
  %8422 = vst.msk [vmem:[%s4 + $0x1e8] sm:$0xff] %vm2440, %v8358
  %8423 = vst.msk [vmem:[%s4 + $0x1f0] sm:$0xff] %vm2440, %v8359
  %8424 = vst.msk [vmem:[%s4 + $0x1f8] sm:$0xff] %vm2440, %v8360
  // Predicated region
  $region18: #{double_conv_block.1} parent=0 // pred_check
    _
  $region19: #{double_conv_block.1} parent=0 // pred_check_branch
    %8426 = sbr.rel (0) target = $region21
  $region20: #{double_conv_block.1} parent=0 // pred_region
    _
  $region21: #{double_conv_block.1} parent=0 // pred_fallthru
    _
  // Predicated region
  $region22: #{double_conv_block.1} parent=0 // pred_check
    _
  $region23: #{double_conv_block.1} parent=0 // pred_check_branch
    %8428 = sbr.rel (0) target = $region25
  $region24: #{double_conv_block.1} parent=0 // pred_region
    _
  $region25: #{double_conv_block.1} parent=0 // pred_fallthru
    _

</llo_original>
